<compile_context>
chip_gen: v7x
topology: tpu7x:2x2x1
jax: 0.10.0
libtpu: 0.0.40
codegen_flags: <defaults>
</compile_context>

<pallas_src>
import functools

import jax
import jax.numpy as jnp
from jax.experimental import pallas as pl
from jax.experimental.pallas import tpu as pltpu

EPS = 1e-5          # PyTorch LayerNorm default eps
BF16 = jnp.bfloat16


def _layernorm(y, gamma, beta):
    # statistics kept in f32 to match PyTorch LayerNorm numerics
    mean = jnp.mean(y, axis=-1, keepdims=True)
    var = jnp.mean(jnp.square(y - mean), axis=-1, keepdims=True)
    return (y - mean) * jax.lax.rsqrt(var + EPS) * gamma + beta


def _softmax_rows(s):
    # stable f32 softmax; reciprocal runs on the EUP slot
    m = jnp.max(s, axis=-1, keepdims=True)
    p = jnp.exp(s - m)
    denom = jnp.sum(p, axis=-1, keepdims=True)
    return p * pl.reciprocal(denom, approx=True)


# --------------------------------------------------------------------------
# Shared encoder block body (post-LN transformer block on a (T, D) f32 tile)
# --------------------------------------------------------------------------
def _encoder_block(x, params, num_heads):
    (wq, bq, wk, bk, wv, bv, wo, bo,
     g1, b1, w1, bf1, w2, bf2, g2, b2) = params
    T, D = x.shape
    xb = x.astype(BF16)

    attn = jnp.zeros((T, D), jnp.float32)
    for h in range(num_heads):                    # unrolled; weights sliced per head
        # 1/sqrt(hd) is folded into wq/bq at parameter-build time.
        q = jnp.dot(xb, wq[h], preferred_element_type=jnp.float32) + bq[h]
        k = jnp.dot(xb, wk[h], preferred_element_type=jnp.float32) + bk[h]
        v = jnp.dot(xb, wv[h], preferred_element_type=jnp.float32) + bv[h]
        s = jax.lax.dot_general(                   # q @ k^T without transposing k
            q.astype(BF16), k.astype(BF16),
            (((1,), (1,)), ((), ())), preferred_element_type=jnp.float32)
        p = _softmax_rows(s)                       # f32
        ctx = jnp.dot(p.astype(BF16), v.astype(BF16),
                      preferred_element_type=jnp.float32)          # (T, hd)
        attn = attn + jnp.dot(ctx.astype(BF16), wo[h],
                              preferred_element_type=jnp.float32)  # accumulate heads
    attn = attn + bo

    h1 = _layernorm(x + attn, g1, b1)              # residual + LN (dropout=identity)
    ff = jnp.dot(h1.astype(BF16), w1, preferred_element_type=jnp.float32) + bf1
    ff = jnp.maximum(ff, 0.0)                      # ReLU FFN
    ff = jnp.dot(ff.astype(BF16), w2, preferred_element_type=jnp.float32) + bf2
    return _layernorm(h1 + ff, g2, b2)


# --------------------------------------------------------------------------
# Kernel 1: feat_proj (Linear) + LayerNorm fused with encoder layer 0
# --------------------------------------------------------------------------
def first_block_kernel(num_heads, *refs):
    x_ref = refs[0]
    pw, pb, pg, pbt = (r[...] for r in refs[1:5])
    layer = tuple(r[...] for r in refs[5:-1])
    o_ref = refs[-1]

    x = x_ref[0]                                                  # (T, ch_in) f32
    y = jnp.dot(x.astype(BF16), pw, preferred_element_type=jnp.float32) + pb
    y = _layernorm(y, pg, pbt)
    o_ref[0] = _encoder_block(y, layer, num_heads)


# --------------------------------------------------------------------------
# Kernel 2: one RoomFeatureEncoder layer
# --------------------------------------------------------------------------
def encoder_layer_kernel(num_heads, *refs):
    x_ref = refs[0]
    layer = tuple(r[...] for r in refs[1:-1])
    o_ref = refs[-1]
    o_ref[0] = _encoder_block(x_ref[0], layer, num_heads)


# --------------------------------------------------------------------------
# Kernel 3: both ParametricPredictors (tr & volume) in one kernel
# --------------------------------------------------------------------------
def _conv1d_same(h, cw, cb, kernel_size):
    """'same' Conv1d over time on a (T, Cin) tile.

    Taps are built with pltpu.roll (XLU) + boundary masking; no zero-pad
    concatenate or unaligned sublane slices.  Correct for odd kernel_size
    (matches PyTorch padding=(K-1)//2)."""
    T = h.shape[0]
    pad = (kernel_size - 1) // 2
    row = jax.lax.broadcasted_iota(jnp.int32, (T, 1), 0)
    out = jnp.zeros((T, cw.shape[2]), jnp.float32)
    for kk in range(kernel_size):
        d = kk - pad                               # this tap reads h[t + d]
        if d == 0:
            tap = h
        else:
            rolled = pltpu.roll(h, shift=(-d) % T, axis=0)
            valid = jnp.logical_and(row + d >= 0, row + d < T)
            tap = jnp.where(valid, rolled, 0.0)
        out = out + jnp.dot(tap.astype(BF16), cw[kk],
                            preferred_element_type=jnp.float32)
    return out + cb


def predictor_pair_kernel(kernel_size, num_layers_dec, *refs):
    x_ref = refs[0]
    o_ref = refs[-1]
    wrefs = refs[1:-1]
    n_per = 4 * num_layers_dec + 2                 # per-predictor param count

    x = x_ref[0]                                                  # (T, D) f32
    outs = []
    for pidx in range(2):                          # 0 -> tr, 1 -> volume
        prefs = wrefs[pidx * n_per:(pidx + 1) * n_per]
        h = x
        for l in range(num_layers_dec):
            cw, cb, g, beta = (r[...] for r in prefs[4 * l:4 * l + 4])
            h = _conv1d_same(h, cw, cb, kernel_size)
            h = jnp.maximum(h, 0.0)                # ReLU
            h = _layernorm(h, g, beta)
            # dropout_decoder -> identity (eval mode)
        lw, lb = prefs[-2][...], prefs[-1][...]    # (ch_out, C), (ch_out, 1)
        # lane-dense output: contract the channel dim, keep T on the lane axis
        y = jax.lax.dot_general(
            lw, h.astype(BF16), (((1,), (1,)), ((), ())),
            preferred_element_type=jnp.float32) + lb               # (ch_out, T)
        outs.append(y)
    o_ref[0] = jnp.concatenate(outs, axis=0)                       # (2*ch_out, T)


# --------------------------------------------------------------------------
# pallas_call helper: per-batch grid, whole-weight blocks
# --------------------------------------------------------------------------
def _per_batch_call(kernel_fn, x, weights, inner_out_shape):
    B = x.shape[0]
    xb = (1,) + tuple(x.shape[1:])
    ob = (1,) + tuple(inner_out_shape)
    in_specs = [pl.BlockSpec(xb, lambda i: (i,) + (0,) * (len(xb) - 1))]
    in_specs += [pl.BlockSpec(tuple(w.shape), lambda i, nd=w.ndim: (0,) * nd)
                 for w in weights]
    return pl.pallas_call(
        kernel_fn,
        out_shape=jax.ShapeDtypeStruct((B,) + tuple(inner_out_shape), jnp.float32),
        grid=(B,),
        in_specs=in_specs,
        out_specs=pl.BlockSpec(ob, lambda i: (i,) + (0,) * (len(ob) - 1)),
        compiler_params=pltpu.CompilerParams(
            dimension_semantics=("parallel",)),    # B >= 2 -> both TCs on v7x
    )(x, *weights)


# --------------------------------------------------------------------------
# Parameter construction (deterministic, synthetic); matmul weights stored bf16
# --------------------------------------------------------------------------
def init_params(key, *, ch_in, embed_dim, num_heads, ch_scale, num_layers,
                num_channels_dec, kernel_size_dec, num_layers_dec, ch_out):
    keys = iter(jax.random.split(key, 256))

    def nrm(shape):
        return jax.random.normal(next(keys), shape, jnp.float32) * 0.02

    D = embed_dim
    H = num_heads
    hd = D // H
    Dff = ch_scale * D
    C = num_channels_dec
    scale = 1.0 / float(hd) ** 0.5

    params = {}
    # feat_proj Linear(ch_in -> D) + LayerNorm(D)
    params["feat_proj_ln"] = (
        nrm((ch_in, D)).astype(BF16),
        jnp.zeros((1, D), jnp.float32),
        jnp.ones((1, D), jnp.float32),
        jnp.zeros((1, D), jnp.float32),
    )

    def qkv_heads(w):                              # (D, D) -> (H, D, hd)
        return jnp.transpose(w.reshape(D, H, hd), (1, 0, 2))

    enc = []
    for _ in range(num_layers):
        enc.append((
            (qkv_heads(nrm((D, D))) * scale).astype(BF16),    # wq (1/sqrt(hd) folded)
            jnp.zeros((H, 1, hd), jnp.float32) * scale,       # bq (folded; zero)
            qkv_heads(nrm((D, D))).astype(BF16),              # wk
            jnp.zeros((H, 1, hd), jnp.float32),               # bk
            qkv_heads(nrm((D, D))).astype(BF16),              # wv
            jnp.zeros((H, 1, hd), jnp.float32),               # bv
            nrm((D, D)).reshape(H, hd, D).astype(BF16),       # wo (per-head rows)
            jnp.zeros((1, D), jnp.float32),                   # bo
            jnp.ones((1, D), jnp.float32), jnp.zeros((1, D), jnp.float32),   # LN1
            nrm((D, Dff)).astype(BF16), jnp.zeros((1, Dff), jnp.float32),    # FFN1
            nrm((Dff, D)).astype(BF16), jnp.zeros((1, D), jnp.float32),      # FFN2
            jnp.ones((1, D), jnp.float32), jnp.zeros((1, D), jnp.float32),   # LN2
        ))
    params["encoder_layers"] = enc

    def predictor_params():
        p = []
        in_ch = D
        for _ in range(num_layers_dec):
            p += [
                nrm((kernel_size_dec, in_ch, C)).astype(BF16),  # conv W (K, Cin, Cout)
                jnp.zeros((1, C), jnp.float32),                 # conv bias
                jnp.ones((1, C), jnp.float32),                  # LN gamma
                jnp.zeros((1, C), jnp.float32),                 # LN beta
            ]
            in_ch = C
        p += [nrm((ch_out, C)).astype(BF16),                    # final Linear (out, C)
              jnp.zeros((ch_out, 1), jnp.float32)]              # final bias
        return tuple(p)

    params["pred_tr"] = predictor_params()
    params["pred_vol"] = predictor_params()
    return params


# --------------------------------------------------------------------------
# Full forward (glue in plain JAX, hot path in Pallas)
# --------------------------------------------------------------------------
def joint_estimator_forward(source, params, *, num_heads, kernel_size_dec,
                            num_layers_dec, ch_out):
    # source: (B, freq_bins=ch_in, seq_len) -- PyTorch-style gammatone features
    x = jnp.transpose(source, (0, 2, 1))                        # (B, T, ch_in)
    B, T, _ = x.shape
    D = params["feat_proj_ln"][0].shape[1]

    enc_layers = params["encoder_layers"]

    # feat_proj + LayerNorm fused with the first encoder layer (single launch)
    w0 = params["feat_proj_ln"] + enc_layers[0]
    x = _per_batch_call(
        functools.partial(first_block_kernel, num_heads), x, w0, (T, D))
    for lp in enc_layers[1:]:
        x = _per_batch_call(
            functools.partial(encoder_layer_kernel, num_heads), x, lp, (T, D))

    # Both parametric predictors fused; lane-dense (2*ch_out, T) output block
    pw = params["pred_tr"] + params["pred_vol"]
    preds = _per_batch_call(
        functools.partial(predictor_pair_kernel, kernel_size_dec, num_layers_dec),
        x, pw, (2 * ch_out, T))                                  # (B, 2*ch_out, T)

    tr_hat = preds[:, :ch_out, :]
    volume_hat = preds[:, ch_out:, :]
    if ch_out == 1:
        # matches reference .squeeze() for B > 1 and keeps the batch dim for B == 1
        tr_hat = tr_hat[:, 0, :]                                 # (B, T)
        volume_hat = volume_hat[:, 0, :]                         # (B, T)
    return {"tr_hat": tr_hat, "volume_hat": volume_hat, "padding_mask": None}


if __name__ == "__main__":
    # Small config consistent with the module (scaled down).
    B, CH_IN, T = 2, 16, 16
    EMBED_DIM, NUM_HEADS, CH_SCALE, NUM_LAYERS = 64, 4, 4, 2
    NUM_CH_DEC, K_DEC, NUM_LAYERS_DEC, CH_OUT = 32, 3, 3, 1

    key = jax.random.PRNGKey(0)
    k_src, k_par = jax.random.split(key)
    source = jax.random.normal(k_src, (B, CH_IN, T), jnp.float32)

    params = init_params(
        k_par, ch_in=CH_IN, embed_dim=EMBED_DIM, num_heads=NUM_HEADS,
        ch_scale=CH_SCALE, num_layers=NUM_LAYERS, num_channels_dec=NUM_CH_DEC,
        kernel_size_dec=K_DEC, num_layers_dec=NUM_LAYERS_DEC, ch_out=CH_OUT,
    )

    fwd = jax.jit(functools.partial(
        joint_estimator_forward, num_heads=NUM_HEADS,
        kernel_size_dec=K_DEC, num_layers_dec=NUM_LAYERS_DEC, ch_out=CH_OUT))
    out = fwd(source, params)
    jax.block_until_ready(out["tr_hat"])
    jax.block_until_ready(out["volume_hat"])

    assert out["tr_hat"].shape == (B, T)
    assert out["volume_hat"].shape == (B, T)
    assert out["padding_mask"] is None
    print("KERNEL_OK")
</pallas_src>

<mosaic_0001>
module attributes {stable_mosaic.version = 11 : i64} {
  func.func @first_block_kernel(%arg0: i32, %arg1: memref<1x16x16xf32, #tpu.memory_space<vmem>>, %arg2: memref<16x64xbf16, #tpu.memory_space<vmem>>, %arg3: memref<1x64xf32, #tpu.memory_space<vmem>>, %arg4: memref<1x64xf32, #tpu.memory_space<vmem>>, %arg5: memref<1x64xf32, #tpu.memory_space<vmem>>, %arg6: memref<4x64x16xbf16, #tpu.memory_space<vmem>>, %arg7: memref<4x1x16xf32, #tpu.memory_space<vmem>>, %arg8: memref<4x64x16xbf16, #tpu.memory_space<vmem>>, %arg9: memref<4x1x16xf32, #tpu.memory_space<vmem>>, %arg10: memref<4x64x16xbf16, #tpu.memory_space<vmem>>, %arg11: memref<4x1x16xf32, #tpu.memory_space<vmem>>, %arg12: memref<4x16x64xbf16, #tpu.memory_space<vmem>>, %arg13: memref<1x64xf32, #tpu.memory_space<vmem>>, %arg14: memref<1x64xf32, #tpu.memory_space<vmem>>, %arg15: memref<1x64xf32, #tpu.memory_space<vmem>>, %arg16: memref<64x256xbf16, #tpu.memory_space<vmem>>, %arg17: memref<1x256xf32, #tpu.memory_space<vmem>>, %arg18: memref<256x64xbf16, #tpu.memory_space<vmem>>, %arg19: memref<1x64xf32, #tpu.memory_space<vmem>>, %arg20: memref<1x64xf32, #tpu.memory_space<vmem>>, %arg21: memref<1x64xf32, #tpu.memory_space<vmem>>, %arg22: memref<1x16x64xf32, #tpu.memory_space<vmem>>) attributes {dimension_semantics = [#tpu.dimension_semantics<parallel>], iteration_bounds = array<i64: 2>, scalar_prefetch = 0 : i64, scratch_operands = 0 : i64, tpu.core_type = #tpu.core_type<tc>, window_params = [{transform_indices = @transform_0, window_bounds = array<i64: 1, 16, 16>}, {pipeline_mode = #tpu.pipeline_mode<synchronous>, transform_indices = @transform_1, window_bounds = array<i64: 16, 64>}, {pipeline_mode = #tpu.pipeline_mode<synchronous>, transform_indices = @transform_2, window_bounds = array<i64: 1, 64>}, {pipeline_mode = #tpu.pipeline_mode<synchronous>, transform_indices = @transform_3, window_bounds = array<i64: 1, 64>}, {pipeline_mode = #tpu.pipeline_mode<synchronous>, transform_indices = @transform_4, window_bounds = array<i64: 1, 64>}, {pipeline_mode = #tpu.pipeline_mode<synchronous>, transform_indices = @transform_5, window_bounds = array<i64: 4, 64, 16>}, {pipeline_mode = #tpu.pipeline_mode<synchronous>, transform_indices = @transform_6, window_bounds = array<i64: 4, 1, 16>}, {pipeline_mode = #tpu.pipeline_mode<synchronous>, transform_indices = @transform_7, window_bounds = array<i64: 4, 64, 16>}, {pipeline_mode = #tpu.pipeline_mode<synchronous>, transform_indices = @transform_8, window_bounds = array<i64: 4, 1, 16>}, {pipeline_mode = #tpu.pipeline_mode<synchronous>, transform_indices = @transform_9, window_bounds = array<i64: 4, 64, 16>}, {pipeline_mode = #tpu.pipeline_mode<synchronous>, transform_indices = @transform_10, window_bounds = array<i64: 4, 1, 16>}, {pipeline_mode = #tpu.pipeline_mode<synchronous>, transform_indices = @transform_11, window_bounds = array<i64: 4, 16, 64>}, {pipeline_mode = #tpu.pipeline_mode<synchronous>, transform_indices = @transform_12, window_bounds = array<i64: 1, 64>}, {pipeline_mode = #tpu.pipeline_mode<synchronous>, transform_indices = @transform_13, window_bounds = array<i64: 1, 64>}, {pipeline_mode = #tpu.pipeline_mode<synchronous>, transform_indices = @transform_14, window_bounds = array<i64: 1, 64>}, {pipeline_mode = #tpu.pipeline_mode<synchronous>, transform_indices = @transform_15, window_bounds = array<i64: 64, 256>}, {pipeline_mode = #tpu.pipeline_mode<synchronous>, transform_indices = @transform_16, window_bounds = array<i64: 1, 256>}, {pipeline_mode = #tpu.pipeline_mode<synchronous>, transform_indices = @transform_17, window_bounds = array<i64: 256, 64>}, {pipeline_mode = #tpu.pipeline_mode<synchronous>, transform_indices = @transform_18, window_bounds = array<i64: 1, 64>}, {pipeline_mode = #tpu.pipeline_mode<synchronous>, transform_indices = @transform_19, window_bounds = array<i64: 1, 64>}, {pipeline_mode = #tpu.pipeline_mode<synchronous>, transform_indices = @transform_20, window_bounds = array<i64: 1, 64>}, {transform_indices = @transform_21, window_bounds = array<i64: 1, 16, 64>}]} {
    %c0 = arith.constant 0 : index
    %c0_0 = arith.constant 0 : index
    %0 = vector.load %arg2[%c0, %c0_0] : memref<16x64xbf16, #tpu.memory_space<vmem>>, vector<16x64xbf16>
    %c0_1 = arith.constant 0 : index
    %c0_2 = arith.constant 0 : index
    %1 = vector.load %arg3[%c0_1, %c0_2] : memref<1x64xf32, #tpu.memory_space<vmem>>, vector<1x64xf32>
    %c0_3 = arith.constant 0 : index
    %c0_4 = arith.constant 0 : index
    %2 = vector.load %arg4[%c0_3, %c0_4] : memref<1x64xf32, #tpu.memory_space<vmem>>, vector<1x64xf32>
    %c0_5 = arith.constant 0 : index
    %c0_6 = arith.constant 0 : index
    %3 = vector.load %arg5[%c0_5, %c0_6] : memref<1x64xf32, #tpu.memory_space<vmem>>, vector<1x64xf32>
    %c0_7 = arith.constant 0 : index
    %c0_8 = arith.constant 0 : index
    %c0_9 = arith.constant 0 : index
    %4 = vector.load %arg6[%c0_7, %c0_8, %c0_9] : memref<4x64x16xbf16, #tpu.memory_space<vmem>>, vector<4x64x16xbf16>
    %c0_10 = arith.constant 0 : index
    %c0_11 = arith.constant 0 : index
    %c0_12 = arith.constant 0 : index
    %5 = vector.load %arg7[%c0_10, %c0_11, %c0_12] : memref<4x1x16xf32, #tpu.memory_space<vmem>>, vector<4x1x16xf32>
    %c0_13 = arith.constant 0 : index
    %c0_14 = arith.constant 0 : index
    %c0_15 = arith.constant 0 : index
    %6 = vector.load %arg8[%c0_13, %c0_14, %c0_15] : memref<4x64x16xbf16, #tpu.memory_space<vmem>>, vector<4x64x16xbf16>
    %c0_16 = arith.constant 0 : index
    %c0_17 = arith.constant 0 : index
    %c0_18 = arith.constant 0 : index
    %7 = vector.load %arg9[%c0_16, %c0_17, %c0_18] : memref<4x1x16xf32, #tpu.memory_space<vmem>>, vector<4x1x16xf32>
    %c0_19 = arith.constant 0 : index
    %c0_20 = arith.constant 0 : index
    %c0_21 = arith.constant 0 : index
    %8 = vector.load %arg10[%c0_19, %c0_20, %c0_21] : memref<4x64x16xbf16, #tpu.memory_space<vmem>>, vector<4x64x16xbf16>
    %c0_22 = arith.constant 0 : index
    %c0_23 = arith.constant 0 : index
    %c0_24 = arith.constant 0 : index
    %9 = vector.load %arg11[%c0_22, %c0_23, %c0_24] : memref<4x1x16xf32, #tpu.memory_space<vmem>>, vector<4x1x16xf32>
    %c0_25 = arith.constant 0 : index
    %c0_26 = arith.constant 0 : index
    %c0_27 = arith.constant 0 : index
    %10 = vector.load %arg12[%c0_25, %c0_26, %c0_27] : memref<4x16x64xbf16, #tpu.memory_space<vmem>>, vector<4x16x64xbf16>
    %c0_28 = arith.constant 0 : index
    %c0_29 = arith.constant 0 : index
    %11 = vector.load %arg13[%c0_28, %c0_29] : memref<1x64xf32, #tpu.memory_space<vmem>>, vector<1x64xf32>
    %c0_30 = arith.constant 0 : index
    %c0_31 = arith.constant 0 : index
    %12 = vector.load %arg14[%c0_30, %c0_31] : memref<1x64xf32, #tpu.memory_space<vmem>>, vector<1x64xf32>
    %c0_32 = arith.constant 0 : index
    %c0_33 = arith.constant 0 : index
    %13 = vector.load %arg15[%c0_32, %c0_33] : memref<1x64xf32, #tpu.memory_space<vmem>>, vector<1x64xf32>
    %c0_34 = arith.constant 0 : index
    %c0_35 = arith.constant 0 : index
    %14 = vector.load %arg16[%c0_34, %c0_35] : memref<64x256xbf16, #tpu.memory_space<vmem>>, vector<64x256xbf16>
    %c0_36 = arith.constant 0 : index
    %c0_37 = arith.constant 0 : index
    %15 = vector.load %arg17[%c0_36, %c0_37] : memref<1x256xf32, #tpu.memory_space<vmem>>, vector<1x256xf32>
    %c0_38 = arith.constant 0 : index
    %c0_39 = arith.constant 0 : index
    %16 = vector.load %arg18[%c0_38, %c0_39] : memref<256x64xbf16, #tpu.memory_space<vmem>>, vector<256x64xbf16>
    %c0_40 = arith.constant 0 : index
    %c0_41 = arith.constant 0 : index
    %17 = vector.load %arg19[%c0_40, %c0_41] : memref<1x64xf32, #tpu.memory_space<vmem>>, vector<1x64xf32>
    %c0_42 = arith.constant 0 : index
    %c0_43 = arith.constant 0 : index
    %18 = vector.load %arg20[%c0_42, %c0_43] : memref<1x64xf32, #tpu.memory_space<vmem>>, vector<1x64xf32>
    %c0_44 = arith.constant 0 : index
    %c0_45 = arith.constant 0 : index
    %19 = vector.load %arg21[%c0_44, %c0_45] : memref<1x64xf32, #tpu.memory_space<vmem>>, vector<1x64xf32>
    %c0_46 = arith.constant 0 : index
    %c0_47 = arith.constant 0 : index
    %c0_48 = arith.constant 0 : index
    %20 = vector.load %arg1[%c0_46, %c0_47, %c0_48] : memref<1x16x16xf32, #tpu.memory_space<vmem>>, vector<1x16x16xf32>
    %21 = vector.shape_cast %20 : vector<1x16x16xf32> to vector<16x16xf32>
    %22 = arith.truncf %21 : vector<16x16xf32> to vector<16x16xbf16>
    %cst = arith.constant dense<0.000000e+00> : vector<16x64xf32>
    %23 = tpu.matmul %22, %0, %cst {dimension_numbers = #tpu.dot_dimension_numbers<[1], [0], [0], [1], [0, 0, 1, 1], [], []>} : vector<16x16xbf16>, vector<16x64xbf16>, vector<16x64xf32> -> vector<16x64xf32>
    %24 = vector.broadcast %1 : vector<1x64xf32> to vector<16x64xf32>
    %25 = arith.addf %23, %24 : vector<16x64xf32>
    %cst_49 = arith.constant dense<0.000000e+00> : vector<16xf32>
    %26 = vector.multi_reduction <add>, %25, %cst_49 [1] : vector<16x64xf32> to vector<16xf32>
    %27 = vector.shape_cast %26 : vector<16xf32> to vector<16x1xf32>
    %cst_50 = arith.constant 6.400000e+01 : f32
    %28 = vector.broadcast %cst_50 : f32 to vector<16x1xf32>
    %29 = arith.divf %27, %28 : vector<16x1xf32>
    %30 = vector.broadcast %29 : vector<16x1xf32> to vector<16x64xf32>
    %31 = arith.subf %25, %30 : vector<16x64xf32>
    %32 = arith.mulf %31, %31 : vector<16x64xf32>
    %cst_51 = arith.constant dense<0.000000e+00> : vector<16xf32>
    %33 = vector.multi_reduction <add>, %32, %cst_51 [1] : vector<16x64xf32> to vector<16xf32>
    %34 = vector.shape_cast %33 : vector<16xf32> to vector<16x1xf32>
    %cst_52 = arith.constant 6.400000e+01 : f32
    %35 = vector.broadcast %cst_52 : f32 to vector<16x1xf32>
    %36 = arith.divf %34, %35 : vector<16x1xf32>
    %37 = vector.broadcast %29 : vector<16x1xf32> to vector<16x64xf32>
    %38 = arith.subf %25, %37 : vector<16x64xf32>
    %cst_53 = arith.constant 9.99999974E-6 : f32
    %39 = vector.broadcast %cst_53 : f32 to vector<16x1xf32>
    %40 = arith.addf %36, %39 : vector<16x1xf32>
    %41 = math.rsqrt %40 : vector<16x1xf32>
    %42 = vector.broadcast %41 : vector<16x1xf32> to vector<16x64xf32>
    %43 = arith.mulf %38, %42 : vector<16x64xf32>
    %44 = vector.broadcast %2 : vector<1x64xf32> to vector<16x64xf32>
    %45 = arith.mulf %43, %44 : vector<16x64xf32>
    %46 = vector.broadcast %3 : vector<1x64xf32> to vector<16x64xf32>
    %47 = arith.addf %45, %46 : vector<16x64xf32>
    %48 = arith.truncf %47 : vector<16x64xf32> to vector<16x64xbf16>
    %cst_54 = arith.constant 0.000000e+00 : f32
    %49 = vector.broadcast %cst_54 : f32 to vector<16x64xf32>
    %50 = vector.extract_strided_slice %4 {offsets = [0, 0, 0], sizes = [1, 64, 16], strides = [1, 1, 1]} : vector<4x64x16xbf16> to vector<1x64x16xbf16>
    %51 = vector.shape_cast %50 : vector<1x64x16xbf16> to vector<64x16xbf16>
    %cst_55 = arith.constant dense<0.000000e+00> : vector<16x16xf32>
    %52 = tpu.matmul %48, %51, %cst_55 {dimension_numbers = #tpu.dot_dimension_numbers<[1], [0], [0], [1], [0, 0, 1, 1], [], []>} : vector<16x64xbf16>, vector<64x16xbf16>, vector<16x16xf32> -> vector<16x16xf32>
    %53 = vector.extract_strided_slice %5 {offsets = [0, 0, 0], sizes = [1, 1, 16], strides = [1, 1, 1]} : vector<4x1x16xf32> to vector<1x1x16xf32>
    %54 = vector.shape_cast %53 : vector<1x1x16xf32> to vector<1x16xf32>
    %55 = vector.broadcast %54 : vector<1x16xf32> to vector<16x16xf32>
    %56 = arith.addf %52, %55 : vector<16x16xf32>
    %57 = vector.extract_strided_slice %6 {offsets = [0, 0, 0], sizes = [1, 64, 16], strides = [1, 1, 1]} : vector<4x64x16xbf16> to vector<1x64x16xbf16>
    %58 = vector.shape_cast %57 : vector<1x64x16xbf16> to vector<64x16xbf16>
    %cst_56 = arith.constant dense<0.000000e+00> : vector<16x16xf32>
    %59 = tpu.matmul %48, %58, %cst_56 {dimension_numbers = #tpu.dot_dimension_numbers<[1], [0], [0], [1], [0, 0, 1, 1], [], []>} : vector<16x64xbf16>, vector<64x16xbf16>, vector<16x16xf32> -> vector<16x16xf32>
    %60 = vector.extract_strided_slice %7 {offsets = [0, 0, 0], sizes = [1, 1, 16], strides = [1, 1, 1]} : vector<4x1x16xf32> to vector<1x1x16xf32>
    %61 = vector.shape_cast %60 : vector<1x1x16xf32> to vector<1x16xf32>
    %62 = vector.broadcast %61 : vector<1x16xf32> to vector<16x16xf32>
    %63 = arith.addf %59, %62 : vector<16x16xf32>
    %64 = vector.extract_strided_slice %8 {offsets = [0, 0, 0], sizes = [1, 64, 16], strides = [1, 1, 1]} : vector<4x64x16xbf16> to vector<1x64x16xbf16>
    %65 = vector.shape_cast %64 : vector<1x64x16xbf16> to vector<64x16xbf16>
    %cst_57 = arith.constant dense<0.000000e+00> : vector<16x16xf32>
    %66 = tpu.matmul %48, %65, %cst_57 {dimension_numbers = #tpu.dot_dimension_numbers<[1], [0], [0], [1], [0, 0, 1, 1], [], []>} : vector<16x64xbf16>, vector<64x16xbf16>, vector<16x16xf32> -> vector<16x16xf32>
    %67 = vector.extract_strided_slice %9 {offsets = [0, 0, 0], sizes = [1, 1, 16], strides = [1, 1, 1]} : vector<4x1x16xf32> to vector<1x1x16xf32>
    %68 = vector.shape_cast %67 : vector<1x1x16xf32> to vector<1x16xf32>
    %69 = vector.broadcast %68 : vector<1x16xf32> to vector<16x16xf32>
    %70 = arith.addf %66, %69 : vector<16x16xf32>
    %71 = arith.truncf %56 : vector<16x16xf32> to vector<16x16xbf16>
    %72 = arith.truncf %63 : vector<16x16xf32> to vector<16x16xbf16>
    %cst_58 = arith.constant dense<0.000000e+00> : vector<16x16xf32>
    %73 = tpu.matmul %71, %72, %cst_58 {dimension_numbers = #tpu.dot_dimension_numbers<[1], [1], [0], [0], [0, 0, 1, 0], [], []>} : vector<16x16xbf16>, vector<16x16xbf16>, vector<16x16xf32> -> vector<16x16xf32>
    %cst_59 = arith.constant dense<0xFF800000> : vector<16xf32>
    %74 = vector.multi_reduction <maximumf>, %73, %cst_59 [1] : vector<16x16xf32> to vector<16xf32>
    %75 = vector.shape_cast %74 : vector<16xf32> to vector<16x1xf32>
    %76 = vector.broadcast %75 : vector<16x1xf32> to vector<16x16xf32>
    %77 = arith.subf %73, %76 : vector<16x16xf32>
    %78 = math.exp %77 : vector<16x16xf32>
    %cst_60 = arith.constant dense<0.000000e+00> : vector<16xf32>
    %79 = vector.multi_reduction <add>, %78, %cst_60 [1] : vector<16x16xf32> to vector<16xf32>
    %80 = vector.shape_cast %79 : vector<16xf32> to vector<16x1xf32>
    %81 = tpu.reciprocal %80 {approx = true} : vector<16x1xf32> -> vector<16x1xf32>
    %82 = vector.broadcast %81 : vector<16x1xf32> to vector<16x16xf32>
    %83 = arith.mulf %78, %82 : vector<16x16xf32>
    %84 = arith.truncf %83 : vector<16x16xf32> to vector<16x16xbf16>
    %85 = arith.truncf %70 : vector<16x16xf32> to vector<16x16xbf16>
    %cst_61 = arith.constant dense<0.000000e+00> : vector<16x16xf32>
    %86 = tpu.matmul %84, %85, %cst_61 {dimension_numbers = #tpu.dot_dimension_numbers<[1], [0], [0], [1], [0, 0, 1, 1], [], []>} : vector<16x16xbf16>, vector<16x16xbf16>, vector<16x16xf32> -> vector<16x16xf32>
    %87 = arith.truncf %86 : vector<16x16xf32> to vector<16x16xbf16>
    %88 = vector.extract_strided_slice %10 {offsets = [0, 0, 0], sizes = [1, 16, 64], strides = [1, 1, 1]} : vector<4x16x64xbf16> to vector<1x16x64xbf16>
    %89 = vector.shape_cast %88 : vector<1x16x64xbf16> to vector<16x64xbf16>
    %cst_62 = arith.constant dense<0.000000e+00> : vector<16x64xf32>
    %90 = tpu.matmul %87, %89, %cst_62 {dimension_numbers = #tpu.dot_dimension_numbers<[1], [0], [0], [1], [0, 0, 1, 1], [], []>} : vector<16x16xbf16>, vector<16x64xbf16>, vector<16x64xf32> -> vector<16x64xf32>
    %91 = arith.addf %49, %90 : vector<16x64xf32>
    %92 = vector.extract_strided_slice %4 {offsets = [1, 0, 0], sizes = [1, 64, 16], strides = [1, 1, 1]} : vector<4x64x16xbf16> to vector<1x64x16xbf16>
    %93 = vector.shape_cast %92 : vector<1x64x16xbf16> to vector<64x16xbf16>
    %cst_63 = arith.constant dense<0.000000e+00> : vector<16x16xf32>
    %94 = tpu.matmul %48, %93, %cst_63 {dimension_numbers = #tpu.dot_dimension_numbers<[1], [0], [0], [1], [0, 0, 1, 1], [], []>} : vector<16x64xbf16>, vector<64x16xbf16>, vector<16x16xf32> -> vector<16x16xf32>
    %95 = vector.extract_strided_slice %5 {offsets = [1, 0, 0], sizes = [1, 1, 16], strides = [1, 1, 1]} : vector<4x1x16xf32> to vector<1x1x16xf32>
    %96 = vector.shape_cast %95 : vector<1x1x16xf32> to vector<1x16xf32>
    %97 = vector.broadcast %96 : vector<1x16xf32> to vector<16x16xf32>
    %98 = arith.addf %94, %97 : vector<16x16xf32>
    %99 = vector.extract_strided_slice %6 {offsets = [1, 0, 0], sizes = [1, 64, 16], strides = [1, 1, 1]} : vector<4x64x16xbf16> to vector<1x64x16xbf16>
    %100 = vector.shape_cast %99 : vector<1x64x16xbf16> to vector<64x16xbf16>
    %cst_64 = arith.constant dense<0.000000e+00> : vector<16x16xf32>
    %101 = tpu.matmul %48, %100, %cst_64 {dimension_numbers = #tpu.dot_dimension_numbers<[1], [0], [0], [1], [0, 0, 1, 1], [], []>} : vector<16x64xbf16>, vector<64x16xbf16>, vector<16x16xf32> -> vector<16x16xf32>
    %102 = vector.extract_strided_slice %7 {offsets = [1, 0, 0], sizes = [1, 1, 16], strides = [1, 1, 1]} : vector<4x1x16xf32> to vector<1x1x16xf32>
    %103 = vector.shape_cast %102 : vector<1x1x16xf32> to vector<1x16xf32>
    %104 = vector.broadcast %103 : vector<1x16xf32> to vector<16x16xf32>
    %105 = arith.addf %101, %104 : vector<16x16xf32>
    %106 = vector.extract_strided_slice %8 {offsets = [1, 0, 0], sizes = [1, 64, 16], strides = [1, 1, 1]} : vector<4x64x16xbf16> to vector<1x64x16xbf16>
    %107 = vector.shape_cast %106 : vector<1x64x16xbf16> to vector<64x16xbf16>
    %cst_65 = arith.constant dense<0.000000e+00> : vector<16x16xf32>
    %108 = tpu.matmul %48, %107, %cst_65 {dimension_numbers = #tpu.dot_dimension_numbers<[1], [0], [0], [1], [0, 0, 1, 1], [], []>} : vector<16x64xbf16>, vector<64x16xbf16>, vector<16x16xf32> -> vector<16x16xf32>
    %109 = vector.extract_strided_slice %9 {offsets = [1, 0, 0], sizes = [1, 1, 16], strides = [1, 1, 1]} : vector<4x1x16xf32> to vector<1x1x16xf32>
    %110 = vector.shape_cast %109 : vector<1x1x16xf32> to vector<1x16xf32>
    %111 = vector.broadcast %110 : vector<1x16xf32> to vector<16x16xf32>
    %112 = arith.addf %108, %111 : vector<16x16xf32>
    %113 = arith.truncf %98 : vector<16x16xf32> to vector<16x16xbf16>
    %114 = arith.truncf %105 : vector<16x16xf32> to vector<16x16xbf16>
    %cst_66 = arith.constant dense<0.000000e+00> : vector<16x16xf32>
    %115 = tpu.matmul %113, %114, %cst_66 {dimension_numbers = #tpu.dot_dimension_numbers<[1], [1], [0], [0], [0, 0, 1, 0], [], []>} : vector<16x16xbf16>, vector<16x16xbf16>, vector<16x16xf32> -> vector<16x16xf32>
    %cst_67 = arith.constant dense<0xFF800000> : vector<16xf32>
    %116 = vector.multi_reduction <maximumf>, %115, %cst_67 [1] : vector<16x16xf32> to vector<16xf32>
    %117 = vector.shape_cast %116 : vector<16xf32> to vector<16x1xf32>
    %118 = vector.broadcast %117 : vector<16x1xf32> to vector<16x16xf32>
    %119 = arith.subf %115, %118 : vector<16x16xf32>
    %120 = math.exp %119 : vector<16x16xf32>
    %cst_68 = arith.constant dense<0.000000e+00> : vector<16xf32>
    %121 = vector.multi_reduction <add>, %120, %cst_68 [1] : vector<16x16xf32> to vector<16xf32>
    %122 = vector.shape_cast %121 : vector<16xf32> to vector<16x1xf32>
    %123 = tpu.reciprocal %122 {approx = true} : vector<16x1xf32> -> vector<16x1xf32>
    %124 = vector.broadcast %123 : vector<16x1xf32> to vector<16x16xf32>
    %125 = arith.mulf %120, %124 : vector<16x16xf32>
    %126 = arith.truncf %125 : vector<16x16xf32> to vector<16x16xbf16>
    %127 = arith.truncf %112 : vector<16x16xf32> to vector<16x16xbf16>
    %cst_69 = arith.constant dense<0.000000e+00> : vector<16x16xf32>
    %128 = tpu.matmul %126, %127, %cst_69 {dimension_numbers = #tpu.dot_dimension_numbers<[1], [0], [0], [1], [0, 0, 1, 1], [], []>} : vector<16x16xbf16>, vector<16x16xbf16>, vector<16x16xf32> -> vector<16x16xf32>
    %129 = arith.truncf %128 : vector<16x16xf32> to vector<16x16xbf16>
    %130 = vector.extract_strided_slice %10 {offsets = [1, 0, 0], sizes = [1, 16, 64], strides = [1, 1, 1]} : vector<4x16x64xbf16> to vector<1x16x64xbf16>
    %131 = vector.shape_cast %130 : vector<1x16x64xbf16> to vector<16x64xbf16>
    %cst_70 = arith.constant dense<0.000000e+00> : vector<16x64xf32>
    %132 = tpu.matmul %129, %131, %cst_70 {dimension_numbers = #tpu.dot_dimension_numbers<[1], [0], [0], [1], [0, 0, 1, 1], [], []>} : vector<16x16xbf16>, vector<16x64xbf16>, vector<16x64xf32> -> vector<16x64xf32>
    %133 = arith.addf %91, %132 : vector<16x64xf32>
    %134 = vector.extract_strided_slice %4 {offsets = [2, 0, 0], sizes = [1, 64, 16], strides = [1, 1, 1]} : vector<4x64x16xbf16> to vector<1x64x16xbf16>
    %135 = vector.shape_cast %134 : vector<1x64x16xbf16> to vector<64x16xbf16>
    %cst_71 = arith.constant dense<0.000000e+00> : vector<16x16xf32>
    %136 = tpu.matmul %48, %135, %cst_71 {dimension_numbers = #tpu.dot_dimension_numbers<[1], [0], [0], [1], [0, 0, 1, 1], [], []>} : vector<16x64xbf16>, vector<64x16xbf16>, vector<16x16xf32> -> vector<16x16xf32>
    %137 = vector.extract_strided_slice %5 {offsets = [2, 0, 0], sizes = [1, 1, 16], strides = [1, 1, 1]} : vector<4x1x16xf32> to vector<1x1x16xf32>
    %138 = vector.shape_cast %137 : vector<1x1x16xf32> to vector<1x16xf32>
    %139 = vector.broadcast %138 : vector<1x16xf32> to vector<16x16xf32>
    %140 = arith.addf %136, %139 : vector<16x16xf32>
    %141 = vector.extract_strided_slice %6 {offsets = [2, 0, 0], sizes = [1, 64, 16], strides = [1, 1, 1]} : vector<4x64x16xbf16> to vector<1x64x16xbf16>
    %142 = vector.shape_cast %141 : vector<1x64x16xbf16> to vector<64x16xbf16>
    %cst_72 = arith.constant dense<0.000000e+00> : vector<16x16xf32>
    %143 = tpu.matmul %48, %142, %cst_72 {dimension_numbers = #tpu.dot_dimension_numbers<[1], [0], [0], [1], [0, 0, 1, 1], [], []>} : vector<16x64xbf16>, vector<64x16xbf16>, vector<16x16xf32> -> vector<16x16xf32>
    %144 = vector.extract_strided_slice %7 {offsets = [2, 0, 0], sizes = [1, 1, 16], strides = [1, 1, 1]} : vector<4x1x16xf32> to vector<1x1x16xf32>
    %145 = vector.shape_cast %144 : vector<1x1x16xf32> to vector<1x16xf32>
    %146 = vector.broadcast %145 : vector<1x16xf32> to vector<16x16xf32>
    %147 = arith.addf %143, %146 : vector<16x16xf32>
    %148 = vector.extract_strided_slice %8 {offsets = [2, 0, 0], sizes = [1, 64, 16], strides = [1, 1, 1]} : vector<4x64x16xbf16> to vector<1x64x16xbf16>
    %149 = vector.shape_cast %148 : vector<1x64x16xbf16> to vector<64x16xbf16>
    %cst_73 = arith.constant dense<0.000000e+00> : vector<16x16xf32>
    %150 = tpu.matmul %48, %149, %cst_73 {dimension_numbers = #tpu.dot_dimension_numbers<[1], [0], [0], [1], [0, 0, 1, 1], [], []>} : vector<16x64xbf16>, vector<64x16xbf16>, vector<16x16xf32> -> vector<16x16xf32>
    %151 = vector.extract_strided_slice %9 {offsets = [2, 0, 0], sizes = [1, 1, 16], strides = [1, 1, 1]} : vector<4x1x16xf32> to vector<1x1x16xf32>
    %152 = vector.shape_cast %151 : vector<1x1x16xf32> to vector<1x16xf32>
    %153 = vector.broadcast %152 : vector<1x16xf32> to vector<16x16xf32>
    %154 = arith.addf %150, %153 : vector<16x16xf32>
    %155 = arith.truncf %140 : vector<16x16xf32> to vector<16x16xbf16>
    %156 = arith.truncf %147 : vector<16x16xf32> to vector<16x16xbf16>
    %cst_74 = arith.constant dense<0.000000e+00> : vector<16x16xf32>
    %157 = tpu.matmul %155, %156, %cst_74 {dimension_numbers = #tpu.dot_dimension_numbers<[1], [1], [0], [0], [0, 0, 1, 0], [], []>} : vector<16x16xbf16>, vector<16x16xbf16>, vector<16x16xf32> -> vector<16x16xf32>
    %cst_75 = arith.constant dense<0xFF800000> : vector<16xf32>
    %158 = vector.multi_reduction <maximumf>, %157, %cst_75 [1] : vector<16x16xf32> to vector<16xf32>
    %159 = vector.shape_cast %158 : vector<16xf32> to vector<16x1xf32>
    %160 = vector.broadcast %159 : vector<16x1xf32> to vector<16x16xf32>
    %161 = arith.subf %157, %160 : vector<16x16xf32>
    %162 = math.exp %161 : vector<16x16xf32>
    %cst_76 = arith.constant dense<0.000000e+00> : vector<16xf32>
    %163 = vector.multi_reduction <add>, %162, %cst_76 [1] : vector<16x16xf32> to vector<16xf32>
    %164 = vector.shape_cast %163 : vector<16xf32> to vector<16x1xf32>
    %165 = tpu.reciprocal %164 {approx = true} : vector<16x1xf32> -> vector<16x1xf32>
    %166 = vector.broadcast %165 : vector<16x1xf32> to vector<16x16xf32>
    %167 = arith.mulf %162, %166 : vector<16x16xf32>
    %168 = arith.truncf %167 : vector<16x16xf32> to vector<16x16xbf16>
    %169 = arith.truncf %154 : vector<16x16xf32> to vector<16x16xbf16>
    %cst_77 = arith.constant dense<0.000000e+00> : vector<16x16xf32>
    %170 = tpu.matmul %168, %169, %cst_77 {dimension_numbers = #tpu.dot_dimension_numbers<[1], [0], [0], [1], [0, 0, 1, 1], [], []>} : vector<16x16xbf16>, vector<16x16xbf16>, vector<16x16xf32> -> vector<16x16xf32>
    %171 = arith.truncf %170 : vector<16x16xf32> to vector<16x16xbf16>
    %172 = vector.extract_strided_slice %10 {offsets = [2, 0, 0], sizes = [1, 16, 64], strides = [1, 1, 1]} : vector<4x16x64xbf16> to vector<1x16x64xbf16>
    %173 = vector.shape_cast %172 : vector<1x16x64xbf16> to vector<16x64xbf16>
    %cst_78 = arith.constant dense<0.000000e+00> : vector<16x64xf32>
    %174 = tpu.matmul %171, %173, %cst_78 {dimension_numbers = #tpu.dot_dimension_numbers<[1], [0], [0], [1], [0, 0, 1, 1], [], []>} : vector<16x16xbf16>, vector<16x64xbf16>, vector<16x64xf32> -> vector<16x64xf32>
    %175 = arith.addf %133, %174 : vector<16x64xf32>
    %176 = vector.extract_strided_slice %4 {offsets = [3, 0, 0], sizes = [1, 64, 16], strides = [1, 1, 1]} : vector<4x64x16xbf16> to vector<1x64x16xbf16>
    %177 = vector.shape_cast %176 : vector<1x64x16xbf16> to vector<64x16xbf16>
    %cst_79 = arith.constant dense<0.000000e+00> : vector<16x16xf32>
    %178 = tpu.matmul %48, %177, %cst_79 {dimension_numbers = #tpu.dot_dimension_numbers<[1], [0], [0], [1], [0, 0, 1, 1], [], []>} : vector<16x64xbf16>, vector<64x16xbf16>, vector<16x16xf32> -> vector<16x16xf32>
    %179 = vector.extract_strided_slice %5 {offsets = [3, 0, 0], sizes = [1, 1, 16], strides = [1, 1, 1]} : vector<4x1x16xf32> to vector<1x1x16xf32>
    %180 = vector.shape_cast %179 : vector<1x1x16xf32> to vector<1x16xf32>
    %181 = vector.broadcast %180 : vector<1x16xf32> to vector<16x16xf32>
    %182 = arith.addf %178, %181 : vector<16x16xf32>
    %183 = vector.extract_strided_slice %6 {offsets = [3, 0, 0], sizes = [1, 64, 16], strides = [1, 1, 1]} : vector<4x64x16xbf16> to vector<1x64x16xbf16>
    %184 = vector.shape_cast %183 : vector<1x64x16xbf16> to vector<64x16xbf16>
    %cst_80 = arith.constant dense<0.000000e+00> : vector<16x16xf32>
    %185 = tpu.matmul %48, %184, %cst_80 {dimension_numbers = #tpu.dot_dimension_numbers<[1], [0], [0], [1], [0, 0, 1, 1], [], []>} : vector<16x64xbf16>, vector<64x16xbf16>, vector<16x16xf32> -> vector<16x16xf32>
    %186 = vector.extract_strided_slice %7 {offsets = [3, 0, 0], sizes = [1, 1, 16], strides = [1, 1, 1]} : vector<4x1x16xf32> to vector<1x1x16xf32>
    %187 = vector.shape_cast %186 : vector<1x1x16xf32> to vector<1x16xf32>
    %188 = vector.broadcast %187 : vector<1x16xf32> to vector<16x16xf32>
    %189 = arith.addf %185, %188 : vector<16x16xf32>
    %190 = vector.extract_strided_slice %8 {offsets = [3, 0, 0], sizes = [1, 64, 16], strides = [1, 1, 1]} : vector<4x64x16xbf16> to vector<1x64x16xbf16>
    %191 = vector.shape_cast %190 : vector<1x64x16xbf16> to vector<64x16xbf16>
    %cst_81 = arith.constant dense<0.000000e+00> : vector<16x16xf32>
    %192 = tpu.matmul %48, %191, %cst_81 {dimension_numbers = #tpu.dot_dimension_numbers<[1], [0], [0], [1], [0, 0, 1, 1], [], []>} : vector<16x64xbf16>, vector<64x16xbf16>, vector<16x16xf32> -> vector<16x16xf32>
    %193 = vector.extract_strided_slice %9 {offsets = [3, 0, 0], sizes = [1, 1, 16], strides = [1, 1, 1]} : vector<4x1x16xf32> to vector<1x1x16xf32>
    %194 = vector.shape_cast %193 : vector<1x1x16xf32> to vector<1x16xf32>
    %195 = vector.broadcast %194 : vector<1x16xf32> to vector<16x16xf32>
    %196 = arith.addf %192, %195 : vector<16x16xf32>
    %197 = arith.truncf %182 : vector<16x16xf32> to vector<16x16xbf16>
    %198 = arith.truncf %189 : vector<16x16xf32> to vector<16x16xbf16>
    %cst_82 = arith.constant dense<0.000000e+00> : vector<16x16xf32>
    %199 = tpu.matmul %197, %198, %cst_82 {dimension_numbers = #tpu.dot_dimension_numbers<[1], [1], [0], [0], [0, 0, 1, 0], [], []>} : vector<16x16xbf16>, vector<16x16xbf16>, vector<16x16xf32> -> vector<16x16xf32>
    %cst_83 = arith.constant dense<0xFF800000> : vector<16xf32>
    %200 = vector.multi_reduction <maximumf>, %199, %cst_83 [1] : vector<16x16xf32> to vector<16xf32>
    %201 = vector.shape_cast %200 : vector<16xf32> to vector<16x1xf32>
    %202 = vector.broadcast %201 : vector<16x1xf32> to vector<16x16xf32>
    %203 = arith.subf %199, %202 : vector<16x16xf32>
    %204 = math.exp %203 : vector<16x16xf32>
    %cst_84 = arith.constant dense<0.000000e+00> : vector<16xf32>
    %205 = vector.multi_reduction <add>, %204, %cst_84 [1] : vector<16x16xf32> to vector<16xf32>
    %206 = vector.shape_cast %205 : vector<16xf32> to vector<16x1xf32>
    %207 = tpu.reciprocal %206 {approx = true} : vector<16x1xf32> -> vector<16x1xf32>
    %208 = vector.broadcast %207 : vector<16x1xf32> to vector<16x16xf32>
    %209 = arith.mulf %204, %208 : vector<16x16xf32>
    %210 = arith.truncf %209 : vector<16x16xf32> to vector<16x16xbf16>
    %211 = arith.truncf %196 : vector<16x16xf32> to vector<16x16xbf16>
    %cst_85 = arith.constant dense<0.000000e+00> : vector<16x16xf32>
    %212 = tpu.matmul %210, %211, %cst_85 {dimension_numbers = #tpu.dot_dimension_numbers<[1], [0], [0], [1], [0, 0, 1, 1], [], []>} : vector<16x16xbf16>, vector<16x16xbf16>, vector<16x16xf32> -> vector<16x16xf32>
    %213 = arith.truncf %212 : vector<16x16xf32> to vector<16x16xbf16>
    %214 = vector.extract_strided_slice %10 {offsets = [3, 0, 0], sizes = [1, 16, 64], strides = [1, 1, 1]} : vector<4x16x64xbf16> to vector<1x16x64xbf16>
    %215 = vector.shape_cast %214 : vector<1x16x64xbf16> to vector<16x64xbf16>
    %cst_86 = arith.constant dense<0.000000e+00> : vector<16x64xf32>
    %216 = tpu.matmul %213, %215, %cst_86 {dimension_numbers = #tpu.dot_dimension_numbers<[1], [0], [0], [1], [0, 0, 1, 1], [], []>} : vector<16x16xbf16>, vector<16x64xbf16>, vector<16x64xf32> -> vector<16x64xf32>
    %217 = arith.addf %175, %216 : vector<16x64xf32>
    %218 = vector.broadcast %11 : vector<1x64xf32> to vector<16x64xf32>
    %219 = arith.addf %217, %218 : vector<16x64xf32>
    %220 = arith.addf %47, %219 : vector<16x64xf32>
    %cst_87 = arith.constant dense<0.000000e+00> : vector<16xf32>
    %221 = vector.multi_reduction <add>, %220, %cst_87 [1] : vector<16x64xf32> to vector<16xf32>
    %222 = vector.shape_cast %221 : vector<16xf32> to vector<16x1xf32>
    %cst_88 = arith.constant 6.400000e+01 : f32
    %223 = vector.broadcast %cst_88 : f32 to vector<16x1xf32>
    %224 = arith.divf %222, %223 : vector<16x1xf32>
    %225 = vector.broadcast %224 : vector<16x1xf32> to vector<16x64xf32>
    %226 = arith.subf %220, %225 : vector<16x64xf32>
    %227 = arith.mulf %226, %226 : vector<16x64xf32>
    %cst_89 = arith.constant dense<0.000000e+00> : vector<16xf32>
    %228 = vector.multi_reduction <add>, %227, %cst_89 [1] : vector<16x64xf32> to vector<16xf32>
    %229 = vector.shape_cast %228 : vector<16xf32> to vector<16x1xf32>
    %cst_90 = arith.constant 6.400000e+01 : f32
    %230 = vector.broadcast %cst_90 : f32 to vector<16x1xf32>
    %231 = arith.divf %229, %230 : vector<16x1xf32>
    %232 = vector.broadcast %224 : vector<16x1xf32> to vector<16x64xf32>
    %233 = arith.subf %220, %232 : vector<16x64xf32>
    %cst_91 = arith.constant 9.99999974E-6 : f32
    %234 = vector.broadcast %cst_91 : f32 to vector<16x1xf32>
    %235 = arith.addf %231, %234 : vector<16x1xf32>
    %236 = math.rsqrt %235 : vector<16x1xf32>
    %237 = vector.broadcast %236 : vector<16x1xf32> to vector<16x64xf32>
    %238 = arith.mulf %233, %237 : vector<16x64xf32>
    %239 = vector.broadcast %12 : vector<1x64xf32> to vector<16x64xf32>
    %240 = arith.mulf %238, %239 : vector<16x64xf32>
    %241 = vector.broadcast %13 : vector<1x64xf32> to vector<16x64xf32>
    %242 = arith.addf %240, %241 : vector<16x64xf32>
    %243 = arith.truncf %242 : vector<16x64xf32> to vector<16x64xbf16>
    %cst_92 = arith.constant dense<0.000000e+00> : vector<16x256xf32>
    %244 = tpu.matmul %243, %14, %cst_92 {dimension_numbers = #tpu.dot_dimension_numbers<[1], [0], [0], [1], [0, 0, 1, 1], [], []>} : vector<16x64xbf16>, vector<64x256xbf16>, vector<16x256xf32> -> vector<16x256xf32>
    %245 = vector.broadcast %15 : vector<1x256xf32> to vector<16x256xf32>
    %246 = arith.addf %244, %245 : vector<16x256xf32>
    %cst_93 = arith.constant 0.000000e+00 : f32
    %247 = vector.broadcast %cst_93 : f32 to vector<16x256xf32>
    %248 = arith.maximumf %246, %247 : vector<16x256xf32>
    %249 = arith.truncf %248 : vector<16x256xf32> to vector<16x256xbf16>
    %cst_94 = arith.constant dense<0.000000e+00> : vector<16x64xf32>
    %250 = tpu.matmul %249, %16, %cst_94 {dimension_numbers = #tpu.dot_dimension_numbers<[1], [0], [0], [1], [0, 0, 1, 1], [], []>} : vector<16x256xbf16>, vector<256x64xbf16>, vector<16x64xf32> -> vector<16x64xf32>
    %251 = vector.broadcast %17 : vector<1x64xf32> to vector<16x64xf32>
    %252 = arith.addf %250, %251 : vector<16x64xf32>
    %253 = arith.addf %242, %252 : vector<16x64xf32>
    %cst_95 = arith.constant dense<0.000000e+00> : vector<16xf32>
    %254 = vector.multi_reduction <add>, %253, %cst_95 [1] : vector<16x64xf32> to vector<16xf32>
    %255 = vector.shape_cast %254 : vector<16xf32> to vector<16x1xf32>
    %cst_96 = arith.constant 6.400000e+01 : f32
    %256 = vector.broadcast %cst_96 : f32 to vector<16x1xf32>
    %257 = arith.divf %255, %256 : vector<16x1xf32>
    %258 = vector.broadcast %257 : vector<16x1xf32> to vector<16x64xf32>
    %259 = arith.subf %253, %258 : vector<16x64xf32>
    %260 = arith.mulf %259, %259 : vector<16x64xf32>
    %cst_97 = arith.constant dense<0.000000e+00> : vector<16xf32>
    %261 = vector.multi_reduction <add>, %260, %cst_97 [1] : vector<16x64xf32> to vector<16xf32>
    %262 = vector.shape_cast %261 : vector<16xf32> to vector<16x1xf32>
    %cst_98 = arith.constant 6.400000e+01 : f32
    %263 = vector.broadcast %cst_98 : f32 to vector<16x1xf32>
    %264 = arith.divf %262, %263 : vector<16x1xf32>
    %265 = vector.broadcast %257 : vector<16x1xf32> to vector<16x64xf32>
    %266 = arith.subf %253, %265 : vector<16x64xf32>
    %cst_99 = arith.constant 9.99999974E-6 : f32
    %267 = vector.broadcast %cst_99 : f32 to vector<16x1xf32>
    %268 = arith.addf %264, %267 : vector<16x1xf32>
    %269 = math.rsqrt %268 : vector<16x1xf32>
    %270 = vector.broadcast %269 : vector<16x1xf32> to vector<16x64xf32>
    %271 = arith.mulf %266, %270 : vector<16x64xf32>
    %272 = vector.broadcast %18 : vector<1x64xf32> to vector<16x64xf32>
    %273 = arith.mulf %271, %272 : vector<16x64xf32>
    %274 = vector.broadcast %19 : vector<1x64xf32> to vector<16x64xf32>
    %275 = arith.addf %273, %274 : vector<16x64xf32>
    %c0_100 = arith.constant 0 : index
    %c0_101 = arith.constant 0 : index
    %c0_102 = arith.constant 0 : index
    %276 = vector.load %arg22[%c0_100, %c0_101, %c0_102] : memref<1x16x64xf32, #tpu.memory_space<vmem>>, vector<1x16x64xf32>
    %277 = vector.shape_cast %276 : vector<1x16x64xf32> to vector<16x64xf32>
    %278 = vector.shape_cast %275 : vector<16x64xf32> to vector<1x16x64xf32>
    tpu.vector_store %arg22[%c0_100, %c0_101, %c0_102], %278 {strides = array<i32>} : memref<1x16x64xf32, #tpu.memory_space<vmem>>, vector<1x16x64xf32>,
    return
  }
  func.func @transform_0(%arg0: i32) -> (i32, i32, i32) {
    %c0_i32 = arith.constant 0 : i32
    %c0_i32_0 = arith.constant 0 : i32
    %c0_i32_1 = arith.constant 0 : i32
    return %arg0, %c0_i32, %c0_i32_0 : i32, i32, i32
  }
  func.func @transform_1(%arg0: i32) -> (i32, i32) {
    %c0_i32 = arith.constant 0 : i32
    %c0_i32_0 = arith.constant 0 : i32
    %c0_i32_1 = arith.constant 0 : i32
    return %c0_i32, %c0_i32_0 : i32, i32
  }
  func.func @transform_2(%arg0: i32) -> (i32, i32) {
    %c0_i32 = arith.constant 0 : i32
    %c0_i32_0 = arith.constant 0 : i32
    %c0_i32_1 = arith.constant 0 : i32
    return %c0_i32, %c0_i32_0 : i32, i32
  }
  func.func @transform_3(%arg0: i32) -> (i32, i32) {
    %c0_i32 = arith.constant 0 : i32
    %c0_i32_0 = arith.constant 0 : i32
    %c0_i32_1 = arith.constant 0 : i32
    return %c0_i32, %c0_i32_0 : i32, i32
  }
  func.func @transform_4(%arg0: i32) -> (i32, i32) {
    %c0_i32 = arith.constant 0 : i32
    %c0_i32_0 = arith.constant 0 : i32
    %c0_i32_1 = arith.constant 0 : i32
    return %c0_i32, %c0_i32_0 : i32, i32
  }
  func.func @transform_5(%arg0: i32) -> (i32, i32, i32) {
    %c0_i32 = arith.constant 0 : i32
    %c0_i32_0 = arith.constant 0 : i32
    %c0_i32_1 = arith.constant 0 : i32
    %c0_i32_2 = arith.constant 0 : i32
    return %c0_i32, %c0_i32_0, %c0_i32_1 : i32, i32, i32
  }
  func.func @transform_6(%arg0: i32) -> (i32, i32, i32) {
    %c0_i32 = arith.constant 0 : i32
    %c0_i32_0 = arith.constant 0 : i32
    %c0_i32_1 = arith.constant 0 : i32
    %c0_i32_2 = arith.constant 0 : i32
    return %c0_i32, %c0_i32_0, %c0_i32_1 : i32, i32, i32
  }
  func.func @transform_7(%arg0: i32) -> (i32, i32, i32) {
    %c0_i32 = arith.constant 0 : i32
    %c0_i32_0 = arith.constant 0 : i32
    %c0_i32_1 = arith.constant 0 : i32
    %c0_i32_2 = arith.constant 0 : i32
    return %c0_i32, %c0_i32_0, %c0_i32_1 : i32, i32, i32
  }
  func.func @transform_8(%arg0: i32) -> (i32, i32, i32) {
    %c0_i32 = arith.constant 0 : i32
    %c0_i32_0 = arith.constant 0 : i32
    %c0_i32_1 = arith.constant 0 : i32
    %c0_i32_2 = arith.constant 0 : i32
    return %c0_i32, %c0_i32_0, %c0_i32_1 : i32, i32, i32
  }
  func.func @transform_9(%arg0: i32) -> (i32, i32, i32) {
    %c0_i32 = arith.constant 0 : i32
    %c0_i32_0 = arith.constant 0 : i32
    %c0_i32_1 = arith.constant 0 : i32
    %c0_i32_2 = arith.constant 0 : i32
    return %c0_i32, %c0_i32_0, %c0_i32_1 : i32, i32, i32
  }
  func.func @transform_10(%arg0: i32) -> (i32, i32, i32) {
    %c0_i32 = arith.constant 0 : i32
    %c0_i32_0 = arith.constant 0 : i32
    %c0_i32_1 = arith.constant 0 : i32
    %c0_i32_2 = arith.constant 0 : i32
    return %c0_i32, %c0_i32_0, %c0_i32_1 : i32, i32, i32
  }
  func.func @transform_11(%arg0: i32) -> (i32, i32, i32) {
    %c0_i32 = arith.constant 0 : i32
    %c0_i32_0 = arith.constant 0 : i32
    %c0_i32_1 = arith.constant 0 : i32
    %c0_i32_2 = arith.constant 0 : i32
    return %c0_i32, %c0_i32_0, %c0_i32_1 : i32, i32, i32
  }
  func.func @transform_12(%arg0: i32) -> (i32, i32) {
    %c0_i32 = arith.constant 0 : i32
    %c0_i32_0 = arith.constant 0 : i32
    %c0_i32_1 = arith.constant 0 : i32
    return %c0_i32, %c0_i32_0 : i32, i32
  }
  func.func @transform_13(%arg0: i32) -> (i32, i32) {
    %c0_i32 = arith.constant 0 : i32
    %c0_i32_0 = arith.constant 0 : i32
    %c0_i32_1 = arith.constant 0 : i32
    return %c0_i32, %c0_i32_0 : i32, i32
  }
  func.func @transform_14(%arg0: i32) -> (i32, i32) {
    %c0_i32 = arith.constant 0 : i32
    %c0_i32_0 = arith.constant 0 : i32
    %c0_i32_1 = arith.constant 0 : i32
    return %c0_i32, %c0_i32_0 : i32, i32
  }
  func.func @transform_15(%arg0: i32) -> (i32, i32) {
    %c0_i32 = arith.constant 0 : i32
    %c0_i32_0 = arith.constant 0 : i32
    %c0_i32_1 = arith.constant 0 : i32
    return %c0_i32, %c0_i32_0 : i32, i32
  }
  func.func @transform_16(%arg0: i32) -> (i32, i32) {
    %c0_i32 = arith.constant 0 : i32
    %c0_i32_0 = arith.constant 0 : i32
    %c0_i32_1 = arith.constant 0 : i32
    return %c0_i32, %c0_i32_0 : i32, i32
  }
  func.func @transform_17(%arg0: i32) -> (i32, i32) {
    %c0_i32 = arith.constant 0 : i32
    %c0_i32_0 = arith.constant 0 : i32
    %c0_i32_1 = arith.constant 0 : i32
    return %c0_i32, %c0_i32_0 : i32, i32
  }
  func.func @transform_18(%arg0: i32) -> (i32, i32) {
    %c0_i32 = arith.constant 0 : i32
    %c0_i32_0 = arith.constant 0 : i32
    %c0_i32_1 = arith.constant 0 : i32
    return %c0_i32, %c0_i32_0 : i32, i32
  }
  func.func @transform_19(%arg0: i32) -> (i32, i32) {
    %c0_i32 = arith.constant 0 : i32
    %c0_i32_0 = arith.constant 0 : i32
    %c0_i32_1 = arith.constant 0 : i32
    return %c0_i32, %c0_i32_0 : i32, i32
  }
  func.func @transform_20(%arg0: i32) -> (i32, i32) {
    %c0_i32 = arith.constant 0 : i32
    %c0_i32_0 = arith.constant 0 : i32
    %c0_i32_1 = arith.constant 0 : i32
    return %c0_i32, %c0_i32_0 : i32, i32
  }
  func.func @transform_21(%arg0: i32) -> (i32, i32, i32) {
    %c0_i32 = arith.constant 0 : i32
    %c0_i32_0 = arith.constant 0 : i32
    %c0_i32_1 = arith.constant 0 : i32
    return %arg0, %c0_i32, %c0_i32_0 : i32, i32, i32
  }
}

module attributes {stable_mosaic.version = 11 : i64} {
  func.func @encoder_layer_kernel(%arg0: i32, %arg1: memref<1x16x64xf32, #tpu.memory_space<vmem>>, %arg2: memref<4x64x16xbf16, #tpu.memory_space<vmem>>, %arg3: memref<4x1x16xf32, #tpu.memory_space<vmem>>, %arg4: memref<4x64x16xbf16, #tpu.memory_space<vmem>>, %arg5: memref<4x1x16xf32, #tpu.memory_space<vmem>>, %arg6: memref<4x64x16xbf16, #tpu.memory_space<vmem>>, %arg7: memref<4x1x16xf32, #tpu.memory_space<vmem>>, %arg8: memref<4x16x64xbf16, #tpu.memory_space<vmem>>, %arg9: memref<1x64xf32, #tpu.memory_space<vmem>>, %arg10: memref<1x64xf32, #tpu.memory_space<vmem>>, %arg11: memref<1x64xf32, #tpu.memory_space<vmem>>, %arg12: memref<64x256xbf16, #tpu.memory_space<vmem>>, %arg13: memref<1x256xf32, #tpu.memory_space<vmem>>, %arg14: memref<256x64xbf16, #tpu.memory_space<vmem>>, %arg15: memref<1x64xf32, #tpu.memory_space<vmem>>, %arg16: memref<1x64xf32, #tpu.memory_space<vmem>>, %arg17: memref<1x64xf32, #tpu.memory_space<vmem>>, %arg18: memref<1x16x64xf32, #tpu.memory_space<vmem>>) attributes {dimension_semantics = [#tpu.dimension_semantics<parallel>], iteration_bounds = array<i64: 2>, scalar_prefetch = 0 : i64, scratch_operands = 0 : i64, tpu.core_type = #tpu.core_type<tc>, window_params = [{transform_indices = @transform_0, window_bounds = array<i64: 1, 16, 64>}, {pipeline_mode = #tpu.pipeline_mode<synchronous>, transform_indices = @transform_1, window_bounds = array<i64: 4, 64, 16>}, {pipeline_mode = #tpu.pipeline_mode<synchronous>, transform_indices = @transform_2, window_bounds = array<i64: 4, 1, 16>}, {pipeline_mode = #tpu.pipeline_mode<synchronous>, transform_indices = @transform_3, window_bounds = array<i64: 4, 64, 16>}, {pipeline_mode = #tpu.pipeline_mode<synchronous>, transform_indices = @transform_4, window_bounds = array<i64: 4, 1, 16>}, {pipeline_mode = #tpu.pipeline_mode<synchronous>, transform_indices = @transform_5, window_bounds = array<i64: 4, 64, 16>}, {pipeline_mode = #tpu.pipeline_mode<synchronous>, transform_indices = @transform_6, window_bounds = array<i64: 4, 1, 16>}, {pipeline_mode = #tpu.pipeline_mode<synchronous>, transform_indices = @transform_7, window_bounds = array<i64: 4, 16, 64>}, {pipeline_mode = #tpu.pipeline_mode<synchronous>, transform_indices = @transform_8, window_bounds = array<i64: 1, 64>}, {pipeline_mode = #tpu.pipeline_mode<synchronous>, transform_indices = @transform_9, window_bounds = array<i64: 1, 64>}, {pipeline_mode = #tpu.pipeline_mode<synchronous>, transform_indices = @transform_10, window_bounds = array<i64: 1, 64>}, {pipeline_mode = #tpu.pipeline_mode<synchronous>, transform_indices = @transform_11, window_bounds = array<i64: 64, 256>}, {pipeline_mode = #tpu.pipeline_mode<synchronous>, transform_indices = @transform_12, window_bounds = array<i64: 1, 256>}, {pipeline_mode = #tpu.pipeline_mode<synchronous>, transform_indices = @transform_13, window_bounds = array<i64: 256, 64>}, {pipeline_mode = #tpu.pipeline_mode<synchronous>, transform_indices = @transform_14, window_bounds = array<i64: 1, 64>}, {pipeline_mode = #tpu.pipeline_mode<synchronous>, transform_indices = @transform_15, window_bounds = array<i64: 1, 64>}, {pipeline_mode = #tpu.pipeline_mode<synchronous>, transform_indices = @transform_16, window_bounds = array<i64: 1, 64>}, {transform_indices = @transform_17, window_bounds = array<i64: 1, 16, 64>}]} {
    %c0 = arith.constant 0 : index
    %c0_0 = arith.constant 0 : index
    %c0_1 = arith.constant 0 : index
    %0 = vector.load %arg2[%c0, %c0_0, %c0_1] : memref<4x64x16xbf16, #tpu.memory_space<vmem>>, vector<4x64x16xbf16>
    %c0_2 = arith.constant 0 : index
    %c0_3 = arith.constant 0 : index
    %c0_4 = arith.constant 0 : index
    %1 = vector.load %arg3[%c0_2, %c0_3, %c0_4] : memref<4x1x16xf32, #tpu.memory_space<vmem>>, vector<4x1x16xf32>
    %c0_5 = arith.constant 0 : index
    %c0_6 = arith.constant 0 : index
    %c0_7 = arith.constant 0 : index
    %2 = vector.load %arg4[%c0_5, %c0_6, %c0_7] : memref<4x64x16xbf16, #tpu.memory_space<vmem>>, vector<4x64x16xbf16>
    %c0_8 = arith.constant 0 : index
    %c0_9 = arith.constant 0 : index
    %c0_10 = arith.constant 0 : index
    %3 = vector.load %arg5[%c0_8, %c0_9, %c0_10] : memref<4x1x16xf32, #tpu.memory_space<vmem>>, vector<4x1x16xf32>
    %c0_11 = arith.constant 0 : index
    %c0_12 = arith.constant 0 : index
    %c0_13 = arith.constant 0 : index
    %4 = vector.load %arg6[%c0_11, %c0_12, %c0_13] : memref<4x64x16xbf16, #tpu.memory_space<vmem>>, vector<4x64x16xbf16>
    %c0_14 = arith.constant 0 : index
    %c0_15 = arith.constant 0 : index
    %c0_16 = arith.constant 0 : index
    %5 = vector.load %arg7[%c0_14, %c0_15, %c0_16] : memref<4x1x16xf32, #tpu.memory_space<vmem>>, vector<4x1x16xf32>
    %c0_17 = arith.constant 0 : index
    %c0_18 = arith.constant 0 : index
    %c0_19 = arith.constant 0 : index
    %6 = vector.load %arg8[%c0_17, %c0_18, %c0_19] : memref<4x16x64xbf16, #tpu.memory_space<vmem>>, vector<4x16x64xbf16>
    %c0_20 = arith.constant 0 : index
    %c0_21 = arith.constant 0 : index
    %7 = vector.load %arg9[%c0_20, %c0_21] : memref<1x64xf32, #tpu.memory_space<vmem>>, vector<1x64xf32>
    %c0_22 = arith.constant 0 : index
    %c0_23 = arith.constant 0 : index
    %8 = vector.load %arg10[%c0_22, %c0_23] : memref<1x64xf32, #tpu.memory_space<vmem>>, vector<1x64xf32>
    %c0_24 = arith.constant 0 : index
    %c0_25 = arith.constant 0 : index
    %9 = vector.load %arg11[%c0_24, %c0_25] : memref<1x64xf32, #tpu.memory_space<vmem>>, vector<1x64xf32>
    %c0_26 = arith.constant 0 : index
    %c0_27 = arith.constant 0 : index
    %10 = vector.load %arg12[%c0_26, %c0_27] : memref<64x256xbf16, #tpu.memory_space<vmem>>, vector<64x256xbf16>
    %c0_28 = arith.constant 0 : index
    %c0_29 = arith.constant 0 : index
    %11 = vector.load %arg13[%c0_28, %c0_29] : memref<1x256xf32, #tpu.memory_space<vmem>>, vector<1x256xf32>
    %c0_30 = arith.constant 0 : index
    %c0_31 = arith.constant 0 : index
    %12 = vector.load %arg14[%c0_30, %c0_31] : memref<256x64xbf16, #tpu.memory_space<vmem>>, vector<256x64xbf16>
    %c0_32 = arith.constant 0 : index
    %c0_33 = arith.constant 0 : index
    %13 = vector.load %arg15[%c0_32, %c0_33] : memref<1x64xf32, #tpu.memory_space<vmem>>, vector<1x64xf32>
    %c0_34 = arith.constant 0 : index
    %c0_35 = arith.constant 0 : index
    %14 = vector.load %arg16[%c0_34, %c0_35] : memref<1x64xf32, #tpu.memory_space<vmem>>, vector<1x64xf32>
    %c0_36 = arith.constant 0 : index
    %c0_37 = arith.constant 0 : index
    %15 = vector.load %arg17[%c0_36, %c0_37] : memref<1x64xf32, #tpu.memory_space<vmem>>, vector<1x64xf32>
    %c0_38 = arith.constant 0 : index
    %c0_39 = arith.constant 0 : index
    %c0_40 = arith.constant 0 : index
    %16 = vector.load %arg1[%c0_38, %c0_39, %c0_40] : memref<1x16x64xf32, #tpu.memory_space<vmem>>, vector<1x16x64xf32>
    %17 = vector.shape_cast %16 : vector<1x16x64xf32> to vector<16x64xf32>
    %18 = arith.truncf %17 : vector<16x64xf32> to vector<16x64xbf16>
    %cst = arith.constant 0.000000e+00 : f32
    %19 = vector.broadcast %cst : f32 to vector<16x64xf32>
    %20 = vector.extract_strided_slice %0 {offsets = [0, 0, 0], sizes = [1, 64, 16], strides = [1, 1, 1]} : vector<4x64x16xbf16> to vector<1x64x16xbf16>
    %21 = vector.shape_cast %20 : vector<1x64x16xbf16> to vector<64x16xbf16>
    %cst_41 = arith.constant dense<0.000000e+00> : vector<16x16xf32>
    %22 = tpu.matmul %18, %21, %cst_41 {dimension_numbers = #tpu.dot_dimension_numbers<[1], [0], [0], [1], [0, 0, 1, 1], [], []>} : vector<16x64xbf16>, vector<64x16xbf16>, vector<16x16xf32> -> vector<16x16xf32>
    %23 = vector.extract_strided_slice %1 {offsets = [0, 0, 0], sizes = [1, 1, 16], strides = [1, 1, 1]} : vector<4x1x16xf32> to vector<1x1x16xf32>
    %24 = vector.shape_cast %23 : vector<1x1x16xf32> to vector<1x16xf32>
    %25 = vector.broadcast %24 : vector<1x16xf32> to vector<16x16xf32>
    %26 = arith.addf %22, %25 : vector<16x16xf32>
    %27 = vector.extract_strided_slice %2 {offsets = [0, 0, 0], sizes = [1, 64, 16], strides = [1, 1, 1]} : vector<4x64x16xbf16> to vector<1x64x16xbf16>
    %28 = vector.shape_cast %27 : vector<1x64x16xbf16> to vector<64x16xbf16>
    %cst_42 = arith.constant dense<0.000000e+00> : vector<16x16xf32>
    %29 = tpu.matmul %18, %28, %cst_42 {dimension_numbers = #tpu.dot_dimension_numbers<[1], [0], [0], [1], [0, 0, 1, 1], [], []>} : vector<16x64xbf16>, vector<64x16xbf16>, vector<16x16xf32> -> vector<16x16xf32>
    %30 = vector.extract_strided_slice %3 {offsets = [0, 0, 0], sizes = [1, 1, 16], strides = [1, 1, 1]} : vector<4x1x16xf32> to vector<1x1x16xf32>
    %31 = vector.shape_cast %30 : vector<1x1x16xf32> to vector<1x16xf32>
    %32 = vector.broadcast %31 : vector<1x16xf32> to vector<16x16xf32>
    %33 = arith.addf %29, %32 : vector<16x16xf32>
    %34 = vector.extract_strided_slice %4 {offsets = [0, 0, 0], sizes = [1, 64, 16], strides = [1, 1, 1]} : vector<4x64x16xbf16> to vector<1x64x16xbf16>
    %35 = vector.shape_cast %34 : vector<1x64x16xbf16> to vector<64x16xbf16>
    %cst_43 = arith.constant dense<0.000000e+00> : vector<16x16xf32>
    %36 = tpu.matmul %18, %35, %cst_43 {dimension_numbers = #tpu.dot_dimension_numbers<[1], [0], [0], [1], [0, 0, 1, 1], [], []>} : vector<16x64xbf16>, vector<64x16xbf16>, vector<16x16xf32> -> vector<16x16xf32>
    %37 = vector.extract_strided_slice %5 {offsets = [0, 0, 0], sizes = [1, 1, 16], strides = [1, 1, 1]} : vector<4x1x16xf32> to vector<1x1x16xf32>
    %38 = vector.shape_cast %37 : vector<1x1x16xf32> to vector<1x16xf32>
    %39 = vector.broadcast %38 : vector<1x16xf32> to vector<16x16xf32>
    %40 = arith.addf %36, %39 : vector<16x16xf32>
    %41 = arith.truncf %26 : vector<16x16xf32> to vector<16x16xbf16>
    %42 = arith.truncf %33 : vector<16x16xf32> to vector<16x16xbf16>
    %cst_44 = arith.constant dense<0.000000e+00> : vector<16x16xf32>
    %43 = tpu.matmul %41, %42, %cst_44 {dimension_numbers = #tpu.dot_dimension_numbers<[1], [1], [0], [0], [0, 0, 1, 0], [], []>} : vector<16x16xbf16>, vector<16x16xbf16>, vector<16x16xf32> -> vector<16x16xf32>
    %cst_45 = arith.constant dense<0xFF800000> : vector<16xf32>
    %44 = vector.multi_reduction <maximumf>, %43, %cst_45 [1] : vector<16x16xf32> to vector<16xf32>
    %45 = vector.shape_cast %44 : vector<16xf32> to vector<16x1xf32>
    %46 = vector.broadcast %45 : vector<16x1xf32> to vector<16x16xf32>
    %47 = arith.subf %43, %46 : vector<16x16xf32>
    %48 = math.exp %47 : vector<16x16xf32>
    %cst_46 = arith.constant dense<0.000000e+00> : vector<16xf32>
    %49 = vector.multi_reduction <add>, %48, %cst_46 [1] : vector<16x16xf32> to vector<16xf32>
    %50 = vector.shape_cast %49 : vector<16xf32> to vector<16x1xf32>
    %51 = tpu.reciprocal %50 {approx = true} : vector<16x1xf32> -> vector<16x1xf32>
    %52 = vector.broadcast %51 : vector<16x1xf32> to vector<16x16xf32>
    %53 = arith.mulf %48, %52 : vector<16x16xf32>
    %54 = arith.truncf %53 : vector<16x16xf32> to vector<16x16xbf16>
    %55 = arith.truncf %40 : vector<16x16xf32> to vector<16x16xbf16>
    %cst_47 = arith.constant dense<0.000000e+00> : vector<16x16xf32>
    %56 = tpu.matmul %54, %55, %cst_47 {dimension_numbers = #tpu.dot_dimension_numbers<[1], [0], [0], [1], [0, 0, 1, 1], [], []>} : vector<16x16xbf16>, vector<16x16xbf16>, vector<16x16xf32> -> vector<16x16xf32>
    %57 = arith.truncf %56 : vector<16x16xf32> to vector<16x16xbf16>
    %58 = vector.extract_strided_slice %6 {offsets = [0, 0, 0], sizes = [1, 16, 64], strides = [1, 1, 1]} : vector<4x16x64xbf16> to vector<1x16x64xbf16>
    %59 = vector.shape_cast %58 : vector<1x16x64xbf16> to vector<16x64xbf16>
    %cst_48 = arith.constant dense<0.000000e+00> : vector<16x64xf32>
    %60 = tpu.matmul %57, %59, %cst_48 {dimension_numbers = #tpu.dot_dimension_numbers<[1], [0], [0], [1], [0, 0, 1, 1], [], []>} : vector<16x16xbf16>, vector<16x64xbf16>, vector<16x64xf32> -> vector<16x64xf32>
    %61 = arith.addf %19, %60 : vector<16x64xf32>
    %62 = vector.extract_strided_slice %0 {offsets = [1, 0, 0], sizes = [1, 64, 16], strides = [1, 1, 1]} : vector<4x64x16xbf16> to vector<1x64x16xbf16>
    %63 = vector.shape_cast %62 : vector<1x64x16xbf16> to vector<64x16xbf16>
    %cst_49 = arith.constant dense<0.000000e+00> : vector<16x16xf32>
    %64 = tpu.matmul %18, %63, %cst_49 {dimension_numbers = #tpu.dot_dimension_numbers<[1], [0], [0], [1], [0, 0, 1, 1], [], []>} : vector<16x64xbf16>, vector<64x16xbf16>, vector<16x16xf32> -> vector<16x16xf32>
    %65 = vector.extract_strided_slice %1 {offsets = [1, 0, 0], sizes = [1, 1, 16], strides = [1, 1, 1]} : vector<4x1x16xf32> to vector<1x1x16xf32>
    %66 = vector.shape_cast %65 : vector<1x1x16xf32> to vector<1x16xf32>
    %67 = vector.broadcast %66 : vector<1x16xf32> to vector<16x16xf32>
    %68 = arith.addf %64, %67 : vector<16x16xf32>
    %69 = vector.extract_strided_slice %2 {offsets = [1, 0, 0], sizes = [1, 64, 16], strides = [1, 1, 1]} : vector<4x64x16xbf16> to vector<1x64x16xbf16>
    %70 = vector.shape_cast %69 : vector<1x64x16xbf16> to vector<64x16xbf16>
    %cst_50 = arith.constant dense<0.000000e+00> : vector<16x16xf32>
    %71 = tpu.matmul %18, %70, %cst_50 {dimension_numbers = #tpu.dot_dimension_numbers<[1], [0], [0], [1], [0, 0, 1, 1], [], []>} : vector<16x64xbf16>, vector<64x16xbf16>, vector<16x16xf32> -> vector<16x16xf32>
    %72 = vector.extract_strided_slice %3 {offsets = [1, 0, 0], sizes = [1, 1, 16], strides = [1, 1, 1]} : vector<4x1x16xf32> to vector<1x1x16xf32>
    %73 = vector.shape_cast %72 : vector<1x1x16xf32> to vector<1x16xf32>
    %74 = vector.broadcast %73 : vector<1x16xf32> to vector<16x16xf32>
    %75 = arith.addf %71, %74 : vector<16x16xf32>
    %76 = vector.extract_strided_slice %4 {offsets = [1, 0, 0], sizes = [1, 64, 16], strides = [1, 1, 1]} : vector<4x64x16xbf16> to vector<1x64x16xbf16>
    %77 = vector.shape_cast %76 : vector<1x64x16xbf16> to vector<64x16xbf16>
    %cst_51 = arith.constant dense<0.000000e+00> : vector<16x16xf32>
    %78 = tpu.matmul %18, %77, %cst_51 {dimension_numbers = #tpu.dot_dimension_numbers<[1], [0], [0], [1], [0, 0, 1, 1], [], []>} : vector<16x64xbf16>, vector<64x16xbf16>, vector<16x16xf32> -> vector<16x16xf32>
    %79 = vector.extract_strided_slice %5 {offsets = [1, 0, 0], sizes = [1, 1, 16], strides = [1, 1, 1]} : vector<4x1x16xf32> to vector<1x1x16xf32>
    %80 = vector.shape_cast %79 : vector<1x1x16xf32> to vector<1x16xf32>
    %81 = vector.broadcast %80 : vector<1x16xf32> to vector<16x16xf32>
    %82 = arith.addf %78, %81 : vector<16x16xf32>
    %83 = arith.truncf %68 : vector<16x16xf32> to vector<16x16xbf16>
    %84 = arith.truncf %75 : vector<16x16xf32> to vector<16x16xbf16>
    %cst_52 = arith.constant dense<0.000000e+00> : vector<16x16xf32>
    %85 = tpu.matmul %83, %84, %cst_52 {dimension_numbers = #tpu.dot_dimension_numbers<[1], [1], [0], [0], [0, 0, 1, 0], [], []>} : vector<16x16xbf16>, vector<16x16xbf16>, vector<16x16xf32> -> vector<16x16xf32>
    %cst_53 = arith.constant dense<0xFF800000> : vector<16xf32>
    %86 = vector.multi_reduction <maximumf>, %85, %cst_53 [1] : vector<16x16xf32> to vector<16xf32>
    %87 = vector.shape_cast %86 : vector<16xf32> to vector<16x1xf32>
    %88 = vector.broadcast %87 : vector<16x1xf32> to vector<16x16xf32>
    %89 = arith.subf %85, %88 : vector<16x16xf32>
    %90 = math.exp %89 : vector<16x16xf32>
    %cst_54 = arith.constant dense<0.000000e+00> : vector<16xf32>
    %91 = vector.multi_reduction <add>, %90, %cst_54 [1] : vector<16x16xf32> to vector<16xf32>
    %92 = vector.shape_cast %91 : vector<16xf32> to vector<16x1xf32>
    %93 = tpu.reciprocal %92 {approx = true} : vector<16x1xf32> -> vector<16x1xf32>
    %94 = vector.broadcast %93 : vector<16x1xf32> to vector<16x16xf32>
    %95 = arith.mulf %90, %94 : vector<16x16xf32>
    %96 = arith.truncf %95 : vector<16x16xf32> to vector<16x16xbf16>
    %97 = arith.truncf %82 : vector<16x16xf32> to vector<16x16xbf16>
    %cst_55 = arith.constant dense<0.000000e+00> : vector<16x16xf32>
    %98 = tpu.matmul %96, %97, %cst_55 {dimension_numbers = #tpu.dot_dimension_numbers<[1], [0], [0], [1], [0, 0, 1, 1], [], []>} : vector<16x16xbf16>, vector<16x16xbf16>, vector<16x16xf32> -> vector<16x16xf32>
    %99 = arith.truncf %98 : vector<16x16xf32> to vector<16x16xbf16>
    %100 = vector.extract_strided_slice %6 {offsets = [1, 0, 0], sizes = [1, 16, 64], strides = [1, 1, 1]} : vector<4x16x64xbf16> to vector<1x16x64xbf16>
    %101 = vector.shape_cast %100 : vector<1x16x64xbf16> to vector<16x64xbf16>
    %cst_56 = arith.constant dense<0.000000e+00> : vector<16x64xf32>
    %102 = tpu.matmul %99, %101, %cst_56 {dimension_numbers = #tpu.dot_dimension_numbers<[1], [0], [0], [1], [0, 0, 1, 1], [], []>} : vector<16x16xbf16>, vector<16x64xbf16>, vector<16x64xf32> -> vector<16x64xf32>
    %103 = arith.addf %61, %102 : vector<16x64xf32>
    %104 = vector.extract_strided_slice %0 {offsets = [2, 0, 0], sizes = [1, 64, 16], strides = [1, 1, 1]} : vector<4x64x16xbf16> to vector<1x64x16xbf16>
    %105 = vector.shape_cast %104 : vector<1x64x16xbf16> to vector<64x16xbf16>
    %cst_57 = arith.constant dense<0.000000e+00> : vector<16x16xf32>
    %106 = tpu.matmul %18, %105, %cst_57 {dimension_numbers = #tpu.dot_dimension_numbers<[1], [0], [0], [1], [0, 0, 1, 1], [], []>} : vector<16x64xbf16>, vector<64x16xbf16>, vector<16x16xf32> -> vector<16x16xf32>
    %107 = vector.extract_strided_slice %1 {offsets = [2, 0, 0], sizes = [1, 1, 16], strides = [1, 1, 1]} : vector<4x1x16xf32> to vector<1x1x16xf32>
    %108 = vector.shape_cast %107 : vector<1x1x16xf32> to vector<1x16xf32>
    %109 = vector.broadcast %108 : vector<1x16xf32> to vector<16x16xf32>
    %110 = arith.addf %106, %109 : vector<16x16xf32>
    %111 = vector.extract_strided_slice %2 {offsets = [2, 0, 0], sizes = [1, 64, 16], strides = [1, 1, 1]} : vector<4x64x16xbf16> to vector<1x64x16xbf16>
    %112 = vector.shape_cast %111 : vector<1x64x16xbf16> to vector<64x16xbf16>
    %cst_58 = arith.constant dense<0.000000e+00> : vector<16x16xf32>
    %113 = tpu.matmul %18, %112, %cst_58 {dimension_numbers = #tpu.dot_dimension_numbers<[1], [0], [0], [1], [0, 0, 1, 1], [], []>} : vector<16x64xbf16>, vector<64x16xbf16>, vector<16x16xf32> -> vector<16x16xf32>
    %114 = vector.extract_strided_slice %3 {offsets = [2, 0, 0], sizes = [1, 1, 16], strides = [1, 1, 1]} : vector<4x1x16xf32> to vector<1x1x16xf32>
    %115 = vector.shape_cast %114 : vector<1x1x16xf32> to vector<1x16xf32>
    %116 = vector.broadcast %115 : vector<1x16xf32> to vector<16x16xf32>
    %117 = arith.addf %113, %116 : vector<16x16xf32>
    %118 = vector.extract_strided_slice %4 {offsets = [2, 0, 0], sizes = [1, 64, 16], strides = [1, 1, 1]} : vector<4x64x16xbf16> to vector<1x64x16xbf16>
    %119 = vector.shape_cast %118 : vector<1x64x16xbf16> to vector<64x16xbf16>
    %cst_59 = arith.constant dense<0.000000e+00> : vector<16x16xf32>
    %120 = tpu.matmul %18, %119, %cst_59 {dimension_numbers = #tpu.dot_dimension_numbers<[1], [0], [0], [1], [0, 0, 1, 1], [], []>} : vector<16x64xbf16>, vector<64x16xbf16>, vector<16x16xf32> -> vector<16x16xf32>
    %121 = vector.extract_strided_slice %5 {offsets = [2, 0, 0], sizes = [1, 1, 16], strides = [1, 1, 1]} : vector<4x1x16xf32> to vector<1x1x16xf32>
    %122 = vector.shape_cast %121 : vector<1x1x16xf32> to vector<1x16xf32>
    %123 = vector.broadcast %122 : vector<1x16xf32> to vector<16x16xf32>
    %124 = arith.addf %120, %123 : vector<16x16xf32>
    %125 = arith.truncf %110 : vector<16x16xf32> to vector<16x16xbf16>
    %126 = arith.truncf %117 : vector<16x16xf32> to vector<16x16xbf16>
    %cst_60 = arith.constant dense<0.000000e+00> : vector<16x16xf32>
    %127 = tpu.matmul %125, %126, %cst_60 {dimension_numbers = #tpu.dot_dimension_numbers<[1], [1], [0], [0], [0, 0, 1, 0], [], []>} : vector<16x16xbf16>, vector<16x16xbf16>, vector<16x16xf32> -> vector<16x16xf32>
    %cst_61 = arith.constant dense<0xFF800000> : vector<16xf32>
    %128 = vector.multi_reduction <maximumf>, %127, %cst_61 [1] : vector<16x16xf32> to vector<16xf32>
    %129 = vector.shape_cast %128 : vector<16xf32> to vector<16x1xf32>
    %130 = vector.broadcast %129 : vector<16x1xf32> to vector<16x16xf32>
    %131 = arith.subf %127, %130 : vector<16x16xf32>
    %132 = math.exp %131 : vector<16x16xf32>
    %cst_62 = arith.constant dense<0.000000e+00> : vector<16xf32>
    %133 = vector.multi_reduction <add>, %132, %cst_62 [1] : vector<16x16xf32> to vector<16xf32>
    %134 = vector.shape_cast %133 : vector<16xf32> to vector<16x1xf32>
    %135 = tpu.reciprocal %134 {approx = true} : vector<16x1xf32> -> vector<16x1xf32>
    %136 = vector.broadcast %135 : vector<16x1xf32> to vector<16x16xf32>
    %137 = arith.mulf %132, %136 : vector<16x16xf32>
    %138 = arith.truncf %137 : vector<16x16xf32> to vector<16x16xbf16>
    %139 = arith.truncf %124 : vector<16x16xf32> to vector<16x16xbf16>
    %cst_63 = arith.constant dense<0.000000e+00> : vector<16x16xf32>
    %140 = tpu.matmul %138, %139, %cst_63 {dimension_numbers = #tpu.dot_dimension_numbers<[1], [0], [0], [1], [0, 0, 1, 1], [], []>} : vector<16x16xbf16>, vector<16x16xbf16>, vector<16x16xf32> -> vector<16x16xf32>
    %141 = arith.truncf %140 : vector<16x16xf32> to vector<16x16xbf16>
    %142 = vector.extract_strided_slice %6 {offsets = [2, 0, 0], sizes = [1, 16, 64], strides = [1, 1, 1]} : vector<4x16x64xbf16> to vector<1x16x64xbf16>
    %143 = vector.shape_cast %142 : vector<1x16x64xbf16> to vector<16x64xbf16>
    %cst_64 = arith.constant dense<0.000000e+00> : vector<16x64xf32>
    %144 = tpu.matmul %141, %143, %cst_64 {dimension_numbers = #tpu.dot_dimension_numbers<[1], [0], [0], [1], [0, 0, 1, 1], [], []>} : vector<16x16xbf16>, vector<16x64xbf16>, vector<16x64xf32> -> vector<16x64xf32>
    %145 = arith.addf %103, %144 : vector<16x64xf32>
    %146 = vector.extract_strided_slice %0 {offsets = [3, 0, 0], sizes = [1, 64, 16], strides = [1, 1, 1]} : vector<4x64x16xbf16> to vector<1x64x16xbf16>
    %147 = vector.shape_cast %146 : vector<1x64x16xbf16> to vector<64x16xbf16>
    %cst_65 = arith.constant dense<0.000000e+00> : vector<16x16xf32>
    %148 = tpu.matmul %18, %147, %cst_65 {dimension_numbers = #tpu.dot_dimension_numbers<[1], [0], [0], [1], [0, 0, 1, 1], [], []>} : vector<16x64xbf16>, vector<64x16xbf16>, vector<16x16xf32> -> vector<16x16xf32>
    %149 = vector.extract_strided_slice %1 {offsets = [3, 0, 0], sizes = [1, 1, 16], strides = [1, 1, 1]} : vector<4x1x16xf32> to vector<1x1x16xf32>
    %150 = vector.shape_cast %149 : vector<1x1x16xf32> to vector<1x16xf32>
    %151 = vector.broadcast %150 : vector<1x16xf32> to vector<16x16xf32>
    %152 = arith.addf %148, %151 : vector<16x16xf32>
    %153 = vector.extract_strided_slice %2 {offsets = [3, 0, 0], sizes = [1, 64, 16], strides = [1, 1, 1]} : vector<4x64x16xbf16> to vector<1x64x16xbf16>
    %154 = vector.shape_cast %153 : vector<1x64x16xbf16> to vector<64x16xbf16>
    %cst_66 = arith.constant dense<0.000000e+00> : vector<16x16xf32>
    %155 = tpu.matmul %18, %154, %cst_66 {dimension_numbers = #tpu.dot_dimension_numbers<[1], [0], [0], [1], [0, 0, 1, 1], [], []>} : vector<16x64xbf16>, vector<64x16xbf16>, vector<16x16xf32> -> vector<16x16xf32>
    %156 = vector.extract_strided_slice %3 {offsets = [3, 0, 0], sizes = [1, 1, 16], strides = [1, 1, 1]} : vector<4x1x16xf32> to vector<1x1x16xf32>
    %157 = vector.shape_cast %156 : vector<1x1x16xf32> to vector<1x16xf32>
    %158 = vector.broadcast %157 : vector<1x16xf32> to vector<16x16xf32>
    %159 = arith.addf %155, %158 : vector<16x16xf32>
    %160 = vector.extract_strided_slice %4 {offsets = [3, 0, 0], sizes = [1, 64, 16], strides = [1, 1, 1]} : vector<4x64x16xbf16> to vector<1x64x16xbf16>
    %161 = vector.shape_cast %160 : vector<1x64x16xbf16> to vector<64x16xbf16>
    %cst_67 = arith.constant dense<0.000000e+00> : vector<16x16xf32>
    %162 = tpu.matmul %18, %161, %cst_67 {dimension_numbers = #tpu.dot_dimension_numbers<[1], [0], [0], [1], [0, 0, 1, 1], [], []>} : vector<16x64xbf16>, vector<64x16xbf16>, vector<16x16xf32> -> vector<16x16xf32>
    %163 = vector.extract_strided_slice %5 {offsets = [3, 0, 0], sizes = [1, 1, 16], strides = [1, 1, 1]} : vector<4x1x16xf32> to vector<1x1x16xf32>
    %164 = vector.shape_cast %163 : vector<1x1x16xf32> to vector<1x16xf32>
    %165 = vector.broadcast %164 : vector<1x16xf32> to vector<16x16xf32>
    %166 = arith.addf %162, %165 : vector<16x16xf32>
    %167 = arith.truncf %152 : vector<16x16xf32> to vector<16x16xbf16>
    %168 = arith.truncf %159 : vector<16x16xf32> to vector<16x16xbf16>
    %cst_68 = arith.constant dense<0.000000e+00> : vector<16x16xf32>
    %169 = tpu.matmul %167, %168, %cst_68 {dimension_numbers = #tpu.dot_dimension_numbers<[1], [1], [0], [0], [0, 0, 1, 0], [], []>} : vector<16x16xbf16>, vector<16x16xbf16>, vector<16x16xf32> -> vector<16x16xf32>
    %cst_69 = arith.constant dense<0xFF800000> : vector<16xf32>
    %170 = vector.multi_reduction <maximumf>, %169, %cst_69 [1] : vector<16x16xf32> to vector<16xf32>
    %171 = vector.shape_cast %170 : vector<16xf32> to vector<16x1xf32>
    %172 = vector.broadcast %171 : vector<16x1xf32> to vector<16x16xf32>
    %173 = arith.subf %169, %172 : vector<16x16xf32>
    %174 = math.exp %173 : vector<16x16xf32>
    %cst_70 = arith.constant dense<0.000000e+00> : vector<16xf32>
    %175 = vector.multi_reduction <add>, %174, %cst_70 [1] : vector<16x16xf32> to vector<16xf32>
    %176 = vector.shape_cast %175 : vector<16xf32> to vector<16x1xf32>
    %177 = tpu.reciprocal %176 {approx = true} : vector<16x1xf32> -> vector<16x1xf32>
    %178 = vector.broadcast %177 : vector<16x1xf32> to vector<16x16xf32>
    %179 = arith.mulf %174, %178 : vector<16x16xf32>
    %180 = arith.truncf %179 : vector<16x16xf32> to vector<16x16xbf16>
    %181 = arith.truncf %166 : vector<16x16xf32> to vector<16x16xbf16>
    %cst_71 = arith.constant dense<0.000000e+00> : vector<16x16xf32>
    %182 = tpu.matmul %180, %181, %cst_71 {dimension_numbers = #tpu.dot_dimension_numbers<[1], [0], [0], [1], [0, 0, 1, 1], [], []>} : vector<16x16xbf16>, vector<16x16xbf16>, vector<16x16xf32> -> vector<16x16xf32>
    %183 = arith.truncf %182 : vector<16x16xf32> to vector<16x16xbf16>
    %184 = vector.extract_strided_slice %6 {offsets = [3, 0, 0], sizes = [1, 16, 64], strides = [1, 1, 1]} : vector<4x16x64xbf16> to vector<1x16x64xbf16>
    %185 = vector.shape_cast %184 : vector<1x16x64xbf16> to vector<16x64xbf16>
    %cst_72 = arith.constant dense<0.000000e+00> : vector<16x64xf32>
    %186 = tpu.matmul %183, %185, %cst_72 {dimension_numbers = #tpu.dot_dimension_numbers<[1], [0], [0], [1], [0, 0, 1, 1], [], []>} : vector<16x16xbf16>, vector<16x64xbf16>, vector<16x64xf32> -> vector<16x64xf32>
    %187 = arith.addf %145, %186 : vector<16x64xf32>
    %188 = vector.broadcast %7 : vector<1x64xf32> to vector<16x64xf32>
    %189 = arith.addf %187, %188 : vector<16x64xf32>
    %190 = arith.addf %17, %189 : vector<16x64xf32>
    %cst_73 = arith.constant dense<0.000000e+00> : vector<16xf32>
    %191 = vector.multi_reduction <add>, %190, %cst_73 [1] : vector<16x64xf32> to vector<16xf32>
    %192 = vector.shape_cast %191 : vector<16xf32> to vector<16x1xf32>
    %cst_74 = arith.constant 6.400000e+01 : f32
    %193 = vector.broadcast %cst_74 : f32 to vector<16x1xf32>
    %194 = arith.divf %192, %193 : vector<16x1xf32>
    %195 = vector.broadcast %194 : vector<16x1xf32> to vector<16x64xf32>
    %196 = arith.subf %190, %195 : vector<16x64xf32>
    %197 = arith.mulf %196, %196 : vector<16x64xf32>
    %cst_75 = arith.constant dense<0.000000e+00> : vector<16xf32>
    %198 = vector.multi_reduction <add>, %197, %cst_75 [1] : vector<16x64xf32> to vector<16xf32>
    %199 = vector.shape_cast %198 : vector<16xf32> to vector<16x1xf32>
    %cst_76 = arith.constant 6.400000e+01 : f32
    %200 = vector.broadcast %cst_76 : f32 to vector<16x1xf32>
    %201 = arith.divf %199, %200 : vector<16x1xf32>
    %202 = vector.broadcast %194 : vector<16x1xf32> to vector<16x64xf32>
    %203 = arith.subf %190, %202 : vector<16x64xf32>
    %cst_77 = arith.constant 9.99999974E-6 : f32
    %204 = vector.broadcast %cst_77 : f32 to vector<16x1xf32>
    %205 = arith.addf %201, %204 : vector<16x1xf32>
    %206 = math.rsqrt %205 : vector<16x1xf32>
    %207 = vector.broadcast %206 : vector<16x1xf32> to vector<16x64xf32>
    %208 = arith.mulf %203, %207 : vector<16x64xf32>
    %209 = vector.broadcast %8 : vector<1x64xf32> to vector<16x64xf32>
    %210 = arith.mulf %208, %209 : vector<16x64xf32>
    %211 = vector.broadcast %9 : vector<1x64xf32> to vector<16x64xf32>
    %212 = arith.addf %210, %211 : vector<16x64xf32>
    %213 = arith.truncf %212 : vector<16x64xf32> to vector<16x64xbf16>
    %cst_78 = arith.constant dense<0.000000e+00> : vector<16x256xf32>
    %214 = tpu.matmul %213, %10, %cst_78 {dimension_numbers = #tpu.dot_dimension_numbers<[1], [0], [0], [1], [0, 0, 1, 1], [], []>} : vector<16x64xbf16>, vector<64x256xbf16>, vector<16x256xf32> -> vector<16x256xf32>
    %215 = vector.broadcast %11 : vector<1x256xf32> to vector<16x256xf32>
    %216 = arith.addf %214, %215 : vector<16x256xf32>
    %cst_79 = arith.constant 0.000000e+00 : f32
    %217 = vector.broadcast %cst_79 : f32 to vector<16x256xf32>
    %218 = arith.maximumf %216, %217 : vector<16x256xf32>
    %219 = arith.truncf %218 : vector<16x256xf32> to vector<16x256xbf16>
    %cst_80 = arith.constant dense<0.000000e+00> : vector<16x64xf32>
    %220 = tpu.matmul %219, %12, %cst_80 {dimension_numbers = #tpu.dot_dimension_numbers<[1], [0], [0], [1], [0, 0, 1, 1], [], []>} : vector<16x256xbf16>, vector<256x64xbf16>, vector<16x64xf32> -> vector<16x64xf32>
    %221 = vector.broadcast %13 : vector<1x64xf32> to vector<16x64xf32>
    %222 = arith.addf %220, %221 : vector<16x64xf32>
    %223 = arith.addf %212, %222 : vector<16x64xf32>
    %cst_81 = arith.constant dense<0.000000e+00> : vector<16xf32>
    %224 = vector.multi_reduction <add>, %223, %cst_81 [1] : vector<16x64xf32> to vector<16xf32>
    %225 = vector.shape_cast %224 : vector<16xf32> to vector<16x1xf32>
    %cst_82 = arith.constant 6.400000e+01 : f32
    %226 = vector.broadcast %cst_82 : f32 to vector<16x1xf32>
    %227 = arith.divf %225, %226 : vector<16x1xf32>
    %228 = vector.broadcast %227 : vector<16x1xf32> to vector<16x64xf32>
    %229 = arith.subf %223, %228 : vector<16x64xf32>
    %230 = arith.mulf %229, %229 : vector<16x64xf32>
    %cst_83 = arith.constant dense<0.000000e+00> : vector<16xf32>
    %231 = vector.multi_reduction <add>, %230, %cst_83 [1] : vector<16x64xf32> to vector<16xf32>
    %232 = vector.shape_cast %231 : vector<16xf32> to vector<16x1xf32>
    %cst_84 = arith.constant 6.400000e+01 : f32
    %233 = vector.broadcast %cst_84 : f32 to vector<16x1xf32>
    %234 = arith.divf %232, %233 : vector<16x1xf32>
    %235 = vector.broadcast %227 : vector<16x1xf32> to vector<16x64xf32>
    %236 = arith.subf %223, %235 : vector<16x64xf32>
    %cst_85 = arith.constant 9.99999974E-6 : f32
    %237 = vector.broadcast %cst_85 : f32 to vector<16x1xf32>
    %238 = arith.addf %234, %237 : vector<16x1xf32>
    %239 = math.rsqrt %238 : vector<16x1xf32>
    %240 = vector.broadcast %239 : vector<16x1xf32> to vector<16x64xf32>
    %241 = arith.mulf %236, %240 : vector<16x64xf32>
    %242 = vector.broadcast %14 : vector<1x64xf32> to vector<16x64xf32>
    %243 = arith.mulf %241, %242 : vector<16x64xf32>
    %244 = vector.broadcast %15 : vector<1x64xf32> to vector<16x64xf32>
    %245 = arith.addf %243, %244 : vector<16x64xf32>
    %c0_86 = arith.constant 0 : index
    %c0_87 = arith.constant 0 : index
    %c0_88 = arith.constant 0 : index
    %246 = vector.load %arg18[%c0_86, %c0_87, %c0_88] : memref<1x16x64xf32, #tpu.memory_space<vmem>>, vector<1x16x64xf32>
    %247 = vector.shape_cast %246 : vector<1x16x64xf32> to vector<16x64xf32>
    %248 = vector.shape_cast %245 : vector<16x64xf32> to vector<1x16x64xf32>
    tpu.vector_store %arg18[%c0_86, %c0_87, %c0_88], %248 {strides = array<i32>} : memref<1x16x64xf32, #tpu.memory_space<vmem>>, vector<1x16x64xf32>,
    return
  }
  func.func @transform_0(%arg0: i32) -> (i32, i32, i32) {
    %c0_i32 = arith.constant 0 : i32
    %c0_i32_0 = arith.constant 0 : i32
    %c0_i32_1 = arith.constant 0 : i32
    return %arg0, %c0_i32, %c0_i32_0 : i32, i32, i32
  }
  func.func @transform_1(%arg0: i32) -> (i32, i32, i32) {
    %c0_i32 = arith.constant 0 : i32
    %c0_i32_0 = arith.constant 0 : i32
    %c0_i32_1 = arith.constant 0 : i32
    %c0_i32_2 = arith.constant 0 : i32
    return %c0_i32, %c0_i32_0, %c0_i32_1 : i32, i32, i32
  }
  func.func @transform_2(%arg0: i32) -> (i32, i32, i32) {
    %c0_i32 = arith.constant 0 : i32
    %c0_i32_0 = arith.constant 0 : i32
    %c0_i32_1 = arith.constant 0 : i32
    %c0_i32_2 = arith.constant 0 : i32
    return %c0_i32, %c0_i32_0, %c0_i32_1 : i32, i32, i32
  }
  func.func @transform_3(%arg0: i32) -> (i32, i32, i32) {
    %c0_i32 = arith.constant 0 : i32
    %c0_i32_0 = arith.constant 0 : i32
    %c0_i32_1 = arith.constant 0 : i32
    %c0_i32_2 = arith.constant 0 : i32
    return %c0_i32, %c0_i32_0, %c0_i32_1 : i32, i32, i32
  }
  func.func @transform_4(%arg0: i32) -> (i32, i32, i32) {
    %c0_i32 = arith.constant 0 : i32
    %c0_i32_0 = arith.constant 0 : i32
    %c0_i32_1 = arith.constant 0 : i32
    %c0_i32_2 = arith.constant 0 : i32
    return %c0_i32, %c0_i32_0, %c0_i32_1 : i32, i32, i32
  }
  func.func @transform_5(%arg0: i32) -> (i32, i32, i32) {
    %c0_i32 = arith.constant 0 : i32
    %c0_i32_0 = arith.constant 0 : i32
    %c0_i32_1 = arith.constant 0 : i32
    %c0_i32_2 = arith.constant 0 : i32
    return %c0_i32, %c0_i32_0, %c0_i32_1 : i32, i32, i32
  }
  func.func @transform_6(%arg0: i32) -> (i32, i32, i32) {
    %c0_i32 = arith.constant 0 : i32
    %c0_i32_0 = arith.constant 0 : i32
    %c0_i32_1 = arith.constant 0 : i32
    %c0_i32_2 = arith.constant 0 : i32
    return %c0_i32, %c0_i32_0, %c0_i32_1 : i32, i32, i32
  }
  func.func @transform_7(%arg0: i32) -> (i32, i32, i32) {
    %c0_i32 = arith.constant 0 : i32
    %c0_i32_0 = arith.constant 0 : i32
    %c0_i32_1 = arith.constant 0 : i32
    %c0_i32_2 = arith.constant 0 : i32
    return %c0_i32, %c0_i32_0, %c0_i32_1 : i32, i32, i32
  }
  func.func @transform_8(%arg0: i32) -> (i32, i32) {
    %c0_i32 = arith.constant 0 : i32
    %c0_i32_0 = arith.constant 0 : i32
    %c0_i32_1 = arith.constant 0 : i32
    return %c0_i32, %c0_i32_0 : i32, i32
  }
  func.func @transform_9(%arg0: i32) -> (i32, i32) {
    %c0_i32 = arith.constant 0 : i32
    %c0_i32_0 = arith.constant 0 : i32
    %c0_i32_1 = arith.constant 0 : i32
    return %c0_i32, %c0_i32_0 : i32, i32
  }
  func.func @transform_10(%arg0: i32) -> (i32, i32) {
    %c0_i32 = arith.constant 0 : i32
    %c0_i32_0 = arith.constant 0 : i32
    %c0_i32_1 = arith.constant 0 : i32
    return %c0_i32, %c0_i32_0 : i32, i32
  }
  func.func @transform_11(%arg0: i32) -> (i32, i32) {
    %c0_i32 = arith.constant 0 : i32
    %c0_i32_0 = arith.constant 0 : i32
    %c0_i32_1 = arith.constant 0 : i32
    return %c0_i32, %c0_i32_0 : i32, i32
  }
  func.func @transform_12(%arg0: i32) -> (i32, i32) {
    %c0_i32 = arith.constant 0 : i32
    %c0_i32_0 = arith.constant 0 : i32
    %c0_i32_1 = arith.constant 0 : i32
    return %c0_i32, %c0_i32_0 : i32, i32
  }
  func.func @transform_13(%arg0: i32) -> (i32, i32) {
    %c0_i32 = arith.constant 0 : i32
    %c0_i32_0 = arith.constant 0 : i32
    %c0_i32_1 = arith.constant 0 : i32
    return %c0_i32, %c0_i32_0 : i32, i32
  }
  func.func @transform_14(%arg0: i32) -> (i32, i32) {
    %c0_i32 = arith.constant 0 : i32
    %c0_i32_0 = arith.constant 0 : i32
    %c0_i32_1 = arith.constant 0 : i32
    return %c0_i32, %c0_i32_0 : i32, i32
  }
  func.func @transform_15(%arg0: i32) -> (i32, i32) {
    %c0_i32 = arith.constant 0 : i32
    %c0_i32_0 = arith.constant 0 : i32
    %c0_i32_1 = arith.constant 0 : i32
    return %c0_i32, %c0_i32_0 : i32, i32
  }
  func.func @transform_16(%arg0: i32) -> (i32, i32) {
    %c0_i32 = arith.constant 0 : i32
    %c0_i32_0 = arith.constant 0 : i32
    %c0_i32_1 = arith.constant 0 : i32
    return %c0_i32, %c0_i32_0 : i32, i32
  }
  func.func @transform_17(%arg0: i32) -> (i32, i32, i32) {
    %c0_i32 = arith.constant 0 : i32
    %c0_i32_0 = arith.constant 0 : i32
    %c0_i32_1 = arith.constant 0 : i32
    return %arg0, %c0_i32, %c0_i32_0 : i32, i32, i32
  }
}

module attributes {stable_mosaic.version = 11 : i64} {
  func.func @predictor_pair_kernel(%arg0: i32, %arg1: memref<1x16x64xf32, #tpu.memory_space<vmem>>, %arg2: memref<3x64x32xbf16, #tpu.memory_space<vmem>>, %arg3: memref<1x32xf32, #tpu.memory_space<vmem>>, %arg4: memref<1x32xf32, #tpu.memory_space<vmem>>, %arg5: memref<1x32xf32, #tpu.memory_space<vmem>>, %arg6: memref<3x32x32xbf16, #tpu.memory_space<vmem>>, %arg7: memref<1x32xf32, #tpu.memory_space<vmem>>, %arg8: memref<1x32xf32, #tpu.memory_space<vmem>>, %arg9: memref<1x32xf32, #tpu.memory_space<vmem>>, %arg10: memref<3x32x32xbf16, #tpu.memory_space<vmem>>, %arg11: memref<1x32xf32, #tpu.memory_space<vmem>>, %arg12: memref<1x32xf32, #tpu.memory_space<vmem>>, %arg13: memref<1x32xf32, #tpu.memory_space<vmem>>, %arg14: memref<1x32xbf16, #tpu.memory_space<vmem>>, %arg15: memref<1x1xf32, #tpu.memory_space<vmem>>, %arg16: memref<3x64x32xbf16, #tpu.memory_space<vmem>>, %arg17: memref<1x32xf32, #tpu.memory_space<vmem>>, %arg18: memref<1x32xf32, #tpu.memory_space<vmem>>, %arg19: memref<1x32xf32, #tpu.memory_space<vmem>>, %arg20: memref<3x32x32xbf16, #tpu.memory_space<vmem>>, %arg21: memref<1x32xf32, #tpu.memory_space<vmem>>, %arg22: memref<1x32xf32, #tpu.memory_space<vmem>>, %arg23: memref<1x32xf32, #tpu.memory_space<vmem>>, %arg24: memref<3x32x32xbf16, #tpu.memory_space<vmem>>, %arg25: memref<1x32xf32, #tpu.memory_space<vmem>>, %arg26: memref<1x32xf32, #tpu.memory_space<vmem>>, %arg27: memref<1x32xf32, #tpu.memory_space<vmem>>, %arg28: memref<1x32xbf16, #tpu.memory_space<vmem>>, %arg29: memref<1x1xf32, #tpu.memory_space<vmem>>, %arg30: memref<1x2x16xf32, #tpu.memory_space<vmem>>) attributes {dimension_semantics = [#tpu.dimension_semantics<parallel>], iteration_bounds = array<i64: 2>, scalar_prefetch = 0 : i64, scratch_operands = 0 : i64, tpu.core_type = #tpu.core_type<tc>, window_params = [{transform_indices = @transform_0, window_bounds = array<i64: 1, 16, 64>}, {pipeline_mode = #tpu.pipeline_mode<synchronous>, transform_indices = @transform_1, window_bounds = array<i64: 3, 64, 32>}, {pipeline_mode = #tpu.pipeline_mode<synchronous>, transform_indices = @transform_2, window_bounds = array<i64: 1, 32>}, {pipeline_mode = #tpu.pipeline_mode<synchronous>, transform_indices = @transform_3, window_bounds = array<i64: 1, 32>}, {pipeline_mode = #tpu.pipeline_mode<synchronous>, transform_indices = @transform_4, window_bounds = array<i64: 1, 32>}, {pipeline_mode = #tpu.pipeline_mode<synchronous>, transform_indices = @transform_5, window_bounds = array<i64: 3, 32, 32>}, {pipeline_mode = #tpu.pipeline_mode<synchronous>, transform_indices = @transform_6, window_bounds = array<i64: 1, 32>}, {pipeline_mode = #tpu.pipeline_mode<synchronous>, transform_indices = @transform_7, window_bounds = array<i64: 1, 32>}, {pipeline_mode = #tpu.pipeline_mode<synchronous>, transform_indices = @transform_8, window_bounds = array<i64: 1, 32>}, {pipeline_mode = #tpu.pipeline_mode<synchronous>, transform_indices = @transform_9, window_bounds = array<i64: 3, 32, 32>}, {pipeline_mode = #tpu.pipeline_mode<synchronous>, transform_indices = @transform_10, window_bounds = array<i64: 1, 32>}, {pipeline_mode = #tpu.pipeline_mode<synchronous>, transform_indices = @transform_11, window_bounds = array<i64: 1, 32>}, {pipeline_mode = #tpu.pipeline_mode<synchronous>, transform_indices = @transform_12, window_bounds = array<i64: 1, 32>}, {pipeline_mode = #tpu.pipeline_mode<synchronous>, transform_indices = @transform_13, window_bounds = array<i64: 1, 32>}, {pipeline_mode = #tpu.pipeline_mode<synchronous>, transform_indices = @transform_14, window_bounds = array<i64: 1, 1>}, {pipeline_mode = #tpu.pipeline_mode<synchronous>, transform_indices = @transform_15, window_bounds = array<i64: 3, 64, 32>}, {pipeline_mode = #tpu.pipeline_mode<synchronous>, transform_indices = @transform_16, window_bounds = array<i64: 1, 32>}, {pipeline_mode = #tpu.pipeline_mode<synchronous>, transform_indices = @transform_17, window_bounds = array<i64: 1, 32>}, {pipeline_mode = #tpu.pipeline_mode<synchronous>, transform_indices = @transform_18, window_bounds = array<i64: 1, 32>}, {pipeline_mode = #tpu.pipeline_mode<synchronous>, transform_indices = @transform_19, window_bounds = array<i64: 3, 32, 32>}, {pipeline_mode = #tpu.pipeline_mode<synchronous>, transform_indices = @transform_20, window_bounds = array<i64: 1, 32>}, {pipeline_mode = #tpu.pipeline_mode<synchronous>, transform_indices = @transform_21, window_bounds = array<i64: 1, 32>}, {pipeline_mode = #tpu.pipeline_mode<synchronous>, transform_indices = @transform_22, window_bounds = array<i64: 1, 32>}, {pipeline_mode = #tpu.pipeline_mode<synchronous>, transform_indices = @transform_23, window_bounds = array<i64: 3, 32, 32>}, {pipeline_mode = #tpu.pipeline_mode<synchronous>, transform_indices = @transform_24, window_bounds = array<i64: 1, 32>}, {pipeline_mode = #tpu.pipeline_mode<synchronous>, transform_indices = @transform_25, window_bounds = array<i64: 1, 32>}, {pipeline_mode = #tpu.pipeline_mode<synchronous>, transform_indices = @transform_26, window_bounds = array<i64: 1, 32>}, {pipeline_mode = #tpu.pipeline_mode<synchronous>, transform_indices = @transform_27, window_bounds = array<i64: 1, 32>}, {pipeline_mode = #tpu.pipeline_mode<synchronous>, transform_indices = @transform_28, window_bounds = array<i64: 1, 1>}, {transform_indices = @transform_29, window_bounds = array<i64: 1, 2, 16>}]} {
    %c0 = arith.constant 0 : index
    %c0_0 = arith.constant 0 : index
    %c0_1 = arith.constant 0 : index
    %0 = vector.load %arg1[%c0, %c0_0, %c0_1] : memref<1x16x64xf32, #tpu.memory_space<vmem>>, vector<1x16x64xf32>
    %1 = vector.shape_cast %0 : vector<1x16x64xf32> to vector<16x64xf32>
    %c0_2 = arith.constant 0 : index
    %c0_3 = arith.constant 0 : index
    %c0_4 = arith.constant 0 : index
    %2 = vector.load %arg2[%c0_2, %c0_3, %c0_4] : memref<3x64x32xbf16, #tpu.memory_space<vmem>>, vector<3x64x32xbf16>
    %c0_5 = arith.constant 0 : index
    %c0_6 = arith.constant 0 : index
    %3 = vector.load %arg3[%c0_5, %c0_6] : memref<1x32xf32, #tpu.memory_space<vmem>>, vector<1x32xf32>
    %c0_7 = arith.constant 0 : index
    %c0_8 = arith.constant 0 : index
    %4 = vector.load %arg4[%c0_7, %c0_8] : memref<1x32xf32, #tpu.memory_space<vmem>>, vector<1x32xf32>
    %c0_9 = arith.constant 0 : index
    %c0_10 = arith.constant 0 : index
    %5 = vector.load %arg5[%c0_9, %c0_10] : memref<1x32xf32, #tpu.memory_space<vmem>>, vector<1x32xf32>
    %6 = tpu.iota {dimensions = array<i32: 0>} : vector<16x1xi32>
    %cst = arith.constant 0.000000e+00 : f32
    %7 = vector.broadcast %cst : f32 to vector<16x32xf32>
    %c1_i32 = arith.constant 1 : i32
    %8 = tpu.dynamic_rotate %1 by %c1_i32 dim 0 : vector<16x64xf32>, i32 -> vector<16x64xf32>
    %c-1_i32 = arith.constant -1 : i32
    %9 = vector.broadcast %c-1_i32 : i32 to vector<16x1xi32>
    %10 = arith.addi %6, %9 : vector<16x1xi32>
    %c0_i32 = arith.constant 0 : i32
    %11 = vector.broadcast %c0_i32 : i32 to vector<16x1xi32>
    %12 = arith.cmpi sge, %10, %11 : vector<16x1xi32>
    %c-1_i32_11 = arith.constant -1 : i32
    %13 = vector.broadcast %c-1_i32_11 : i32 to vector<16x1xi32>
    %14 = arith.addi %6, %13 : vector<16x1xi32>
    %c16_i32 = arith.constant 16 : i32
    %15 = vector.broadcast %c16_i32 : i32 to vector<16x1xi32>
    %16 = arith.cmpi slt, %14, %15 : vector<16x1xi32>
    %17 = arith.andi %12, %16 : vector<16x1xi1>
    %cst_12 = arith.constant 0.000000e+00 : f32
    %18 = vector.shape_cast %17 : vector<16x1xi1> to vector<16x1xi1>
    %19 = vector.broadcast %18 : vector<16x1xi1> to vector<16x64xi1>
    %20 = vector.broadcast %cst_12 : f32 to vector<16x64xf32>
    %21 = arith.select %19, %8, %20 : vector<16x64xi1>, vector<16x64xf32>
    %22 = arith.truncf %21 : vector<16x64xf32> to vector<16x64xbf16>
    %23 = vector.extract_strided_slice %2 {offsets = [0, 0, 0], sizes = [1, 64, 32], strides = [1, 1, 1]} : vector<3x64x32xbf16> to vector<1x64x32xbf16>
    %24 = vector.shape_cast %23 : vector<1x64x32xbf16> to vector<64x32xbf16>
    %cst_13 = arith.constant dense<0.000000e+00> : vector<16x32xf32>
    %25 = tpu.matmul %22, %24, %cst_13 {dimension_numbers = #tpu.dot_dimension_numbers<[1], [0], [0], [1], [0, 0, 1, 1], [], []>} : vector<16x64xbf16>, vector<64x32xbf16>, vector<16x32xf32> -> vector<16x32xf32>
    %26 = arith.addf %7, %25 : vector<16x32xf32>
    %27 = arith.truncf %1 : vector<16x64xf32> to vector<16x64xbf16>
    %28 = vector.extract_strided_slice %2 {offsets = [1, 0, 0], sizes = [1, 64, 32], strides = [1, 1, 1]} : vector<3x64x32xbf16> to vector<1x64x32xbf16>
    %29 = vector.shape_cast %28 : vector<1x64x32xbf16> to vector<64x32xbf16>
    %cst_14 = arith.constant dense<0.000000e+00> : vector<16x32xf32>
    %30 = tpu.matmul %27, %29, %cst_14 {dimension_numbers = #tpu.dot_dimension_numbers<[1], [0], [0], [1], [0, 0, 1, 1], [], []>} : vector<16x64xbf16>, vector<64x32xbf16>, vector<16x32xf32> -> vector<16x32xf32>
    %31 = arith.addf %26, %30 : vector<16x32xf32>
    %c15_i32 = arith.constant 15 : i32
    %32 = tpu.dynamic_rotate %1 by %c15_i32 dim 0 : vector<16x64xf32>, i32 -> vector<16x64xf32>
    %c1_i32_15 = arith.constant 1 : i32
    %33 = vector.broadcast %c1_i32_15 : i32 to vector<16x1xi32>
    %34 = arith.addi %6, %33 : vector<16x1xi32>
    %c0_i32_16 = arith.constant 0 : i32
    %35 = vector.broadcast %c0_i32_16 : i32 to vector<16x1xi32>
    %36 = arith.cmpi sge, %34, %35 : vector<16x1xi32>
    %c1_i32_17 = arith.constant 1 : i32
    %37 = vector.broadcast %c1_i32_17 : i32 to vector<16x1xi32>
    %38 = arith.addi %6, %37 : vector<16x1xi32>
    %c16_i32_18 = arith.constant 16 : i32
    %39 = vector.broadcast %c16_i32_18 : i32 to vector<16x1xi32>
    %40 = arith.cmpi slt, %38, %39 : vector<16x1xi32>
    %41 = arith.andi %36, %40 : vector<16x1xi1>
    %cst_19 = arith.constant 0.000000e+00 : f32
    %42 = vector.shape_cast %41 : vector<16x1xi1> to vector<16x1xi1>
    %43 = vector.broadcast %42 : vector<16x1xi1> to vector<16x64xi1>
    %44 = vector.broadcast %cst_19 : f32 to vector<16x64xf32>
    %45 = arith.select %43, %32, %44 : vector<16x64xi1>, vector<16x64xf32>
    %46 = arith.truncf %45 : vector<16x64xf32> to vector<16x64xbf16>
    %47 = vector.extract_strided_slice %2 {offsets = [2, 0, 0], sizes = [1, 64, 32], strides = [1, 1, 1]} : vector<3x64x32xbf16> to vector<1x64x32xbf16>
    %48 = vector.shape_cast %47 : vector<1x64x32xbf16> to vector<64x32xbf16>
    %cst_20 = arith.constant dense<0.000000e+00> : vector<16x32xf32>
    %49 = tpu.matmul %46, %48, %cst_20 {dimension_numbers = #tpu.dot_dimension_numbers<[1], [0], [0], [1], [0, 0, 1, 1], [], []>} : vector<16x64xbf16>, vector<64x32xbf16>, vector<16x32xf32> -> vector<16x32xf32>
    %50 = arith.addf %31, %49 : vector<16x32xf32>
    %51 = vector.broadcast %3 : vector<1x32xf32> to vector<16x32xf32>
    %52 = arith.addf %50, %51 : vector<16x32xf32>
    %cst_21 = arith.constant 0.000000e+00 : f32
    %53 = vector.broadcast %cst_21 : f32 to vector<16x32xf32>
    %54 = arith.maximumf %52, %53 : vector<16x32xf32>
    %cst_22 = arith.constant dense<0.000000e+00> : vector<16xf32>
    %55 = vector.multi_reduction <add>, %54, %cst_22 [1] : vector<16x32xf32> to vector<16xf32>
    %56 = vector.shape_cast %55 : vector<16xf32> to vector<16x1xf32>
    %cst_23 = arith.constant 3.200000e+01 : f32
    %57 = vector.broadcast %cst_23 : f32 to vector<16x1xf32>
    %58 = arith.divf %56, %57 : vector<16x1xf32>
    %59 = vector.broadcast %58 : vector<16x1xf32> to vector<16x32xf32>
    %60 = arith.subf %54, %59 : vector<16x32xf32>
    %61 = arith.mulf %60, %60 : vector<16x32xf32>
    %cst_24 = arith.constant dense<0.000000e+00> : vector<16xf32>
    %62 = vector.multi_reduction <add>, %61, %cst_24 [1] : vector<16x32xf32> to vector<16xf32>
    %63 = vector.shape_cast %62 : vector<16xf32> to vector<16x1xf32>
    %cst_25 = arith.constant 3.200000e+01 : f32
    %64 = vector.broadcast %cst_25 : f32 to vector<16x1xf32>
    %65 = arith.divf %63, %64 : vector<16x1xf32>
    %66 = vector.broadcast %58 : vector<16x1xf32> to vector<16x32xf32>
    %67 = arith.subf %54, %66 : vector<16x32xf32>
    %cst_26 = arith.constant 9.99999974E-6 : f32
    %68 = vector.broadcast %cst_26 : f32 to vector<16x1xf32>
    %69 = arith.addf %65, %68 : vector<16x1xf32>
    %70 = math.rsqrt %69 : vector<16x1xf32>
    %71 = vector.broadcast %70 : vector<16x1xf32> to vector<16x32xf32>
    %72 = arith.mulf %67, %71 : vector<16x32xf32>
    %73 = vector.broadcast %4 : vector<1x32xf32> to vector<16x32xf32>
    %74 = arith.mulf %72, %73 : vector<16x32xf32>
    %75 = vector.broadcast %5 : vector<1x32xf32> to vector<16x32xf32>
    %76 = arith.addf %74, %75 : vector<16x32xf32>
    %c0_27 = arith.constant 0 : index
    %c0_28 = arith.constant 0 : index
    %c0_29 = arith.constant 0 : index
    %77 = vector.load %arg6[%c0_27, %c0_28, %c0_29] : memref<3x32x32xbf16, #tpu.memory_space<vmem>>, vector<3x32x32xbf16>
    %c0_30 = arith.constant 0 : index
    %c0_31 = arith.constant 0 : index
    %78 = vector.load %arg7[%c0_30, %c0_31] : memref<1x32xf32, #tpu.memory_space<vmem>>, vector<1x32xf32>
    %c0_32 = arith.constant 0 : index
    %c0_33 = arith.constant 0 : index
    %79 = vector.load %arg8[%c0_32, %c0_33] : memref<1x32xf32, #tpu.memory_space<vmem>>, vector<1x32xf32>
    %c0_34 = arith.constant 0 : index
    %c0_35 = arith.constant 0 : index
    %80 = vector.load %arg9[%c0_34, %c0_35] : memref<1x32xf32, #tpu.memory_space<vmem>>, vector<1x32xf32>
    %81 = tpu.iota {dimensions = array<i32: 0>} : vector<16x1xi32>
    %cst_36 = arith.constant 0.000000e+00 : f32
    %82 = vector.broadcast %cst_36 : f32 to vector<16x32xf32>
    %c1_i32_37 = arith.constant 1 : i32
    %83 = tpu.dynamic_rotate %76 by %c1_i32_37 dim 0 : vector<16x32xf32>, i32 -> vector<16x32xf32>
    %c-1_i32_38 = arith.constant -1 : i32
    %84 = vector.broadcast %c-1_i32_38 : i32 to vector<16x1xi32>
    %85 = arith.addi %81, %84 : vector<16x1xi32>
    %c0_i32_39 = arith.constant 0 : i32
    %86 = vector.broadcast %c0_i32_39 : i32 to vector<16x1xi32>
    %87 = arith.cmpi sge, %85, %86 : vector<16x1xi32>
    %c-1_i32_40 = arith.constant -1 : i32
    %88 = vector.broadcast %c-1_i32_40 : i32 to vector<16x1xi32>
    %89 = arith.addi %81, %88 : vector<16x1xi32>
    %c16_i32_41 = arith.constant 16 : i32
    %90 = vector.broadcast %c16_i32_41 : i32 to vector<16x1xi32>
    %91 = arith.cmpi slt, %89, %90 : vector<16x1xi32>
    %92 = arith.andi %87, %91 : vector<16x1xi1>
    %cst_42 = arith.constant 0.000000e+00 : f32
    %93 = vector.shape_cast %92 : vector<16x1xi1> to vector<16x1xi1>
    %94 = vector.broadcast %93 : vector<16x1xi1> to vector<16x32xi1>
    %95 = vector.broadcast %cst_42 : f32 to vector<16x32xf32>
    %96 = arith.select %94, %83, %95 : vector<16x32xi1>, vector<16x32xf32>
    %97 = arith.truncf %96 : vector<16x32xf32> to vector<16x32xbf16>
    %98 = vector.extract_strided_slice %77 {offsets = [0, 0, 0], sizes = [1, 32, 32], strides = [1, 1, 1]} : vector<3x32x32xbf16> to vector<1x32x32xbf16>
    %99 = vector.shape_cast %98 : vector<1x32x32xbf16> to vector<32x32xbf16>
    %cst_43 = arith.constant dense<0.000000e+00> : vector<16x32xf32>
    %100 = tpu.matmul %97, %99, %cst_43 {dimension_numbers = #tpu.dot_dimension_numbers<[1], [0], [0], [1], [0, 0, 1, 1], [], []>} : vector<16x32xbf16>, vector<32x32xbf16>, vector<16x32xf32> -> vector<16x32xf32>
    %101 = arith.addf %82, %100 : vector<16x32xf32>
    %102 = arith.truncf %76 : vector<16x32xf32> to vector<16x32xbf16>
    %103 = vector.extract_strided_slice %77 {offsets = [1, 0, 0], sizes = [1, 32, 32], strides = [1, 1, 1]} : vector<3x32x32xbf16> to vector<1x32x32xbf16>
    %104 = vector.shape_cast %103 : vector<1x32x32xbf16> to vector<32x32xbf16>
    %cst_44 = arith.constant dense<0.000000e+00> : vector<16x32xf32>
    %105 = tpu.matmul %102, %104, %cst_44 {dimension_numbers = #tpu.dot_dimension_numbers<[1], [0], [0], [1], [0, 0, 1, 1], [], []>} : vector<16x32xbf16>, vector<32x32xbf16>, vector<16x32xf32> -> vector<16x32xf32>
    %106 = arith.addf %101, %105 : vector<16x32xf32>
    %c15_i32_45 = arith.constant 15 : i32
    %107 = tpu.dynamic_rotate %76 by %c15_i32_45 dim 0 : vector<16x32xf32>, i32 -> vector<16x32xf32>
    %c1_i32_46 = arith.constant 1 : i32
    %108 = vector.broadcast %c1_i32_46 : i32 to vector<16x1xi32>
    %109 = arith.addi %81, %108 : vector<16x1xi32>
    %c0_i32_47 = arith.constant 0 : i32
    %110 = vector.broadcast %c0_i32_47 : i32 to vector<16x1xi32>
    %111 = arith.cmpi sge, %109, %110 : vector<16x1xi32>
    %c1_i32_48 = arith.constant 1 : i32
    %112 = vector.broadcast %c1_i32_48 : i32 to vector<16x1xi32>
    %113 = arith.addi %81, %112 : vector<16x1xi32>
    %c16_i32_49 = arith.constant 16 : i32
    %114 = vector.broadcast %c16_i32_49 : i32 to vector<16x1xi32>
    %115 = arith.cmpi slt, %113, %114 : vector<16x1xi32>
    %116 = arith.andi %111, %115 : vector<16x1xi1>
    %cst_50 = arith.constant 0.000000e+00 : f32
    %117 = vector.shape_cast %116 : vector<16x1xi1> to vector<16x1xi1>
    %118 = vector.broadcast %117 : vector<16x1xi1> to vector<16x32xi1>
    %119 = vector.broadcast %cst_50 : f32 to vector<16x32xf32>
    %120 = arith.select %118, %107, %119 : vector<16x32xi1>, vector<16x32xf32>
    %121 = arith.truncf %120 : vector<16x32xf32> to vector<16x32xbf16>
    %122 = vector.extract_strided_slice %77 {offsets = [2, 0, 0], sizes = [1, 32, 32], strides = [1, 1, 1]} : vector<3x32x32xbf16> to vector<1x32x32xbf16>
    %123 = vector.shape_cast %122 : vector<1x32x32xbf16> to vector<32x32xbf16>
    %cst_51 = arith.constant dense<0.000000e+00> : vector<16x32xf32>
    %124 = tpu.matmul %121, %123, %cst_51 {dimension_numbers = #tpu.dot_dimension_numbers<[1], [0], [0], [1], [0, 0, 1, 1], [], []>} : vector<16x32xbf16>, vector<32x32xbf16>, vector<16x32xf32> -> vector<16x32xf32>
    %125 = arith.addf %106, %124 : vector<16x32xf32>
    %126 = vector.broadcast %78 : vector<1x32xf32> to vector<16x32xf32>
    %127 = arith.addf %125, %126 : vector<16x32xf32>
    %cst_52 = arith.constant 0.000000e+00 : f32
    %128 = vector.broadcast %cst_52 : f32 to vector<16x32xf32>
    %129 = arith.maximumf %127, %128 : vector<16x32xf32>
    %cst_53 = arith.constant dense<0.000000e+00> : vector<16xf32>
    %130 = vector.multi_reduction <add>, %129, %cst_53 [1] : vector<16x32xf32> to vector<16xf32>
    %131 = vector.shape_cast %130 : vector<16xf32> to vector<16x1xf32>
    %cst_54 = arith.constant 3.200000e+01 : f32
    %132 = vector.broadcast %cst_54 : f32 to vector<16x1xf32>
    %133 = arith.divf %131, %132 : vector<16x1xf32>
    %134 = vector.broadcast %133 : vector<16x1xf32> to vector<16x32xf32>
    %135 = arith.subf %129, %134 : vector<16x32xf32>
    %136 = arith.mulf %135, %135 : vector<16x32xf32>
    %cst_55 = arith.constant dense<0.000000e+00> : vector<16xf32>
    %137 = vector.multi_reduction <add>, %136, %cst_55 [1] : vector<16x32xf32> to vector<16xf32>
    %138 = vector.shape_cast %137 : vector<16xf32> to vector<16x1xf32>
    %cst_56 = arith.constant 3.200000e+01 : f32
    %139 = vector.broadcast %cst_56 : f32 to vector<16x1xf32>
    %140 = arith.divf %138, %139 : vector<16x1xf32>
    %141 = vector.broadcast %133 : vector<16x1xf32> to vector<16x32xf32>
    %142 = arith.subf %129, %141 : vector<16x32xf32>
    %cst_57 = arith.constant 9.99999974E-6 : f32
    %143 = vector.broadcast %cst_57 : f32 to vector<16x1xf32>
    %144 = arith.addf %140, %143 : vector<16x1xf32>
    %145 = math.rsqrt %144 : vector<16x1xf32>
    %146 = vector.broadcast %145 : vector<16x1xf32> to vector<16x32xf32>
    %147 = arith.mulf %142, %146 : vector<16x32xf32>
    %148 = vector.broadcast %79 : vector<1x32xf32> to vector<16x32xf32>
    %149 = arith.mulf %147, %148 : vector<16x32xf32>
    %150 = vector.broadcast %80 : vector<1x32xf32> to vector<16x32xf32>
    %151 = arith.addf %149, %150 : vector<16x32xf32>
    %c0_58 = arith.constant 0 : index
    %c0_59 = arith.constant 0 : index
    %c0_60 = arith.constant 0 : index
    %152 = vector.load %arg10[%c0_58, %c0_59, %c0_60] : memref<3x32x32xbf16, #tpu.memory_space<vmem>>, vector<3x32x32xbf16>
    %c0_61 = arith.constant 0 : index
    %c0_62 = arith.constant 0 : index
    %153 = vector.load %arg11[%c0_61, %c0_62] : memref<1x32xf32, #tpu.memory_space<vmem>>, vector<1x32xf32>
    %c0_63 = arith.constant 0 : index
    %c0_64 = arith.constant 0 : index
    %154 = vector.load %arg12[%c0_63, %c0_64] : memref<1x32xf32, #tpu.memory_space<vmem>>, vector<1x32xf32>
    %c0_65 = arith.constant 0 : index
    %c0_66 = arith.constant 0 : index
    %155 = vector.load %arg13[%c0_65, %c0_66] : memref<1x32xf32, #tpu.memory_space<vmem>>, vector<1x32xf32>
    %156 = tpu.iota {dimensions = array<i32: 0>} : vector<16x1xi32>
    %cst_67 = arith.constant 0.000000e+00 : f32
    %157 = vector.broadcast %cst_67 : f32 to vector<16x32xf32>
    %c1_i32_68 = arith.constant 1 : i32
    %158 = tpu.dynamic_rotate %151 by %c1_i32_68 dim 0 : vector<16x32xf32>, i32 -> vector<16x32xf32>
    %c-1_i32_69 = arith.constant -1 : i32
    %159 = vector.broadcast %c-1_i32_69 : i32 to vector<16x1xi32>
    %160 = arith.addi %156, %159 : vector<16x1xi32>
    %c0_i32_70 = arith.constant 0 : i32
    %161 = vector.broadcast %c0_i32_70 : i32 to vector<16x1xi32>
    %162 = arith.cmpi sge, %160, %161 : vector<16x1xi32>
    %c-1_i32_71 = arith.constant -1 : i32
    %163 = vector.broadcast %c-1_i32_71 : i32 to vector<16x1xi32>
    %164 = arith.addi %156, %163 : vector<16x1xi32>
    %c16_i32_72 = arith.constant 16 : i32
    %165 = vector.broadcast %c16_i32_72 : i32 to vector<16x1xi32>
    %166 = arith.cmpi slt, %164, %165 : vector<16x1xi32>
    %167 = arith.andi %162, %166 : vector<16x1xi1>
    %cst_73 = arith.constant 0.000000e+00 : f32
    %168 = vector.shape_cast %167 : vector<16x1xi1> to vector<16x1xi1>
    %169 = vector.broadcast %168 : vector<16x1xi1> to vector<16x32xi1>
    %170 = vector.broadcast %cst_73 : f32 to vector<16x32xf32>
    %171 = arith.select %169, %158, %170 : vector<16x32xi1>, vector<16x32xf32>
    %172 = arith.truncf %171 : vector<16x32xf32> to vector<16x32xbf16>
    %173 = vector.extract_strided_slice %152 {offsets = [0, 0, 0], sizes = [1, 32, 32], strides = [1, 1, 1]} : vector<3x32x32xbf16> to vector<1x32x32xbf16>
    %174 = vector.shape_cast %173 : vector<1x32x32xbf16> to vector<32x32xbf16>
    %cst_74 = arith.constant dense<0.000000e+00> : vector<16x32xf32>
    %175 = tpu.matmul %172, %174, %cst_74 {dimension_numbers = #tpu.dot_dimension_numbers<[1], [0], [0], [1], [0, 0, 1, 1], [], []>} : vector<16x32xbf16>, vector<32x32xbf16>, vector<16x32xf32> -> vector<16x32xf32>
    %176 = arith.addf %157, %175 : vector<16x32xf32>
    %177 = arith.truncf %151 : vector<16x32xf32> to vector<16x32xbf16>
    %178 = vector.extract_strided_slice %152 {offsets = [1, 0, 0], sizes = [1, 32, 32], strides = [1, 1, 1]} : vector<3x32x32xbf16> to vector<1x32x32xbf16>
    %179 = vector.shape_cast %178 : vector<1x32x32xbf16> to vector<32x32xbf16>
    %cst_75 = arith.constant dense<0.000000e+00> : vector<16x32xf32>
    %180 = tpu.matmul %177, %179, %cst_75 {dimension_numbers = #tpu.dot_dimension_numbers<[1], [0], [0], [1], [0, 0, 1, 1], [], []>} : vector<16x32xbf16>, vector<32x32xbf16>, vector<16x32xf32> -> vector<16x32xf32>
    %181 = arith.addf %176, %180 : vector<16x32xf32>
    %c15_i32_76 = arith.constant 15 : i32
    %182 = tpu.dynamic_rotate %151 by %c15_i32_76 dim 0 : vector<16x32xf32>, i32 -> vector<16x32xf32>
    %c1_i32_77 = arith.constant 1 : i32
    %183 = vector.broadcast %c1_i32_77 : i32 to vector<16x1xi32>
    %184 = arith.addi %156, %183 : vector<16x1xi32>
    %c0_i32_78 = arith.constant 0 : i32
    %185 = vector.broadcast %c0_i32_78 : i32 to vector<16x1xi32>
    %186 = arith.cmpi sge, %184, %185 : vector<16x1xi32>
    %c1_i32_79 = arith.constant 1 : i32
    %187 = vector.broadcast %c1_i32_79 : i32 to vector<16x1xi32>
    %188 = arith.addi %156, %187 : vector<16x1xi32>
    %c16_i32_80 = arith.constant 16 : i32
    %189 = vector.broadcast %c16_i32_80 : i32 to vector<16x1xi32>
    %190 = arith.cmpi slt, %188, %189 : vector<16x1xi32>
    %191 = arith.andi %186, %190 : vector<16x1xi1>
    %cst_81 = arith.constant 0.000000e+00 : f32
    %192 = vector.shape_cast %191 : vector<16x1xi1> to vector<16x1xi1>
    %193 = vector.broadcast %192 : vector<16x1xi1> to vector<16x32xi1>
    %194 = vector.broadcast %cst_81 : f32 to vector<16x32xf32>
    %195 = arith.select %193, %182, %194 : vector<16x32xi1>, vector<16x32xf32>
    %196 = arith.truncf %195 : vector<16x32xf32> to vector<16x32xbf16>
    %197 = vector.extract_strided_slice %152 {offsets = [2, 0, 0], sizes = [1, 32, 32], strides = [1, 1, 1]} : vector<3x32x32xbf16> to vector<1x32x32xbf16>
    %198 = vector.shape_cast %197 : vector<1x32x32xbf16> to vector<32x32xbf16>
    %cst_82 = arith.constant dense<0.000000e+00> : vector<16x32xf32>
    %199 = tpu.matmul %196, %198, %cst_82 {dimension_numbers = #tpu.dot_dimension_numbers<[1], [0], [0], [1], [0, 0, 1, 1], [], []>} : vector<16x32xbf16>, vector<32x32xbf16>, vector<16x32xf32> -> vector<16x32xf32>
    %200 = arith.addf %181, %199 : vector<16x32xf32>
    %201 = vector.broadcast %153 : vector<1x32xf32> to vector<16x32xf32>
    %202 = arith.addf %200, %201 : vector<16x32xf32>
    %cst_83 = arith.constant 0.000000e+00 : f32
    %203 = vector.broadcast %cst_83 : f32 to vector<16x32xf32>
    %204 = arith.maximumf %202, %203 : vector<16x32xf32>
    %cst_84 = arith.constant dense<0.000000e+00> : vector<16xf32>
    %205 = vector.multi_reduction <add>, %204, %cst_84 [1] : vector<16x32xf32> to vector<16xf32>
    %206 = vector.shape_cast %205 : vector<16xf32> to vector<16x1xf32>
    %cst_85 = arith.constant 3.200000e+01 : f32
    %207 = vector.broadcast %cst_85 : f32 to vector<16x1xf32>
    %208 = arith.divf %206, %207 : vector<16x1xf32>
    %209 = vector.broadcast %208 : vector<16x1xf32> to vector<16x32xf32>
    %210 = arith.subf %204, %209 : vector<16x32xf32>
    %211 = arith.mulf %210, %210 : vector<16x32xf32>
    %cst_86 = arith.constant dense<0.000000e+00> : vector<16xf32>
    %212 = vector.multi_reduction <add>, %211, %cst_86 [1] : vector<16x32xf32> to vector<16xf32>
    %213 = vector.shape_cast %212 : vector<16xf32> to vector<16x1xf32>
    %cst_87 = arith.constant 3.200000e+01 : f32
    %214 = vector.broadcast %cst_87 : f32 to vector<16x1xf32>
    %215 = arith.divf %213, %214 : vector<16x1xf32>
    %216 = vector.broadcast %208 : vector<16x1xf32> to vector<16x32xf32>
    %217 = arith.subf %204, %216 : vector<16x32xf32>
    %cst_88 = arith.constant 9.99999974E-6 : f32
    %218 = vector.broadcast %cst_88 : f32 to vector<16x1xf32>
    %219 = arith.addf %215, %218 : vector<16x1xf32>
    %220 = math.rsqrt %219 : vector<16x1xf32>
    %221 = vector.broadcast %220 : vector<16x1xf32> to vector<16x32xf32>
    %222 = arith.mulf %217, %221 : vector<16x32xf32>
    %223 = vector.broadcast %154 : vector<1x32xf32> to vector<16x32xf32>
    %224 = arith.mulf %222, %223 : vector<16x32xf32>
    %225 = vector.broadcast %155 : vector<1x32xf32> to vector<16x32xf32>
    %226 = arith.addf %224, %225 : vector<16x32xf32>
    %c0_89 = arith.constant 0 : index
    %c0_90 = arith.constant 0 : index
    %227 = vector.load %arg14[%c0_89, %c0_90] : memref<1x32xbf16, #tpu.memory_space<vmem>>, vector<1x32xbf16>
    %c0_91 = arith.constant 0 : index
    %c0_92 = arith.constant 0 : index
    %228 = vector.load %arg15[%c0_91, %c0_92] : memref<1x1xf32, #tpu.memory_space<vmem>>, vector<1x1xf32>
    %229 = arith.truncf %226 : vector<16x32xf32> to vector<16x32xbf16>
    %cst_93 = arith.constant dense<0.000000e+00> : vector<1x16xf32>
    %230 = tpu.matmul %227, %229, %cst_93 {dimension_numbers = #tpu.dot_dimension_numbers<[1], [1], [0], [0], [0, 0, 1, 0], [], []>} : vector<1x32xbf16>, vector<16x32xbf16>, vector<1x16xf32> -> vector<1x16xf32>
    %231 = vector.broadcast %228 : vector<1x1xf32> to vector<1x16xf32>
    %232 = arith.addf %230, %231 : vector<1x16xf32>
    %c0_94 = arith.constant 0 : index
    %c0_95 = arith.constant 0 : index
    %c0_96 = arith.constant 0 : index
    %233 = vector.load %arg16[%c0_94, %c0_95, %c0_96] : memref<3x64x32xbf16, #tpu.memory_space<vmem>>, vector<3x64x32xbf16>
    %c0_97 = arith.constant 0 : index
    %c0_98 = arith.constant 0 : index
    %234 = vector.load %arg17[%c0_97, %c0_98] : memref<1x32xf32, #tpu.memory_space<vmem>>, vector<1x32xf32>
    %c0_99 = arith.constant 0 : index
    %c0_100 = arith.constant 0 : index
    %235 = vector.load %arg18[%c0_99, %c0_100] : memref<1x32xf32, #tpu.memory_space<vmem>>, vector<1x32xf32>
    %c0_101 = arith.constant 0 : index
    %c0_102 = arith.constant 0 : index
    %236 = vector.load %arg19[%c0_101, %c0_102] : memref<1x32xf32, #tpu.memory_space<vmem>>, vector<1x32xf32>
    %237 = tpu.iota {dimensions = array<i32: 0>} : vector<16x1xi32>
    %cst_103 = arith.constant 0.000000e+00 : f32
    %238 = vector.broadcast %cst_103 : f32 to vector<16x32xf32>
    %c1_i32_104 = arith.constant 1 : i32
    %239 = tpu.dynamic_rotate %1 by %c1_i32_104 dim 0 : vector<16x64xf32>, i32 -> vector<16x64xf32>
    %c-1_i32_105 = arith.constant -1 : i32
    %240 = vector.broadcast %c-1_i32_105 : i32 to vector<16x1xi32>
    %241 = arith.addi %237, %240 : vector<16x1xi32>
    %c0_i32_106 = arith.constant 0 : i32
    %242 = vector.broadcast %c0_i32_106 : i32 to vector<16x1xi32>
    %243 = arith.cmpi sge, %241, %242 : vector<16x1xi32>
    %c-1_i32_107 = arith.constant -1 : i32
    %244 = vector.broadcast %c-1_i32_107 : i32 to vector<16x1xi32>
    %245 = arith.addi %237, %244 : vector<16x1xi32>
    %c16_i32_108 = arith.constant 16 : i32
    %246 = vector.broadcast %c16_i32_108 : i32 to vector<16x1xi32>
    %247 = arith.cmpi slt, %245, %246 : vector<16x1xi32>
    %248 = arith.andi %243, %247 : vector<16x1xi1>
    %cst_109 = arith.constant 0.000000e+00 : f32
    %249 = vector.shape_cast %248 : vector<16x1xi1> to vector<16x1xi1>
    %250 = vector.broadcast %249 : vector<16x1xi1> to vector<16x64xi1>
    %251 = vector.broadcast %cst_109 : f32 to vector<16x64xf32>
    %252 = arith.select %250, %239, %251 : vector<16x64xi1>, vector<16x64xf32>
    %253 = arith.truncf %252 : vector<16x64xf32> to vector<16x64xbf16>
    %254 = vector.extract_strided_slice %233 {offsets = [0, 0, 0], sizes = [1, 64, 32], strides = [1, 1, 1]} : vector<3x64x32xbf16> to vector<1x64x32xbf16>
    %255 = vector.shape_cast %254 : vector<1x64x32xbf16> to vector<64x32xbf16>
    %cst_110 = arith.constant dense<0.000000e+00> : vector<16x32xf32>
    %256 = tpu.matmul %253, %255, %cst_110 {dimension_numbers = #tpu.dot_dimension_numbers<[1], [0], [0], [1], [0, 0, 1, 1], [], []>} : vector<16x64xbf16>, vector<64x32xbf16>, vector<16x32xf32> -> vector<16x32xf32>
    %257 = arith.addf %238, %256 : vector<16x32xf32>
    %258 = arith.truncf %1 : vector<16x64xf32> to vector<16x64xbf16>
    %259 = vector.extract_strided_slice %233 {offsets = [1, 0, 0], sizes = [1, 64, 32], strides = [1, 1, 1]} : vector<3x64x32xbf16> to vector<1x64x32xbf16>
    %260 = vector.shape_cast %259 : vector<1x64x32xbf16> to vector<64x32xbf16>
    %cst_111 = arith.constant dense<0.000000e+00> : vector<16x32xf32>
    %261 = tpu.matmul %258, %260, %cst_111 {dimension_numbers = #tpu.dot_dimension_numbers<[1], [0], [0], [1], [0, 0, 1, 1], [], []>} : vector<16x64xbf16>, vector<64x32xbf16>, vector<16x32xf32> -> vector<16x32xf32>
    %262 = arith.addf %257, %261 : vector<16x32xf32>
    %c15_i32_112 = arith.constant 15 : i32
    %263 = tpu.dynamic_rotate %1 by %c15_i32_112 dim 0 : vector<16x64xf32>, i32 -> vector<16x64xf32>
    %c1_i32_113 = arith.constant 1 : i32
    %264 = vector.broadcast %c1_i32_113 : i32 to vector<16x1xi32>
    %265 = arith.addi %237, %264 : vector<16x1xi32>
    %c0_i32_114 = arith.constant 0 : i32
    %266 = vector.broadcast %c0_i32_114 : i32 to vector<16x1xi32>
    %267 = arith.cmpi sge, %265, %266 : vector<16x1xi32>
    %c1_i32_115 = arith.constant 1 : i32
    %268 = vector.broadcast %c1_i32_115 : i32 to vector<16x1xi32>
    %269 = arith.addi %237, %268 : vector<16x1xi32>
    %c16_i32_116 = arith.constant 16 : i32
    %270 = vector.broadcast %c16_i32_116 : i32 to vector<16x1xi32>
    %271 = arith.cmpi slt, %269, %270 : vector<16x1xi32>
    %272 = arith.andi %267, %271 : vector<16x1xi1>
    %cst_117 = arith.constant 0.000000e+00 : f32
    %273 = vector.shape_cast %272 : vector<16x1xi1> to vector<16x1xi1>
    %274 = vector.broadcast %273 : vector<16x1xi1> to vector<16x64xi1>
    %275 = vector.broadcast %cst_117 : f32 to vector<16x64xf32>
    %276 = arith.select %274, %263, %275 : vector<16x64xi1>, vector<16x64xf32>
    %277 = arith.truncf %276 : vector<16x64xf32> to vector<16x64xbf16>
    %278 = vector.extract_strided_slice %233 {offsets = [2, 0, 0], sizes = [1, 64, 32], strides = [1, 1, 1]} : vector<3x64x32xbf16> to vector<1x64x32xbf16>
    %279 = vector.shape_cast %278 : vector<1x64x32xbf16> to vector<64x32xbf16>
    %cst_118 = arith.constant dense<0.000000e+00> : vector<16x32xf32>
    %280 = tpu.matmul %277, %279, %cst_118 {dimension_numbers = #tpu.dot_dimension_numbers<[1], [0], [0], [1], [0, 0, 1, 1], [], []>} : vector<16x64xbf16>, vector<64x32xbf16>, vector<16x32xf32> -> vector<16x32xf32>
    %281 = arith.addf %262, %280 : vector<16x32xf32>
    %282 = vector.broadcast %234 : vector<1x32xf32> to vector<16x32xf32>
    %283 = arith.addf %281, %282 : vector<16x32xf32>
    %cst_119 = arith.constant 0.000000e+00 : f32
    %284 = vector.broadcast %cst_119 : f32 to vector<16x32xf32>
    %285 = arith.maximumf %283, %284 : vector<16x32xf32>
    %cst_120 = arith.constant dense<0.000000e+00> : vector<16xf32>
    %286 = vector.multi_reduction <add>, %285, %cst_120 [1] : vector<16x32xf32> to vector<16xf32>
    %287 = vector.shape_cast %286 : vector<16xf32> to vector<16x1xf32>
    %cst_121 = arith.constant 3.200000e+01 : f32
    %288 = vector.broadcast %cst_121 : f32 to vector<16x1xf32>
    %289 = arith.divf %287, %288 : vector<16x1xf32>
    %290 = vector.broadcast %289 : vector<16x1xf32> to vector<16x32xf32>
    %291 = arith.subf %285, %290 : vector<16x32xf32>
    %292 = arith.mulf %291, %291 : vector<16x32xf32>
    %cst_122 = arith.constant dense<0.000000e+00> : vector<16xf32>
    %293 = vector.multi_reduction <add>, %292, %cst_122 [1] : vector<16x32xf32> to vector<16xf32>
    %294 = vector.shape_cast %293 : vector<16xf32> to vector<16x1xf32>
    %cst_123 = arith.constant 3.200000e+01 : f32
    %295 = vector.broadcast %cst_123 : f32 to vector<16x1xf32>
    %296 = arith.divf %294, %295 : vector<16x1xf32>
    %297 = vector.broadcast %289 : vector<16x1xf32> to vector<16x32xf32>
    %298 = arith.subf %285, %297 : vector<16x32xf32>
    %cst_124 = arith.constant 9.99999974E-6 : f32
    %299 = vector.broadcast %cst_124 : f32 to vector<16x1xf32>
    %300 = arith.addf %296, %299 : vector<16x1xf32>
    %301 = math.rsqrt %300 : vector<16x1xf32>
    %302 = vector.broadcast %301 : vector<16x1xf32> to vector<16x32xf32>
    %303 = arith.mulf %298, %302 : vector<16x32xf32>
    %304 = vector.broadcast %235 : vector<1x32xf32> to vector<16x32xf32>
    %305 = arith.mulf %303, %304 : vector<16x32xf32>
    %306 = vector.broadcast %236 : vector<1x32xf32> to vector<16x32xf32>
    %307 = arith.addf %305, %306 : vector<16x32xf32>
    %c0_125 = arith.constant 0 : index
    %c0_126 = arith.constant 0 : index
    %c0_127 = arith.constant 0 : index
    %308 = vector.load %arg20[%c0_125, %c0_126, %c0_127] : memref<3x32x32xbf16, #tpu.memory_space<vmem>>, vector<3x32x32xbf16>
    %c0_128 = arith.constant 0 : index
    %c0_129 = arith.constant 0 : index
    %309 = vector.load %arg21[%c0_128, %c0_129] : memref<1x32xf32, #tpu.memory_space<vmem>>, vector<1x32xf32>
    %c0_130 = arith.constant 0 : index
    %c0_131 = arith.constant 0 : index
    %310 = vector.load %arg22[%c0_130, %c0_131] : memref<1x32xf32, #tpu.memory_space<vmem>>, vector<1x32xf32>
    %c0_132 = arith.constant 0 : index
    %c0_133 = arith.constant 0 : index
    %311 = vector.load %arg23[%c0_132, %c0_133] : memref<1x32xf32, #tpu.memory_space<vmem>>, vector<1x32xf32>
    %312 = tpu.iota {dimensions = array<i32: 0>} : vector<16x1xi32>
    %cst_134 = arith.constant 0.000000e+00 : f32
    %313 = vector.broadcast %cst_134 : f32 to vector<16x32xf32>
    %c1_i32_135 = arith.constant 1 : i32
    %314 = tpu.dynamic_rotate %307 by %c1_i32_135 dim 0 : vector<16x32xf32>, i32 -> vector<16x32xf32>
    %c-1_i32_136 = arith.constant -1 : i32
    %315 = vector.broadcast %c-1_i32_136 : i32 to vector<16x1xi32>
    %316 = arith.addi %312, %315 : vector<16x1xi32>
    %c0_i32_137 = arith.constant 0 : i32
    %317 = vector.broadcast %c0_i32_137 : i32 to vector<16x1xi32>
    %318 = arith.cmpi sge, %316, %317 : vector<16x1xi32>
    %c-1_i32_138 = arith.constant -1 : i32
    %319 = vector.broadcast %c-1_i32_138 : i32 to vector<16x1xi32>
    %320 = arith.addi %312, %319 : vector<16x1xi32>
    %c16_i32_139 = arith.constant 16 : i32
    %321 = vector.broadcast %c16_i32_139 : i32 to vector<16x1xi32>
    %322 = arith.cmpi slt, %320, %321 : vector<16x1xi32>
    %323 = arith.andi %318, %322 : vector<16x1xi1>
    %cst_140 = arith.constant 0.000000e+00 : f32
    %324 = vector.shape_cast %323 : vector<16x1xi1> to vector<16x1xi1>
    %325 = vector.broadcast %324 : vector<16x1xi1> to vector<16x32xi1>
    %326 = vector.broadcast %cst_140 : f32 to vector<16x32xf32>
    %327 = arith.select %325, %314, %326 : vector<16x32xi1>, vector<16x32xf32>
    %328 = arith.truncf %327 : vector<16x32xf32> to vector<16x32xbf16>
    %329 = vector.extract_strided_slice %308 {offsets = [0, 0, 0], sizes = [1, 32, 32], strides = [1, 1, 1]} : vector<3x32x32xbf16> to vector<1x32x32xbf16>
    %330 = vector.shape_cast %329 : vector<1x32x32xbf16> to vector<32x32xbf16>
    %cst_141 = arith.constant dense<0.000000e+00> : vector<16x32xf32>
    %331 = tpu.matmul %328, %330, %cst_141 {dimension_numbers = #tpu.dot_dimension_numbers<[1], [0], [0], [1], [0, 0, 1, 1], [], []>} : vector<16x32xbf16>, vector<32x32xbf16>, vector<16x32xf32> -> vector<16x32xf32>
    %332 = arith.addf %313, %331 : vector<16x32xf32>
    %333 = arith.truncf %307 : vector<16x32xf32> to vector<16x32xbf16>
    %334 = vector.extract_strided_slice %308 {offsets = [1, 0, 0], sizes = [1, 32, 32], strides = [1, 1, 1]} : vector<3x32x32xbf16> to vector<1x32x32xbf16>
    %335 = vector.shape_cast %334 : vector<1x32x32xbf16> to vector<32x32xbf16>
    %cst_142 = arith.constant dense<0.000000e+00> : vector<16x32xf32>
    %336 = tpu.matmul %333, %335, %cst_142 {dimension_numbers = #tpu.dot_dimension_numbers<[1], [0], [0], [1], [0, 0, 1, 1], [], []>} : vector<16x32xbf16>, vector<32x32xbf16>, vector<16x32xf32> -> vector<16x32xf32>
    %337 = arith.addf %332, %336 : vector<16x32xf32>
    %c15_i32_143 = arith.constant 15 : i32
    %338 = tpu.dynamic_rotate %307 by %c15_i32_143 dim 0 : vector<16x32xf32>, i32 -> vector<16x32xf32>
    %c1_i32_144 = arith.constant 1 : i32
    %339 = vector.broadcast %c1_i32_144 : i32 to vector<16x1xi32>
    %340 = arith.addi %312, %339 : vector<16x1xi32>
    %c0_i32_145 = arith.constant 0 : i32
    %341 = vector.broadcast %c0_i32_145 : i32 to vector<16x1xi32>
    %342 = arith.cmpi sge, %340, %341 : vector<16x1xi32>
    %c1_i32_146 = arith.constant 1 : i32
    %343 = vector.broadcast %c1_i32_146 : i32 to vector<16x1xi32>
    %344 = arith.addi %312, %343 : vector<16x1xi32>
    %c16_i32_147 = arith.constant 16 : i32
    %345 = vector.broadcast %c16_i32_147 : i32 to vector<16x1xi32>
    %346 = arith.cmpi slt, %344, %345 : vector<16x1xi32>
    %347 = arith.andi %342, %346 : vector<16x1xi1>
    %cst_148 = arith.constant 0.000000e+00 : f32
    %348 = vector.shape_cast %347 : vector<16x1xi1> to vector<16x1xi1>
    %349 = vector.broadcast %348 : vector<16x1xi1> to vector<16x32xi1>
    %350 = vector.broadcast %cst_148 : f32 to vector<16x32xf32>
    %351 = arith.select %349, %338, %350 : vector<16x32xi1>, vector<16x32xf32>
    %352 = arith.truncf %351 : vector<16x32xf32> to vector<16x32xbf16>
    %353 = vector.extract_strided_slice %308 {offsets = [2, 0, 0], sizes = [1, 32, 32], strides = [1, 1, 1]} : vector<3x32x32xbf16> to vector<1x32x32xbf16>
    %354 = vector.shape_cast %353 : vector<1x32x32xbf16> to vector<32x32xbf16>
    %cst_149 = arith.constant dense<0.000000e+00> : vector<16x32xf32>
    %355 = tpu.matmul %352, %354, %cst_149 {dimension_numbers = #tpu.dot_dimension_numbers<[1], [0], [0], [1], [0, 0, 1, 1], [], []>} : vector<16x32xbf16>, vector<32x32xbf16>, vector<16x32xf32> -> vector<16x32xf32>
    %356 = arith.addf %337, %355 : vector<16x32xf32>
    %357 = vector.broadcast %309 : vector<1x32xf32> to vector<16x32xf32>
    %358 = arith.addf %356, %357 : vector<16x32xf32>
    %cst_150 = arith.constant 0.000000e+00 : f32
    %359 = vector.broadcast %cst_150 : f32 to vector<16x32xf32>
    %360 = arith.maximumf %358, %359 : vector<16x32xf32>
    %cst_151 = arith.constant dense<0.000000e+00> : vector<16xf32>
    %361 = vector.multi_reduction <add>, %360, %cst_151 [1] : vector<16x32xf32> to vector<16xf32>
    %362 = vector.shape_cast %361 : vector<16xf32> to vector<16x1xf32>
    %cst_152 = arith.constant 3.200000e+01 : f32
    %363 = vector.broadcast %cst_152 : f32 to vector<16x1xf32>
    %364 = arith.divf %362, %363 : vector<16x1xf32>
    %365 = vector.broadcast %364 : vector<16x1xf32> to vector<16x32xf32>
    %366 = arith.subf %360, %365 : vector<16x32xf32>
    %367 = arith.mulf %366, %366 : vector<16x32xf32>
    %cst_153 = arith.constant dense<0.000000e+00> : vector<16xf32>
    %368 = vector.multi_reduction <add>, %367, %cst_153 [1] : vector<16x32xf32> to vector<16xf32>
    %369 = vector.shape_cast %368 : vector<16xf32> to vector<16x1xf32>
    %cst_154 = arith.constant 3.200000e+01 : f32
    %370 = vector.broadcast %cst_154 : f32 to vector<16x1xf32>
    %371 = arith.divf %369, %370 : vector<16x1xf32>
    %372 = vector.broadcast %364 : vector<16x1xf32> to vector<16x32xf32>
    %373 = arith.subf %360, %372 : vector<16x32xf32>
    %cst_155 = arith.constant 9.99999974E-6 : f32
    %374 = vector.broadcast %cst_155 : f32 to vector<16x1xf32>
    %375 = arith.addf %371, %374 : vector<16x1xf32>
    %376 = math.rsqrt %375 : vector<16x1xf32>
    %377 = vector.broadcast %376 : vector<16x1xf32> to vector<16x32xf32>
    %378 = arith.mulf %373, %377 : vector<16x32xf32>
    %379 = vector.broadcast %310 : vector<1x32xf32> to vector<16x32xf32>
    %380 = arith.mulf %378, %379 : vector<16x32xf32>
    %381 = vector.broadcast %311 : vector<1x32xf32> to vector<16x32xf32>
    %382 = arith.addf %380, %381 : vector<16x32xf32>
    %c0_156 = arith.constant 0 : index
    %c0_157 = arith.constant 0 : index
    %c0_158 = arith.constant 0 : index
    %383 = vector.load %arg24[%c0_156, %c0_157, %c0_158] : memref<3x32x32xbf16, #tpu.memory_space<vmem>>, vector<3x32x32xbf16>
    %c0_159 = arith.constant 0 : index
    %c0_160 = arith.constant 0 : index
    %384 = vector.load %arg25[%c0_159, %c0_160] : memref<1x32xf32, #tpu.memory_space<vmem>>, vector<1x32xf32>
    %c0_161 = arith.constant 0 : index
    %c0_162 = arith.constant 0 : index
    %385 = vector.load %arg26[%c0_161, %c0_162] : memref<1x32xf32, #tpu.memory_space<vmem>>, vector<1x32xf32>
    %c0_163 = arith.constant 0 : index
    %c0_164 = arith.constant 0 : index
    %386 = vector.load %arg27[%c0_163, %c0_164] : memref<1x32xf32, #tpu.memory_space<vmem>>, vector<1x32xf32>
    %387 = tpu.iota {dimensions = array<i32: 0>} : vector<16x1xi32>
    %cst_165 = arith.constant 0.000000e+00 : f32
    %388 = vector.broadcast %cst_165 : f32 to vector<16x32xf32>
    %c1_i32_166 = arith.constant 1 : i32
    %389 = tpu.dynamic_rotate %382 by %c1_i32_166 dim 0 : vector<16x32xf32>, i32 -> vector<16x32xf32>
    %c-1_i32_167 = arith.constant -1 : i32
    %390 = vector.broadcast %c-1_i32_167 : i32 to vector<16x1xi32>
    %391 = arith.addi %387, %390 : vector<16x1xi32>
    %c0_i32_168 = arith.constant 0 : i32
    %392 = vector.broadcast %c0_i32_168 : i32 to vector<16x1xi32>
    %393 = arith.cmpi sge, %391, %392 : vector<16x1xi32>
    %c-1_i32_169 = arith.constant -1 : i32
    %394 = vector.broadcast %c-1_i32_169 : i32 to vector<16x1xi32>
    %395 = arith.addi %387, %394 : vector<16x1xi32>
    %c16_i32_170 = arith.constant 16 : i32
    %396 = vector.broadcast %c16_i32_170 : i32 to vector<16x1xi32>
    %397 = arith.cmpi slt, %395, %396 : vector<16x1xi32>
    %398 = arith.andi %393, %397 : vector<16x1xi1>
    %cst_171 = arith.constant 0.000000e+00 : f32
    %399 = vector.shape_cast %398 : vector<16x1xi1> to vector<16x1xi1>
    %400 = vector.broadcast %399 : vector<16x1xi1> to vector<16x32xi1>
    %401 = vector.broadcast %cst_171 : f32 to vector<16x32xf32>
    %402 = arith.select %400, %389, %401 : vector<16x32xi1>, vector<16x32xf32>
    %403 = arith.truncf %402 : vector<16x32xf32> to vector<16x32xbf16>
    %404 = vector.extract_strided_slice %383 {offsets = [0, 0, 0], sizes = [1, 32, 32], strides = [1, 1, 1]} : vector<3x32x32xbf16> to vector<1x32x32xbf16>
    %405 = vector.shape_cast %404 : vector<1x32x32xbf16> to vector<32x32xbf16>
    %cst_172 = arith.constant dense<0.000000e+00> : vector<16x32xf32>
    %406 = tpu.matmul %403, %405, %cst_172 {dimension_numbers = #tpu.dot_dimension_numbers<[1], [0], [0], [1], [0, 0, 1, 1], [], []>} : vector<16x32xbf16>, vector<32x32xbf16>, vector<16x32xf32> -> vector<16x32xf32>
    %407 = arith.addf %388, %406 : vector<16x32xf32>
    %408 = arith.truncf %382 : vector<16x32xf32> to vector<16x32xbf16>
    %409 = vector.extract_strided_slice %383 {offsets = [1, 0, 0], sizes = [1, 32, 32], strides = [1, 1, 1]} : vector<3x32x32xbf16> to vector<1x32x32xbf16>
    %410 = vector.shape_cast %409 : vector<1x32x32xbf16> to vector<32x32xbf16>
    %cst_173 = arith.constant dense<0.000000e+00> : vector<16x32xf32>
    %411 = tpu.matmul %408, %410, %cst_173 {dimension_numbers = #tpu.dot_dimension_numbers<[1], [0], [0], [1], [0, 0, 1, 1], [], []>} : vector<16x32xbf16>, vector<32x32xbf16>, vector<16x32xf32> -> vector<16x32xf32>
    %412 = arith.addf %407, %411 : vector<16x32xf32>
    %c15_i32_174 = arith.constant 15 : i32
    %413 = tpu.dynamic_rotate %382 by %c15_i32_174 dim 0 : vector<16x32xf32>, i32 -> vector<16x32xf32>
    %c1_i32_175 = arith.constant 1 : i32
    %414 = vector.broadcast %c1_i32_175 : i32 to vector<16x1xi32>
    %415 = arith.addi %387, %414 : vector<16x1xi32>
    %c0_i32_176 = arith.constant 0 : i32
    %416 = vector.broadcast %c0_i32_176 : i32 to vector<16x1xi32>
    %417 = arith.cmpi sge, %415, %416 : vector<16x1xi32>
    %c1_i32_177 = arith.constant 1 : i32
    %418 = vector.broadcast %c1_i32_177 : i32 to vector<16x1xi32>
    %419 = arith.addi %387, %418 : vector<16x1xi32>
    %c16_i32_178 = arith.constant 16 : i32
    %420 = vector.broadcast %c16_i32_178 : i32 to vector<16x1xi32>
    %421 = arith.cmpi slt, %419, %420 : vector<16x1xi32>
    %422 = arith.andi %417, %421 : vector<16x1xi1>
    %cst_179 = arith.constant 0.000000e+00 : f32
    %423 = vector.shape_cast %422 : vector<16x1xi1> to vector<16x1xi1>
    %424 = vector.broadcast %423 : vector<16x1xi1> to vector<16x32xi1>
    %425 = vector.broadcast %cst_179 : f32 to vector<16x32xf32>
    %426 = arith.select %424, %413, %425 : vector<16x32xi1>, vector<16x32xf32>
    %427 = arith.truncf %426 : vector<16x32xf32> to vector<16x32xbf16>
    %428 = vector.extract_strided_slice %383 {offsets = [2, 0, 0], sizes = [1, 32, 32], strides = [1, 1, 1]} : vector<3x32x32xbf16> to vector<1x32x32xbf16>
    %429 = vector.shape_cast %428 : vector<1x32x32xbf16> to vector<32x32xbf16>
    %cst_180 = arith.constant dense<0.000000e+00> : vector<16x32xf32>
    %430 = tpu.matmul %427, %429, %cst_180 {dimension_numbers = #tpu.dot_dimension_numbers<[1], [0], [0], [1], [0, 0, 1, 1], [], []>} : vector<16x32xbf16>, vector<32x32xbf16>, vector<16x32xf32> -> vector<16x32xf32>
    %431 = arith.addf %412, %430 : vector<16x32xf32>
    %432 = vector.broadcast %384 : vector<1x32xf32> to vector<16x32xf32>
    %433 = arith.addf %431, %432 : vector<16x32xf32>
    %cst_181 = arith.constant 0.000000e+00 : f32
    %434 = vector.broadcast %cst_181 : f32 to vector<16x32xf32>
    %435 = arith.maximumf %433, %434 : vector<16x32xf32>
    %cst_182 = arith.constant dense<0.000000e+00> : vector<16xf32>
    %436 = vector.multi_reduction <add>, %435, %cst_182 [1] : vector<16x32xf32> to vector<16xf32>
    %437 = vector.shape_cast %436 : vector<16xf32> to vector<16x1xf32>
    %cst_183 = arith.constant 3.200000e+01 : f32
    %438 = vector.broadcast %cst_183 : f32 to vector<16x1xf32>
    %439 = arith.divf %437, %438 : vector<16x1xf32>
    %440 = vector.broadcast %439 : vector<16x1xf32> to vector<16x32xf32>
    %441 = arith.subf %435, %440 : vector<16x32xf32>
    %442 = arith.mulf %441, %441 : vector<16x32xf32>
    %cst_184 = arith.constant dense<0.000000e+00> : vector<16xf32>
    %443 = vector.multi_reduction <add>, %442, %cst_184 [1] : vector<16x32xf32> to vector<16xf32>
    %444 = vector.shape_cast %443 : vector<16xf32> to vector<16x1xf32>
    %cst_185 = arith.constant 3.200000e+01 : f32
    %445 = vector.broadcast %cst_185 : f32 to vector<16x1xf32>
    %446 = arith.divf %444, %445 : vector<16x1xf32>
    %447 = vector.broadcast %439 : vector<16x1xf32> to vector<16x32xf32>
    %448 = arith.subf %435, %447 : vector<16x32xf32>
    %cst_186 = arith.constant 9.99999974E-6 : f32
    %449 = vector.broadcast %cst_186 : f32 to vector<16x1xf32>
    %450 = arith.addf %446, %449 : vector<16x1xf32>
    %451 = math.rsqrt %450 : vector<16x1xf32>
    %452 = vector.broadcast %451 : vector<16x1xf32> to vector<16x32xf32>
    %453 = arith.mulf %448, %452 : vector<16x32xf32>
    %454 = vector.broadcast %385 : vector<1x32xf32> to vector<16x32xf32>
    %455 = arith.mulf %453, %454 : vector<16x32xf32>
    %456 = vector.broadcast %386 : vector<1x32xf32> to vector<16x32xf32>
    %457 = arith.addf %455, %456 : vector<16x32xf32>
    %c0_187 = arith.constant 0 : index
    %c0_188 = arith.constant 0 : index
    %458 = vector.load %arg28[%c0_187, %c0_188] : memref<1x32xbf16, #tpu.memory_space<vmem>>, vector<1x32xbf16>
    %c0_189 = arith.constant 0 : index
    %c0_190 = arith.constant 0 : index
    %459 = vector.load %arg29[%c0_189, %c0_190] : memref<1x1xf32, #tpu.memory_space<vmem>>, vector<1x1xf32>
    %460 = arith.truncf %457 : vector<16x32xf32> to vector<16x32xbf16>
    %cst_191 = arith.constant dense<0.000000e+00> : vector<1x16xf32>
    %461 = tpu.matmul %458, %460, %cst_191 {dimension_numbers = #tpu.dot_dimension_numbers<[1], [1], [0], [0], [0, 0, 1, 0], [], []>} : vector<1x32xbf16>, vector<16x32xbf16>, vector<1x16xf32> -> vector<1x16xf32>
    %462 = vector.broadcast %459 : vector<1x1xf32> to vector<1x16xf32>
    %463 = arith.addf %461, %462 : vector<1x16xf32>
    %464 = tpu.concatenate %232, %463 in 0 : vector<1x16xf32>, vector<1x16xf32> -> vector<2x16xf32>
    %c0_192 = arith.constant 0 : index
    %c0_193 = arith.constant 0 : index
    %c0_194 = arith.constant 0 : index
    %465 = vector.load %arg30[%c0_192, %c0_193, %c0_194] : memref<1x2x16xf32, #tpu.memory_space<vmem>>, vector<1x2x16xf32>
    %466 = vector.shape_cast %465 : vector<1x2x16xf32> to vector<2x16xf32>
    %467 = vector.shape_cast %464 : vector<2x16xf32> to vector<1x2x16xf32>
    tpu.vector_store %arg30[%c0_192, %c0_193, %c0_194], %467 {strides = array<i32>} : memref<1x2x16xf32, #tpu.memory_space<vmem>>, vector<1x2x16xf32>,
    return
  }
  func.func @transform_0(%arg0: i32) -> (i32, i32, i32) {
    %c0_i32 = arith.constant 0 : i32
    %c0_i32_0 = arith.constant 0 : i32
    %c0_i32_1 = arith.constant 0 : i32
    return %arg0, %c0_i32, %c0_i32_0 : i32, i32, i32
  }
  func.func @transform_1(%arg0: i32) -> (i32, i32, i32) {
    %c0_i32 = arith.constant 0 : i32
    %c0_i32_0 = arith.constant 0 : i32
    %c0_i32_1 = arith.constant 0 : i32
    %c0_i32_2 = arith.constant 0 : i32
    return %c0_i32, %c0_i32_0, %c0_i32_1 : i32, i32, i32
  }
  func.func @transform_2(%arg0: i32) -> (i32, i32) {
    %c0_i32 = arith.constant 0 : i32
    %c0_i32_0 = arith.constant 0 : i32
    %c0_i32_1 = arith.constant 0 : i32
    return %c0_i32, %c0_i32_0 : i32, i32
  }
  func.func @transform_3(%arg0: i32) -> (i32, i32) {
    %c0_i32 = arith.constant 0 : i32
    %c0_i32_0 = arith.constant 0 : i32
    %c0_i32_1 = arith.constant 0 : i32
    return %c0_i32, %c0_i32_0 : i32, i32
  }
  func.func @transform_4(%arg0: i32) -> (i32, i32) {
    %c0_i32 = arith.constant 0 : i32
    %c0_i32_0 = arith.constant 0 : i32
    %c0_i32_1 = arith.constant 0 : i32
    return %c0_i32, %c0_i32_0 : i32, i32
  }
  func.func @transform_5(%arg0: i32) -> (i32, i32, i32) {
    %c0_i32 = arith.constant 0 : i32
    %c0_i32_0 = arith.constant 0 : i32
    %c0_i32_1 = arith.constant 0 : i32
    %c0_i32_2 = arith.constant 0 : i32
    return %c0_i32, %c0_i32_0, %c0_i32_1 : i32, i32, i32
  }
  func.func @transform_6(%arg0: i32) -> (i32, i32) {
    %c0_i32 = arith.constant 0 : i32
    %c0_i32_0 = arith.constant 0 : i32
    %c0_i32_1 = arith.constant 0 : i32
    return %c0_i32, %c0_i32_0 : i32, i32
  }
  func.func @transform_7(%arg0: i32) -> (i32, i32) {
    %c0_i32 = arith.constant 0 : i32
    %c0_i32_0 = arith.constant 0 : i32
    %c0_i32_1 = arith.constant 0 : i32
    return %c0_i32, %c0_i32_0 : i32, i32
  }
  func.func @transform_8(%arg0: i32) -> (i32, i32) {
    %c0_i32 = arith.constant 0 : i32
    %c0_i32_0 = arith.constant 0 : i32
    %c0_i32_1 = arith.constant 0 : i32
    return %c0_i32, %c0_i32_0 : i32, i32
  }
  func.func @transform_9(%arg0: i32) -> (i32, i32, i32) {
    %c0_i32 = arith.constant 0 : i32
    %c0_i32_0 = arith.constant 0 : i32
    %c0_i32_1 = arith.constant 0 : i32
    %c0_i32_2 = arith.constant 0 : i32
    return %c0_i32, %c0_i32_0, %c0_i32_1 : i32, i32, i32
  }
  func.func @transform_10(%arg0: i32) -> (i32, i32) {
    %c0_i32 = arith.constant 0 : i32
    %c0_i32_0 = arith.constant 0 : i32
    %c0_i32_1 = arith.constant 0 : i32
    return %c0_i32, %c0_i32_0 : i32, i32
  }
  func.func @transform_11(%arg0: i32) -> (i32, i32) {
    %c0_i32 = arith.constant 0 : i32
    %c0_i32_0 = arith.constant 0 : i32
    %c0_i32_1 = arith.constant 0 : i32
    return %c0_i32, %c0_i32_0 : i32, i32
  }
  func.func @transform_12(%arg0: i32) -> (i32, i32) {
    %c0_i32 = arith.constant 0 : i32
    %c0_i32_0 = arith.constant 0 : i32
    %c0_i32_1 = arith.constant 0 : i32
    return %c0_i32, %c0_i32_0 : i32, i32
  }
  func.func @transform_13(%arg0: i32) -> (i32, i32) {
    %c0_i32 = arith.constant 0 : i32
    %c0_i32_0 = arith.constant 0 : i32
    %c0_i32_1 = arith.constant 0 : i32
    return %c0_i32, %c0_i32_0 : i32, i32
  }
  func.func @transform_14(%arg0: i32) -> (i32, i32) {
    %c0_i32 = arith.constant 0 : i32
    %c0_i32_0 = arith.constant 0 : i32
    %c0_i32_1 = arith.constant 0 : i32
    return %c0_i32, %c0_i32_0 : i32, i32
  }
  func.func @transform_15(%arg0: i32) -> (i32, i32, i32) {
    %c0_i32 = arith.constant 0 : i32
    %c0_i32_0 = arith.constant 0 : i32
    %c0_i32_1 = arith.constant 0 : i32
    %c0_i32_2 = arith.constant 0 : i32
    return %c0_i32, %c0_i32_0, %c0_i32_1 : i32, i32, i32
  }
  func.func @transform_16(%arg0: i32) -> (i32, i32) {
    %c0_i32 = arith.constant 0 : i32
    %c0_i32_0 = arith.constant 0 : i32
    %c0_i32_1 = arith.constant 0 : i32
    return %c0_i32, %c0_i32_0 : i32, i32
  }
  func.func @transform_17(%arg0: i32) -> (i32, i32) {
    %c0_i32 = arith.constant 0 : i32
    %c0_i32_0 = arith.constant 0 : i32
    %c0_i32_1 = arith.constant 0 : i32
    return %c0_i32, %c0_i32_0 : i32, i32
  }
  func.func @transform_18(%arg0: i32) -> (i32, i32) {
    %c0_i32 = arith.constant 0 : i32
    %c0_i32_0 = arith.constant 0 : i32
    %c0_i32_1 = arith.constant 0 : i32
    return %c0_i32, %c0_i32_0 : i32, i32
  }
  func.func @transform_19(%arg0: i32) -> (i32, i32, i32) {
    %c0_i32 = arith.constant 0 : i32
    %c0_i32_0 = arith.constant 0 : i32
    %c0_i32_1 = arith.constant 0 : i32
    %c0_i32_2 = arith.constant 0 : i32
    return %c0_i32, %c0_i32_0, %c0_i32_1 : i32, i32, i32
  }
  func.func @transform_20(%arg0: i32) -> (i32, i32) {
    %c0_i32 = arith.constant 0 : i32
    %c0_i32_0 = arith.constant 0 : i32
    %c0_i32_1 = arith.constant 0 : i32
    return %c0_i32, %c0_i32_0 : i32, i32
  }
  func.func @transform_21(%arg0: i32) -> (i32, i32) {
    %c0_i32 = arith.constant 0 : i32
    %c0_i32_0 = arith.constant 0 : i32
    %c0_i32_1 = arith.constant 0 : i32
    return %c0_i32, %c0_i32_0 : i32, i32
  }
  func.func @transform_22(%arg0: i32) -> (i32, i32) {
    %c0_i32 = arith.constant 0 : i32
    %c0_i32_0 = arith.constant 0 : i32
    %c0_i32_1 = arith.constant 0 : i32
    return %c0_i32, %c0_i32_0 : i32, i32
  }
  func.func @transform_23(%arg0: i32) -> (i32, i32, i32) {
    %c0_i32 = arith.constant 0 : i32
    %c0_i32_0 = arith.constant 0 : i32
    %c0_i32_1 = arith.constant 0 : i32
    %c0_i32_2 = arith.constant 0 : i32
    return %c0_i32, %c0_i32_0, %c0_i32_1 : i32, i32, i32
  }
  func.func @transform_24(%arg0: i32) -> (i32, i32) {
    %c0_i32 = arith.constant 0 : i32
    %c0_i32_0 = arith.constant 0 : i32
    %c0_i32_1 = arith.constant 0 : i32
    return %c0_i32, %c0_i32_0 : i32, i32
  }
  func.func @transform_25(%arg0: i32) -> (i32, i32) {
    %c0_i32 = arith.constant 0 : i32
    %c0_i32_0 = arith.constant 0 : i32
    %c0_i32_1 = arith.constant 0 : i32
    return %c0_i32, %c0_i32_0 : i32, i32
  }
  func.func @transform_26(%arg0: i32) -> (i32, i32) {
    %c0_i32 = arith.constant 0 : i32
    %c0_i32_0 = arith.constant 0 : i32
    %c0_i32_1 = arith.constant 0 : i32
    return %c0_i32, %c0_i32_0 : i32, i32
  }
  func.func @transform_27(%arg0: i32) -> (i32, i32) {
    %c0_i32 = arith.constant 0 : i32
    %c0_i32_0 = arith.constant 0 : i32
    %c0_i32_1 = arith.constant 0 : i32
    return %c0_i32, %c0_i32_0 : i32, i32
  }
  func.func @transform_28(%arg0: i32) -> (i32, i32) {
    %c0_i32 = arith.constant 0 : i32
    %c0_i32_0 = arith.constant 0 : i32
    %c0_i32_1 = arith.constant 0 : i32
    return %c0_i32, %c0_i32_0 : i32, i32
  }
  func.func @transform_29(%arg0: i32) -> (i32, i32, i32) {
    %c0_i32 = arith.constant 0 : i32
    %c0_i32_0 = arith.constant 0 : i32
    %c0_i32_1 = arith.constant 0 : i32
    return %arg0, %c0_i32, %c0_i32_0 : i32, i32, i32
  }
}

</mosaic_0001>

<llo_original>
// kernel: joint_estimator_forward.3
$region0: #{joint_estimator_forward.3}
  #allocation0 [shape = 'u32[]', space=smem, size = 0x4, offset = 0x4, fixed_abs, tag = 'smem constant byte address 0x4 - core index']
  #allocation1 [shape = 'u32[144,128]{1,0:T(1,128)}', space=vmem, size = 0x12000, scoped, tag = 'internal scratch']
  %s0 = inlined_call_operand.vmem [shape: f32[2,16,16], index: 0, kind: input, shape index: {}]
  %s1 = inlined_call_operand.vmem [shape: bf16[16,64], index: 1, kind: input, shape index: {}]
  %s2 = inlined_call_operand.vmem [shape: f32[1,64], index: 2, kind: input, shape index: {}]
  %s3 = inlined_call_operand.vmem [shape: f32[1,64], index: 3, kind: input, shape index: {}]
  %s4 = inlined_call_operand.vmem [shape: f32[1,64], index: 4, kind: input, shape index: {}]
  %s5 = inlined_call_operand.vmem [shape: bf16[4,64,16], index: 5, kind: input, shape index: {}]
  %s6 = inlined_call_operand.vmem [shape: f32[4,1,16], index: 6, kind: input, shape index: {}]
  %s7 = inlined_call_operand.vmem [shape: bf16[4,64,16], index: 7, kind: input, shape index: {}]
  %s8 = inlined_call_operand.vmem [shape: f32[4,1,16], index: 8, kind: input, shape index: {}]
  %s9 = inlined_call_operand.vmem [shape: bf16[4,64,16], index: 9, kind: input, shape index: {}]
  %s10 = inlined_call_operand.vmem [shape: f32[4,1,16], index: 10, kind: input, shape index: {}]
  %s11 = inlined_call_operand.vmem [shape: bf16[4,16,64], index: 11, kind: input, shape index: {}]
  %s12 = inlined_call_operand.vmem [shape: f32[1,64], index: 12, kind: input, shape index: {}]
  %s13 = inlined_call_operand.vmem [shape: f32[1,64], index: 13, kind: input, shape index: {}]
  %s14 = inlined_call_operand.vmem [shape: f32[1,64], index: 14, kind: input, shape index: {}]
  %s15 = inlined_call_operand.vmem [shape: bf16[64,256], index: 15, kind: input, shape index: {}]
  %s16 = inlined_call_operand.vmem [shape: f32[1,256], index: 16, kind: input, shape index: {}]
  %s17 = inlined_call_operand.vmem [shape: bf16[256,64], index: 17, kind: input, shape index: {}]
  %s18 = inlined_call_operand.vmem [shape: f32[1,64], index: 18, kind: input, shape index: {}]
  %s19 = inlined_call_operand.vmem [shape: f32[1,64], index: 19, kind: input, shape index: {}]
  %s20 = inlined_call_operand.vmem [shape: f32[1,64], index: 20, kind: input, shape index: {}]
  %s21 = inlined_call_operand.vmem [shape: f32[2,16,64], index: 21, kind: output, shape index: {}]
  %s22 = sld [smem:[#allocation0]]
  $region117: #{joint_estimator_forward.3} parent=0
    _
  %s24 = ssub.s32 1, %s22
  %s25 = scalar_select 0, %s24, %s22
  loop: start=0, step=1, limit=4
  $region2: #{joint_estimator_forward.3} parent=0 // loop_pre_header
    _
  $region3: #{joint_estimator_forward.3} parent=0 // loop_header
    %s27 = sphi 0, %s31
    %p28 = scmp.ge.s32.totalorder %s27, 4
    %s37 = sphi 0, %s39
    %s40 = sphi 0, %s37
    %s41 = sphi 0, %s40
    %s57 = sphi 0, %s41
    %s61 = sphi 0, %s61
    %s63 = sphi 0, %s61
    %s64 = sphi 0, %s63
    %s78 = sphi 0, %s64
    %s82 = sphi 0, %s82
    %s84 = sphi 0, %s82
    %s85 = sphi 0, %s84
    %s99 = sphi 0, %s85
    %s103 = sphi 0, %s103
    %s105 = sphi 0, %s103
    %s106 = sphi 0, %s105
    %s120 = sphi 0, %s106
    %s124 = sphi 0, %s124
    %s126 = sphi 0, %s124
    %s127 = sphi 0, %s126
    %s141 = sphi 0, %s127
    %s145 = sphi 0, %s145
    %s147 = sphi 0, %s145
    %s148 = sphi 0, %s147
    %s162 = sphi 0, %s148
    %s166 = sphi 0, %s166
    %s168 = sphi 0, %s166
    %s169 = sphi 0, %s168
    %s183 = sphi 0, %s169
    %s187 = sphi 0, %s187
    %s189 = sphi 0, %s187
    %s190 = sphi 0, %s189
    %s204 = sphi 0, %s190
    %s208 = sphi 0, %s208
    %s210 = sphi 0, %s208
    %s211 = sphi 0, %s210
    %s225 = sphi 0, %s211
    %s229 = sphi 0, %s229
    %s231 = sphi 0, %s229
    %s232 = sphi 0, %s231
    %s246 = sphi 0, %s232
    %s250 = sphi 0, %s250
    %s252 = sphi 0, %s250
    %s253 = sphi 0, %s252
    %s267 = sphi 0, %s253
    %s271 = sphi 0, %s271
    %s273 = sphi 0, %s271
    %s274 = sphi 0, %s273
    %s288 = sphi 0, %s274
    %s292 = sphi 0, %s292
    %s294 = sphi 0, %s292
    %s295 = sphi 0, %s294
    %s309 = sphi 0, %s295
    %s313 = sphi 0, %s313
    %s315 = sphi 0, %s313
    %s316 = sphi 0, %s315
    %s330 = sphi 0, %s316
    %s334 = sphi 0, %s334
    %s336 = sphi 0, %s334
    %s337 = sphi 0, %s336
    %s351 = sphi 0, %s337
    %s355 = sphi 0, %s355
    %s357 = sphi 0, %s355
    %s358 = sphi 0, %s357
    %s372 = sphi 0, %s358
    %s376 = sphi 0, %s376
    %s378 = sphi 0, %s376
    %s379 = sphi 0, %s378
    %s393 = sphi 0, %s379
    %s397 = sphi 0, %s397
    %s399 = sphi 0, %s397
    %s400 = sphi 0, %s399
    %s414 = sphi 0, %s400
    %s418 = sphi 0, %s418
    %s420 = sphi 0, %s418
    %s421 = sphi 0, %s420
    %s435 = sphi 0, %s421
    %s439 = sphi 0, %s439
    %s441 = sphi 0, %s439
    %s442 = sphi 0, %s441
    %s456 = sphi 0, %s442
    %s460 = sphi 0, %s460
    %s462 = sphi 0, %s460
    %s463 = sphi 0, %s462
    %s477 = sphi 0, %s463
    %s483 = sphi 0, %s485
    %s486 = sphi 0, %s483
    %s487 = sphi 0, %s486
    %s503 = sphi 0, %s487
  $region4: #{joint_estimator_forward.3} parent=0 // loop_header_branch
    %30 = sbr.rel (%p28) target = $region8
  $region5: #{joint_estimator_forward.3} parent=0 // loop_body
    %s32 = ssub.s32 %s27, 1
    %s33 = ssub.s32 %s27, 2
    %s34 = sadd.s32 %s27, 1
    %s35 = ssub.s32 %s27, %s34
    %p36 = scmp.eq.s32.totalorder %s35, 0
    %s38 = sadd.s32 %s37, 1
    %s39 = scalar_select %p36, %s37, %s38
    %p42 = pneg %p36
    %p43 = scmp.eq.s32.totalorder %s27, 1
    %p44 = por %p42, %p43
    %p45 = scmp.ne.s32.totalorder %s37, %s40
    %p46 = scmp.eq.s32.totalorder %s27, 0
    %p47 = por %p45, %p46
    %p48 = scmp.ne.s32.totalorder %s37, %s40
    %p49 = scmp.eq.s32.totalorder %s32, 1
    %p50 = por %p48, %p49
    %p51 = scmp.ne.s32.totalorder %s40, %s41
    %p52 = scmp.eq.s32.totalorder %s32, 0
    %p53 = por %p51, %p52
    %p54 = scmp.ne.s32.totalorder %s40, %s41
    %p55 = scmp.eq.s32.totalorder %s33, 1
    %p56 = por %p54, %p55
    %p58 = scmp.ne.s32.totalorder %s41, %s57
    %p59 = scmp.eq.s32.totalorder %s33, 0
    %p60 = por %p58, %p59
    %s62 = sadd.s32 %s61, 1
    %p65 = scmp.eq.s32.totalorder %s27, 1
    %p66 = scmp.ne.s32.totalorder %s61, %s63
    %p67 = scmp.eq.s32.totalorder %s27, 0
    %p68 = por %p66, %p67
    %p69 = scmp.ne.s32.totalorder %s61, %s63
    %p70 = scmp.eq.s32.totalorder %s32, 1
    %p71 = por %p69, %p70
    %p72 = scmp.ne.s32.totalorder %s63, %s64
    %p73 = scmp.eq.s32.totalorder %s32, 0
    %p74 = por %p72, %p73
    %p75 = scmp.ne.s32.totalorder %s63, %s64
    %p76 = scmp.eq.s32.totalorder %s33, 1
    %p77 = por %p75, %p76
    %p79 = scmp.ne.s32.totalorder %s64, %s78
    %p80 = scmp.eq.s32.totalorder %s33, 0
    %p81 = por %p79, %p80
    %s83 = sadd.s32 %s82, 1
    %p86 = scmp.eq.s32.totalorder %s27, 1
    %p87 = scmp.ne.s32.totalorder %s82, %s84
    %p88 = scmp.eq.s32.totalorder %s27, 0
    %p89 = por %p87, %p88
    %p90 = scmp.ne.s32.totalorder %s82, %s84
    %p91 = scmp.eq.s32.totalorder %s32, 1
    %p92 = por %p90, %p91
    %p93 = scmp.ne.s32.totalorder %s84, %s85
    %p94 = scmp.eq.s32.totalorder %s32, 0
    %p95 = por %p93, %p94
    %p96 = scmp.ne.s32.totalorder %s84, %s85
    %p97 = scmp.eq.s32.totalorder %s33, 1
    %p98 = por %p96, %p97
    %p100 = scmp.ne.s32.totalorder %s85, %s99
    %p101 = scmp.eq.s32.totalorder %s33, 0
    %p102 = por %p100, %p101
    %s104 = sadd.s32 %s103, 1
    %p107 = scmp.eq.s32.totalorder %s27, 1
    %p108 = scmp.ne.s32.totalorder %s103, %s105
    %p109 = scmp.eq.s32.totalorder %s27, 0
    %p110 = por %p108, %p109
    %p111 = scmp.ne.s32.totalorder %s103, %s105
    %p112 = scmp.eq.s32.totalorder %s32, 1
    %p113 = por %p111, %p112
    %p114 = scmp.ne.s32.totalorder %s105, %s106
    %p115 = scmp.eq.s32.totalorder %s32, 0
    %p116 = por %p114, %p115
    %p117 = scmp.ne.s32.totalorder %s105, %s106
    %p118 = scmp.eq.s32.totalorder %s33, 1
    %p119 = por %p117, %p118
    %p121 = scmp.ne.s32.totalorder %s106, %s120
    %p122 = scmp.eq.s32.totalorder %s33, 0
    %p123 = por %p121, %p122
    %s125 = sadd.s32 %s124, 1
    %p128 = scmp.eq.s32.totalorder %s27, 1
    %p129 = scmp.ne.s32.totalorder %s124, %s126
    %p130 = scmp.eq.s32.totalorder %s27, 0
    %p131 = por %p129, %p130
    %p132 = scmp.ne.s32.totalorder %s124, %s126
    %p133 = scmp.eq.s32.totalorder %s32, 1
    %p134 = por %p132, %p133
    %p135 = scmp.ne.s32.totalorder %s126, %s127
    %p136 = scmp.eq.s32.totalorder %s32, 0
    %p137 = por %p135, %p136
    %p138 = scmp.ne.s32.totalorder %s126, %s127
    %p139 = scmp.eq.s32.totalorder %s33, 1
    %p140 = por %p138, %p139
    %p142 = scmp.ne.s32.totalorder %s127, %s141
    %p143 = scmp.eq.s32.totalorder %s33, 0
    %p144 = por %p142, %p143
    %s146 = sadd.s32 %s145, 1
    %p149 = scmp.eq.s32.totalorder %s27, 1
    %p150 = scmp.ne.s32.totalorder %s145, %s147
    %p151 = scmp.eq.s32.totalorder %s27, 0
    %p152 = por %p150, %p151
    %p153 = scmp.ne.s32.totalorder %s145, %s147
    %p154 = scmp.eq.s32.totalorder %s32, 1
    %p155 = por %p153, %p154
    %p156 = scmp.ne.s32.totalorder %s147, %s148
    %p157 = scmp.eq.s32.totalorder %s32, 0
    %p158 = por %p156, %p157
    %p159 = scmp.ne.s32.totalorder %s147, %s148
    %p160 = scmp.eq.s32.totalorder %s33, 1
    %p161 = por %p159, %p160
    %p163 = scmp.ne.s32.totalorder %s148, %s162
    %p164 = scmp.eq.s32.totalorder %s33, 0
    %p165 = por %p163, %p164
    %s167 = sadd.s32 %s166, 1
    %p170 = scmp.eq.s32.totalorder %s27, 1
    %p171 = scmp.ne.s32.totalorder %s166, %s168
    %p172 = scmp.eq.s32.totalorder %s27, 0
    %p173 = por %p171, %p172
    %p174 = scmp.ne.s32.totalorder %s166, %s168
    %p175 = scmp.eq.s32.totalorder %s32, 1
    %p176 = por %p174, %p175
    %p177 = scmp.ne.s32.totalorder %s168, %s169
    %p178 = scmp.eq.s32.totalorder %s32, 0
    %p179 = por %p177, %p178
    %p180 = scmp.ne.s32.totalorder %s168, %s169
    %p181 = scmp.eq.s32.totalorder %s33, 1
    %p182 = por %p180, %p181
    %p184 = scmp.ne.s32.totalorder %s169, %s183
    %p185 = scmp.eq.s32.totalorder %s33, 0
    %p186 = por %p184, %p185
    %s188 = sadd.s32 %s187, 1
    %p191 = scmp.eq.s32.totalorder %s27, 1
    %p192 = scmp.ne.s32.totalorder %s187, %s189
    %p193 = scmp.eq.s32.totalorder %s27, 0
    %p194 = por %p192, %p193
    %p195 = scmp.ne.s32.totalorder %s187, %s189
    %p196 = scmp.eq.s32.totalorder %s32, 1
    %p197 = por %p195, %p196
    %p198 = scmp.ne.s32.totalorder %s189, %s190
    %p199 = scmp.eq.s32.totalorder %s32, 0
    %p200 = por %p198, %p199
    %p201 = scmp.ne.s32.totalorder %s189, %s190
    %p202 = scmp.eq.s32.totalorder %s33, 1
    %p203 = por %p201, %p202
    %p205 = scmp.ne.s32.totalorder %s190, %s204
    %p206 = scmp.eq.s32.totalorder %s33, 0
    %p207 = por %p205, %p206
    %s209 = sadd.s32 %s208, 1
    %p212 = scmp.eq.s32.totalorder %s27, 1
    %p213 = scmp.ne.s32.totalorder %s208, %s210
    %p214 = scmp.eq.s32.totalorder %s27, 0
    %p215 = por %p213, %p214
    %p216 = scmp.ne.s32.totalorder %s208, %s210
    %p217 = scmp.eq.s32.totalorder %s32, 1
    %p218 = por %p216, %p217
    %p219 = scmp.ne.s32.totalorder %s210, %s211
    %p220 = scmp.eq.s32.totalorder %s32, 0
    %p221 = por %p219, %p220
    %p222 = scmp.ne.s32.totalorder %s210, %s211
    %p223 = scmp.eq.s32.totalorder %s33, 1
    %p224 = por %p222, %p223
    %p226 = scmp.ne.s32.totalorder %s211, %s225
    %p227 = scmp.eq.s32.totalorder %s33, 0
    %p228 = por %p226, %p227
    %s230 = sadd.s32 %s229, 1
    %p233 = scmp.eq.s32.totalorder %s27, 1
    %p234 = scmp.ne.s32.totalorder %s229, %s231
    %p235 = scmp.eq.s32.totalorder %s27, 0
    %p236 = por %p234, %p235
    %p237 = scmp.ne.s32.totalorder %s229, %s231
    %p238 = scmp.eq.s32.totalorder %s32, 1
    %p239 = por %p237, %p238
    %p240 = scmp.ne.s32.totalorder %s231, %s232
    %p241 = scmp.eq.s32.totalorder %s32, 0
    %p242 = por %p240, %p241
    %p243 = scmp.ne.s32.totalorder %s231, %s232
    %p244 = scmp.eq.s32.totalorder %s33, 1
    %p245 = por %p243, %p244
    %p247 = scmp.ne.s32.totalorder %s232, %s246
    %p248 = scmp.eq.s32.totalorder %s33, 0
    %p249 = por %p247, %p248
    %s251 = sadd.s32 %s250, 1
    %p254 = scmp.eq.s32.totalorder %s27, 1
    %p255 = scmp.ne.s32.totalorder %s250, %s252
    %p256 = scmp.eq.s32.totalorder %s27, 0
    %p257 = por %p255, %p256
    %p258 = scmp.ne.s32.totalorder %s250, %s252
    %p259 = scmp.eq.s32.totalorder %s32, 1
    %p260 = por %p258, %p259
    %p261 = scmp.ne.s32.totalorder %s252, %s253
    %p262 = scmp.eq.s32.totalorder %s32, 0
    %p263 = por %p261, %p262
    %p264 = scmp.ne.s32.totalorder %s252, %s253
    %p265 = scmp.eq.s32.totalorder %s33, 1
    %p266 = por %p264, %p265
    %p268 = scmp.ne.s32.totalorder %s253, %s267
    %p269 = scmp.eq.s32.totalorder %s33, 0
    %p270 = por %p268, %p269
    %s272 = sadd.s32 %s271, 1
    %p275 = scmp.eq.s32.totalorder %s27, 1
    %p276 = scmp.ne.s32.totalorder %s271, %s273
    %p277 = scmp.eq.s32.totalorder %s27, 0
    %p278 = por %p276, %p277
    %p279 = scmp.ne.s32.totalorder %s271, %s273
    %p280 = scmp.eq.s32.totalorder %s32, 1
    %p281 = por %p279, %p280
    %p282 = scmp.ne.s32.totalorder %s273, %s274
    %p283 = scmp.eq.s32.totalorder %s32, 0
    %p284 = por %p282, %p283
    %p285 = scmp.ne.s32.totalorder %s273, %s274
    %p286 = scmp.eq.s32.totalorder %s33, 1
    %p287 = por %p285, %p286
    %p289 = scmp.ne.s32.totalorder %s274, %s288
    %p290 = scmp.eq.s32.totalorder %s33, 0
    %p291 = por %p289, %p290
    %s293 = sadd.s32 %s292, 1
    %p296 = scmp.eq.s32.totalorder %s27, 1
    %p297 = scmp.ne.s32.totalorder %s292, %s294
    %p298 = scmp.eq.s32.totalorder %s27, 0
    %p299 = por %p297, %p298
    %p300 = scmp.ne.s32.totalorder %s292, %s294
    %p301 = scmp.eq.s32.totalorder %s32, 1
    %p302 = por %p300, %p301
    %p303 = scmp.ne.s32.totalorder %s294, %s295
    %p304 = scmp.eq.s32.totalorder %s32, 0
    %p305 = por %p303, %p304
    %p306 = scmp.ne.s32.totalorder %s294, %s295
    %p307 = scmp.eq.s32.totalorder %s33, 1
    %p308 = por %p306, %p307
    %p310 = scmp.ne.s32.totalorder %s295, %s309
    %p311 = scmp.eq.s32.totalorder %s33, 0
    %p312 = por %p310, %p311
    %s314 = sadd.s32 %s313, 1
    %p317 = scmp.eq.s32.totalorder %s27, 1
    %p318 = scmp.ne.s32.totalorder %s313, %s315
    %p319 = scmp.eq.s32.totalorder %s27, 0
    %p320 = por %p318, %p319
    %p321 = scmp.ne.s32.totalorder %s313, %s315
    %p322 = scmp.eq.s32.totalorder %s32, 1
    %p323 = por %p321, %p322
    %p324 = scmp.ne.s32.totalorder %s315, %s316
    %p325 = scmp.eq.s32.totalorder %s32, 0
    %p326 = por %p324, %p325
    %p327 = scmp.ne.s32.totalorder %s315, %s316
    %p328 = scmp.eq.s32.totalorder %s33, 1
    %p329 = por %p327, %p328
    %p331 = scmp.ne.s32.totalorder %s316, %s330
    %p332 = scmp.eq.s32.totalorder %s33, 0
    %p333 = por %p331, %p332
    %s335 = sadd.s32 %s334, 1
    %p338 = scmp.eq.s32.totalorder %s27, 1
    %p339 = scmp.ne.s32.totalorder %s334, %s336
    %p340 = scmp.eq.s32.totalorder %s27, 0
    %p341 = por %p339, %p340
    %p342 = scmp.ne.s32.totalorder %s334, %s336
    %p343 = scmp.eq.s32.totalorder %s32, 1
    %p344 = por %p342, %p343
    %p345 = scmp.ne.s32.totalorder %s336, %s337
    %p346 = scmp.eq.s32.totalorder %s32, 0
    %p347 = por %p345, %p346
    %p348 = scmp.ne.s32.totalorder %s336, %s337
    %p349 = scmp.eq.s32.totalorder %s33, 1
    %p350 = por %p348, %p349
    %p352 = scmp.ne.s32.totalorder %s337, %s351
    %p353 = scmp.eq.s32.totalorder %s33, 0
    %p354 = por %p352, %p353
    %s356 = sadd.s32 %s355, 1
    %p359 = scmp.eq.s32.totalorder %s27, 1
    %p360 = scmp.ne.s32.totalorder %s355, %s357
    %p361 = scmp.eq.s32.totalorder %s27, 0
    %p362 = por %p360, %p361
    %p363 = scmp.ne.s32.totalorder %s355, %s357
    %p364 = scmp.eq.s32.totalorder %s32, 1
    %p365 = por %p363, %p364
    %p366 = scmp.ne.s32.totalorder %s357, %s358
    %p367 = scmp.eq.s32.totalorder %s32, 0
    %p368 = por %p366, %p367
    %p369 = scmp.ne.s32.totalorder %s357, %s358
    %p370 = scmp.eq.s32.totalorder %s33, 1
    %p371 = por %p369, %p370
    %p373 = scmp.ne.s32.totalorder %s358, %s372
    %p374 = scmp.eq.s32.totalorder %s33, 0
    %p375 = por %p373, %p374
    %s377 = sadd.s32 %s376, 1
    %p380 = scmp.eq.s32.totalorder %s27, 1
    %p381 = scmp.ne.s32.totalorder %s376, %s378
    %p382 = scmp.eq.s32.totalorder %s27, 0
    %p383 = por %p381, %p382
    %p384 = scmp.ne.s32.totalorder %s376, %s378
    %p385 = scmp.eq.s32.totalorder %s32, 1
    %p386 = por %p384, %p385
    %p387 = scmp.ne.s32.totalorder %s378, %s379
    %p388 = scmp.eq.s32.totalorder %s32, 0
    %p389 = por %p387, %p388
    %p390 = scmp.ne.s32.totalorder %s378, %s379
    %p391 = scmp.eq.s32.totalorder %s33, 1
    %p392 = por %p390, %p391
    %p394 = scmp.ne.s32.totalorder %s379, %s393
    %p395 = scmp.eq.s32.totalorder %s33, 0
    %p396 = por %p394, %p395
    %s398 = sadd.s32 %s397, 1
    %p401 = scmp.eq.s32.totalorder %s27, 1
    %p402 = scmp.ne.s32.totalorder %s397, %s399
    %p403 = scmp.eq.s32.totalorder %s27, 0
    %p404 = por %p402, %p403
    %p405 = scmp.ne.s32.totalorder %s397, %s399
    %p406 = scmp.eq.s32.totalorder %s32, 1
    %p407 = por %p405, %p406
    %p408 = scmp.ne.s32.totalorder %s399, %s400
    %p409 = scmp.eq.s32.totalorder %s32, 0
    %p410 = por %p408, %p409
    %p411 = scmp.ne.s32.totalorder %s399, %s400
    %p412 = scmp.eq.s32.totalorder %s33, 1
    %p413 = por %p411, %p412
    %p415 = scmp.ne.s32.totalorder %s400, %s414
    %p416 = scmp.eq.s32.totalorder %s33, 0
    %p417 = por %p415, %p416
    %s419 = sadd.s32 %s418, 1
    %p422 = scmp.eq.s32.totalorder %s27, 1
    %p423 = scmp.ne.s32.totalorder %s418, %s420
    %p424 = scmp.eq.s32.totalorder %s27, 0
    %p425 = por %p423, %p424
    %p426 = scmp.ne.s32.totalorder %s418, %s420
    %p427 = scmp.eq.s32.totalorder %s32, 1
    %p428 = por %p426, %p427
    %p429 = scmp.ne.s32.totalorder %s420, %s421
    %p430 = scmp.eq.s32.totalorder %s32, 0
    %p431 = por %p429, %p430
    %p432 = scmp.ne.s32.totalorder %s420, %s421
    %p433 = scmp.eq.s32.totalorder %s33, 1
    %p434 = por %p432, %p433
    %p436 = scmp.ne.s32.totalorder %s421, %s435
    %p437 = scmp.eq.s32.totalorder %s33, 0
    %p438 = por %p436, %p437
    %s440 = sadd.s32 %s439, 1
    %p443 = scmp.eq.s32.totalorder %s27, 1
    %p444 = scmp.ne.s32.totalorder %s439, %s441
    %p445 = scmp.eq.s32.totalorder %s27, 0
    %p446 = por %p444, %p445
    %p447 = scmp.ne.s32.totalorder %s439, %s441
    %p448 = scmp.eq.s32.totalorder %s32, 1
    %p449 = por %p447, %p448
    %p450 = scmp.ne.s32.totalorder %s441, %s442
    %p451 = scmp.eq.s32.totalorder %s32, 0
    %p452 = por %p450, %p451
    %p453 = scmp.ne.s32.totalorder %s441, %s442
    %p454 = scmp.eq.s32.totalorder %s33, 1
    %p455 = por %p453, %p454
    %p457 = scmp.ne.s32.totalorder %s442, %s456
    %p458 = scmp.eq.s32.totalorder %s33, 0
    %p459 = por %p457, %p458
    %s461 = sadd.s32 %s460, 1
    %p464 = scmp.eq.s32.totalorder %s27, 1
    %p465 = scmp.ne.s32.totalorder %s460, %s462
    %p466 = scmp.eq.s32.totalorder %s27, 0
    %p467 = por %p465, %p466
    %p468 = scmp.ne.s32.totalorder %s460, %s462
    %p469 = scmp.eq.s32.totalorder %s32, 1
    %p470 = por %p468, %p469
    %p471 = scmp.ne.s32.totalorder %s462, %s463
    %p472 = scmp.eq.s32.totalorder %s32, 0
    %p473 = por %p471, %p472
    %p474 = scmp.ne.s32.totalorder %s462, %s463
    %p475 = scmp.eq.s32.totalorder %s33, 1
    %p476 = por %p474, %p475
    %p478 = scmp.ne.s32.totalorder %s463, %s477
    %p479 = scmp.eq.s32.totalorder %s33, 0
    %p480 = por %p478, %p479
    %s481 = ssub.s32 %s27, %s34
    %p482 = scmp.eq.s32.totalorder %s481, 0
    %s484 = sadd.s32 %s483, 1
    %s485 = scalar_select %p482, %s483, %s484
    %p488 = pneg %p482
    %p489 = scmp.eq.s32.totalorder %s27, 1
    %p490 = por %p488, %p489
    %p491 = scmp.ne.s32.totalorder %s483, %s486
    %p492 = scmp.eq.s32.totalorder %s27, 0
    %p493 = por %p491, %p492
    %p494 = scmp.ne.s32.totalorder %s483, %s486
    %p495 = scmp.eq.s32.totalorder %s32, 1
    %p496 = por %p494, %p495
    %p497 = scmp.ne.s32.totalorder %s486, %s487
    %p498 = scmp.eq.s32.totalorder %s32, 0
    %p499 = por %p497, %p498
    %p500 = scmp.ne.s32.totalorder %s486, %s487
    %p501 = scmp.eq.s32.totalorder %s33, 1
    %p502 = por %p500, %p501
    %p504 = scmp.ne.s32.totalorder %s487, %s503
    %p505 = scmp.eq.s32.totalorder %s33, 0
    %p506 = por %p504, %p505
    %p507 = scmp.le.s32.totalorder 1, %s27
    %p508 = scmp.lt.s32.totalorder %s27, 3
    %p509 = pnand %p507, %p508
    %p510 = pneg %p509
    // Predicated region
    $region9: #{joint_estimator_forward.3} parent=5 // pred_check
      _
    $region10: #{joint_estimator_forward.3} parent=5 // pred_check_branch
      %512 = sbr.rel (%p509) target = $region12
    $region11: #{joint_estimator_forward.3} parent=5 // pred_region
      %s513 = ssub.s32 %s27, 1
      // Predicated region
      $region13: #{joint_estimator_forward.3} parent=11 // pred_check
        %p514 = pneg %p74
      $region14: #{joint_estimator_forward.3} parent=11 // pred_check_branch
        %516 = sbr.rel (%p514) target = $region16
      $region15: #{joint_estimator_forward.3} parent=11 // pred_region
        _
      $region16: #{joint_estimator_forward.3} parent=11 // pred_fallthru
        _
      // Predicated region
      $region17: #{joint_estimator_forward.3} parent=11 // pred_check
        %p517 = pneg %p95
      $region18: #{joint_estimator_forward.3} parent=11 // pred_check_branch
        %519 = sbr.rel (%p517) target = $region20
      $region19: #{joint_estimator_forward.3} parent=11 // pred_region
        _
      $region20: #{joint_estimator_forward.3} parent=11 // pred_fallthru
        _
      // Predicated region
      $region21: #{joint_estimator_forward.3} parent=11 // pred_check
        %p520 = pneg %p116
      $region22: #{joint_estimator_forward.3} parent=11 // pred_check_branch
        %522 = sbr.rel (%p520) target = $region24
      $region23: #{joint_estimator_forward.3} parent=11 // pred_region
        _
      $region24: #{joint_estimator_forward.3} parent=11 // pred_fallthru
        _
      // Predicated region
      $region25: #{joint_estimator_forward.3} parent=11 // pred_check
        %p523 = pneg %p137
      $region26: #{joint_estimator_forward.3} parent=11 // pred_check_branch
        %525 = sbr.rel (%p523) target = $region28
      $region27: #{joint_estimator_forward.3} parent=11 // pred_region
        _
      $region28: #{joint_estimator_forward.3} parent=11 // pred_fallthru
        _
      // Predicated region
      $region29: #{joint_estimator_forward.3} parent=11 // pred_check
        %p526 = pneg %p158
      $region30: #{joint_estimator_forward.3} parent=11 // pred_check_branch
        %528 = sbr.rel (%p526) target = $region32
      $region31: #{joint_estimator_forward.3} parent=11 // pred_region
        _
      $region32: #{joint_estimator_forward.3} parent=11 // pred_fallthru
        _
      // Predicated region
      $region33: #{joint_estimator_forward.3} parent=11 // pred_check
        %p529 = pneg %p179
      $region34: #{joint_estimator_forward.3} parent=11 // pred_check_branch
        %531 = sbr.rel (%p529) target = $region36
      $region35: #{joint_estimator_forward.3} parent=11 // pred_region
        _
      $region36: #{joint_estimator_forward.3} parent=11 // pred_fallthru
        _
      // Predicated region
      $region37: #{joint_estimator_forward.3} parent=11 // pred_check
        %p532 = pneg %p200
      $region38: #{joint_estimator_forward.3} parent=11 // pred_check_branch
        %534 = sbr.rel (%p532) target = $region40
      $region39: #{joint_estimator_forward.3} parent=11 // pred_region
        _
      $region40: #{joint_estimator_forward.3} parent=11 // pred_fallthru
        _
      // Predicated region
      $region41: #{joint_estimator_forward.3} parent=11 // pred_check
        %p535 = pneg %p221
      $region42: #{joint_estimator_forward.3} parent=11 // pred_check_branch
        %537 = sbr.rel (%p535) target = $region44
      $region43: #{joint_estimator_forward.3} parent=11 // pred_region
        _
      $region44: #{joint_estimator_forward.3} parent=11 // pred_fallthru
        _
      // Predicated region
      $region45: #{joint_estimator_forward.3} parent=11 // pred_check
        %p538 = pneg %p242
      $region46: #{joint_estimator_forward.3} parent=11 // pred_check_branch
        %540 = sbr.rel (%p538) target = $region48
      $region47: #{joint_estimator_forward.3} parent=11 // pred_region
        _
      $region48: #{joint_estimator_forward.3} parent=11 // pred_fallthru
        _
      // Predicated region
      $region49: #{joint_estimator_forward.3} parent=11 // pred_check
        %p541 = pneg %p263
      $region50: #{joint_estimator_forward.3} parent=11 // pred_check_branch
        %543 = sbr.rel (%p541) target = $region52
      $region51: #{joint_estimator_forward.3} parent=11 // pred_region
        _
      $region52: #{joint_estimator_forward.3} parent=11 // pred_fallthru
        _
      // Predicated region
      $region53: #{joint_estimator_forward.3} parent=11 // pred_check
        %p544 = pneg %p284
      $region54: #{joint_estimator_forward.3} parent=11 // pred_check_branch
        %546 = sbr.rel (%p544) target = $region56
      $region55: #{joint_estimator_forward.3} parent=11 // pred_region
        _
      $region56: #{joint_estimator_forward.3} parent=11 // pred_fallthru
        _
      // Predicated region
      $region57: #{joint_estimator_forward.3} parent=11 // pred_check
        %p547 = pneg %p305
      $region58: #{joint_estimator_forward.3} parent=11 // pred_check_branch
        %549 = sbr.rel (%p547) target = $region60
      $region59: #{joint_estimator_forward.3} parent=11 // pred_region
        _
      $region60: #{joint_estimator_forward.3} parent=11 // pred_fallthru
        _
      // Predicated region
      $region61: #{joint_estimator_forward.3} parent=11 // pred_check
        %p550 = pneg %p326
      $region62: #{joint_estimator_forward.3} parent=11 // pred_check_branch
        %552 = sbr.rel (%p550) target = $region64
      $region63: #{joint_estimator_forward.3} parent=11 // pred_region
        _
      $region64: #{joint_estimator_forward.3} parent=11 // pred_fallthru
        _
      // Predicated region
      $region65: #{joint_estimator_forward.3} parent=11 // pred_check
        %p553 = pneg %p347
      $region66: #{joint_estimator_forward.3} parent=11 // pred_check_branch
        %555 = sbr.rel (%p553) target = $region68
      $region67: #{joint_estimator_forward.3} parent=11 // pred_region
        _
      $region68: #{joint_estimator_forward.3} parent=11 // pred_fallthru
        _
      // Predicated region
      $region69: #{joint_estimator_forward.3} parent=11 // pred_check
        %p556 = pneg %p368
      $region70: #{joint_estimator_forward.3} parent=11 // pred_check_branch
        %558 = sbr.rel (%p556) target = $region72
      $region71: #{joint_estimator_forward.3} parent=11 // pred_region
        _
      $region72: #{joint_estimator_forward.3} parent=11 // pred_fallthru
        _
      // Predicated region
      $region73: #{joint_estimator_forward.3} parent=11 // pred_check
        %p559 = pneg %p389
      $region74: #{joint_estimator_forward.3} parent=11 // pred_check_branch
        %561 = sbr.rel (%p559) target = $region76
      $region75: #{joint_estimator_forward.3} parent=11 // pred_region
        _
      $region76: #{joint_estimator_forward.3} parent=11 // pred_fallthru
        _
      // Predicated region
      $region77: #{joint_estimator_forward.3} parent=11 // pred_check
        %p562 = pneg %p410
      $region78: #{joint_estimator_forward.3} parent=11 // pred_check_branch
        %564 = sbr.rel (%p562) target = $region80
      $region79: #{joint_estimator_forward.3} parent=11 // pred_region
        _
      $region80: #{joint_estimator_forward.3} parent=11 // pred_fallthru
        _
      // Predicated region
      $region81: #{joint_estimator_forward.3} parent=11 // pred_check
        %p565 = pneg %p431
      $region82: #{joint_estimator_forward.3} parent=11 // pred_check_branch
        %567 = sbr.rel (%p565) target = $region84
      $region83: #{joint_estimator_forward.3} parent=11 // pred_region
        _
      $region84: #{joint_estimator_forward.3} parent=11 // pred_fallthru
        _
      // Predicated region
      $region85: #{joint_estimator_forward.3} parent=11 // pred_check
        %p568 = pneg %p452
      $region86: #{joint_estimator_forward.3} parent=11 // pred_check_branch
        %570 = sbr.rel (%p568) target = $region88
      $region87: #{joint_estimator_forward.3} parent=11 // pred_region
        _
      $region88: #{joint_estimator_forward.3} parent=11 // pred_fallthru
        _
      // Predicated region
      $region89: #{joint_estimator_forward.3} parent=11 // pred_check
        %p571 = pneg %p473
      $region90: #{joint_estimator_forward.3} parent=11 // pred_check_branch
        %573 = sbr.rel (%p571) target = $region92
      $region91: #{joint_estimator_forward.3} parent=11 // pred_region
        _
      $region92: #{joint_estimator_forward.3} parent=11 // pred_fallthru
        _
    $region12: #{joint_estimator_forward.3} parent=5 // pred_fallthru
      _
    %p574 = scmp.lt.s32.totalorder %s27, 2
    // Predicated region
    $region93: #{joint_estimator_forward.3} parent=5 // pred_check
      %p575 = pneg %p574
    $region94: #{joint_estimator_forward.3} parent=5 // pred_check_branch
      %577 = sbr.rel (%p575) target = $region96
    $region95: #{joint_estimator_forward.3} parent=5 // pred_region
      // Predicated region
      $region97: #{joint_estimator_forward.3} parent=95 // pred_check
        %p578 = pneg %p47
      $region98: #{joint_estimator_forward.3} parent=95 // pred_check_branch
        %580 = sbr.rel (%p578) target = $region100
      $region99: #{joint_estimator_forward.3} parent=95 // pred_region
        %p581 = scmp.lt.s32.totalorder %s27, 1
        %s582 = scalar_select %p581, %s27, 1
        %s583 = smul.addr %s582, 2
        %s584 = smul.addr %s583, 8
        %s585 = scalar_lea.vmem %s0, %s584
      $region100: #{joint_estimator_forward.3} parent=95 // pred_fallthru
        _
    $region96: #{joint_estimator_forward.3} parent=5 // pred_fallthru
      _
    %p586 = scmp.le.s32.totalorder 1, %s27
    %p587 = scmp.lt.s32.totalorder %s27, 3
    %p588 = pnand %p586, %p587
    %p589 = pneg %p588
    // Predicated region
    $region101: #{joint_estimator_forward.3} parent=5 // pred_check
      _
    $region102: #{joint_estimator_forward.3} parent=5 // pred_check_branch
      %591 = sbr.rel (%p588) target = $region104
    $region103: #{joint_estimator_forward.3} parent=5 // pred_region
      %s592 = ssub.s32 %s27, 1
      %p593 = scmp.lt.s32.totalorder %s32, 1
      %s594 = scalar_select %p593, %s32, 1
      %s595 = smul.addr %s594, 2
      %s596 = smul.addr %s595, 8
      %s597 = scalar_lea.vmem %s0, %s596
      %p598 = pneg %p53
      %p599 = pneg %p50
      %p600 = pneg %p74
      %p601 = pneg %p71
      %p602 = pneg %p95
      %p603 = pneg %p92
      %p604 = pneg %p116
      %p605 = pneg %p113
      %p606 = pneg %p137
      %p607 = pneg %p134
      %p608 = pneg %p158
      %p609 = pneg %p155
      %p610 = pneg %p179
      %p611 = pneg %p176
      %p612 = pneg %p200
      %p613 = pneg %p197
      %p614 = pneg %p221
      %p615 = pneg %p218
      %p616 = pneg %p242
      %p617 = pneg %p239
      %p618 = pneg %p263
      %p619 = pneg %p260
      %p620 = pneg %p284
      %p621 = pneg %p281
      %p622 = pneg %p305
      %p623 = pneg %p302
      %p624 = pneg %p326
      %p625 = pneg %p323
      %p626 = pneg %p347
      %p627 = pneg %p344
      %p628 = pneg %p368
      %p629 = pneg %p365
      %p630 = pneg %p389
      %p631 = pneg %p386
      %p632 = pneg %p410
      %p633 = pneg %p407
      %p634 = pneg %p431
      %p635 = pneg %p428
      %p636 = pneg %p452
      %p637 = pneg %p449
      %p638 = pneg %p473
      %p639 = pneg %p470
      %p640 = pneg %p499
      %p641 = pneg %p496
      %p642 = scmp.lt.s32.totalorder %s32, 1
      %s643 = scalar_select %p642, %s32, 1
      %s644 = smul.addr %s643, 2
      %s645 = smul.addr %s644, 8
      %s646 = scalar_lea.vmem %s21, %s645
      %p647 = scmp.lt.s32.totalorder %s32, 1
      %s648 = scalar_select %p647, %s32, 1
      %s649 = smul.addr %s648, 2
      %s650 = smul.addr %s649, 8
      %s651 = scalar_lea.vmem %s0, %s650
      %p652 = scmp.lt.s32.totalorder %s32, 1
      %s653 = scalar_select %p652, %s32, 1
      %s654 = smul.addr %s653, 2
      %s655 = smul.addr %s654, 8
      %s656 = scalar_lea.vmem %s21, %s655
      %v658 = vld [vmem:[%s1] sm:$0xf]
      %v659 = vld [vmem:[%s1 + $0x4] sm:$0xf]
      %v660 = vld [vmem:[%s2] sm:$0x1]
      %v661 = vld [vmem:[%s3] sm:$0x1]
      %v662 = vld [vmem:[%s4] sm:$0x1]
      %v663 = vld [vmem:[%s5] sm:$0xf]
      %v664 = vld [vmem:[%s5 + $0x4] sm:$0xf]
      %v665 = vld [vmem:[%s5 + $0x8] sm:$0xf]
      %v666 = vld [vmem:[%s5 + $0xc] sm:$0xf]
      %v667 = vld [vmem:[%s5 + $0x10] sm:$0xf]
      %v668 = vld [vmem:[%s5 + $0x14] sm:$0xf]
      %v669 = vld [vmem:[%s5 + $0x18] sm:$0xf]
      %v670 = vld [vmem:[%s5 + $0x1c] sm:$0xf]
      %v671 = vld [vmem:[%s5 + $0x20] sm:$0xf]
      %v672 = vld [vmem:[%s5 + $0x24] sm:$0xf]
      %v673 = vld [vmem:[%s5 + $0x28] sm:$0xf]
      %v674 = vld [vmem:[%s5 + $0x2c] sm:$0xf]
      %v675 = vld [vmem:[%s5 + $0x30] sm:$0xf]
      %v676 = vld [vmem:[%s5 + $0x34] sm:$0xf]
      %v677 = vld [vmem:[%s5 + $0x38] sm:$0xf]
      %v678 = vld [vmem:[%s5 + $0x3c] sm:$0xf]
      %v679 = vld [vmem:[%s5 + $0x40] sm:$0xf]
      %v680 = vld [vmem:[%s5 + $0x44] sm:$0xf]
      %v681 = vld [vmem:[%s5 + $0x48] sm:$0xf]
      %v682 = vld [vmem:[%s5 + $0x4c] sm:$0xf]
      %v683 = vld [vmem:[%s5 + $0x50] sm:$0xf]
      %v684 = vld [vmem:[%s5 + $0x54] sm:$0xf]
      %v685 = vld [vmem:[%s5 + $0x58] sm:$0xf]
      %v686 = vld [vmem:[%s5 + $0x5c] sm:$0xf]
      %v687 = vld [vmem:[%s5 + $0x60] sm:$0xf]
      %v688 = vld [vmem:[%s5 + $0x64] sm:$0xf]
      %v689 = vld [vmem:[%s5 + $0x68] sm:$0xf]
      %v690 = vld [vmem:[%s5 + $0x6c] sm:$0xf]
      %v691 = vld [vmem:[%s5 + $0x70] sm:$0xf]
      %v692 = vld [vmem:[%s5 + $0x74] sm:$0xf]
      %v693 = vld [vmem:[%s5 + $0x78] sm:$0xf]
      %v694 = vld [vmem:[%s5 + $0x7c] sm:$0xf]
      %v695 = vld [vmem:[%s6] sm:$0x1]
      %v696 = vld [vmem:[%s6 + $0x1] sm:$0x1]
      %v697 = vld [vmem:[%s6 + $0x2] sm:$0x1]
      %v698 = vld [vmem:[%s6 + $0x3] sm:$0x1]
      %v699 = vld [vmem:[%s7] sm:$0xf]
      %v700 = vld [vmem:[%s7 + $0x4] sm:$0xf]
      %v701 = vld [vmem:[%s7 + $0x8] sm:$0xf]
      %v702 = vld [vmem:[%s7 + $0xc] sm:$0xf]
      %v703 = vld [vmem:[%s7 + $0x10] sm:$0xf]
      %v704 = vld [vmem:[%s7 + $0x14] sm:$0xf]
      %v705 = vld [vmem:[%s7 + $0x18] sm:$0xf]
      %v706 = vld [vmem:[%s7 + $0x1c] sm:$0xf]
      %v707 = vld [vmem:[%s7 + $0x20] sm:$0xf]
      %v708 = vld [vmem:[%s7 + $0x24] sm:$0xf]
      %v709 = vld [vmem:[%s7 + $0x28] sm:$0xf]
      %v710 = vld [vmem:[%s7 + $0x2c] sm:$0xf]
      %v711 = vld [vmem:[%s7 + $0x30] sm:$0xf]
      %v712 = vld [vmem:[%s7 + $0x34] sm:$0xf]
      %v713 = vld [vmem:[%s7 + $0x38] sm:$0xf]
      %v714 = vld [vmem:[%s7 + $0x3c] sm:$0xf]
      %v715 = vld [vmem:[%s7 + $0x40] sm:$0xf]
      %v716 = vld [vmem:[%s7 + $0x44] sm:$0xf]
      %v717 = vld [vmem:[%s7 + $0x48] sm:$0xf]
      %v718 = vld [vmem:[%s7 + $0x4c] sm:$0xf]
      %v719 = vld [vmem:[%s7 + $0x50] sm:$0xf]
      %v720 = vld [vmem:[%s7 + $0x54] sm:$0xf]
      %v721 = vld [vmem:[%s7 + $0x58] sm:$0xf]
      %v722 = vld [vmem:[%s7 + $0x5c] sm:$0xf]
      %v723 = vld [vmem:[%s7 + $0x60] sm:$0xf]
      %v724 = vld [vmem:[%s7 + $0x64] sm:$0xf]
      %v725 = vld [vmem:[%s7 + $0x68] sm:$0xf]
      %v726 = vld [vmem:[%s7 + $0x6c] sm:$0xf]
      %v727 = vld [vmem:[%s7 + $0x70] sm:$0xf]
      %v728 = vld [vmem:[%s7 + $0x74] sm:$0xf]
      %v729 = vld [vmem:[%s7 + $0x78] sm:$0xf]
      %v730 = vld [vmem:[%s7 + $0x7c] sm:$0xf]
      %v731 = vld [vmem:[%s8] sm:$0x1]
      %v732 = vld [vmem:[%s8 + $0x1] sm:$0x1]
      %v733 = vld [vmem:[%s8 + $0x2] sm:$0x1]
      %v734 = vld [vmem:[%s8 + $0x3] sm:$0x1]
      %v735 = vld [vmem:[%s9] sm:$0xf]
      %v736 = vld [vmem:[%s9 + $0x4] sm:$0xf]
      %v737 = vld [vmem:[%s9 + $0x8] sm:$0xf]
      %v738 = vld [vmem:[%s9 + $0xc] sm:$0xf]
      %v739 = vld [vmem:[%s9 + $0x10] sm:$0xf]
      %v740 = vld [vmem:[%s9 + $0x14] sm:$0xf]
      %v741 = vld [vmem:[%s9 + $0x18] sm:$0xf]
      %v742 = vld [vmem:[%s9 + $0x1c] sm:$0xf]
      %v743 = vld [vmem:[%s9 + $0x20] sm:$0xf]
      %v744 = vld [vmem:[%s9 + $0x24] sm:$0xf]
      %v745 = vld [vmem:[%s9 + $0x28] sm:$0xf]
      %v746 = vld [vmem:[%s9 + $0x2c] sm:$0xf]
      %v747 = vld [vmem:[%s9 + $0x30] sm:$0xf]
      %v748 = vld [vmem:[%s9 + $0x34] sm:$0xf]
      %v749 = vld [vmem:[%s9 + $0x38] sm:$0xf]
      %v750 = vld [vmem:[%s9 + $0x3c] sm:$0xf]
      %v751 = vld [vmem:[%s9 + $0x40] sm:$0xf]
      %v752 = vld [vmem:[%s9 + $0x44] sm:$0xf]
      %v753 = vld [vmem:[%s9 + $0x48] sm:$0xf]
      %v754 = vld [vmem:[%s9 + $0x4c] sm:$0xf]
      %v755 = vld [vmem:[%s9 + $0x50] sm:$0xf]
      %v756 = vld [vmem:[%s9 + $0x54] sm:$0xf]
      %v757 = vld [vmem:[%s9 + $0x58] sm:$0xf]
      %v758 = vld [vmem:[%s9 + $0x5c] sm:$0xf]
      %v759 = vld [vmem:[%s9 + $0x60] sm:$0xf]
      %v760 = vld [vmem:[%s9 + $0x64] sm:$0xf]
      %v761 = vld [vmem:[%s9 + $0x68] sm:$0xf]
      %v762 = vld [vmem:[%s9 + $0x6c] sm:$0xf]
      %v763 = vld [vmem:[%s9 + $0x70] sm:$0xf]
      %v764 = vld [vmem:[%s9 + $0x74] sm:$0xf]
      %v765 = vld [vmem:[%s9 + $0x78] sm:$0xf]
      %v766 = vld [vmem:[%s9 + $0x7c] sm:$0xf]
      %v767 = vld [vmem:[%s10] sm:$0x1]
      %v768 = vld [vmem:[%s10 + $0x1] sm:$0x1]
      %v769 = vld [vmem:[%s10 + $0x2] sm:$0x1]
      %v770 = vld [vmem:[%s10 + $0x3] sm:$0x1]
      %v771 = vld [vmem:[%s11] sm:$0xf]
      %v772 = vld [vmem:[%s11 + $0x4] sm:$0xf]
      %v773 = vld [vmem:[%s11 + $0x8] sm:$0xf]
      %v774 = vld [vmem:[%s11 + $0xc] sm:$0xf]
      %v775 = vld [vmem:[%s11 + $0x10] sm:$0xf]
      %v776 = vld [vmem:[%s11 + $0x14] sm:$0xf]
      %v777 = vld [vmem:[%s11 + $0x18] sm:$0xf]
      %v778 = vld [vmem:[%s11 + $0x1c] sm:$0xf]
      %v779 = vld [vmem:[%s12] sm:$0x1]
      %v780 = vld [vmem:[%s13] sm:$0x1]
      %v781 = vld [vmem:[%s14] sm:$0x1]
      %v782 = vld [vmem:[%s15] sm:$0xff]
      %v783 = vld [vmem:[%s15 + $0x8] sm:$0xff]
      %v784 = vld [vmem:[%s15 + $0x10] sm:$0xff]
      %v785 = vld [vmem:[%s15 + $0x18] sm:$0xff]
      %v786 = vld [vmem:[%s15 + $0x20] sm:$0xff]
      %v787 = vld [vmem:[%s15 + $0x28] sm:$0xff]
      %v788 = vld [vmem:[%s15 + $0x30] sm:$0xff]
      %v789 = vld [vmem:[%s15 + $0x38] sm:$0xff]
      %v790 = vld [vmem:[%s16] sm:$0x3]
      %v791 = vld [vmem:[%s17] sm:$0xf]
      %v792 = vld [vmem:[%s17 + $0x4] sm:$0xf]
      %v793 = vld [vmem:[%s17 + $0x8] sm:$0xf]
      %v794 = vld [vmem:[%s17 + $0xc] sm:$0xf]
      %v795 = vld [vmem:[%s17 + $0x10] sm:$0xf]
      %v796 = vld [vmem:[%s17 + $0x14] sm:$0xf]
      %v797 = vld [vmem:[%s17 + $0x18] sm:$0xf]
      %v798 = vld [vmem:[%s17 + $0x1c] sm:$0xf]
      %v799 = vld [vmem:[%s17 + $0x20] sm:$0xf]
      %v800 = vld [vmem:[%s17 + $0x24] sm:$0xf]
      %v801 = vld [vmem:[%s17 + $0x28] sm:$0xf]
      %v802 = vld [vmem:[%s17 + $0x2c] sm:$0xf]
      %v803 = vld [vmem:[%s17 + $0x30] sm:$0xf]
      %v804 = vld [vmem:[%s17 + $0x34] sm:$0xf]
      %v805 = vld [vmem:[%s17 + $0x38] sm:$0xf]
      %v806 = vld [vmem:[%s17 + $0x3c] sm:$0xf]
      %v807 = vld [vmem:[%s17 + $0x40] sm:$0xf]
      %v808 = vld [vmem:[%s17 + $0x44] sm:$0xf]
      %v809 = vld [vmem:[%s17 + $0x48] sm:$0xf]
      %v810 = vld [vmem:[%s17 + $0x4c] sm:$0xf]
      %v811 = vld [vmem:[%s17 + $0x50] sm:$0xf]
      %v812 = vld [vmem:[%s17 + $0x54] sm:$0xf]
      %v813 = vld [vmem:[%s17 + $0x58] sm:$0xf]
      %v814 = vld [vmem:[%s17 + $0x5c] sm:$0xf]
      %v815 = vld [vmem:[%s17 + $0x60] sm:$0xf]
      %v816 = vld [vmem:[%s17 + $0x64] sm:$0xf]
      %v817 = vld [vmem:[%s17 + $0x68] sm:$0xf]
      %v818 = vld [vmem:[%s17 + $0x6c] sm:$0xf]
      %v819 = vld [vmem:[%s17 + $0x70] sm:$0xf]
      %v820 = vld [vmem:[%s17 + $0x74] sm:$0xf]
      %v821 = vld [vmem:[%s17 + $0x78] sm:$0xf]
      %v822 = vld [vmem:[%s17 + $0x7c] sm:$0xf]
      %v823 = vld [vmem:[%s18] sm:$0x1]
      %v824 = vld [vmem:[%s19] sm:$0x1]
      %v825 = vld [vmem:[%s20] sm:$0x1]
      %v826 = vld [vmem:[%s651] sm:$0xff]
      %v827 = vld [vmem:[%s651 + $0x8] sm:$0xff]
      %v828 = vpack.c.bf16 %v827, %v826
      %v830 = vlaneseq
      %v831 = vshrl.u32 %v830, 7
      %v832 = vsub.s32 0, %v831
      %v833 = vrot.slane %v660, %v832
      %v837 = vunpack.c.l.b16 %v658
      %v838 = vunpack.c.l.b16 %v659
      %v839 = vpack.c.b16 %v838, %v837
      %vm841 = vcmask 130048
      %v843 = vsel %vm841, %v828, 0
      %845 = vmatprep.subr.bf16.mxu0 0
      %846 = vmatpush1.bf16.msra.mxu0 %v839
      %847 = vmatprep.subr.bf16.mxu0 0
      %848 = vmatpush1.bf16.msra.mxu0 0
      %849 = vmatprep.subr.bf16.mxu0 0
      %850 = vmatpush1.bf16.msra.mxu0 0
      %851 = vmatprep.subr.bf16.mxu0 0
      %852 = vmatpush1.bf16.msra.mxu0 0
      %853 = vmatprep.subr.bf16.mxu0 0
      %854 = vmatpush1.bf16.msra.mxu0 0
      %855 = vmatprep.subr.bf16.mxu0 0
      %856 = vmatpush1.bf16.msra.mxu0 0
      %857 = vmatprep.subr.bf16.mxu0 0
      %858 = vmatpush1.bf16.msra.mxu0 0
      %859 = vmatprep.subr.bf16.mxu0 0
      %860 = vmatpush1.bf16.msra.mxu0 0
      %861 = vmatprep.subr.bf16.mxu0 0
      %862 = vmatpush1.bf16.msra.mxu0 0
      %863 = vmatprep.subr.bf16.mxu0 0
      %864 = vmatpush1.bf16.msra.mxu0 0
      %865 = vmatprep.subr.bf16.mxu0 0
      %866 = vmatpush1.bf16.msra.mxu0 0
      %867 = vmatprep.subr.bf16.mxu0 0
      %868 = vmatpush1.bf16.msra.mxu0 0
      %869 = vmatprep.subr.bf16.mxu0 0
      %870 = vmatpush1.bf16.msra.mxu0 0
      %871 = vmatprep.subr.bf16.mxu0 0
      %872 = vmatpush1.bf16.msra.mxu0 0
      %873 = vmatprep.subr.bf16.mxu0 0
      %874 = vmatpush1.bf16.msra.mxu0 0
      %875 = vmatprep.subr.bf16.mxu0 0
      %876 = vmatpush1.bf16.msra.mxu0 0
      %877 = vmatprep.mubr.bf16.mxu0 0
      %878 = vmatmul.mubr.bf16.gmra.mrb[0].mxu0 %v843
      %v879 = vpop.f32.mrb[0].mxu0
      %v880 = vadd.f32 %v833, %v879
      %v881 = vpop.f32.mrb[0].mxu0
      %v882 = vpop.f32.mrb[0].mxu0
      %v883 = vadd.f32 %v833, %v882
      %v884 = vpop.f32.mrb[0].mxu0
      %885 = vdwg.mxu0
      %vm886 = vcmask 523264
      %v887 = vsel %vm886, %v880, 0.0
      %888 = vadd.xlane.f32.xlu0 %v887
      %v889 = vpop.xlane.xlu0 %888
      %v890 = vsel %vm886, %v883, 0.0
      %891 = vadd.xlane.f32.xlu0 %v890
      %v892 = vpop.xlane.xlu0 %891
      %v893 = vrcp.pop 64.0
      %v894 = vmul.f32 %v889, %v893
      %v895 = vmul.f32 %v892, %v893
      %v896 = vsub.f32 %v880, %v894
      %v897 = vsub.f32 %v883, %v895
      %v898 = vmul.f32 %v896, %v896
      %v899 = vmul.f32 %v897, %v897
      %v900 = vsel %vm886, %v898, 0.0
      %901 = vadd.xlane.f32.xlu0 %v900
      %v902 = vpop.xlane.xlu0 %901
      %v903 = vsel %vm886, %v899, 0.0
      %904 = vadd.xlane.f32.xlu0 %v903
      %v905 = vpop.xlane.xlu0 %904
      %v906 = vmul.f32 %v902, %v893
      %v907 = vmul.f32 %v905, %v893
      %v908 = vadd.f32 %v906, 1e-05
      %v909 = vadd.f32 %v907, 1e-05
      %v910 = vrsqrt.pop %v908
      %v911 = vrsqrt.pop %v909
      %v912 = vmul.f32 %v896, %v910
      %v913 = vmul.f32 %v897, %v911
      %v915 = vlaneseq
      %v916 = vshrl.u32 %v915, 7
      %v917 = vsub.s32 0, %v916
      %v918 = vrot.slane %v661, %v917
      %v920 = vmul.f32 %v912, %v918
      %v921 = vmul.f32 %v913, %v918
      %v923 = vlaneseq
      %v924 = vshrl.u32 %v923, 7
      %v925 = vsub.s32 0, %v924
      %v926 = vrot.slane %v662, %v925
      %v928 = vadd.f32 %v920, %v926
      %v929 = vadd.f32 %v921, %v926
      %v930 = vpack.c.bf16 %v929, %v928
      %v932 = vlaneseq
      %v933 = vshrl.u32 %v932, 7
      %v934 = vsub.s32 0, %v933
      %v935 = vrot.slane %v695, %v934
      %v945 = vunpack.c.l.b16 %v663
      %v946 = vunpack.c.l.b16 %v664
      %v947 = vunpack.c.l.b16 %v665
      %v948 = vunpack.c.l.b16 %v666
      %v949 = vunpack.c.l.b16 %v667
      %v950 = vunpack.c.l.b16 %v668
      %v951 = vunpack.c.l.b16 %v669
      %v952 = vunpack.c.l.b16 %v670
      %v953 = vpack.c.b16 %v946, %v945
      %v954 = vpack.c.b16 %v948, %v947
      %v955 = vpack.c.b16 %v950, %v949
      %v956 = vpack.c.b16 %v952, %v951
      %v962 = vsel %vm886, %v930, 0
      %964 = vmatprep.subr.bf16.mxu0 0
      %965 = vmatpush1.bf16.msra.mxu0 %v953
      %966 = vmatprep.subr.bf16.mxu0 0
      %967 = vmatpush1.bf16.msra.mxu0 %v954
      %968 = vmatprep.subr.bf16.mxu0 0
      %969 = vmatpush1.bf16.msra.mxu0 %v955
      %970 = vmatprep.subr.bf16.mxu0 0
      %971 = vmatpush1.bf16.msra.mxu0 %v956
      %972 = vmatprep.subr.bf16.mxu0 0
      %973 = vmatpush1.bf16.msra.mxu0 0
      %974 = vmatprep.subr.bf16.mxu0 0
      %975 = vmatpush1.bf16.msra.mxu0 0
      %976 = vmatprep.subr.bf16.mxu0 0
      %977 = vmatpush1.bf16.msra.mxu0 0
      %978 = vmatprep.subr.bf16.mxu0 0
      %979 = vmatpush1.bf16.msra.mxu0 0
      %980 = vmatprep.subr.bf16.mxu0 0
      %981 = vmatpush1.bf16.msra.mxu0 0
      %982 = vmatprep.subr.bf16.mxu0 0
      %983 = vmatpush1.bf16.msra.mxu0 0
      %984 = vmatprep.subr.bf16.mxu0 0
      %985 = vmatpush1.bf16.msra.mxu0 0
      %986 = vmatprep.subr.bf16.mxu0 0
      %987 = vmatpush1.bf16.msra.mxu0 0
      %988 = vmatprep.subr.bf16.mxu0 0
      %989 = vmatpush1.bf16.msra.mxu0 0
      %990 = vmatprep.subr.bf16.mxu0 0
      %991 = vmatpush1.bf16.msra.mxu0 0
      %992 = vmatprep.subr.bf16.mxu0 0
      %993 = vmatpush1.bf16.msra.mxu0 0
      %994 = vmatprep.subr.bf16.mxu0 0
      %995 = vmatpush1.bf16.msra.mxu0 0
      %996 = vmatprep.mubr.bf16.mxu0 0
      %997 = vmatmul.mubr.bf16.gmra.mrb[0].mxu0 %v962
      %v998 = vpop.f32.mrb[0].mxu0
      %v999 = vadd.f32 %v935, %v998
      %v1000 = vpop.f32.mrb[0].mxu0
      %v1001 = vpop.f32.mrb[0].mxu0
      %v1002 = vadd.f32 %v935, %v1001
      %v1003 = vpop.f32.mrb[0].mxu0
      %1004 = vdwg.mxu0
      %v1006 = vlaneseq
      %v1007 = vshrl.u32 %v1006, 7
      %v1008 = vsub.s32 0, %v1007
      %v1009 = vrot.slane %v731, %v1008
      %v1019 = vunpack.c.l.b16 %v699
      %v1020 = vunpack.c.l.b16 %v700
      %v1021 = vunpack.c.l.b16 %v701
      %v1022 = vunpack.c.l.b16 %v702
      %v1023 = vunpack.c.l.b16 %v703
      %v1024 = vunpack.c.l.b16 %v704
      %v1025 = vunpack.c.l.b16 %v705
      %v1026 = vunpack.c.l.b16 %v706
      %v1027 = vpack.c.b16 %v1020, %v1019
      %v1028 = vpack.c.b16 %v1022, %v1021
      %v1029 = vpack.c.b16 %v1024, %v1023
      %v1030 = vpack.c.b16 %v1026, %v1025
      %1035 = vmatprep.subr.bf16.mxu0 0
      %1036 = vmatpush1.bf16.msra.mxu0 %v1027
      %1037 = vmatprep.subr.bf16.mxu0 0
      %1038 = vmatpush1.bf16.msra.mxu0 %v1028
      %1039 = vmatprep.subr.bf16.mxu0 0
      %1040 = vmatpush1.bf16.msra.mxu0 %v1029
      %1041 = vmatprep.subr.bf16.mxu0 0
      %1042 = vmatpush1.bf16.msra.mxu0 %v1030
      %1043 = vmatprep.subr.bf16.mxu0 0
      %1044 = vmatpush1.bf16.msra.mxu0 0
      %1045 = vmatprep.subr.bf16.mxu0 0
      %1046 = vmatpush1.bf16.msra.mxu0 0
      %1047 = vmatprep.subr.bf16.mxu0 0
      %1048 = vmatpush1.bf16.msra.mxu0 0
      %1049 = vmatprep.subr.bf16.mxu0 0
      %1050 = vmatpush1.bf16.msra.mxu0 0
      %1051 = vmatprep.subr.bf16.mxu0 0
      %1052 = vmatpush1.bf16.msra.mxu0 0
      %1053 = vmatprep.subr.bf16.mxu0 0
      %1054 = vmatpush1.bf16.msra.mxu0 0
      %1055 = vmatprep.subr.bf16.mxu0 0
      %1056 = vmatpush1.bf16.msra.mxu0 0
      %1057 = vmatprep.subr.bf16.mxu0 0
      %1058 = vmatpush1.bf16.msra.mxu0 0
      %1059 = vmatprep.subr.bf16.mxu0 0
      %1060 = vmatpush1.bf16.msra.mxu0 0
      %1061 = vmatprep.subr.bf16.mxu0 0
      %1062 = vmatpush1.bf16.msra.mxu0 0
      %1063 = vmatprep.subr.bf16.mxu0 0
      %1064 = vmatpush1.bf16.msra.mxu0 0
      %1065 = vmatprep.subr.bf16.mxu0 0
      %1066 = vmatpush1.bf16.msra.mxu0 0
      %1067 = vmatprep.mubr.bf16.mxu0 0
      %1068 = vmatmul.mubr.bf16.gmra.mrb[0].mxu0 %v962
      %v1069 = vpop.f32.mrb[0].mxu0
      %v1070 = vadd.f32 %v1009, %v1069
      %v1071 = vpop.f32.mrb[0].mxu0
      %v1072 = vpop.f32.mrb[0].mxu0
      %v1073 = vadd.f32 %v1009, %v1072
      %v1074 = vpop.f32.mrb[0].mxu0
      %1075 = vdwg.mxu0
      %v1077 = vlaneseq
      %v1078 = vshrl.u32 %v1077, 7
      %v1079 = vsub.s32 0, %v1078
      %v1080 = vrot.slane %v767, %v1079
      %v1090 = vunpack.c.l.b16 %v735
      %v1091 = vunpack.c.l.b16 %v736
      %v1092 = vunpack.c.l.b16 %v737
      %v1093 = vunpack.c.l.b16 %v738
      %v1094 = vunpack.c.l.b16 %v739
      %v1095 = vunpack.c.l.b16 %v740
      %v1096 = vunpack.c.l.b16 %v741
      %v1097 = vunpack.c.l.b16 %v742
      %v1098 = vpack.c.b16 %v1091, %v1090
      %v1099 = vpack.c.b16 %v1093, %v1092
      %v1100 = vpack.c.b16 %v1095, %v1094
      %v1101 = vpack.c.b16 %v1097, %v1096
      %1106 = vmatprep.subr.bf16.mxu0 0
      %1107 = vmatpush1.bf16.msra.mxu0 %v1098
      %1108 = vmatprep.subr.bf16.mxu0 0
      %1109 = vmatpush1.bf16.msra.mxu0 %v1099
      %1110 = vmatprep.subr.bf16.mxu0 0
      %1111 = vmatpush1.bf16.msra.mxu0 %v1100
      %1112 = vmatprep.subr.bf16.mxu0 0
      %1113 = vmatpush1.bf16.msra.mxu0 %v1101
      %1114 = vmatprep.subr.bf16.mxu0 0
      %1115 = vmatpush1.bf16.msra.mxu0 0
      %1116 = vmatprep.subr.bf16.mxu0 0
      %1117 = vmatpush1.bf16.msra.mxu0 0
      %1118 = vmatprep.subr.bf16.mxu0 0
      %1119 = vmatpush1.bf16.msra.mxu0 0
      %1120 = vmatprep.subr.bf16.mxu0 0
      %1121 = vmatpush1.bf16.msra.mxu0 0
      %1122 = vmatprep.subr.bf16.mxu0 0
      %1123 = vmatpush1.bf16.msra.mxu0 0
      %1124 = vmatprep.subr.bf16.mxu0 0
      %1125 = vmatpush1.bf16.msra.mxu0 0
      %1126 = vmatprep.subr.bf16.mxu0 0
      %1127 = vmatpush1.bf16.msra.mxu0 0
      %1128 = vmatprep.subr.bf16.mxu0 0
      %1129 = vmatpush1.bf16.msra.mxu0 0
      %1130 = vmatprep.subr.bf16.mxu0 0
      %1131 = vmatpush1.bf16.msra.mxu0 0
      %1132 = vmatprep.subr.bf16.mxu0 0
      %1133 = vmatpush1.bf16.msra.mxu0 0
      %1134 = vmatprep.subr.bf16.mxu0 0
      %1135 = vmatpush1.bf16.msra.mxu0 0
      %1136 = vmatprep.subr.bf16.mxu0 0
      %1137 = vmatpush1.bf16.msra.mxu0 0
      %1138 = vmatprep.mubr.bf16.mxu0 0
      %1139 = vmatmul.mubr.bf16.gmra.mrb[0].mxu0 %v962
      %v1140 = vpop.f32.mrb[0].mxu0
      %v1141 = vadd.f32 %v1080, %v1140
      %v1142 = vpop.f32.mrb[0].mxu0
      %v1143 = vpop.f32.mrb[0].mxu0
      %v1144 = vadd.f32 %v1080, %v1143
      %v1145 = vpop.f32.mrb[0].mxu0
      %1146 = vdwg.mxu0
      %v1147 = vpack.c.bf16 %v1002, %v999
      %v1148 = vpack.c.bf16 %v1073, %v1070
      %v1150 = vsel %vm841, %v1147, 0
      %v1153 = vsel %vm841, %v1148, 0
      %1155 = vmatprep.subr.bf16.mxu0 0
      %1156 = vmatpush1.bf16.xpose.msra.mxu0 %v1153
      %1157 = vmatprep.subr.bf16.mxu0 0
      %1158 = vmatpush1.bf16.xpose.msra.mxu0 0
      %1159 = vmatprep.subr.bf16.mxu0 0
      %1160 = vmatpush1.bf16.xpose.msra.mxu0 0
      %1161 = vmatprep.subr.bf16.mxu0 0
      %1162 = vmatpush1.bf16.xpose.msra.mxu0 0
      %1163 = vmatprep.subr.bf16.mxu0 0
      %1164 = vmatpush1.bf16.xpose.msra.mxu0 0
      %1165 = vmatprep.subr.bf16.mxu0 0
      %1166 = vmatpush1.bf16.xpose.msra.mxu0 0
      %1167 = vmatprep.subr.bf16.mxu0 0
      %1168 = vmatpush1.bf16.xpose.msra.mxu0 0
      %1169 = vmatprep.subr.bf16.mxu0 0
      %1170 = vmatpush1.bf16.xpose.msra.mxu0 0
      %1171 = vmatprep.subr.bf16.mxu0 0
      %1172 = vmatpush1.bf16.xpose.msra.mxu0 0
      %1173 = vmatprep.subr.bf16.mxu0 0
      %1174 = vmatpush1.bf16.xpose.msra.mxu0 0
      %1175 = vmatprep.subr.bf16.mxu0 0
      %1176 = vmatpush1.bf16.xpose.msra.mxu0 0
      %1177 = vmatprep.subr.bf16.mxu0 0
      %1178 = vmatpush1.bf16.xpose.msra.mxu0 0
      %1179 = vmatprep.subr.bf16.mxu0 0
      %1180 = vmatpush1.bf16.xpose.msra.mxu0 0
      %1181 = vmatprep.subr.bf16.mxu0 0
      %1182 = vmatpush1.bf16.xpose.msra.mxu0 0
      %1183 = vmatprep.subr.bf16.mxu0 0
      %1184 = vmatpush1.bf16.xpose.msra.mxu0 0
      %1185 = vmatprep.subr.bf16.mxu0 0
      %1186 = vmatpush1.bf16.xpose.msra.mxu0 0
      %1187 = vmatprep.mubr.bf16.mxu0 0
      %1188 = vmatmul.mubr.bf16.gmra.mrb[0].mxu0 %v1150
      %v1189 = vpop.f32.mrb[0].mxu0
      %v1190 = vadd.f32 0.0, %v1189
      %v1191 = vpop.f32.mrb[0].mxu0
      %v1192 = vpop.f32.mrb[0].mxu0
      %v1193 = vadd.f32 0.0, %v1192
      %v1194 = vpop.f32.mrb[0].mxu0
      %1195 = vdwg.mxu0
      %v1196 = vsel %vm841, %v1190, -inf
      %1197 = vmax.xlane.f32.xlu0 %v1196
      %v1198 = vpop.xlane.xlu0 %1197
      %v1199 = vsel %vm841, %v1193, -inf
      %1200 = vmax.xlane.f32.xlu0 %v1199
      %v1201 = vpop.xlane.xlu0 %1200
      %v1202 = vsub.f32 %v1190, %v1198
      %v1203 = vsub.f32 %v1193, %v1201
      %v1204 = vmul.f32 %v1202, 1.442695
      %v1205 = vpow.pop %v1204
      %v1206 = vmul.f32 %v1203, 1.442695
      %v1207 = vpow.pop %v1206
      %v1208 = vsel %vm841, %v1205, 0.0
      %1209 = vadd.xlane.f32.xlu0 %v1208
      %v1210 = vpop.xlane.xlu0 %1209
      %v1211 = vsel %vm841, %v1207, 0.0
      %1212 = vadd.xlane.f32.xlu0 %v1211
      %v1213 = vpop.xlane.xlu0 %1212
      %v1214 = vrcp.pop %v1210
      %v1215 = vrcp.pop %v1213
      %v1216 = vmul.f32 %v1205, %v1214
      %v1217 = vmul.f32 %v1207, %v1215
      %v1218 = vpack.c.bf16 %v1217, %v1216
      %v1219 = vpack.c.bf16 %v1144, %v1141
      %v1221 = vsel %vm841, %v1218, 0
      %1223 = vmatprep.subr.bf16.mxu0 0
      %1224 = vmatpush1.bf16.msra.mxu0 %v1219
      %1225 = vmatprep.subr.bf16.mxu0 0
      %1226 = vmatpush1.bf16.msra.mxu0 0
      %1227 = vmatprep.subr.bf16.mxu0 0
      %1228 = vmatpush1.bf16.msra.mxu0 0
      %1229 = vmatprep.subr.bf16.mxu0 0
      %1230 = vmatpush1.bf16.msra.mxu0 0
      %1231 = vmatprep.subr.bf16.mxu0 0
      %1232 = vmatpush1.bf16.msra.mxu0 0
      %1233 = vmatprep.subr.bf16.mxu0 0
      %1234 = vmatpush1.bf16.msra.mxu0 0
      %1235 = vmatprep.subr.bf16.mxu0 0
      %1236 = vmatpush1.bf16.msra.mxu0 0
      %1237 = vmatprep.subr.bf16.mxu0 0
      %1238 = vmatpush1.bf16.msra.mxu0 0
      %1239 = vmatprep.subr.bf16.mxu0 0
      %1240 = vmatpush1.bf16.msra.mxu0 0
      %1241 = vmatprep.subr.bf16.mxu0 0
      %1242 = vmatpush1.bf16.msra.mxu0 0
      %1243 = vmatprep.subr.bf16.mxu0 0
      %1244 = vmatpush1.bf16.msra.mxu0 0
      %1245 = vmatprep.subr.bf16.mxu0 0
      %1246 = vmatpush1.bf16.msra.mxu0 0
      %1247 = vmatprep.subr.bf16.mxu0 0
      %1248 = vmatpush1.bf16.msra.mxu0 0
      %1249 = vmatprep.subr.bf16.mxu0 0
      %1250 = vmatpush1.bf16.msra.mxu0 0
      %1251 = vmatprep.subr.bf16.mxu0 0
      %1252 = vmatpush1.bf16.msra.mxu0 0
      %1253 = vmatprep.subr.bf16.mxu0 0
      %1254 = vmatpush1.bf16.msra.mxu0 0
      %1255 = vmatprep.mubr.bf16.mxu0 0
      %1256 = vmatmul.mubr.bf16.gmra.mrb[0].mxu0 %v1221
      %v1257 = vpop.f32.mrb[0].mxu0
      %v1258 = vadd.f32 0.0, %v1257
      %v1259 = vpop.f32.mrb[0].mxu0
      %v1260 = vpop.f32.mrb[0].mxu0
      %v1261 = vadd.f32 0.0, %v1260
      %v1262 = vpop.f32.mrb[0].mxu0
      %1263 = vdwg.mxu0
      %v1264 = vpack.c.bf16 %v1261, %v1258
      %v1266 = vlaneseq
      %v1267 = vshrl.u32 %v1266, 7
      %v1268 = vsub.s32 0, %v1267
      %v1269 = vrot.slane %v696, %v1268
      %v1279 = vunpack.c.l.b16 %v671
      %v1280 = vunpack.c.l.b16 %v672
      %v1281 = vunpack.c.l.b16 %v673
      %v1282 = vunpack.c.l.b16 %v674
      %v1283 = vunpack.c.l.b16 %v675
      %v1284 = vunpack.c.l.b16 %v676
      %v1285 = vunpack.c.l.b16 %v677
      %v1286 = vunpack.c.l.b16 %v678
      %v1287 = vpack.c.b16 %v1280, %v1279
      %v1288 = vpack.c.b16 %v1282, %v1281
      %v1289 = vpack.c.b16 %v1284, %v1283
      %v1290 = vpack.c.b16 %v1286, %v1285
      %1295 = vmatprep.subr.bf16.mxu0 0
      %1296 = vmatpush1.bf16.msra.mxu0 %v1287
      %1297 = vmatprep.subr.bf16.mxu0 0
      %1298 = vmatpush1.bf16.msra.mxu0 %v1288
      %1299 = vmatprep.subr.bf16.mxu0 0
      %1300 = vmatpush1.bf16.msra.mxu0 %v1289
      %1301 = vmatprep.subr.bf16.mxu0 0
      %1302 = vmatpush1.bf16.msra.mxu0 %v1290
      %1303 = vmatprep.subr.bf16.mxu0 0
      %1304 = vmatpush1.bf16.msra.mxu0 0
      %1305 = vmatprep.subr.bf16.mxu0 0
      %1306 = vmatpush1.bf16.msra.mxu0 0
      %1307 = vmatprep.subr.bf16.mxu0 0
      %1308 = vmatpush1.bf16.msra.mxu0 0
      %1309 = vmatprep.subr.bf16.mxu0 0
      %1310 = vmatpush1.bf16.msra.mxu0 0
      %1311 = vmatprep.subr.bf16.mxu0 0
      %1312 = vmatpush1.bf16.msra.mxu0 0
      %1313 = vmatprep.subr.bf16.mxu0 0
      %1314 = vmatpush1.bf16.msra.mxu0 0
      %1315 = vmatprep.subr.bf16.mxu0 0
      %1316 = vmatpush1.bf16.msra.mxu0 0
      %1317 = vmatprep.subr.bf16.mxu0 0
      %1318 = vmatpush1.bf16.msra.mxu0 0
      %1319 = vmatprep.subr.bf16.mxu0 0
      %1320 = vmatpush1.bf16.msra.mxu0 0
      %1321 = vmatprep.subr.bf16.mxu0 0
      %1322 = vmatpush1.bf16.msra.mxu0 0
      %1323 = vmatprep.subr.bf16.mxu0 0
      %1324 = vmatpush1.bf16.msra.mxu0 0
      %1325 = vmatprep.subr.bf16.mxu0 0
      %1326 = vmatpush1.bf16.msra.mxu0 0
      %1327 = vmatprep.mubr.bf16.mxu0 0
      %1328 = vmatmul.mubr.bf16.gmra.mrb[0].mxu0 %v962
      %v1329 = vpop.f32.mrb[0].mxu0
      %v1330 = vadd.f32 %v1269, %v1329
      %v1331 = vpop.f32.mrb[0].mxu0
      %v1332 = vpop.f32.mrb[0].mxu0
      %v1333 = vadd.f32 %v1269, %v1332
      %v1334 = vpop.f32.mrb[0].mxu0
      %1335 = vdwg.mxu0
      %v1337 = vlaneseq
      %v1338 = vshrl.u32 %v1337, 7
      %v1339 = vsub.s32 0, %v1338
      %v1340 = vrot.slane %v732, %v1339
      %v1350 = vunpack.c.l.b16 %v707
      %v1351 = vunpack.c.l.b16 %v708
      %v1352 = vunpack.c.l.b16 %v709
      %v1353 = vunpack.c.l.b16 %v710
      %v1354 = vunpack.c.l.b16 %v711
      %v1355 = vunpack.c.l.b16 %v712
      %v1356 = vunpack.c.l.b16 %v713
      %v1357 = vunpack.c.l.b16 %v714
      %v1358 = vpack.c.b16 %v1351, %v1350
      %v1359 = vpack.c.b16 %v1353, %v1352
      %v1360 = vpack.c.b16 %v1355, %v1354
      %v1361 = vpack.c.b16 %v1357, %v1356
      %1366 = vmatprep.subr.bf16.mxu0 0
      %1367 = vmatpush1.bf16.msra.mxu0 %v1358
      %1368 = vmatprep.subr.bf16.mxu0 0
      %1369 = vmatpush1.bf16.msra.mxu0 %v1359
      %1370 = vmatprep.subr.bf16.mxu0 0
      %1371 = vmatpush1.bf16.msra.mxu0 %v1360
      %1372 = vmatprep.subr.bf16.mxu0 0
      %1373 = vmatpush1.bf16.msra.mxu0 %v1361
      %1374 = vmatprep.subr.bf16.mxu0 0
      %1375 = vmatpush1.bf16.msra.mxu0 0
      %1376 = vmatprep.subr.bf16.mxu0 0
      %1377 = vmatpush1.bf16.msra.mxu0 0
      %1378 = vmatprep.subr.bf16.mxu0 0
      %1379 = vmatpush1.bf16.msra.mxu0 0
      %1380 = vmatprep.subr.bf16.mxu0 0
      %1381 = vmatpush1.bf16.msra.mxu0 0
      %1382 = vmatprep.subr.bf16.mxu0 0
      %1383 = vmatpush1.bf16.msra.mxu0 0
      %1384 = vmatprep.subr.bf16.mxu0 0
      %1385 = vmatpush1.bf16.msra.mxu0 0
      %1386 = vmatprep.subr.bf16.mxu0 0
      %1387 = vmatpush1.bf16.msra.mxu0 0
      %1388 = vmatprep.subr.bf16.mxu0 0
      %1389 = vmatpush1.bf16.msra.mxu0 0
      %1390 = vmatprep.subr.bf16.mxu0 0
      %1391 = vmatpush1.bf16.msra.mxu0 0
      %1392 = vmatprep.subr.bf16.mxu0 0
      %1393 = vmatpush1.bf16.msra.mxu0 0
      %1394 = vmatprep.subr.bf16.mxu0 0
      %1395 = vmatpush1.bf16.msra.mxu0 0
      %1396 = vmatprep.subr.bf16.mxu0 0
      %1397 = vmatpush1.bf16.msra.mxu0 0
      %1398 = vmatprep.mubr.bf16.mxu0 0
      %1399 = vmatmul.mubr.bf16.gmra.mrb[0].mxu0 %v962
      %v1400 = vpop.f32.mrb[0].mxu0
      %v1401 = vadd.f32 %v1340, %v1400
      %v1402 = vpop.f32.mrb[0].mxu0
      %v1403 = vpop.f32.mrb[0].mxu0
      %v1404 = vadd.f32 %v1340, %v1403
      %v1405 = vpop.f32.mrb[0].mxu0
      %1406 = vdwg.mxu0
      %v1408 = vlaneseq
      %v1409 = vshrl.u32 %v1408, 7
      %v1410 = vsub.s32 0, %v1409
      %v1411 = vrot.slane %v768, %v1410
      %v1421 = vunpack.c.l.b16 %v743
      %v1422 = vunpack.c.l.b16 %v744
      %v1423 = vunpack.c.l.b16 %v745
      %v1424 = vunpack.c.l.b16 %v746
      %v1425 = vunpack.c.l.b16 %v747
      %v1426 = vunpack.c.l.b16 %v748
      %v1427 = vunpack.c.l.b16 %v749
      %v1428 = vunpack.c.l.b16 %v750
      %v1429 = vpack.c.b16 %v1422, %v1421
      %v1430 = vpack.c.b16 %v1424, %v1423
      %v1431 = vpack.c.b16 %v1426, %v1425
      %v1432 = vpack.c.b16 %v1428, %v1427
      %1437 = vmatprep.subr.bf16.mxu0 0
      %1438 = vmatpush1.bf16.msra.mxu0 %v1429
      %1439 = vmatprep.subr.bf16.mxu0 0
      %1440 = vmatpush1.bf16.msra.mxu0 %v1430
      %1441 = vmatprep.subr.bf16.mxu0 0
      %1442 = vmatpush1.bf16.msra.mxu0 %v1431
      %1443 = vmatprep.subr.bf16.mxu0 0
      %1444 = vmatpush1.bf16.msra.mxu0 %v1432
      %1445 = vmatprep.subr.bf16.mxu0 0
      %1446 = vmatpush1.bf16.msra.mxu0 0
      %1447 = vmatprep.subr.bf16.mxu0 0
      %1448 = vmatpush1.bf16.msra.mxu0 0
      %1449 = vmatprep.subr.bf16.mxu0 0
      %1450 = vmatpush1.bf16.msra.mxu0 0
      %1451 = vmatprep.subr.bf16.mxu0 0
      %1452 = vmatpush1.bf16.msra.mxu0 0
      %1453 = vmatprep.subr.bf16.mxu0 0
      %1454 = vmatpush1.bf16.msra.mxu0 0
      %1455 = vmatprep.subr.bf16.mxu0 0
      %1456 = vmatpush1.bf16.msra.mxu0 0
      %1457 = vmatprep.subr.bf16.mxu0 0
      %1458 = vmatpush1.bf16.msra.mxu0 0
      %1459 = vmatprep.subr.bf16.mxu0 0
      %1460 = vmatpush1.bf16.msra.mxu0 0
      %1461 = vmatprep.subr.bf16.mxu0 0
      %1462 = vmatpush1.bf16.msra.mxu0 0
      %1463 = vmatprep.subr.bf16.mxu0 0
      %1464 = vmatpush1.bf16.msra.mxu0 0
      %1465 = vmatprep.subr.bf16.mxu0 0
      %1466 = vmatpush1.bf16.msra.mxu0 0
      %1467 = vmatprep.subr.bf16.mxu0 0
      %1468 = vmatpush1.bf16.msra.mxu0 0
      %1469 = vmatprep.mubr.bf16.mxu0 0
      %1470 = vmatmul.mubr.bf16.gmra.mrb[0].mxu0 %v962
      %v1471 = vpop.f32.mrb[0].mxu0
      %v1472 = vadd.f32 %v1411, %v1471
      %v1473 = vpop.f32.mrb[0].mxu0
      %v1474 = vpop.f32.mrb[0].mxu0
      %v1475 = vadd.f32 %v1411, %v1474
      %v1476 = vpop.f32.mrb[0].mxu0
      %1477 = vdwg.mxu0
      %v1478 = vpack.c.bf16 %v1333, %v1330
      %v1479 = vpack.c.bf16 %v1404, %v1401
      %v1481 = vsel %vm841, %v1478, 0
      %v1484 = vsel %vm841, %v1479, 0
      %1486 = vmatprep.subr.bf16.mxu0 0
      %1487 = vmatpush1.bf16.xpose.msra.mxu0 %v1484
      %1488 = vmatprep.subr.bf16.mxu0 0
      %1489 = vmatpush1.bf16.xpose.msra.mxu0 0
      %1490 = vmatprep.subr.bf16.mxu0 0
      %1491 = vmatpush1.bf16.xpose.msra.mxu0 0
      %1492 = vmatprep.subr.bf16.mxu0 0
      %1493 = vmatpush1.bf16.xpose.msra.mxu0 0
      %1494 = vmatprep.subr.bf16.mxu0 0
      %1495 = vmatpush1.bf16.xpose.msra.mxu0 0
      %1496 = vmatprep.subr.bf16.mxu0 0
      %1497 = vmatpush1.bf16.xpose.msra.mxu0 0
      %1498 = vmatprep.subr.bf16.mxu0 0
      %1499 = vmatpush1.bf16.xpose.msra.mxu0 0
      %1500 = vmatprep.subr.bf16.mxu0 0
      %1501 = vmatpush1.bf16.xpose.msra.mxu0 0
      %1502 = vmatprep.subr.bf16.mxu0 0
      %1503 = vmatpush1.bf16.xpose.msra.mxu0 0
      %1504 = vmatprep.subr.bf16.mxu0 0
      %1505 = vmatpush1.bf16.xpose.msra.mxu0 0
      %1506 = vmatprep.subr.bf16.mxu0 0
      %1507 = vmatpush1.bf16.xpose.msra.mxu0 0
      %1508 = vmatprep.subr.bf16.mxu0 0
      %1509 = vmatpush1.bf16.xpose.msra.mxu0 0
      %1510 = vmatprep.subr.bf16.mxu0 0
      %1511 = vmatpush1.bf16.xpose.msra.mxu0 0
      %1512 = vmatprep.subr.bf16.mxu0 0
      %1513 = vmatpush1.bf16.xpose.msra.mxu0 0
      %1514 = vmatprep.subr.bf16.mxu0 0
      %1515 = vmatpush1.bf16.xpose.msra.mxu0 0
      %1516 = vmatprep.subr.bf16.mxu0 0
      %1517 = vmatpush1.bf16.xpose.msra.mxu0 0
      %1518 = vmatprep.mubr.bf16.mxu0 0
      %1519 = vmatmul.mubr.bf16.gmra.mrb[0].mxu0 %v1481
      %v1520 = vpop.f32.mrb[0].mxu0
      %v1521 = vadd.f32 0.0, %v1520
      %v1522 = vpop.f32.mrb[0].mxu0
      %v1523 = vpop.f32.mrb[0].mxu0
      %v1524 = vadd.f32 0.0, %v1523
      %v1525 = vpop.f32.mrb[0].mxu0
      %1526 = vdwg.mxu0
      %v1527 = vsel %vm841, %v1521, -inf
      %1528 = vmax.xlane.f32.xlu0 %v1527
      %v1529 = vpop.xlane.xlu0 %1528
      %v1530 = vsel %vm841, %v1524, -inf
      %1531 = vmax.xlane.f32.xlu0 %v1530
      %v1532 = vpop.xlane.xlu0 %1531
      %v1533 = vsub.f32 %v1521, %v1529
      %v1534 = vsub.f32 %v1524, %v1532
      %v1535 = vmul.f32 %v1533, 1.442695
      %v1536 = vpow.pop %v1535
      %v1537 = vmul.f32 %v1534, 1.442695
      %v1538 = vpow.pop %v1537
      %v1539 = vsel %vm841, %v1536, 0.0
      %1540 = vadd.xlane.f32.xlu0 %v1539
      %v1541 = vpop.xlane.xlu0 %1540
      %v1542 = vsel %vm841, %v1538, 0.0
      %1543 = vadd.xlane.f32.xlu0 %v1542
      %v1544 = vpop.xlane.xlu0 %1543
      %v1545 = vrcp.pop %v1541
      %v1546 = vrcp.pop %v1544
      %v1547 = vmul.f32 %v1536, %v1545
      %v1548 = vmul.f32 %v1538, %v1546
      %v1549 = vpack.c.bf16 %v1548, %v1547
      %v1550 = vpack.c.bf16 %v1475, %v1472
      %v1552 = vsel %vm841, %v1549, 0
      %1554 = vmatprep.subr.bf16.mxu0 0
      %1555 = vmatpush1.bf16.msra.mxu0 %v1550
      %1556 = vmatprep.subr.bf16.mxu0 0
      %1557 = vmatpush1.bf16.msra.mxu0 0
      %1558 = vmatprep.subr.bf16.mxu0 0
      %1559 = vmatpush1.bf16.msra.mxu0 0
      %1560 = vmatprep.subr.bf16.mxu0 0
      %1561 = vmatpush1.bf16.msra.mxu0 0
      %1562 = vmatprep.subr.bf16.mxu0 0
      %1563 = vmatpush1.bf16.msra.mxu0 0
      %1564 = vmatprep.subr.bf16.mxu0 0
      %1565 = vmatpush1.bf16.msra.mxu0 0
      %1566 = vmatprep.subr.bf16.mxu0 0
      %1567 = vmatpush1.bf16.msra.mxu0 0
      %1568 = vmatprep.subr.bf16.mxu0 0
      %1569 = vmatpush1.bf16.msra.mxu0 0
      %1570 = vmatprep.subr.bf16.mxu0 0
      %1571 = vmatpush1.bf16.msra.mxu0 0
      %1572 = vmatprep.subr.bf16.mxu0 0
      %1573 = vmatpush1.bf16.msra.mxu0 0
      %1574 = vmatprep.subr.bf16.mxu0 0
      %1575 = vmatpush1.bf16.msra.mxu0 0
      %1576 = vmatprep.subr.bf16.mxu0 0
      %1577 = vmatpush1.bf16.msra.mxu0 0
      %1578 = vmatprep.subr.bf16.mxu0 0
      %1579 = vmatpush1.bf16.msra.mxu0 0
      %1580 = vmatprep.subr.bf16.mxu0 0
      %1581 = vmatpush1.bf16.msra.mxu0 0
      %1582 = vmatprep.subr.bf16.mxu0 0
      %1583 = vmatpush1.bf16.msra.mxu0 0
      %1584 = vmatprep.subr.bf16.mxu0 0
      %1585 = vmatpush1.bf16.msra.mxu0 0
      %1586 = vmatprep.mubr.bf16.mxu0 0
      %1587 = vmatmul.mubr.bf16.gmra.mrb[0].mxu0 %v1552
      %v1588 = vpop.f32.mrb[0].mxu0
      %v1589 = vadd.f32 0.0, %v1588
      %v1590 = vpop.f32.mrb[0].mxu0
      %v1591 = vpop.f32.mrb[0].mxu0
      %v1592 = vadd.f32 0.0, %v1591
      %v1593 = vpop.f32.mrb[0].mxu0
      %1594 = vdwg.mxu0
      %v1595 = vpack.c.bf16 %v1592, %v1589
      %v1598 = vunpack.c.l.b16 %v773
      %v1599 = vunpack.c.l.b16 %v774
      %v1600 = vpack.c.b16 %v1599, %v1598
      %v1603 = vsel %vm841, %v1595, 0
      %1605 = vmatprep.subr.bf16.mxu0 0
      %1606 = vmatpush1.bf16.msra.mxu0 %v1600
      %1607 = vmatprep.subr.bf16.mxu0 0
      %1608 = vmatpush1.bf16.msra.mxu0 0
      %1609 = vmatprep.subr.bf16.mxu0 0
      %1610 = vmatpush1.bf16.msra.mxu0 0
      %1611 = vmatprep.subr.bf16.mxu0 0
      %1612 = vmatpush1.bf16.msra.mxu0 0
      %1613 = vmatprep.subr.bf16.mxu0 0
      %1614 = vmatpush1.bf16.msra.mxu0 0
      %1615 = vmatprep.subr.bf16.mxu0 0
      %1616 = vmatpush1.bf16.msra.mxu0 0
      %1617 = vmatprep.subr.bf16.mxu0 0
      %1618 = vmatpush1.bf16.msra.mxu0 0
      %1619 = vmatprep.subr.bf16.mxu0 0
      %1620 = vmatpush1.bf16.msra.mxu0 0
      %1621 = vmatprep.subr.bf16.mxu0 0
      %1622 = vmatpush1.bf16.msra.mxu0 0
      %1623 = vmatprep.subr.bf16.mxu0 0
      %1624 = vmatpush1.bf16.msra.mxu0 0
      %1625 = vmatprep.subr.bf16.mxu0 0
      %1626 = vmatpush1.bf16.msra.mxu0 0
      %1627 = vmatprep.subr.bf16.mxu0 0
      %1628 = vmatpush1.bf16.msra.mxu0 0
      %1629 = vmatprep.subr.bf16.mxu0 0
      %1630 = vmatpush1.bf16.msra.mxu0 0
      %1631 = vmatprep.subr.bf16.mxu0 0
      %1632 = vmatpush1.bf16.msra.mxu0 0
      %1633 = vmatprep.subr.bf16.mxu0 0
      %1634 = vmatpush1.bf16.msra.mxu0 0
      %1635 = vmatprep.subr.bf16.mxu0 0
      %1636 = vmatpush1.bf16.msra.mxu0 0
      %1637 = vmatprep.mubr.bf16.mxu0 0
      %1638 = vmatmul.mubr.bf16.gmra.mrb[0].mxu0 %v1603
      %v1639 = vpop.f32.mrb[0].mxu0
      %v1640 = vadd.f32 0.0, %v1639
      %v1641 = vpop.f32.mrb[0].mxu0
      %v1642 = vpop.f32.mrb[0].mxu0
      %v1643 = vadd.f32 0.0, %v1642
      %v1644 = vpop.f32.mrb[0].mxu0
      %1645 = vdwg.mxu0
      %v1648 = vunpack.c.l.b16 %v771
      %v1649 = vunpack.c.l.b16 %v772
      %v1650 = vpack.c.b16 %v1649, %v1648
      %v1653 = vsel %vm841, %v1264, 0
      %1655 = vmatprep.subr.bf16.mxu0 0
      %1656 = vmatpush1.bf16.msra.mxu0 %v1650
      %1657 = vmatprep.subr.bf16.mxu0 0
      %1658 = vmatpush1.bf16.msra.mxu0 0
      %1659 = vmatprep.subr.bf16.mxu0 0
      %1660 = vmatpush1.bf16.msra.mxu0 0
      %1661 = vmatprep.subr.bf16.mxu0 0
      %1662 = vmatpush1.bf16.msra.mxu0 0
      %1663 = vmatprep.subr.bf16.mxu0 0
      %1664 = vmatpush1.bf16.msra.mxu0 0
      %1665 = vmatprep.subr.bf16.mxu0 0
      %1666 = vmatpush1.bf16.msra.mxu0 0
      %1667 = vmatprep.subr.bf16.mxu0 0
      %1668 = vmatpush1.bf16.msra.mxu0 0
      %1669 = vmatprep.subr.bf16.mxu0 0
      %1670 = vmatpush1.bf16.msra.mxu0 0
      %1671 = vmatprep.subr.bf16.mxu0 0
      %1672 = vmatpush1.bf16.msra.mxu0 0
      %1673 = vmatprep.subr.bf16.mxu0 0
      %1674 = vmatpush1.bf16.msra.mxu0 0
      %1675 = vmatprep.subr.bf16.mxu0 0
      %1676 = vmatpush1.bf16.msra.mxu0 0
      %1677 = vmatprep.subr.bf16.mxu0 0
      %1678 = vmatpush1.bf16.msra.mxu0 0
      %1679 = vmatprep.subr.bf16.mxu0 0
      %1680 = vmatpush1.bf16.msra.mxu0 0
      %1681 = vmatprep.subr.bf16.mxu0 0
      %1682 = vmatpush1.bf16.msra.mxu0 0
      %1683 = vmatprep.subr.bf16.mxu0 0
      %1684 = vmatpush1.bf16.msra.mxu0 0
      %1685 = vmatprep.subr.bf16.mxu0 0
      %1686 = vmatpush1.bf16.msra.mxu0 0
      %1687 = vmatprep.mubr.bf16.mxu0 0
      %1688 = vmatmul.mubr.bf16.gmra.mrb[0].mxu0 %v1653
      %v1689 = vpop.f32.mrb[0].mxu0
      %v1690 = vadd.f32 %v1640, %v1689
      %v1691 = vpop.f32.mrb[0].mxu0
      %v1692 = vpop.f32.mrb[0].mxu0
      %v1693 = vadd.f32 %v1643, %v1692
      %v1694 = vpop.f32.mrb[0].mxu0
      %1695 = vdwg.mxu0
      %v1697 = vlaneseq
      %v1698 = vshrl.u32 %v1697, 7
      %v1699 = vsub.s32 0, %v1698
      %v1700 = vrot.slane %v697, %v1699
      %v1710 = vunpack.c.l.b16 %v679
      %v1711 = vunpack.c.l.b16 %v680
      %v1712 = vunpack.c.l.b16 %v681
      %v1713 = vunpack.c.l.b16 %v682
      %v1714 = vunpack.c.l.b16 %v683
      %v1715 = vunpack.c.l.b16 %v684
      %v1716 = vunpack.c.l.b16 %v685
      %v1717 = vunpack.c.l.b16 %v686
      %v1718 = vpack.c.b16 %v1711, %v1710
      %v1719 = vpack.c.b16 %v1713, %v1712
      %v1720 = vpack.c.b16 %v1715, %v1714
      %v1721 = vpack.c.b16 %v1717, %v1716
      %1726 = vmatprep.subr.bf16.mxu0 0
      %1727 = vmatpush1.bf16.msra.mxu0 %v1718
      %1728 = vmatprep.subr.bf16.mxu0 0
      %1729 = vmatpush1.bf16.msra.mxu0 %v1719
      %1730 = vmatprep.subr.bf16.mxu0 0
      %1731 = vmatpush1.bf16.msra.mxu0 %v1720
      %1732 = vmatprep.subr.bf16.mxu0 0
      %1733 = vmatpush1.bf16.msra.mxu0 %v1721
      %1734 = vmatprep.subr.bf16.mxu0 0
      %1735 = vmatpush1.bf16.msra.mxu0 0
      %1736 = vmatprep.subr.bf16.mxu0 0
      %1737 = vmatpush1.bf16.msra.mxu0 0
      %1738 = vmatprep.subr.bf16.mxu0 0
      %1739 = vmatpush1.bf16.msra.mxu0 0
      %1740 = vmatprep.subr.bf16.mxu0 0
      %1741 = vmatpush1.bf16.msra.mxu0 0
      %1742 = vmatprep.subr.bf16.mxu0 0
      %1743 = vmatpush1.bf16.msra.mxu0 0
      %1744 = vmatprep.subr.bf16.mxu0 0
      %1745 = vmatpush1.bf16.msra.mxu0 0
      %1746 = vmatprep.subr.bf16.mxu0 0
      %1747 = vmatpush1.bf16.msra.mxu0 0
      %1748 = vmatprep.subr.bf16.mxu0 0
      %1749 = vmatpush1.bf16.msra.mxu0 0
      %1750 = vmatprep.subr.bf16.mxu0 0
      %1751 = vmatpush1.bf16.msra.mxu0 0
      %1752 = vmatprep.subr.bf16.mxu0 0
      %1753 = vmatpush1.bf16.msra.mxu0 0
      %1754 = vmatprep.subr.bf16.mxu0 0
      %1755 = vmatpush1.bf16.msra.mxu0 0
      %1756 = vmatprep.subr.bf16.mxu0 0
      %1757 = vmatpush1.bf16.msra.mxu0 0
      %1758 = vmatprep.mubr.bf16.mxu0 0
      %1759 = vmatmul.mubr.bf16.gmra.mrb[0].mxu0 %v962
      %v1760 = vpop.f32.mrb[0].mxu0
      %v1761 = vadd.f32 %v1700, %v1760
      %v1762 = vpop.f32.mrb[0].mxu0
      %v1763 = vpop.f32.mrb[0].mxu0
      %v1764 = vadd.f32 %v1700, %v1763
      %v1765 = vpop.f32.mrb[0].mxu0
      %1766 = vdwg.mxu0
      %v1768 = vlaneseq
      %v1769 = vshrl.u32 %v1768, 7
      %v1770 = vsub.s32 0, %v1769
      %v1771 = vrot.slane %v733, %v1770
      %v1781 = vunpack.c.l.b16 %v715
      %v1782 = vunpack.c.l.b16 %v716
      %v1783 = vunpack.c.l.b16 %v717
      %v1784 = vunpack.c.l.b16 %v718
      %v1785 = vunpack.c.l.b16 %v719
      %v1786 = vunpack.c.l.b16 %v720
      %v1787 = vunpack.c.l.b16 %v721
      %v1788 = vunpack.c.l.b16 %v722
      %v1789 = vpack.c.b16 %v1782, %v1781
      %v1790 = vpack.c.b16 %v1784, %v1783
      %v1791 = vpack.c.b16 %v1786, %v1785
      %v1792 = vpack.c.b16 %v1788, %v1787
      %1797 = vmatprep.subr.bf16.mxu0 0
      %1798 = vmatpush1.bf16.msra.mxu0 %v1789
      %1799 = vmatprep.subr.bf16.mxu0 0
      %1800 = vmatpush1.bf16.msra.mxu0 %v1790
      %1801 = vmatprep.subr.bf16.mxu0 0
      %1802 = vmatpush1.bf16.msra.mxu0 %v1791
      %1803 = vmatprep.subr.bf16.mxu0 0
      %1804 = vmatpush1.bf16.msra.mxu0 %v1792
      %1805 = vmatprep.subr.bf16.mxu0 0
      %1806 = vmatpush1.bf16.msra.mxu0 0
      %1807 = vmatprep.subr.bf16.mxu0 0
      %1808 = vmatpush1.bf16.msra.mxu0 0
      %1809 = vmatprep.subr.bf16.mxu0 0
      %1810 = vmatpush1.bf16.msra.mxu0 0
      %1811 = vmatprep.subr.bf16.mxu0 0
      %1812 = vmatpush1.bf16.msra.mxu0 0
      %1813 = vmatprep.subr.bf16.mxu0 0
      %1814 = vmatpush1.bf16.msra.mxu0 0
      %1815 = vmatprep.subr.bf16.mxu0 0
      %1816 = vmatpush1.bf16.msra.mxu0 0
      %1817 = vmatprep.subr.bf16.mxu0 0
      %1818 = vmatpush1.bf16.msra.mxu0 0
      %1819 = vmatprep.subr.bf16.mxu0 0
      %1820 = vmatpush1.bf16.msra.mxu0 0
      %1821 = vmatprep.subr.bf16.mxu0 0
      %1822 = vmatpush1.bf16.msra.mxu0 0
      %1823 = vmatprep.subr.bf16.mxu0 0
      %1824 = vmatpush1.bf16.msra.mxu0 0
      %1825 = vmatprep.subr.bf16.mxu0 0
      %1826 = vmatpush1.bf16.msra.mxu0 0
      %1827 = vmatprep.subr.bf16.mxu0 0
      %1828 = vmatpush1.bf16.msra.mxu0 0
      %1829 = vmatprep.mubr.bf16.mxu0 0
      %1830 = vmatmul.mubr.bf16.gmra.mrb[0].mxu0 %v962
      %v1831 = vpop.f32.mrb[0].mxu0
      %v1832 = vadd.f32 %v1771, %v1831
      %v1833 = vpop.f32.mrb[0].mxu0
      %v1834 = vpop.f32.mrb[0].mxu0
      %v1835 = vadd.f32 %v1771, %v1834
      %v1836 = vpop.f32.mrb[0].mxu0
      %1837 = vdwg.mxu0
      %v1839 = vlaneseq
      %v1840 = vshrl.u32 %v1839, 7
      %v1841 = vsub.s32 0, %v1840
      %v1842 = vrot.slane %v769, %v1841
      %v1852 = vunpack.c.l.b16 %v751
      %v1853 = vunpack.c.l.b16 %v752
      %v1854 = vunpack.c.l.b16 %v753
      %v1855 = vunpack.c.l.b16 %v754
      %v1856 = vunpack.c.l.b16 %v755
      %v1857 = vunpack.c.l.b16 %v756
      %v1858 = vunpack.c.l.b16 %v757
      %v1859 = vunpack.c.l.b16 %v758
      %v1860 = vpack.c.b16 %v1853, %v1852
      %v1861 = vpack.c.b16 %v1855, %v1854
      %v1862 = vpack.c.b16 %v1857, %v1856
      %v1863 = vpack.c.b16 %v1859, %v1858
      %1868 = vmatprep.subr.bf16.mxu0 0
      %1869 = vmatpush1.bf16.msra.mxu0 %v1860
      %1870 = vmatprep.subr.bf16.mxu0 0
      %1871 = vmatpush1.bf16.msra.mxu0 %v1861
      %1872 = vmatprep.subr.bf16.mxu0 0
      %1873 = vmatpush1.bf16.msra.mxu0 %v1862
      %1874 = vmatprep.subr.bf16.mxu0 0
      %1875 = vmatpush1.bf16.msra.mxu0 %v1863
      %1876 = vmatprep.subr.bf16.mxu0 0
      %1877 = vmatpush1.bf16.msra.mxu0 0
      %1878 = vmatprep.subr.bf16.mxu0 0
      %1879 = vmatpush1.bf16.msra.mxu0 0
      %1880 = vmatprep.subr.bf16.mxu0 0
      %1881 = vmatpush1.bf16.msra.mxu0 0
      %1882 = vmatprep.subr.bf16.mxu0 0
      %1883 = vmatpush1.bf16.msra.mxu0 0
      %1884 = vmatprep.subr.bf16.mxu0 0
      %1885 = vmatpush1.bf16.msra.mxu0 0
      %1886 = vmatprep.subr.bf16.mxu0 0
      %1887 = vmatpush1.bf16.msra.mxu0 0
      %1888 = vmatprep.subr.bf16.mxu0 0
      %1889 = vmatpush1.bf16.msra.mxu0 0
      %1890 = vmatprep.subr.bf16.mxu0 0
      %1891 = vmatpush1.bf16.msra.mxu0 0
      %1892 = vmatprep.subr.bf16.mxu0 0
      %1893 = vmatpush1.bf16.msra.mxu0 0
      %1894 = vmatprep.subr.bf16.mxu0 0
      %1895 = vmatpush1.bf16.msra.mxu0 0
      %1896 = vmatprep.subr.bf16.mxu0 0
      %1897 = vmatpush1.bf16.msra.mxu0 0
      %1898 = vmatprep.subr.bf16.mxu0 0
      %1899 = vmatpush1.bf16.msra.mxu0 0
      %1900 = vmatprep.mubr.bf16.mxu0 0
      %1901 = vmatmul.mubr.bf16.gmra.mrb[0].mxu0 %v962
      %v1902 = vpop.f32.mrb[0].mxu0
      %v1903 = vadd.f32 %v1842, %v1902
      %v1904 = vpop.f32.mrb[0].mxu0
      %v1905 = vpop.f32.mrb[0].mxu0
      %v1906 = vadd.f32 %v1842, %v1905
      %v1907 = vpop.f32.mrb[0].mxu0
      %1908 = vdwg.mxu0
      %v1909 = vpack.c.bf16 %v1764, %v1761
      %v1910 = vpack.c.bf16 %v1835, %v1832
      %v1912 = vsel %vm841, %v1909, 0
      %v1915 = vsel %vm841, %v1910, 0
      %1917 = vmatprep.subr.bf16.mxu0 0
      %1918 = vmatpush1.bf16.xpose.msra.mxu0 %v1915
      %1919 = vmatprep.subr.bf16.mxu0 0
      %1920 = vmatpush1.bf16.xpose.msra.mxu0 0
      %1921 = vmatprep.subr.bf16.mxu0 0
      %1922 = vmatpush1.bf16.xpose.msra.mxu0 0
      %1923 = vmatprep.subr.bf16.mxu0 0
      %1924 = vmatpush1.bf16.xpose.msra.mxu0 0
      %1925 = vmatprep.subr.bf16.mxu0 0
      %1926 = vmatpush1.bf16.xpose.msra.mxu0 0
      %1927 = vmatprep.subr.bf16.mxu0 0
      %1928 = vmatpush1.bf16.xpose.msra.mxu0 0
      %1929 = vmatprep.subr.bf16.mxu0 0
      %1930 = vmatpush1.bf16.xpose.msra.mxu0 0
      %1931 = vmatprep.subr.bf16.mxu0 0
      %1932 = vmatpush1.bf16.xpose.msra.mxu0 0
      %1933 = vmatprep.subr.bf16.mxu0 0
      %1934 = vmatpush1.bf16.xpose.msra.mxu0 0
      %1935 = vmatprep.subr.bf16.mxu0 0
      %1936 = vmatpush1.bf16.xpose.msra.mxu0 0
      %1937 = vmatprep.subr.bf16.mxu0 0
      %1938 = vmatpush1.bf16.xpose.msra.mxu0 0
      %1939 = vmatprep.subr.bf16.mxu0 0
      %1940 = vmatpush1.bf16.xpose.msra.mxu0 0
      %1941 = vmatprep.subr.bf16.mxu0 0
      %1942 = vmatpush1.bf16.xpose.msra.mxu0 0
      %1943 = vmatprep.subr.bf16.mxu0 0
      %1944 = vmatpush1.bf16.xpose.msra.mxu0 0
      %1945 = vmatprep.subr.bf16.mxu0 0
      %1946 = vmatpush1.bf16.xpose.msra.mxu0 0
      %1947 = vmatprep.subr.bf16.mxu0 0
      %1948 = vmatpush1.bf16.xpose.msra.mxu0 0
      %1949 = vmatprep.mubr.bf16.mxu0 0
      %1950 = vmatmul.mubr.bf16.gmra.mrb[0].mxu0 %v1912
      %v1951 = vpop.f32.mrb[0].mxu0
      %v1952 = vadd.f32 0.0, %v1951
      %v1953 = vpop.f32.mrb[0].mxu0
      %v1954 = vpop.f32.mrb[0].mxu0
      %v1955 = vadd.f32 0.0, %v1954
      %v1956 = vpop.f32.mrb[0].mxu0
      %1957 = vdwg.mxu0
      %v1958 = vsel %vm841, %v1952, -inf
      %1959 = vmax.xlane.f32.xlu0 %v1958
      %v1960 = vpop.xlane.xlu0 %1959
      %v1961 = vsel %vm841, %v1955, -inf
      %1962 = vmax.xlane.f32.xlu0 %v1961
      %v1963 = vpop.xlane.xlu0 %1962
      %v1964 = vsub.f32 %v1952, %v1960
      %v1965 = vsub.f32 %v1955, %v1963
      %v1966 = vmul.f32 %v1964, 1.442695
      %v1967 = vpow.pop %v1966
      %v1968 = vmul.f32 %v1965, 1.442695
      %v1969 = vpow.pop %v1968
      %v1970 = vsel %vm841, %v1967, 0.0
      %1971 = vadd.xlane.f32.xlu0 %v1970
      %v1972 = vpop.xlane.xlu0 %1971
      %v1973 = vsel %vm841, %v1969, 0.0
      %1974 = vadd.xlane.f32.xlu0 %v1973
      %v1975 = vpop.xlane.xlu0 %1974
      %v1976 = vrcp.pop %v1972
      %v1977 = vrcp.pop %v1975
      %v1978 = vmul.f32 %v1967, %v1976
      %v1979 = vmul.f32 %v1969, %v1977
      %v1980 = vpack.c.bf16 %v1979, %v1978
      %v1981 = vpack.c.bf16 %v1906, %v1903
      %v1983 = vsel %vm841, %v1980, 0
      %1985 = vmatprep.subr.bf16.mxu0 0
      %1986 = vmatpush1.bf16.msra.mxu0 %v1981
      %1987 = vmatprep.subr.bf16.mxu0 0
      %1988 = vmatpush1.bf16.msra.mxu0 0
      %1989 = vmatprep.subr.bf16.mxu0 0
      %1990 = vmatpush1.bf16.msra.mxu0 0
      %1991 = vmatprep.subr.bf16.mxu0 0
      %1992 = vmatpush1.bf16.msra.mxu0 0
      %1993 = vmatprep.subr.bf16.mxu0 0
      %1994 = vmatpush1.bf16.msra.mxu0 0
      %1995 = vmatprep.subr.bf16.mxu0 0
      %1996 = vmatpush1.bf16.msra.mxu0 0
      %1997 = vmatprep.subr.bf16.mxu0 0
      %1998 = vmatpush1.bf16.msra.mxu0 0
      %1999 = vmatprep.subr.bf16.mxu0 0
      %2000 = vmatpush1.bf16.msra.mxu0 0
      %2001 = vmatprep.subr.bf16.mxu0 0
      %2002 = vmatpush1.bf16.msra.mxu0 0
      %2003 = vmatprep.subr.bf16.mxu0 0
      %2004 = vmatpush1.bf16.msra.mxu0 0
      %2005 = vmatprep.subr.bf16.mxu0 0
      %2006 = vmatpush1.bf16.msra.mxu0 0
      %2007 = vmatprep.subr.bf16.mxu0 0
      %2008 = vmatpush1.bf16.msra.mxu0 0
      %2009 = vmatprep.subr.bf16.mxu0 0
      %2010 = vmatpush1.bf16.msra.mxu0 0
      %2011 = vmatprep.subr.bf16.mxu0 0
      %2012 = vmatpush1.bf16.msra.mxu0 0
      %2013 = vmatprep.subr.bf16.mxu0 0
      %2014 = vmatpush1.bf16.msra.mxu0 0
      %2015 = vmatprep.subr.bf16.mxu0 0
      %2016 = vmatpush1.bf16.msra.mxu0 0
      %2017 = vmatprep.mubr.bf16.mxu0 0
      %2018 = vmatmul.mubr.bf16.gmra.mrb[0].mxu0 %v1983
      %v2019 = vpop.f32.mrb[0].mxu0
      %v2020 = vadd.f32 0.0, %v2019
      %v2021 = vpop.f32.mrb[0].mxu0
      %v2022 = vpop.f32.mrb[0].mxu0
      %v2023 = vadd.f32 0.0, %v2022
      %v2024 = vpop.f32.mrb[0].mxu0
      %2025 = vdwg.mxu0
      %v2026 = vpack.c.bf16 %v2023, %v2020
      %v2029 = vunpack.c.l.b16 %v775
      %v2030 = vunpack.c.l.b16 %v776
      %v2031 = vpack.c.b16 %v2030, %v2029
      %v2034 = vsel %vm841, %v2026, 0
      %2036 = vmatprep.subr.bf16.mxu0 0
      %2037 = vmatpush1.bf16.msra.mxu0 %v2031
      %2038 = vmatprep.subr.bf16.mxu0 0
      %2039 = vmatpush1.bf16.msra.mxu0 0
      %2040 = vmatprep.subr.bf16.mxu0 0
      %2041 = vmatpush1.bf16.msra.mxu0 0
      %2042 = vmatprep.subr.bf16.mxu0 0
      %2043 = vmatpush1.bf16.msra.mxu0 0
      %2044 = vmatprep.subr.bf16.mxu0 0
      %2045 = vmatpush1.bf16.msra.mxu0 0
      %2046 = vmatprep.subr.bf16.mxu0 0
      %2047 = vmatpush1.bf16.msra.mxu0 0
      %2048 = vmatprep.subr.bf16.mxu0 0
      %2049 = vmatpush1.bf16.msra.mxu0 0
      %2050 = vmatprep.subr.bf16.mxu0 0
      %2051 = vmatpush1.bf16.msra.mxu0 0
      %2052 = vmatprep.subr.bf16.mxu0 0
      %2053 = vmatpush1.bf16.msra.mxu0 0
      %2054 = vmatprep.subr.bf16.mxu0 0
      %2055 = vmatpush1.bf16.msra.mxu0 0
      %2056 = vmatprep.subr.bf16.mxu0 0
      %2057 = vmatpush1.bf16.msra.mxu0 0
      %2058 = vmatprep.subr.bf16.mxu0 0
      %2059 = vmatpush1.bf16.msra.mxu0 0
      %2060 = vmatprep.subr.bf16.mxu0 0
      %2061 = vmatpush1.bf16.msra.mxu0 0
      %2062 = vmatprep.subr.bf16.mxu0 0
      %2063 = vmatpush1.bf16.msra.mxu0 0
      %2064 = vmatprep.subr.bf16.mxu0 0
      %2065 = vmatpush1.bf16.msra.mxu0 0
      %2066 = vmatprep.subr.bf16.mxu0 0
      %2067 = vmatpush1.bf16.msra.mxu0 0
      %2068 = vmatprep.mubr.bf16.mxu0 0
      %2069 = vmatmul.mubr.bf16.gmra.mrb[0].mxu0 %v2034
      %v2070 = vpop.f32.mrb[0].mxu0
      %v2071 = vadd.f32 0.0, %v2070
      %v2072 = vpop.f32.mrb[0].mxu0
      %v2073 = vpop.f32.mrb[0].mxu0
      %v2074 = vadd.f32 0.0, %v2073
      %v2075 = vpop.f32.mrb[0].mxu0
      %2076 = vdwg.mxu0
      %v2077 = vadd.f32 %v1690, %v2071
      %v2078 = vadd.f32 %v1693, %v2074
      %v2080 = vlaneseq
      %v2081 = vshrl.u32 %v2080, 7
      %v2082 = vsub.s32 0, %v2081
      %v2083 = vrot.slane %v698, %v2082
      %v2093 = vunpack.c.l.b16 %v687
      %v2094 = vunpack.c.l.b16 %v688
      %v2095 = vunpack.c.l.b16 %v689
      %v2096 = vunpack.c.l.b16 %v690
      %v2097 = vunpack.c.l.b16 %v691
      %v2098 = vunpack.c.l.b16 %v692
      %v2099 = vunpack.c.l.b16 %v693
      %v2100 = vunpack.c.l.b16 %v694
      %v2101 = vpack.c.b16 %v2094, %v2093
      %v2102 = vpack.c.b16 %v2096, %v2095
      %v2103 = vpack.c.b16 %v2098, %v2097
      %v2104 = vpack.c.b16 %v2100, %v2099
      %2109 = vmatprep.subr.bf16.mxu0 0
      %2110 = vmatpush1.bf16.msra.mxu0 %v2101
      %2111 = vmatprep.subr.bf16.mxu0 0
      %2112 = vmatpush1.bf16.msra.mxu0 %v2102
      %2113 = vmatprep.subr.bf16.mxu0 0
      %2114 = vmatpush1.bf16.msra.mxu0 %v2103
      %2115 = vmatprep.subr.bf16.mxu0 0
      %2116 = vmatpush1.bf16.msra.mxu0 %v2104
      %2117 = vmatprep.subr.bf16.mxu0 0
      %2118 = vmatpush1.bf16.msra.mxu0 0
      %2119 = vmatprep.subr.bf16.mxu0 0
      %2120 = vmatpush1.bf16.msra.mxu0 0
      %2121 = vmatprep.subr.bf16.mxu0 0
      %2122 = vmatpush1.bf16.msra.mxu0 0
      %2123 = vmatprep.subr.bf16.mxu0 0
      %2124 = vmatpush1.bf16.msra.mxu0 0
      %2125 = vmatprep.subr.bf16.mxu0 0
      %2126 = vmatpush1.bf16.msra.mxu0 0
      %2127 = vmatprep.subr.bf16.mxu0 0
      %2128 = vmatpush1.bf16.msra.mxu0 0
      %2129 = vmatprep.subr.bf16.mxu0 0
      %2130 = vmatpush1.bf16.msra.mxu0 0
      %2131 = vmatprep.subr.bf16.mxu0 0
      %2132 = vmatpush1.bf16.msra.mxu0 0
      %2133 = vmatprep.subr.bf16.mxu0 0
      %2134 = vmatpush1.bf16.msra.mxu0 0
      %2135 = vmatprep.subr.bf16.mxu0 0
      %2136 = vmatpush1.bf16.msra.mxu0 0
      %2137 = vmatprep.subr.bf16.mxu0 0
      %2138 = vmatpush1.bf16.msra.mxu0 0
      %2139 = vmatprep.subr.bf16.mxu0 0
      %2140 = vmatpush1.bf16.msra.mxu0 0
      %2141 = vmatprep.mubr.bf16.mxu0 0
      %2142 = vmatmul.mubr.bf16.gmra.mrb[0].mxu0 %v962
      %v2143 = vpop.f32.mrb[0].mxu0
      %v2144 = vadd.f32 %v2083, %v2143
      %v2145 = vpop.f32.mrb[0].mxu0
      %v2146 = vpop.f32.mrb[0].mxu0
      %v2147 = vadd.f32 %v2083, %v2146
      %v2148 = vpop.f32.mrb[0].mxu0
      %2149 = vdwg.mxu0
      %v2151 = vlaneseq
      %v2152 = vshrl.u32 %v2151, 7
      %v2153 = vsub.s32 0, %v2152
      %v2154 = vrot.slane %v734, %v2153
      %v2164 = vunpack.c.l.b16 %v723
      %v2165 = vunpack.c.l.b16 %v724
      %v2166 = vunpack.c.l.b16 %v725
      %v2167 = vunpack.c.l.b16 %v726
      %v2168 = vunpack.c.l.b16 %v727
      %v2169 = vunpack.c.l.b16 %v728
      %v2170 = vunpack.c.l.b16 %v729
      %v2171 = vunpack.c.l.b16 %v730
      %v2172 = vpack.c.b16 %v2165, %v2164
      %v2173 = vpack.c.b16 %v2167, %v2166
      %v2174 = vpack.c.b16 %v2169, %v2168
      %v2175 = vpack.c.b16 %v2171, %v2170
      %2180 = vmatprep.subr.bf16.mxu0 0
      %2181 = vmatpush1.bf16.msra.mxu0 %v2172
      %2182 = vmatprep.subr.bf16.mxu0 0
      %2183 = vmatpush1.bf16.msra.mxu0 %v2173
      %2184 = vmatprep.subr.bf16.mxu0 0
      %2185 = vmatpush1.bf16.msra.mxu0 %v2174
      %2186 = vmatprep.subr.bf16.mxu0 0
      %2187 = vmatpush1.bf16.msra.mxu0 %v2175
      %2188 = vmatprep.subr.bf16.mxu0 0
      %2189 = vmatpush1.bf16.msra.mxu0 0
      %2190 = vmatprep.subr.bf16.mxu0 0
      %2191 = vmatpush1.bf16.msra.mxu0 0
      %2192 = vmatprep.subr.bf16.mxu0 0
      %2193 = vmatpush1.bf16.msra.mxu0 0
      %2194 = vmatprep.subr.bf16.mxu0 0
      %2195 = vmatpush1.bf16.msra.mxu0 0
      %2196 = vmatprep.subr.bf16.mxu0 0
      %2197 = vmatpush1.bf16.msra.mxu0 0
      %2198 = vmatprep.subr.bf16.mxu0 0
      %2199 = vmatpush1.bf16.msra.mxu0 0
      %2200 = vmatprep.subr.bf16.mxu0 0
      %2201 = vmatpush1.bf16.msra.mxu0 0
      %2202 = vmatprep.subr.bf16.mxu0 0
      %2203 = vmatpush1.bf16.msra.mxu0 0
      %2204 = vmatprep.subr.bf16.mxu0 0
      %2205 = vmatpush1.bf16.msra.mxu0 0
      %2206 = vmatprep.subr.bf16.mxu0 0
      %2207 = vmatpush1.bf16.msra.mxu0 0
      %2208 = vmatprep.subr.bf16.mxu0 0
      %2209 = vmatpush1.bf16.msra.mxu0 0
      %2210 = vmatprep.subr.bf16.mxu0 0
      %2211 = vmatpush1.bf16.msra.mxu0 0
      %2212 = vmatprep.mubr.bf16.mxu0 0
      %2213 = vmatmul.mubr.bf16.gmra.mrb[0].mxu0 %v962
      %v2214 = vpop.f32.mrb[0].mxu0
      %v2215 = vadd.f32 %v2154, %v2214
      %v2216 = vpop.f32.mrb[0].mxu0
      %v2217 = vpop.f32.mrb[0].mxu0
      %v2218 = vadd.f32 %v2154, %v2217
      %v2219 = vpop.f32.mrb[0].mxu0
      %2220 = vdwg.mxu0
      %v2222 = vlaneseq
      %v2223 = vshrl.u32 %v2222, 7
      %v2224 = vsub.s32 0, %v2223
      %v2225 = vrot.slane %v770, %v2224
      %v2235 = vunpack.c.l.b16 %v759
      %v2236 = vunpack.c.l.b16 %v760
      %v2237 = vunpack.c.l.b16 %v761
      %v2238 = vunpack.c.l.b16 %v762
      %v2239 = vunpack.c.l.b16 %v763
      %v2240 = vunpack.c.l.b16 %v764
      %v2241 = vunpack.c.l.b16 %v765
      %v2242 = vunpack.c.l.b16 %v766
      %v2243 = vpack.c.b16 %v2236, %v2235
      %v2244 = vpack.c.b16 %v2238, %v2237
      %v2245 = vpack.c.b16 %v2240, %v2239
      %v2246 = vpack.c.b16 %v2242, %v2241
      %2251 = vmatprep.subr.bf16.mxu0 0
      %2252 = vmatpush1.bf16.msra.mxu0 %v2243
      %2253 = vmatprep.subr.bf16.mxu0 0
      %2254 = vmatpush1.bf16.msra.mxu0 %v2244
      %2255 = vmatprep.subr.bf16.mxu0 0
      %2256 = vmatpush1.bf16.msra.mxu0 %v2245
      %2257 = vmatprep.subr.bf16.mxu0 0
      %2258 = vmatpush1.bf16.msra.mxu0 %v2246
      %2259 = vmatprep.subr.bf16.mxu0 0
      %2260 = vmatpush1.bf16.msra.mxu0 0
      %2261 = vmatprep.subr.bf16.mxu0 0
      %2262 = vmatpush1.bf16.msra.mxu0 0
      %2263 = vmatprep.subr.bf16.mxu0 0
      %2264 = vmatpush1.bf16.msra.mxu0 0
      %2265 = vmatprep.subr.bf16.mxu0 0
      %2266 = vmatpush1.bf16.msra.mxu0 0
      %2267 = vmatprep.subr.bf16.mxu0 0
      %2268 = vmatpush1.bf16.msra.mxu0 0
      %2269 = vmatprep.subr.bf16.mxu0 0
      %2270 = vmatpush1.bf16.msra.mxu0 0
      %2271 = vmatprep.subr.bf16.mxu0 0
      %2272 = vmatpush1.bf16.msra.mxu0 0
      %2273 = vmatprep.subr.bf16.mxu0 0
      %2274 = vmatpush1.bf16.msra.mxu0 0
      %2275 = vmatprep.subr.bf16.mxu0 0
      %2276 = vmatpush1.bf16.msra.mxu0 0
      %2277 = vmatprep.subr.bf16.mxu0 0
      %2278 = vmatpush1.bf16.msra.mxu0 0
      %2279 = vmatprep.subr.bf16.mxu0 0
      %2280 = vmatpush1.bf16.msra.mxu0 0
      %2281 = vmatprep.subr.bf16.mxu0 0
      %2282 = vmatpush1.bf16.msra.mxu0 0
      %2283 = vmatprep.mubr.bf16.mxu0 0
      %2284 = vmatmul.mubr.bf16.gmra.mrb[0].mxu0 %v962
      %v2285 = vpop.f32.mrb[0].mxu0
      %v2286 = vadd.f32 %v2225, %v2285
      %v2287 = vpop.f32.mrb[0].mxu0
      %v2288 = vpop.f32.mrb[0].mxu0
      %v2289 = vadd.f32 %v2225, %v2288
      %v2290 = vpop.f32.mrb[0].mxu0
      %2291 = vdwg.mxu0
      %v2292 = vpack.c.bf16 %v2147, %v2144
      %v2293 = vpack.c.bf16 %v2218, %v2215
      %v2295 = vsel %vm841, %v2292, 0
      %v2298 = vsel %vm841, %v2293, 0
      %2300 = vmatprep.subr.bf16.mxu0 0
      %2301 = vmatpush1.bf16.xpose.msra.mxu0 %v2298
      %2302 = vmatprep.subr.bf16.mxu0 0
      %2303 = vmatpush1.bf16.xpose.msra.mxu0 0
      %2304 = vmatprep.subr.bf16.mxu0 0
      %2305 = vmatpush1.bf16.xpose.msra.mxu0 0
      %2306 = vmatprep.subr.bf16.mxu0 0
      %2307 = vmatpush1.bf16.xpose.msra.mxu0 0
      %2308 = vmatprep.subr.bf16.mxu0 0
      %2309 = vmatpush1.bf16.xpose.msra.mxu0 0
      %2310 = vmatprep.subr.bf16.mxu0 0
      %2311 = vmatpush1.bf16.xpose.msra.mxu0 0
      %2312 = vmatprep.subr.bf16.mxu0 0
      %2313 = vmatpush1.bf16.xpose.msra.mxu0 0
      %2314 = vmatprep.subr.bf16.mxu0 0
      %2315 = vmatpush1.bf16.xpose.msra.mxu0 0
      %2316 = vmatprep.subr.bf16.mxu0 0
      %2317 = vmatpush1.bf16.xpose.msra.mxu0 0
      %2318 = vmatprep.subr.bf16.mxu0 0
      %2319 = vmatpush1.bf16.xpose.msra.mxu0 0
      %2320 = vmatprep.subr.bf16.mxu0 0
      %2321 = vmatpush1.bf16.xpose.msra.mxu0 0
      %2322 = vmatprep.subr.bf16.mxu0 0
      %2323 = vmatpush1.bf16.xpose.msra.mxu0 0
      %2324 = vmatprep.subr.bf16.mxu0 0
      %2325 = vmatpush1.bf16.xpose.msra.mxu0 0
      %2326 = vmatprep.subr.bf16.mxu0 0
      %2327 = vmatpush1.bf16.xpose.msra.mxu0 0
      %2328 = vmatprep.subr.bf16.mxu0 0
      %2329 = vmatpush1.bf16.xpose.msra.mxu0 0
      %2330 = vmatprep.subr.bf16.mxu0 0
      %2331 = vmatpush1.bf16.xpose.msra.mxu0 0
      %2332 = vmatprep.mubr.bf16.mxu0 0
      %2333 = vmatmul.mubr.bf16.gmra.mrb[0].mxu0 %v2295
      %v2334 = vpop.f32.mrb[0].mxu0
      %v2335 = vadd.f32 0.0, %v2334
      %v2336 = vpop.f32.mrb[0].mxu0
      %v2337 = vpop.f32.mrb[0].mxu0
      %v2338 = vadd.f32 0.0, %v2337
      %v2339 = vpop.f32.mrb[0].mxu0
      %2340 = vdwg.mxu0
      %v2341 = vsel %vm841, %v2335, -inf
      %2342 = vmax.xlane.f32.xlu0 %v2341
      %v2343 = vpop.xlane.xlu0 %2342
      %v2344 = vsel %vm841, %v2338, -inf
      %2345 = vmax.xlane.f32.xlu0 %v2344
      %v2346 = vpop.xlane.xlu0 %2345
      %v2347 = vsub.f32 %v2335, %v2343
      %v2348 = vsub.f32 %v2338, %v2346
      %v2349 = vmul.f32 %v2347, 1.442695
      %v2350 = vpow.pop %v2349
      %v2351 = vmul.f32 %v2348, 1.442695
      %v2352 = vpow.pop %v2351
      %v2353 = vsel %vm841, %v2350, 0.0
      %2354 = vadd.xlane.f32.xlu0 %v2353
      %v2355 = vpop.xlane.xlu0 %2354
      %v2356 = vsel %vm841, %v2352, 0.0
      %2357 = vadd.xlane.f32.xlu0 %v2356
      %v2358 = vpop.xlane.xlu0 %2357
      %v2359 = vrcp.pop %v2355
      %v2360 = vrcp.pop %v2358
      %v2361 = vmul.f32 %v2350, %v2359
      %v2362 = vmul.f32 %v2352, %v2360
      %v2363 = vpack.c.bf16 %v2362, %v2361
      %v2364 = vpack.c.bf16 %v2289, %v2286
      %v2366 = vsel %vm841, %v2363, 0
      %2368 = vmatprep.subr.bf16.mxu0 0
      %2369 = vmatpush1.bf16.msra.mxu0 %v2364
      %2370 = vmatprep.subr.bf16.mxu0 0
      %2371 = vmatpush1.bf16.msra.mxu0 0
      %2372 = vmatprep.subr.bf16.mxu0 0
      %2373 = vmatpush1.bf16.msra.mxu0 0
      %2374 = vmatprep.subr.bf16.mxu0 0
      %2375 = vmatpush1.bf16.msra.mxu0 0
      %2376 = vmatprep.subr.bf16.mxu0 0
      %2377 = vmatpush1.bf16.msra.mxu0 0
      %2378 = vmatprep.subr.bf16.mxu0 0
      %2379 = vmatpush1.bf16.msra.mxu0 0
      %2380 = vmatprep.subr.bf16.mxu0 0
      %2381 = vmatpush1.bf16.msra.mxu0 0
      %2382 = vmatprep.subr.bf16.mxu0 0
      %2383 = vmatpush1.bf16.msra.mxu0 0
      %2384 = vmatprep.subr.bf16.mxu0 0
      %2385 = vmatpush1.bf16.msra.mxu0 0
      %2386 = vmatprep.subr.bf16.mxu0 0
      %2387 = vmatpush1.bf16.msra.mxu0 0
      %2388 = vmatprep.subr.bf16.mxu0 0
      %2389 = vmatpush1.bf16.msra.mxu0 0
      %2390 = vmatprep.subr.bf16.mxu0 0
      %2391 = vmatpush1.bf16.msra.mxu0 0
      %2392 = vmatprep.subr.bf16.mxu0 0
      %2393 = vmatpush1.bf16.msra.mxu0 0
      %2394 = vmatprep.subr.bf16.mxu0 0
      %2395 = vmatpush1.bf16.msra.mxu0 0
      %2396 = vmatprep.subr.bf16.mxu0 0
      %2397 = vmatpush1.bf16.msra.mxu0 0
      %2398 = vmatprep.subr.bf16.mxu0 0
      %2399 = vmatpush1.bf16.msra.mxu0 0
      %2400 = vmatprep.mubr.bf16.mxu0 0
      %2401 = vmatmul.mubr.bf16.gmra.mrb[0].mxu0 %v2366
      %v2402 = vpop.f32.mrb[0].mxu0
      %v2403 = vadd.f32 0.0, %v2402
      %v2404 = vpop.f32.mrb[0].mxu0
      %v2405 = vpop.f32.mrb[0].mxu0
      %v2406 = vadd.f32 0.0, %v2405
      %v2407 = vpop.f32.mrb[0].mxu0
      %2408 = vdwg.mxu0
      %v2409 = vpack.c.bf16 %v2406, %v2403
      %v2412 = vunpack.c.l.b16 %v777
      %v2413 = vunpack.c.l.b16 %v778
      %v2414 = vpack.c.b16 %v2413, %v2412
      %v2417 = vsel %vm841, %v2409, 0
      %2419 = vmatprep.subr.bf16.mxu0 0
      %2420 = vmatpush1.bf16.msra.mxu0 %v2414
      %2421 = vmatprep.subr.bf16.mxu0 0
      %2422 = vmatpush1.bf16.msra.mxu0 0
      %2423 = vmatprep.subr.bf16.mxu0 0
      %2424 = vmatpush1.bf16.msra.mxu0 0
      %2425 = vmatprep.subr.bf16.mxu0 0
      %2426 = vmatpush1.bf16.msra.mxu0 0
      %2427 = vmatprep.subr.bf16.mxu0 0
      %2428 = vmatpush1.bf16.msra.mxu0 0
      %2429 = vmatprep.subr.bf16.mxu0 0
      %2430 = vmatpush1.bf16.msra.mxu0 0
      %2431 = vmatprep.subr.bf16.mxu0 0
      %2432 = vmatpush1.bf16.msra.mxu0 0
      %2433 = vmatprep.subr.bf16.mxu0 0
      %2434 = vmatpush1.bf16.msra.mxu0 0
      %2435 = vmatprep.subr.bf16.mxu0 0
      %2436 = vmatpush1.bf16.msra.mxu0 0
      %2437 = vmatprep.subr.bf16.mxu0 0
      %2438 = vmatpush1.bf16.msra.mxu0 0
      %2439 = vmatprep.subr.bf16.mxu0 0
      %2440 = vmatpush1.bf16.msra.mxu0 0
      %2441 = vmatprep.subr.bf16.mxu0 0
      %2442 = vmatpush1.bf16.msra.mxu0 0
      %2443 = vmatprep.subr.bf16.mxu0 0
      %2444 = vmatpush1.bf16.msra.mxu0 0
      %2445 = vmatprep.subr.bf16.mxu0 0
      %2446 = vmatpush1.bf16.msra.mxu0 0
      %2447 = vmatprep.subr.bf16.mxu0 0
      %2448 = vmatpush1.bf16.msra.mxu0 0
      %2449 = vmatprep.subr.bf16.mxu0 0
      %2450 = vmatpush1.bf16.msra.mxu0 0
      %2451 = vmatprep.mubr.bf16.mxu0 0
      %2452 = vmatmul.mubr.bf16.gmra.mrb[0].mxu0 %v2417
      %v2453 = vpop.f32.mrb[0].mxu0
      %v2454 = vadd.f32 0.0, %v2453
      %v2455 = vpop.f32.mrb[0].mxu0
      %v2456 = vpop.f32.mrb[0].mxu0
      %v2457 = vadd.f32 0.0, %v2456
      %v2458 = vpop.f32.mrb[0].mxu0
      %2459 = vdwg.mxu0
      %v2460 = vadd.f32 %v2077, %v2454
      %v2461 = vadd.f32 %v2078, %v2457
      %v2463 = vlaneseq
      %v2464 = vshrl.u32 %v2463, 7
      %v2465 = vsub.s32 0, %v2464
      %v2466 = vrot.slane %v779, %v2465
      %v2468 = vadd.f32 %v2460, %v2466
      %v2469 = vadd.f32 %v2461, %v2466
      %v2470 = vadd.f32 %v928, %v2468
      %v2471 = vadd.f32 %v929, %v2469
      %v2472 = vsel %vm886, %v2470, 0.0
      %2473 = vadd.xlane.f32.xlu0 %v2472
      %v2474 = vpop.xlane.xlu0 %2473
      %v2475 = vsel %vm886, %v2471, 0.0
      %2476 = vadd.xlane.f32.xlu0 %v2475
      %v2477 = vpop.xlane.xlu0 %2476
      %v2478 = vmul.f32 %v2474, %v893
      %v2479 = vmul.f32 %v2477, %v893
      %v2480 = vsub.f32 %v2470, %v2478
      %v2481 = vsub.f32 %v2471, %v2479
      %v2482 = vmul.f32 %v2480, %v2480
      %v2483 = vmul.f32 %v2481, %v2481
      %v2484 = vsel %vm886, %v2482, 0.0
      %2485 = vadd.xlane.f32.xlu0 %v2484
      %v2486 = vpop.xlane.xlu0 %2485
      %v2487 = vsel %vm886, %v2483, 0.0
      %2488 = vadd.xlane.f32.xlu0 %v2487
      %v2489 = vpop.xlane.xlu0 %2488
      %v2490 = vmul.f32 %v2486, %v893
      %v2491 = vmul.f32 %v2489, %v893
      %v2492 = vadd.f32 %v2490, 1e-05
      %v2493 = vadd.f32 %v2491, 1e-05
      %v2494 = vrsqrt.pop %v2492
      %v2495 = vrsqrt.pop %v2493
      %v2496 = vmul.f32 %v2480, %v2494
      %v2497 = vmul.f32 %v2481, %v2495
      %v2499 = vlaneseq
      %v2500 = vshrl.u32 %v2499, 7
      %v2501 = vsub.s32 0, %v2500
      %v2502 = vrot.slane %v780, %v2501
      %v2504 = vmul.f32 %v2496, %v2502
      %v2505 = vmul.f32 %v2497, %v2502
      %v2507 = vlaneseq
      %v2508 = vshrl.u32 %v2507, 7
      %v2509 = vsub.s32 0, %v2508
      %v2510 = vrot.slane %v781, %v2509
      %v2512 = vadd.f32 %v2504, %v2510
      %v2513 = vadd.f32 %v2505, %v2510
      %v2514 = vpack.c.bf16 %v2513, %v2512
      %v2516 = vlaneseq
      %v2517 = vshrl.u32 %v2516, 7
      %v2518 = vsub.s32 0, %v2517
      %v2519 = vrot.slane %v790, %v2518
      %v2520 = vlaneseq
      %v2521 = vshrl.u32 %v2520, 7
      %v2522 = vsub.s32 1, %v2521
      %v2523 = vrot.slane %v790, %v2522
      %v2534 = vunpack.c.l.b16 %v782
      %v2535 = vunpack.c.h.b16 %v782
      %v2536 = vunpack.c.l.b16 %v783
      %v2537 = vunpack.c.h.b16 %v783
      %v2538 = vunpack.c.l.b16 %v784
      %v2539 = vunpack.c.h.b16 %v784
      %v2540 = vunpack.c.l.b16 %v785
      %v2541 = vunpack.c.h.b16 %v785
      %v2542 = vunpack.c.l.b16 %v786
      %v2543 = vunpack.c.h.b16 %v786
      %v2544 = vunpack.c.l.b16 %v787
      %v2545 = vunpack.c.h.b16 %v787
      %v2546 = vunpack.c.l.b16 %v788
      %v2547 = vunpack.c.h.b16 %v788
      %v2548 = vunpack.c.l.b16 %v789
      %v2549 = vunpack.c.h.b16 %v789
      %v2550 = vpack.c.b16 %v2536, %v2534
      %v2551 = vpack.c.b16 %v2537, %v2535
      %v2552 = vpack.c.b16 %v2540, %v2538
      %v2553 = vpack.c.b16 %v2541, %v2539
      %v2554 = vpack.c.b16 %v2544, %v2542
      %v2555 = vpack.c.b16 %v2545, %v2543
      %v2556 = vpack.c.b16 %v2548, %v2546
      %v2557 = vpack.c.b16 %v2549, %v2547
      %v2567 = vsel %vm886, %v2514, 0
      %2569 = vmatprep.subr.bf16.mxu0 %v2551
      %2570 = vmatpush1.bf16.msra.mxu0 %v2550
      %2571 = vmatprep.subr.bf16.mxu0 %v2553
      %2572 = vmatpush1.bf16.msra.mxu0 %v2552
      %2573 = vmatprep.subr.bf16.mxu0 %v2555
      %2574 = vmatpush1.bf16.msra.mxu0 %v2554
      %2575 = vmatprep.subr.bf16.mxu0 %v2557
      %2576 = vmatpush1.bf16.msra.mxu0 %v2556
      %2577 = vmatprep.subr.bf16.mxu0 0
      %2578 = vmatpush1.bf16.msra.mxu0 0
      %2579 = vmatprep.subr.bf16.mxu0 0
      %2580 = vmatpush1.bf16.msra.mxu0 0
      %2581 = vmatprep.subr.bf16.mxu0 0
      %2582 = vmatpush1.bf16.msra.mxu0 0
      %2583 = vmatprep.subr.bf16.mxu0 0
      %2584 = vmatpush1.bf16.msra.mxu0 0
      %2585 = vmatprep.subr.bf16.mxu0 0
      %2586 = vmatpush1.bf16.msra.mxu0 0
      %2587 = vmatprep.subr.bf16.mxu0 0
      %2588 = vmatpush1.bf16.msra.mxu0 0
      %2589 = vmatprep.subr.bf16.mxu0 0
      %2590 = vmatpush1.bf16.msra.mxu0 0
      %2591 = vmatprep.subr.bf16.mxu0 0
      %2592 = vmatpush1.bf16.msra.mxu0 0
      %2593 = vmatprep.subr.bf16.mxu0 0
      %2594 = vmatpush1.bf16.msra.mxu0 0
      %2595 = vmatprep.subr.bf16.mxu0 0
      %2596 = vmatpush1.bf16.msra.mxu0 0
      %2597 = vmatprep.subr.bf16.mxu0 0
      %2598 = vmatpush1.bf16.msra.mxu0 0
      %2599 = vmatprep.subr.bf16.mxu0 0
      %2600 = vmatpush1.bf16.msra.mxu0 0
      %2601 = vmatprep.mubr.bf16.mxu0 0
      %2602 = vmatmul.mubr.bf16.gmra.mrb[0].mxu0 %v2567
      %v2603 = vpop.f32.mrb[0].mxu0
      %v2604 = vadd.f32 %v2519, %v2603
      %v2605 = vpop.f32.mrb[0].mxu0
      %v2606 = vadd.f32 %v2523, %v2605
      %v2607 = vpop.f32.mrb[0].mxu0
      %v2608 = vadd.f32 %v2519, %v2607
      %v2609 = vpop.f32.mrb[0].mxu0
      %v2610 = vadd.f32 %v2523, %v2609
      %2611 = vdwg.mxu0
      %v2612 = vmax.f32 %v2604, 0.0
      %v2613 = vmax.f32 %v2606, 0.0
      %v2614 = vmax.f32 %v2608, 0.0
      %v2615 = vmax.f32 %v2610, 0.0
      %v2616 = vpack.c.bf16 %v2614, %v2612
      %v2617 = vpack.c.bf16 %v2615, %v2613
      %v2619 = vlaneseq
      %v2620 = vshrl.u32 %v2619, 7
      %v2621 = vsub.s32 0, %v2620
      %v2622 = vrot.slane %v823, %v2621
      %v2656 = vunpack.c.l.b16 %v791
      %v2657 = vunpack.c.l.b16 %v792
      %v2658 = vunpack.c.l.b16 %v793
      %v2659 = vunpack.c.l.b16 %v794
      %v2660 = vunpack.c.l.b16 %v795
      %v2661 = vunpack.c.l.b16 %v796
      %v2662 = vunpack.c.l.b16 %v797
      %v2663 = vunpack.c.l.b16 %v798
      %v2664 = vunpack.c.l.b16 %v799
      %v2665 = vunpack.c.l.b16 %v800
      %v2666 = vunpack.c.l.b16 %v801
      %v2667 = vunpack.c.l.b16 %v802
      %v2668 = vunpack.c.l.b16 %v803
      %v2669 = vunpack.c.l.b16 %v804
      %v2670 = vunpack.c.l.b16 %v805
      %v2671 = vunpack.c.l.b16 %v806
      %v2672 = vunpack.c.l.b16 %v807
      %v2673 = vunpack.c.l.b16 %v808
      %v2674 = vunpack.c.l.b16 %v809
      %v2675 = vunpack.c.l.b16 %v810
      %v2676 = vunpack.c.l.b16 %v811
      %v2677 = vunpack.c.l.b16 %v812
      %v2678 = vunpack.c.l.b16 %v813
      %v2679 = vunpack.c.l.b16 %v814
      %v2680 = vunpack.c.l.b16 %v815
      %v2681 = vunpack.c.l.b16 %v816
      %v2682 = vunpack.c.l.b16 %v817
      %v2683 = vunpack.c.l.b16 %v818
      %v2684 = vunpack.c.l.b16 %v819
      %v2685 = vunpack.c.l.b16 %v820
      %v2686 = vunpack.c.l.b16 %v821
      %v2687 = vunpack.c.l.b16 %v822
      %v2688 = vpack.c.b16 %v2657, %v2656
      %v2689 = vpack.c.b16 %v2659, %v2658
      %v2690 = vpack.c.b16 %v2661, %v2660
      %v2691 = vpack.c.b16 %v2663, %v2662
      %v2692 = vpack.c.b16 %v2665, %v2664
      %v2693 = vpack.c.b16 %v2667, %v2666
      %v2694 = vpack.c.b16 %v2669, %v2668
      %v2695 = vpack.c.b16 %v2671, %v2670
      %v2696 = vpack.c.b16 %v2673, %v2672
      %v2697 = vpack.c.b16 %v2675, %v2674
      %v2698 = vpack.c.b16 %v2677, %v2676
      %v2699 = vpack.c.b16 %v2679, %v2678
      %v2700 = vpack.c.b16 %v2681, %v2680
      %v2701 = vpack.c.b16 %v2683, %v2682
      %v2702 = vpack.c.b16 %v2685, %v2684
      %v2703 = vpack.c.b16 %v2687, %v2686
      %2720 = vmatprep.subr.bf16.mxu0 0
      %2721 = vmatpush1.bf16.msra.mxu0 %v2688
      %2722 = vmatprep.subr.bf16.mxu0 0
      %2723 = vmatpush1.bf16.msra.mxu0 %v2689
      %2724 = vmatprep.subr.bf16.mxu0 0
      %2725 = vmatpush1.bf16.msra.mxu0 %v2690
      %2726 = vmatprep.subr.bf16.mxu0 0
      %2727 = vmatpush1.bf16.msra.mxu0 %v2691
      %2728 = vmatprep.subr.bf16.mxu0 0
      %2729 = vmatpush1.bf16.msra.mxu0 %v2692
      %2730 = vmatprep.subr.bf16.mxu0 0
      %2731 = vmatpush1.bf16.msra.mxu0 %v2693
      %2732 = vmatprep.subr.bf16.mxu0 0
      %2733 = vmatpush1.bf16.msra.mxu0 %v2694
      %2734 = vmatprep.subr.bf16.mxu0 0
      %2735 = vmatpush1.bf16.msra.mxu0 %v2695
      %2736 = vmatprep.subr.bf16.mxu0 0
      %2737 = vmatpush1.bf16.msra.mxu0 %v2696
      %2738 = vmatprep.subr.bf16.mxu0 0
      %2739 = vmatpush1.bf16.msra.mxu0 %v2697
      %2740 = vmatprep.subr.bf16.mxu0 0
      %2741 = vmatpush1.bf16.msra.mxu0 %v2698
      %2742 = vmatprep.subr.bf16.mxu0 0
      %2743 = vmatpush1.bf16.msra.mxu0 %v2699
      %2744 = vmatprep.subr.bf16.mxu0 0
      %2745 = vmatpush1.bf16.msra.mxu0 %v2700
      %2746 = vmatprep.subr.bf16.mxu0 0
      %2747 = vmatpush1.bf16.msra.mxu0 %v2701
      %2748 = vmatprep.subr.bf16.mxu0 0
      %2749 = vmatpush1.bf16.msra.mxu0 %v2702
      %2750 = vmatprep.subr.bf16.mxu0 0
      %2751 = vmatpush1.bf16.msra.mxu0 %v2703
      %2752 = vmatprep.mubr.bf16.mxu0 %v2617
      %2753 = vmatmul.mubr.bf16.gmra.mrb[0].mxu0 %v2616
      %v2754 = vpop.f32.mrb[0].mxu0
      %v2755 = vadd.f32 %v2622, %v2754
      %v2756 = vpop.f32.mrb[0].mxu0
      %v2757 = vpop.f32.mrb[0].mxu0
      %v2758 = vadd.f32 %v2622, %v2757
      %v2759 = vpop.f32.mrb[0].mxu0
      %2760 = vdwg.mxu0
      %v2761 = vadd.f32 %v2512, %v2755
      %v2762 = vadd.f32 %v2513, %v2758
      %v2763 = vsel %vm886, %v2761, 0.0
      %2764 = vadd.xlane.f32.xlu0 %v2763
      %v2765 = vpop.xlane.xlu0 %2764
      %v2766 = vsel %vm886, %v2762, 0.0
      %2767 = vadd.xlane.f32.xlu0 %v2766
      %v2768 = vpop.xlane.xlu0 %2767
      %v2769 = vmul.f32 %v2765, %v893
      %v2770 = vmul.f32 %v2768, %v893
      %v2771 = vsub.f32 %v2761, %v2769
      %v2772 = vsub.f32 %v2762, %v2770
      %v2773 = vmul.f32 %v2771, %v2771
      %v2774 = vmul.f32 %v2772, %v2772
      %v2775 = vsel %vm886, %v2773, 0.0
      %2776 = vadd.xlane.f32.xlu0 %v2775
      %v2777 = vpop.xlane.xlu0 %2776
      %v2778 = vsel %vm886, %v2774, 0.0
      %2779 = vadd.xlane.f32.xlu0 %v2778
      %v2780 = vpop.xlane.xlu0 %2779
      %v2781 = vmul.f32 %v2777, %v893
      %v2782 = vmul.f32 %v2780, %v893
      %v2783 = vadd.f32 %v2781, 1e-05
      %v2784 = vadd.f32 %v2782, 1e-05
      %v2785 = vrsqrt.pop %v2783
      %v2786 = vrsqrt.pop %v2784
      %v2787 = vmul.f32 %v2771, %v2785
      %v2788 = vmul.f32 %v2772, %v2786
      %v2790 = vlaneseq
      %v2791 = vshrl.u32 %v2790, 7
      %v2792 = vsub.s32 0, %v2791
      %v2793 = vrot.slane %v824, %v2792
      %v2795 = vmul.f32 %v2787, %v2793
      %v2796 = vmul.f32 %v2788, %v2793
      %v2798 = vlaneseq
      %v2799 = vshrl.u32 %v2798, 7
      %v2800 = vsub.s32 0, %v2799
      %v2801 = vrot.slane %v825, %v2800
      %v2803 = vadd.f32 %v2795, %v2801
      %v2804 = vadd.f32 %v2796, %v2801
      %2805 = vst.msk [vmem:[%s656] sm:$0xff] %vm886, %v2803
      %2806 = vst.msk [vmem:[%s656 + $0x8] sm:$0xff] %vm886, %v2804
      %p2807 = scmp.lt.s32.totalorder %s32, 1
      %s2808 = scalar_select %p2807, %s32, 1
      %s2809 = smul.addr %s2808, 2
      %s2810 = smul.addr %s2809, 8
      %s2811 = scalar_lea.vmem %s21, %s2810
      // Predicated region
      $region105: #{joint_estimator_forward.3} parent=103 // pred_check
        %p2812 = pneg %p496
      $region106: #{joint_estimator_forward.3} parent=103 // pred_check_branch
        %2814 = sbr.rel (%p2812) target = $region108
      $region107: #{joint_estimator_forward.3} parent=103 // pred_region
        _
      $region108: #{joint_estimator_forward.3} parent=103 // pred_fallthru
        _
    $region104: #{joint_estimator_forward.3} parent=5 // pred_fallthru
      _
    %p2815 = scmp.le.s32.totalorder 2, %s27
    // Predicated region
    $region109: #{joint_estimator_forward.3} parent=5 // pred_check
      %p2816 = pneg %p2815
    $region110: #{joint_estimator_forward.3} parent=5 // pred_check_branch
      %2818 = sbr.rel (%p2816) target = $region112
    $region111: #{joint_estimator_forward.3} parent=5 // pred_region
      %s2819 = ssub.s32 %s27, 2
      // Predicated region
      $region113: #{joint_estimator_forward.3} parent=111 // pred_check
        %p2820 = pneg %p502
      $region114: #{joint_estimator_forward.3} parent=111 // pred_check_branch
        %2822 = sbr.rel (%p2820) target = $region116
      $region115: #{joint_estimator_forward.3} parent=111 // pred_region
        %p2823 = scmp.lt.s32.totalorder %s33, 1
        %s2824 = scalar_select %p2823, %s33, 1
        %s2825 = smul.addr %s2824, 2
        %s2826 = smul.addr %s2825, 8
        %s2827 = scalar_lea.vmem %s21, %s2826
      $region116: #{joint_estimator_forward.3} parent=111 // pred_fallthru
        _
    $region112: #{joint_estimator_forward.3} parent=5 // pred_fallthru
      _
  $region6: #{joint_estimator_forward.3} parent=0 // loop_footer
    %s31 = sadd.s32 1, %s27
  $region7: #{joint_estimator_forward.3} parent=0 // loop_footer_branch
    %26 = sbr.rel target = $region3
  $region8: #{joint_estimator_forward.3} parent=0 // loop_exit
    _

// kernel: joint_estimator_forward.4
$region0: #{joint_estimator_forward.4}
  #allocation0 [shape = 'u32[]', space=smem, size = 0x4, offset = 0x4, fixed_abs, tag = 'smem constant byte address 0x4 - core index']
  #allocation1 [shape = 'u32[144,128]{1,0:T(1,128)}', space=vmem, size = 0x12000, scoped, tag = 'internal scratch']
  %s0 = inlined_call_operand.vmem [shape: f32[2,16,64], index: 0, kind: input, shape index: {}]
  %s1 = inlined_call_operand.vmem [shape: bf16[4,64,16], index: 1, kind: input, shape index: {}]
  %s2 = inlined_call_operand.vmem [shape: f32[4,1,16], index: 2, kind: input, shape index: {}]
  %s3 = inlined_call_operand.vmem [shape: bf16[4,64,16], index: 3, kind: input, shape index: {}]
  %s4 = inlined_call_operand.vmem [shape: f32[4,1,16], index: 4, kind: input, shape index: {}]
  %s5 = inlined_call_operand.vmem [shape: bf16[4,64,16], index: 5, kind: input, shape index: {}]
  %s6 = inlined_call_operand.vmem [shape: f32[4,1,16], index: 6, kind: input, shape index: {}]
  %s7 = inlined_call_operand.vmem [shape: bf16[4,16,64], index: 7, kind: input, shape index: {}]
  %s8 = inlined_call_operand.vmem [shape: f32[1,64], index: 8, kind: input, shape index: {}]
  %s9 = inlined_call_operand.vmem [shape: f32[1,64], index: 9, kind: input, shape index: {}]
  %s10 = inlined_call_operand.vmem [shape: f32[1,64], index: 10, kind: input, shape index: {}]
  %s11 = inlined_call_operand.vmem [shape: bf16[64,256], index: 11, kind: input, shape index: {}]
  %s12 = inlined_call_operand.vmem [shape: f32[1,256], index: 12, kind: input, shape index: {}]
  %s13 = inlined_call_operand.vmem [shape: bf16[256,64], index: 13, kind: input, shape index: {}]
  %s14 = inlined_call_operand.vmem [shape: f32[1,64], index: 14, kind: input, shape index: {}]
  %s15 = inlined_call_operand.vmem [shape: f32[1,64], index: 15, kind: input, shape index: {}]
  %s16 = inlined_call_operand.vmem [shape: f32[1,64], index: 16, kind: input, shape index: {}]
  %s17 = inlined_call_operand.vmem [shape: f32[2,16,64], index: 17, kind: output, shape index: {}]
  %s18 = sld [smem:[#allocation0]]
  $region101: #{joint_estimator_forward.4} parent=0
    _
  %s20 = ssub.s32 1, %s18
  %s21 = scalar_select 0, %s20, %s18
  loop: start=0, step=1, limit=4
  $region2: #{joint_estimator_forward.4} parent=0 // loop_pre_header
    _
  $region3: #{joint_estimator_forward.4} parent=0 // loop_header
    %s23 = sphi 0, %s27
    %p24 = scmp.ge.s32.totalorder %s23, 4
    %s33 = sphi 0, %s35
    %s36 = sphi 0, %s33
    %s37 = sphi 0, %s36
    %s53 = sphi 0, %s37
    %s57 = sphi 0, %s57
    %s59 = sphi 0, %s57
    %s60 = sphi 0, %s59
    %s74 = sphi 0, %s60
    %s78 = sphi 0, %s78
    %s80 = sphi 0, %s78
    %s81 = sphi 0, %s80
    %s95 = sphi 0, %s81
    %s99 = sphi 0, %s99
    %s101 = sphi 0, %s99
    %s102 = sphi 0, %s101
    %s116 = sphi 0, %s102
    %s120 = sphi 0, %s120
    %s122 = sphi 0, %s120
    %s123 = sphi 0, %s122
    %s137 = sphi 0, %s123
    %s141 = sphi 0, %s141
    %s143 = sphi 0, %s141
    %s144 = sphi 0, %s143
    %s158 = sphi 0, %s144
    %s162 = sphi 0, %s162
    %s164 = sphi 0, %s162
    %s165 = sphi 0, %s164
    %s179 = sphi 0, %s165
    %s183 = sphi 0, %s183
    %s185 = sphi 0, %s183
    %s186 = sphi 0, %s185
    %s200 = sphi 0, %s186
    %s204 = sphi 0, %s204
    %s206 = sphi 0, %s204
    %s207 = sphi 0, %s206
    %s221 = sphi 0, %s207
    %s225 = sphi 0, %s225
    %s227 = sphi 0, %s225
    %s228 = sphi 0, %s227
    %s242 = sphi 0, %s228
    %s246 = sphi 0, %s246
    %s248 = sphi 0, %s246
    %s249 = sphi 0, %s248
    %s263 = sphi 0, %s249
    %s267 = sphi 0, %s267
    %s269 = sphi 0, %s267
    %s270 = sphi 0, %s269
    %s284 = sphi 0, %s270
    %s288 = sphi 0, %s288
    %s290 = sphi 0, %s288
    %s291 = sphi 0, %s290
    %s305 = sphi 0, %s291
    %s309 = sphi 0, %s309
    %s311 = sphi 0, %s309
    %s312 = sphi 0, %s311
    %s326 = sphi 0, %s312
    %s330 = sphi 0, %s330
    %s332 = sphi 0, %s330
    %s333 = sphi 0, %s332
    %s347 = sphi 0, %s333
    %s351 = sphi 0, %s351
    %s353 = sphi 0, %s351
    %s354 = sphi 0, %s353
    %s368 = sphi 0, %s354
    %s372 = sphi 0, %s372
    %s374 = sphi 0, %s372
    %s375 = sphi 0, %s374
    %s389 = sphi 0, %s375
    %s395 = sphi 0, %s397
    %s398 = sphi 0, %s395
    %s399 = sphi 0, %s398
    %s415 = sphi 0, %s399
  $region4: #{joint_estimator_forward.4} parent=0 // loop_header_branch
    %26 = sbr.rel (%p24) target = $region8
  $region5: #{joint_estimator_forward.4} parent=0 // loop_body
    %s28 = ssub.s32 %s23, 1
    %s29 = ssub.s32 %s23, 2
    %s30 = sadd.s32 %s23, 1
    %s31 = ssub.s32 %s23, %s30
    %p32 = scmp.eq.s32.totalorder %s31, 0
    %s34 = sadd.s32 %s33, 1
    %s35 = scalar_select %p32, %s33, %s34
    %p38 = pneg %p32
    %p39 = scmp.eq.s32.totalorder %s23, 1
    %p40 = por %p38, %p39
    %p41 = scmp.ne.s32.totalorder %s33, %s36
    %p42 = scmp.eq.s32.totalorder %s23, 0
    %p43 = por %p41, %p42
    %p44 = scmp.ne.s32.totalorder %s33, %s36
    %p45 = scmp.eq.s32.totalorder %s28, 1
    %p46 = por %p44, %p45
    %p47 = scmp.ne.s32.totalorder %s36, %s37
    %p48 = scmp.eq.s32.totalorder %s28, 0
    %p49 = por %p47, %p48
    %p50 = scmp.ne.s32.totalorder %s36, %s37
    %p51 = scmp.eq.s32.totalorder %s29, 1
    %p52 = por %p50, %p51
    %p54 = scmp.ne.s32.totalorder %s37, %s53
    %p55 = scmp.eq.s32.totalorder %s29, 0
    %p56 = por %p54, %p55
    %s58 = sadd.s32 %s57, 1
    %p61 = scmp.eq.s32.totalorder %s23, 1
    %p62 = scmp.ne.s32.totalorder %s57, %s59
    %p63 = scmp.eq.s32.totalorder %s23, 0
    %p64 = por %p62, %p63
    %p65 = scmp.ne.s32.totalorder %s57, %s59
    %p66 = scmp.eq.s32.totalorder %s28, 1
    %p67 = por %p65, %p66
    %p68 = scmp.ne.s32.totalorder %s59, %s60
    %p69 = scmp.eq.s32.totalorder %s28, 0
    %p70 = por %p68, %p69
    %p71 = scmp.ne.s32.totalorder %s59, %s60
    %p72 = scmp.eq.s32.totalorder %s29, 1
    %p73 = por %p71, %p72
    %p75 = scmp.ne.s32.totalorder %s60, %s74
    %p76 = scmp.eq.s32.totalorder %s29, 0
    %p77 = por %p75, %p76
    %s79 = sadd.s32 %s78, 1
    %p82 = scmp.eq.s32.totalorder %s23, 1
    %p83 = scmp.ne.s32.totalorder %s78, %s80
    %p84 = scmp.eq.s32.totalorder %s23, 0
    %p85 = por %p83, %p84
    %p86 = scmp.ne.s32.totalorder %s78, %s80
    %p87 = scmp.eq.s32.totalorder %s28, 1
    %p88 = por %p86, %p87
    %p89 = scmp.ne.s32.totalorder %s80, %s81
    %p90 = scmp.eq.s32.totalorder %s28, 0
    %p91 = por %p89, %p90
    %p92 = scmp.ne.s32.totalorder %s80, %s81
    %p93 = scmp.eq.s32.totalorder %s29, 1
    %p94 = por %p92, %p93
    %p96 = scmp.ne.s32.totalorder %s81, %s95
    %p97 = scmp.eq.s32.totalorder %s29, 0
    %p98 = por %p96, %p97
    %s100 = sadd.s32 %s99, 1
    %p103 = scmp.eq.s32.totalorder %s23, 1
    %p104 = scmp.ne.s32.totalorder %s99, %s101
    %p105 = scmp.eq.s32.totalorder %s23, 0
    %p106 = por %p104, %p105
    %p107 = scmp.ne.s32.totalorder %s99, %s101
    %p108 = scmp.eq.s32.totalorder %s28, 1
    %p109 = por %p107, %p108
    %p110 = scmp.ne.s32.totalorder %s101, %s102
    %p111 = scmp.eq.s32.totalorder %s28, 0
    %p112 = por %p110, %p111
    %p113 = scmp.ne.s32.totalorder %s101, %s102
    %p114 = scmp.eq.s32.totalorder %s29, 1
    %p115 = por %p113, %p114
    %p117 = scmp.ne.s32.totalorder %s102, %s116
    %p118 = scmp.eq.s32.totalorder %s29, 0
    %p119 = por %p117, %p118
    %s121 = sadd.s32 %s120, 1
    %p124 = scmp.eq.s32.totalorder %s23, 1
    %p125 = scmp.ne.s32.totalorder %s120, %s122
    %p126 = scmp.eq.s32.totalorder %s23, 0
    %p127 = por %p125, %p126
    %p128 = scmp.ne.s32.totalorder %s120, %s122
    %p129 = scmp.eq.s32.totalorder %s28, 1
    %p130 = por %p128, %p129
    %p131 = scmp.ne.s32.totalorder %s122, %s123
    %p132 = scmp.eq.s32.totalorder %s28, 0
    %p133 = por %p131, %p132
    %p134 = scmp.ne.s32.totalorder %s122, %s123
    %p135 = scmp.eq.s32.totalorder %s29, 1
    %p136 = por %p134, %p135
    %p138 = scmp.ne.s32.totalorder %s123, %s137
    %p139 = scmp.eq.s32.totalorder %s29, 0
    %p140 = por %p138, %p139
    %s142 = sadd.s32 %s141, 1
    %p145 = scmp.eq.s32.totalorder %s23, 1
    %p146 = scmp.ne.s32.totalorder %s141, %s143
    %p147 = scmp.eq.s32.totalorder %s23, 0
    %p148 = por %p146, %p147
    %p149 = scmp.ne.s32.totalorder %s141, %s143
    %p150 = scmp.eq.s32.totalorder %s28, 1
    %p151 = por %p149, %p150
    %p152 = scmp.ne.s32.totalorder %s143, %s144
    %p153 = scmp.eq.s32.totalorder %s28, 0
    %p154 = por %p152, %p153
    %p155 = scmp.ne.s32.totalorder %s143, %s144
    %p156 = scmp.eq.s32.totalorder %s29, 1
    %p157 = por %p155, %p156
    %p159 = scmp.ne.s32.totalorder %s144, %s158
    %p160 = scmp.eq.s32.totalorder %s29, 0
    %p161 = por %p159, %p160
    %s163 = sadd.s32 %s162, 1
    %p166 = scmp.eq.s32.totalorder %s23, 1
    %p167 = scmp.ne.s32.totalorder %s162, %s164
    %p168 = scmp.eq.s32.totalorder %s23, 0
    %p169 = por %p167, %p168
    %p170 = scmp.ne.s32.totalorder %s162, %s164
    %p171 = scmp.eq.s32.totalorder %s28, 1
    %p172 = por %p170, %p171
    %p173 = scmp.ne.s32.totalorder %s164, %s165
    %p174 = scmp.eq.s32.totalorder %s28, 0
    %p175 = por %p173, %p174
    %p176 = scmp.ne.s32.totalorder %s164, %s165
    %p177 = scmp.eq.s32.totalorder %s29, 1
    %p178 = por %p176, %p177
    %p180 = scmp.ne.s32.totalorder %s165, %s179
    %p181 = scmp.eq.s32.totalorder %s29, 0
    %p182 = por %p180, %p181
    %s184 = sadd.s32 %s183, 1
    %p187 = scmp.eq.s32.totalorder %s23, 1
    %p188 = scmp.ne.s32.totalorder %s183, %s185
    %p189 = scmp.eq.s32.totalorder %s23, 0
    %p190 = por %p188, %p189
    %p191 = scmp.ne.s32.totalorder %s183, %s185
    %p192 = scmp.eq.s32.totalorder %s28, 1
    %p193 = por %p191, %p192
    %p194 = scmp.ne.s32.totalorder %s185, %s186
    %p195 = scmp.eq.s32.totalorder %s28, 0
    %p196 = por %p194, %p195
    %p197 = scmp.ne.s32.totalorder %s185, %s186
    %p198 = scmp.eq.s32.totalorder %s29, 1
    %p199 = por %p197, %p198
    %p201 = scmp.ne.s32.totalorder %s186, %s200
    %p202 = scmp.eq.s32.totalorder %s29, 0
    %p203 = por %p201, %p202
    %s205 = sadd.s32 %s204, 1
    %p208 = scmp.eq.s32.totalorder %s23, 1
    %p209 = scmp.ne.s32.totalorder %s204, %s206
    %p210 = scmp.eq.s32.totalorder %s23, 0
    %p211 = por %p209, %p210
    %p212 = scmp.ne.s32.totalorder %s204, %s206
    %p213 = scmp.eq.s32.totalorder %s28, 1
    %p214 = por %p212, %p213
    %p215 = scmp.ne.s32.totalorder %s206, %s207
    %p216 = scmp.eq.s32.totalorder %s28, 0
    %p217 = por %p215, %p216
    %p218 = scmp.ne.s32.totalorder %s206, %s207
    %p219 = scmp.eq.s32.totalorder %s29, 1
    %p220 = por %p218, %p219
    %p222 = scmp.ne.s32.totalorder %s207, %s221
    %p223 = scmp.eq.s32.totalorder %s29, 0
    %p224 = por %p222, %p223
    %s226 = sadd.s32 %s225, 1
    %p229 = scmp.eq.s32.totalorder %s23, 1
    %p230 = scmp.ne.s32.totalorder %s225, %s227
    %p231 = scmp.eq.s32.totalorder %s23, 0
    %p232 = por %p230, %p231
    %p233 = scmp.ne.s32.totalorder %s225, %s227
    %p234 = scmp.eq.s32.totalorder %s28, 1
    %p235 = por %p233, %p234
    %p236 = scmp.ne.s32.totalorder %s227, %s228
    %p237 = scmp.eq.s32.totalorder %s28, 0
    %p238 = por %p236, %p237
    %p239 = scmp.ne.s32.totalorder %s227, %s228
    %p240 = scmp.eq.s32.totalorder %s29, 1
    %p241 = por %p239, %p240
    %p243 = scmp.ne.s32.totalorder %s228, %s242
    %p244 = scmp.eq.s32.totalorder %s29, 0
    %p245 = por %p243, %p244
    %s247 = sadd.s32 %s246, 1
    %p250 = scmp.eq.s32.totalorder %s23, 1
    %p251 = scmp.ne.s32.totalorder %s246, %s248
    %p252 = scmp.eq.s32.totalorder %s23, 0
    %p253 = por %p251, %p252
    %p254 = scmp.ne.s32.totalorder %s246, %s248
    %p255 = scmp.eq.s32.totalorder %s28, 1
    %p256 = por %p254, %p255
    %p257 = scmp.ne.s32.totalorder %s248, %s249
    %p258 = scmp.eq.s32.totalorder %s28, 0
    %p259 = por %p257, %p258
    %p260 = scmp.ne.s32.totalorder %s248, %s249
    %p261 = scmp.eq.s32.totalorder %s29, 1
    %p262 = por %p260, %p261
    %p264 = scmp.ne.s32.totalorder %s249, %s263
    %p265 = scmp.eq.s32.totalorder %s29, 0
    %p266 = por %p264, %p265
    %s268 = sadd.s32 %s267, 1
    %p271 = scmp.eq.s32.totalorder %s23, 1
    %p272 = scmp.ne.s32.totalorder %s267, %s269
    %p273 = scmp.eq.s32.totalorder %s23, 0
    %p274 = por %p272, %p273
    %p275 = scmp.ne.s32.totalorder %s267, %s269
    %p276 = scmp.eq.s32.totalorder %s28, 1
    %p277 = por %p275, %p276
    %p278 = scmp.ne.s32.totalorder %s269, %s270
    %p279 = scmp.eq.s32.totalorder %s28, 0
    %p280 = por %p278, %p279
    %p281 = scmp.ne.s32.totalorder %s269, %s270
    %p282 = scmp.eq.s32.totalorder %s29, 1
    %p283 = por %p281, %p282
    %p285 = scmp.ne.s32.totalorder %s270, %s284
    %p286 = scmp.eq.s32.totalorder %s29, 0
    %p287 = por %p285, %p286
    %s289 = sadd.s32 %s288, 1
    %p292 = scmp.eq.s32.totalorder %s23, 1
    %p293 = scmp.ne.s32.totalorder %s288, %s290
    %p294 = scmp.eq.s32.totalorder %s23, 0
    %p295 = por %p293, %p294
    %p296 = scmp.ne.s32.totalorder %s288, %s290
    %p297 = scmp.eq.s32.totalorder %s28, 1
    %p298 = por %p296, %p297
    %p299 = scmp.ne.s32.totalorder %s290, %s291
    %p300 = scmp.eq.s32.totalorder %s28, 0
    %p301 = por %p299, %p300
    %p302 = scmp.ne.s32.totalorder %s290, %s291
    %p303 = scmp.eq.s32.totalorder %s29, 1
    %p304 = por %p302, %p303
    %p306 = scmp.ne.s32.totalorder %s291, %s305
    %p307 = scmp.eq.s32.totalorder %s29, 0
    %p308 = por %p306, %p307
    %s310 = sadd.s32 %s309, 1
    %p313 = scmp.eq.s32.totalorder %s23, 1
    %p314 = scmp.ne.s32.totalorder %s309, %s311
    %p315 = scmp.eq.s32.totalorder %s23, 0
    %p316 = por %p314, %p315
    %p317 = scmp.ne.s32.totalorder %s309, %s311
    %p318 = scmp.eq.s32.totalorder %s28, 1
    %p319 = por %p317, %p318
    %p320 = scmp.ne.s32.totalorder %s311, %s312
    %p321 = scmp.eq.s32.totalorder %s28, 0
    %p322 = por %p320, %p321
    %p323 = scmp.ne.s32.totalorder %s311, %s312
    %p324 = scmp.eq.s32.totalorder %s29, 1
    %p325 = por %p323, %p324
    %p327 = scmp.ne.s32.totalorder %s312, %s326
    %p328 = scmp.eq.s32.totalorder %s29, 0
    %p329 = por %p327, %p328
    %s331 = sadd.s32 %s330, 1
    %p334 = scmp.eq.s32.totalorder %s23, 1
    %p335 = scmp.ne.s32.totalorder %s330, %s332
    %p336 = scmp.eq.s32.totalorder %s23, 0
    %p337 = por %p335, %p336
    %p338 = scmp.ne.s32.totalorder %s330, %s332
    %p339 = scmp.eq.s32.totalorder %s28, 1
    %p340 = por %p338, %p339
    %p341 = scmp.ne.s32.totalorder %s332, %s333
    %p342 = scmp.eq.s32.totalorder %s28, 0
    %p343 = por %p341, %p342
    %p344 = scmp.ne.s32.totalorder %s332, %s333
    %p345 = scmp.eq.s32.totalorder %s29, 1
    %p346 = por %p344, %p345
    %p348 = scmp.ne.s32.totalorder %s333, %s347
    %p349 = scmp.eq.s32.totalorder %s29, 0
    %p350 = por %p348, %p349
    %s352 = sadd.s32 %s351, 1
    %p355 = scmp.eq.s32.totalorder %s23, 1
    %p356 = scmp.ne.s32.totalorder %s351, %s353
    %p357 = scmp.eq.s32.totalorder %s23, 0
    %p358 = por %p356, %p357
    %p359 = scmp.ne.s32.totalorder %s351, %s353
    %p360 = scmp.eq.s32.totalorder %s28, 1
    %p361 = por %p359, %p360
    %p362 = scmp.ne.s32.totalorder %s353, %s354
    %p363 = scmp.eq.s32.totalorder %s28, 0
    %p364 = por %p362, %p363
    %p365 = scmp.ne.s32.totalorder %s353, %s354
    %p366 = scmp.eq.s32.totalorder %s29, 1
    %p367 = por %p365, %p366
    %p369 = scmp.ne.s32.totalorder %s354, %s368
    %p370 = scmp.eq.s32.totalorder %s29, 0
    %p371 = por %p369, %p370
    %s373 = sadd.s32 %s372, 1
    %p376 = scmp.eq.s32.totalorder %s23, 1
    %p377 = scmp.ne.s32.totalorder %s372, %s374
    %p378 = scmp.eq.s32.totalorder %s23, 0
    %p379 = por %p377, %p378
    %p380 = scmp.ne.s32.totalorder %s372, %s374
    %p381 = scmp.eq.s32.totalorder %s28, 1
    %p382 = por %p380, %p381
    %p383 = scmp.ne.s32.totalorder %s374, %s375
    %p384 = scmp.eq.s32.totalorder %s28, 0
    %p385 = por %p383, %p384
    %p386 = scmp.ne.s32.totalorder %s374, %s375
    %p387 = scmp.eq.s32.totalorder %s29, 1
    %p388 = por %p386, %p387
    %p390 = scmp.ne.s32.totalorder %s375, %s389
    %p391 = scmp.eq.s32.totalorder %s29, 0
    %p392 = por %p390, %p391
    %s393 = ssub.s32 %s23, %s30
    %p394 = scmp.eq.s32.totalorder %s393, 0
    %s396 = sadd.s32 %s395, 1
    %s397 = scalar_select %p394, %s395, %s396
    %p400 = pneg %p394
    %p401 = scmp.eq.s32.totalorder %s23, 1
    %p402 = por %p400, %p401
    %p403 = scmp.ne.s32.totalorder %s395, %s398
    %p404 = scmp.eq.s32.totalorder %s23, 0
    %p405 = por %p403, %p404
    %p406 = scmp.ne.s32.totalorder %s395, %s398
    %p407 = scmp.eq.s32.totalorder %s28, 1
    %p408 = por %p406, %p407
    %p409 = scmp.ne.s32.totalorder %s398, %s399
    %p410 = scmp.eq.s32.totalorder %s28, 0
    %p411 = por %p409, %p410
    %p412 = scmp.ne.s32.totalorder %s398, %s399
    %p413 = scmp.eq.s32.totalorder %s29, 1
    %p414 = por %p412, %p413
    %p416 = scmp.ne.s32.totalorder %s399, %s415
    %p417 = scmp.eq.s32.totalorder %s29, 0
    %p418 = por %p416, %p417
    %p419 = scmp.le.s32.totalorder 1, %s23
    %p420 = scmp.lt.s32.totalorder %s23, 3
    %p421 = pnand %p419, %p420
    %p422 = pneg %p421
    // Predicated region
    $region9: #{joint_estimator_forward.4} parent=5 // pred_check
      _
    $region10: #{joint_estimator_forward.4} parent=5 // pred_check_branch
      %424 = sbr.rel (%p421) target = $region12
    $region11: #{joint_estimator_forward.4} parent=5 // pred_region
      %s425 = ssub.s32 %s23, 1
      // Predicated region
      $region13: #{joint_estimator_forward.4} parent=11 // pred_check
        %p426 = pneg %p70
      $region14: #{joint_estimator_forward.4} parent=11 // pred_check_branch
        %428 = sbr.rel (%p426) target = $region16
      $region15: #{joint_estimator_forward.4} parent=11 // pred_region
        _
      $region16: #{joint_estimator_forward.4} parent=11 // pred_fallthru
        _
      // Predicated region
      $region17: #{joint_estimator_forward.4} parent=11 // pred_check
        %p429 = pneg %p91
      $region18: #{joint_estimator_forward.4} parent=11 // pred_check_branch
        %431 = sbr.rel (%p429) target = $region20
      $region19: #{joint_estimator_forward.4} parent=11 // pred_region
        _
      $region20: #{joint_estimator_forward.4} parent=11 // pred_fallthru
        _
      // Predicated region
      $region21: #{joint_estimator_forward.4} parent=11 // pred_check
        %p432 = pneg %p112
      $region22: #{joint_estimator_forward.4} parent=11 // pred_check_branch
        %434 = sbr.rel (%p432) target = $region24
      $region23: #{joint_estimator_forward.4} parent=11 // pred_region
        _
      $region24: #{joint_estimator_forward.4} parent=11 // pred_fallthru
        _
      // Predicated region
      $region25: #{joint_estimator_forward.4} parent=11 // pred_check
        %p435 = pneg %p133
      $region26: #{joint_estimator_forward.4} parent=11 // pred_check_branch
        %437 = sbr.rel (%p435) target = $region28
      $region27: #{joint_estimator_forward.4} parent=11 // pred_region
        _
      $region28: #{joint_estimator_forward.4} parent=11 // pred_fallthru
        _
      // Predicated region
      $region29: #{joint_estimator_forward.4} parent=11 // pred_check
        %p438 = pneg %p154
      $region30: #{joint_estimator_forward.4} parent=11 // pred_check_branch
        %440 = sbr.rel (%p438) target = $region32
      $region31: #{joint_estimator_forward.4} parent=11 // pred_region
        _
      $region32: #{joint_estimator_forward.4} parent=11 // pred_fallthru
        _
      // Predicated region
      $region33: #{joint_estimator_forward.4} parent=11 // pred_check
        %p441 = pneg %p175
      $region34: #{joint_estimator_forward.4} parent=11 // pred_check_branch
        %443 = sbr.rel (%p441) target = $region36
      $region35: #{joint_estimator_forward.4} parent=11 // pred_region
        _
      $region36: #{joint_estimator_forward.4} parent=11 // pred_fallthru
        _
      // Predicated region
      $region37: #{joint_estimator_forward.4} parent=11 // pred_check
        %p444 = pneg %p196
      $region38: #{joint_estimator_forward.4} parent=11 // pred_check_branch
        %446 = sbr.rel (%p444) target = $region40
      $region39: #{joint_estimator_forward.4} parent=11 // pred_region
        _
      $region40: #{joint_estimator_forward.4} parent=11 // pred_fallthru
        _
      // Predicated region
      $region41: #{joint_estimator_forward.4} parent=11 // pred_check
        %p447 = pneg %p217
      $region42: #{joint_estimator_forward.4} parent=11 // pred_check_branch
        %449 = sbr.rel (%p447) target = $region44
      $region43: #{joint_estimator_forward.4} parent=11 // pred_region
        _
      $region44: #{joint_estimator_forward.4} parent=11 // pred_fallthru
        _
      // Predicated region
      $region45: #{joint_estimator_forward.4} parent=11 // pred_check
        %p450 = pneg %p238
      $region46: #{joint_estimator_forward.4} parent=11 // pred_check_branch
        %452 = sbr.rel (%p450) target = $region48
      $region47: #{joint_estimator_forward.4} parent=11 // pred_region
        _
      $region48: #{joint_estimator_forward.4} parent=11 // pred_fallthru
        _
      // Predicated region
      $region49: #{joint_estimator_forward.4} parent=11 // pred_check
        %p453 = pneg %p259
      $region50: #{joint_estimator_forward.4} parent=11 // pred_check_branch
        %455 = sbr.rel (%p453) target = $region52
      $region51: #{joint_estimator_forward.4} parent=11 // pred_region
        _
      $region52: #{joint_estimator_forward.4} parent=11 // pred_fallthru
        _
      // Predicated region
      $region53: #{joint_estimator_forward.4} parent=11 // pred_check
        %p456 = pneg %p280
      $region54: #{joint_estimator_forward.4} parent=11 // pred_check_branch
        %458 = sbr.rel (%p456) target = $region56
      $region55: #{joint_estimator_forward.4} parent=11 // pred_region
        _
      $region56: #{joint_estimator_forward.4} parent=11 // pred_fallthru
        _
      // Predicated region
      $region57: #{joint_estimator_forward.4} parent=11 // pred_check
        %p459 = pneg %p301
      $region58: #{joint_estimator_forward.4} parent=11 // pred_check_branch
        %461 = sbr.rel (%p459) target = $region60
      $region59: #{joint_estimator_forward.4} parent=11 // pred_region
        _
      $region60: #{joint_estimator_forward.4} parent=11 // pred_fallthru
        _
      // Predicated region
      $region61: #{joint_estimator_forward.4} parent=11 // pred_check
        %p462 = pneg %p322
      $region62: #{joint_estimator_forward.4} parent=11 // pred_check_branch
        %464 = sbr.rel (%p462) target = $region64
      $region63: #{joint_estimator_forward.4} parent=11 // pred_region
        _
      $region64: #{joint_estimator_forward.4} parent=11 // pred_fallthru
        _
      // Predicated region
      $region65: #{joint_estimator_forward.4} parent=11 // pred_check
        %p465 = pneg %p343
      $region66: #{joint_estimator_forward.4} parent=11 // pred_check_branch
        %467 = sbr.rel (%p465) target = $region68
      $region67: #{joint_estimator_forward.4} parent=11 // pred_region
        _
      $region68: #{joint_estimator_forward.4} parent=11 // pred_fallthru
        _
      // Predicated region
      $region69: #{joint_estimator_forward.4} parent=11 // pred_check
        %p468 = pneg %p364
      $region70: #{joint_estimator_forward.4} parent=11 // pred_check_branch
        %470 = sbr.rel (%p468) target = $region72
      $region71: #{joint_estimator_forward.4} parent=11 // pred_region
        _
      $region72: #{joint_estimator_forward.4} parent=11 // pred_fallthru
        _
      // Predicated region
      $region73: #{joint_estimator_forward.4} parent=11 // pred_check
        %p471 = pneg %p385
      $region74: #{joint_estimator_forward.4} parent=11 // pred_check_branch
        %473 = sbr.rel (%p471) target = $region76
      $region75: #{joint_estimator_forward.4} parent=11 // pred_region
        _
      $region76: #{joint_estimator_forward.4} parent=11 // pred_fallthru
        _
    $region12: #{joint_estimator_forward.4} parent=5 // pred_fallthru
      _
    %p474 = scmp.lt.s32.totalorder %s23, 2
    // Predicated region
    $region77: #{joint_estimator_forward.4} parent=5 // pred_check
      %p475 = pneg %p474
    $region78: #{joint_estimator_forward.4} parent=5 // pred_check_branch
      %477 = sbr.rel (%p475) target = $region80
    $region79: #{joint_estimator_forward.4} parent=5 // pred_region
      // Predicated region
      $region81: #{joint_estimator_forward.4} parent=79 // pred_check
        %p478 = pneg %p43
      $region82: #{joint_estimator_forward.4} parent=79 // pred_check_branch
        %480 = sbr.rel (%p478) target = $region84
      $region83: #{joint_estimator_forward.4} parent=79 // pred_region
        %p481 = scmp.lt.s32.totalorder %s23, 1
        %s482 = scalar_select %p481, %s23, 1
        %s483 = smul.addr %s482, 2
        %s484 = smul.addr %s483, 8
        %s485 = scalar_lea.vmem %s0, %s484
      $region84: #{joint_estimator_forward.4} parent=79 // pred_fallthru
        _
    $region80: #{joint_estimator_forward.4} parent=5 // pred_fallthru
      _
    %p486 = scmp.le.s32.totalorder 1, %s23
    %p487 = scmp.lt.s32.totalorder %s23, 3
    %p488 = pnand %p486, %p487
    %p489 = pneg %p488
    // Predicated region
    $region85: #{joint_estimator_forward.4} parent=5 // pred_check
      _
    $region86: #{joint_estimator_forward.4} parent=5 // pred_check_branch
      %491 = sbr.rel (%p488) target = $region88
    $region87: #{joint_estimator_forward.4} parent=5 // pred_region
      %s492 = ssub.s32 %s23, 1
      %p493 = scmp.lt.s32.totalorder %s28, 1
      %s494 = scalar_select %p493, %s28, 1
      %s495 = smul.addr %s494, 2
      %s496 = smul.addr %s495, 8
      %s497 = scalar_lea.vmem %s0, %s496
      %p498 = pneg %p49
      %p499 = pneg %p46
      %p500 = pneg %p70
      %p501 = pneg %p67
      %p502 = pneg %p91
      %p503 = pneg %p88
      %p504 = pneg %p112
      %p505 = pneg %p109
      %p506 = pneg %p133
      %p507 = pneg %p130
      %p508 = pneg %p154
      %p509 = pneg %p151
      %p510 = pneg %p175
      %p511 = pneg %p172
      %p512 = pneg %p196
      %p513 = pneg %p193
      %p514 = pneg %p217
      %p515 = pneg %p214
      %p516 = pneg %p238
      %p517 = pneg %p235
      %p518 = pneg %p259
      %p519 = pneg %p256
      %p520 = pneg %p280
      %p521 = pneg %p277
      %p522 = pneg %p301
      %p523 = pneg %p298
      %p524 = pneg %p322
      %p525 = pneg %p319
      %p526 = pneg %p343
      %p527 = pneg %p340
      %p528 = pneg %p364
      %p529 = pneg %p361
      %p530 = pneg %p385
      %p531 = pneg %p382
      %p532 = pneg %p411
      %p533 = pneg %p408
      %p534 = scmp.lt.s32.totalorder %s28, 1
      %s535 = scalar_select %p534, %s28, 1
      %s536 = smul.addr %s535, 2
      %s537 = smul.addr %s536, 8
      %s538 = scalar_lea.vmem %s17, %s537
      %p539 = scmp.lt.s32.totalorder %s28, 1
      %s540 = scalar_select %p539, %s28, 1
      %s541 = smul.addr %s540, 2
      %s542 = smul.addr %s541, 8
      %s543 = scalar_lea.vmem %s0, %s542
      %p544 = scmp.lt.s32.totalorder %s28, 1
      %s545 = scalar_select %p544, %s28, 1
      %s546 = smul.addr %s545, 2
      %s547 = smul.addr %s546, 8
      %s548 = scalar_lea.vmem %s17, %s547
      %v550 = vld [vmem:[%s1] sm:$0xf]
      %v551 = vld [vmem:[%s1 + $0x4] sm:$0xf]
      %v552 = vld [vmem:[%s1 + $0x8] sm:$0xf]
      %v553 = vld [vmem:[%s1 + $0xc] sm:$0xf]
      %v554 = vld [vmem:[%s1 + $0x10] sm:$0xf]
      %v555 = vld [vmem:[%s1 + $0x14] sm:$0xf]
      %v556 = vld [vmem:[%s1 + $0x18] sm:$0xf]
      %v557 = vld [vmem:[%s1 + $0x1c] sm:$0xf]
      %v558 = vld [vmem:[%s1 + $0x20] sm:$0xf]
      %v559 = vld [vmem:[%s1 + $0x24] sm:$0xf]
      %v560 = vld [vmem:[%s1 + $0x28] sm:$0xf]
      %v561 = vld [vmem:[%s1 + $0x2c] sm:$0xf]
      %v562 = vld [vmem:[%s1 + $0x30] sm:$0xf]
      %v563 = vld [vmem:[%s1 + $0x34] sm:$0xf]
      %v564 = vld [vmem:[%s1 + $0x38] sm:$0xf]
      %v565 = vld [vmem:[%s1 + $0x3c] sm:$0xf]
      %v566 = vld [vmem:[%s1 + $0x40] sm:$0xf]
      %v567 = vld [vmem:[%s1 + $0x44] sm:$0xf]
      %v568 = vld [vmem:[%s1 + $0x48] sm:$0xf]
      %v569 = vld [vmem:[%s1 + $0x4c] sm:$0xf]
      %v570 = vld [vmem:[%s1 + $0x50] sm:$0xf]
      %v571 = vld [vmem:[%s1 + $0x54] sm:$0xf]
      %v572 = vld [vmem:[%s1 + $0x58] sm:$0xf]
      %v573 = vld [vmem:[%s1 + $0x5c] sm:$0xf]
      %v574 = vld [vmem:[%s1 + $0x60] sm:$0xf]
      %v575 = vld [vmem:[%s1 + $0x64] sm:$0xf]
      %v576 = vld [vmem:[%s1 + $0x68] sm:$0xf]
      %v577 = vld [vmem:[%s1 + $0x6c] sm:$0xf]
      %v578 = vld [vmem:[%s1 + $0x70] sm:$0xf]
      %v579 = vld [vmem:[%s1 + $0x74] sm:$0xf]
      %v580 = vld [vmem:[%s1 + $0x78] sm:$0xf]
      %v581 = vld [vmem:[%s1 + $0x7c] sm:$0xf]
      %v582 = vld [vmem:[%s2] sm:$0x1]
      %v583 = vld [vmem:[%s2 + $0x1] sm:$0x1]
      %v584 = vld [vmem:[%s2 + $0x2] sm:$0x1]
      %v585 = vld [vmem:[%s2 + $0x3] sm:$0x1]
      %v586 = vld [vmem:[%s3] sm:$0xf]
      %v587 = vld [vmem:[%s3 + $0x4] sm:$0xf]
      %v588 = vld [vmem:[%s3 + $0x8] sm:$0xf]
      %v589 = vld [vmem:[%s3 + $0xc] sm:$0xf]
      %v590 = vld [vmem:[%s3 + $0x10] sm:$0xf]
      %v591 = vld [vmem:[%s3 + $0x14] sm:$0xf]
      %v592 = vld [vmem:[%s3 + $0x18] sm:$0xf]
      %v593 = vld [vmem:[%s3 + $0x1c] sm:$0xf]
      %v594 = vld [vmem:[%s3 + $0x20] sm:$0xf]
      %v595 = vld [vmem:[%s3 + $0x24] sm:$0xf]
      %v596 = vld [vmem:[%s3 + $0x28] sm:$0xf]
      %v597 = vld [vmem:[%s3 + $0x2c] sm:$0xf]
      %v598 = vld [vmem:[%s3 + $0x30] sm:$0xf]
      %v599 = vld [vmem:[%s3 + $0x34] sm:$0xf]
      %v600 = vld [vmem:[%s3 + $0x38] sm:$0xf]
      %v601 = vld [vmem:[%s3 + $0x3c] sm:$0xf]
      %v602 = vld [vmem:[%s3 + $0x40] sm:$0xf]
      %v603 = vld [vmem:[%s3 + $0x44] sm:$0xf]
      %v604 = vld [vmem:[%s3 + $0x48] sm:$0xf]
      %v605 = vld [vmem:[%s3 + $0x4c] sm:$0xf]
      %v606 = vld [vmem:[%s3 + $0x50] sm:$0xf]
      %v607 = vld [vmem:[%s3 + $0x54] sm:$0xf]
      %v608 = vld [vmem:[%s3 + $0x58] sm:$0xf]
      %v609 = vld [vmem:[%s3 + $0x5c] sm:$0xf]
      %v610 = vld [vmem:[%s3 + $0x60] sm:$0xf]
      %v611 = vld [vmem:[%s3 + $0x64] sm:$0xf]
      %v612 = vld [vmem:[%s3 + $0x68] sm:$0xf]
      %v613 = vld [vmem:[%s3 + $0x6c] sm:$0xf]
      %v614 = vld [vmem:[%s3 + $0x70] sm:$0xf]
      %v615 = vld [vmem:[%s3 + $0x74] sm:$0xf]
      %v616 = vld [vmem:[%s3 + $0x78] sm:$0xf]
      %v617 = vld [vmem:[%s3 + $0x7c] sm:$0xf]
      %v618 = vld [vmem:[%s4] sm:$0x1]
      %v619 = vld [vmem:[%s4 + $0x1] sm:$0x1]
      %v620 = vld [vmem:[%s4 + $0x2] sm:$0x1]
      %v621 = vld [vmem:[%s4 + $0x3] sm:$0x1]
      %v622 = vld [vmem:[%s5] sm:$0xf]
      %v623 = vld [vmem:[%s5 + $0x4] sm:$0xf]
      %v624 = vld [vmem:[%s5 + $0x8] sm:$0xf]
      %v625 = vld [vmem:[%s5 + $0xc] sm:$0xf]
      %v626 = vld [vmem:[%s5 + $0x10] sm:$0xf]
      %v627 = vld [vmem:[%s5 + $0x14] sm:$0xf]
      %v628 = vld [vmem:[%s5 + $0x18] sm:$0xf]
      %v629 = vld [vmem:[%s5 + $0x1c] sm:$0xf]
      %v630 = vld [vmem:[%s5 + $0x20] sm:$0xf]
      %v631 = vld [vmem:[%s5 + $0x24] sm:$0xf]
      %v632 = vld [vmem:[%s5 + $0x28] sm:$0xf]
      %v633 = vld [vmem:[%s5 + $0x2c] sm:$0xf]
      %v634 = vld [vmem:[%s5 + $0x30] sm:$0xf]
      %v635 = vld [vmem:[%s5 + $0x34] sm:$0xf]
      %v636 = vld [vmem:[%s5 + $0x38] sm:$0xf]
      %v637 = vld [vmem:[%s5 + $0x3c] sm:$0xf]
      %v638 = vld [vmem:[%s5 + $0x40] sm:$0xf]
      %v639 = vld [vmem:[%s5 + $0x44] sm:$0xf]
      %v640 = vld [vmem:[%s5 + $0x48] sm:$0xf]
      %v641 = vld [vmem:[%s5 + $0x4c] sm:$0xf]
      %v642 = vld [vmem:[%s5 + $0x50] sm:$0xf]
      %v643 = vld [vmem:[%s5 + $0x54] sm:$0xf]
      %v644 = vld [vmem:[%s5 + $0x58] sm:$0xf]
      %v645 = vld [vmem:[%s5 + $0x5c] sm:$0xf]
      %v646 = vld [vmem:[%s5 + $0x60] sm:$0xf]
      %v647 = vld [vmem:[%s5 + $0x64] sm:$0xf]
      %v648 = vld [vmem:[%s5 + $0x68] sm:$0xf]
      %v649 = vld [vmem:[%s5 + $0x6c] sm:$0xf]
      %v650 = vld [vmem:[%s5 + $0x70] sm:$0xf]
      %v651 = vld [vmem:[%s5 + $0x74] sm:$0xf]
      %v652 = vld [vmem:[%s5 + $0x78] sm:$0xf]
      %v653 = vld [vmem:[%s5 + $0x7c] sm:$0xf]
      %v654 = vld [vmem:[%s6] sm:$0x1]
      %v655 = vld [vmem:[%s6 + $0x1] sm:$0x1]
      %v656 = vld [vmem:[%s6 + $0x2] sm:$0x1]
      %v657 = vld [vmem:[%s6 + $0x3] sm:$0x1]
      %v658 = vld [vmem:[%s7] sm:$0xf]
      %v659 = vld [vmem:[%s7 + $0x4] sm:$0xf]
      %v660 = vld [vmem:[%s7 + $0x8] sm:$0xf]
      %v661 = vld [vmem:[%s7 + $0xc] sm:$0xf]
      %v662 = vld [vmem:[%s7 + $0x10] sm:$0xf]
      %v663 = vld [vmem:[%s7 + $0x14] sm:$0xf]
      %v664 = vld [vmem:[%s7 + $0x18] sm:$0xf]
      %v665 = vld [vmem:[%s7 + $0x1c] sm:$0xf]
      %v666 = vld [vmem:[%s8] sm:$0x1]
      %v667 = vld [vmem:[%s9] sm:$0x1]
      %v668 = vld [vmem:[%s10] sm:$0x1]
      %v669 = vld [vmem:[%s11] sm:$0xff]
      %v670 = vld [vmem:[%s11 + $0x8] sm:$0xff]
      %v671 = vld [vmem:[%s11 + $0x10] sm:$0xff]
      %v672 = vld [vmem:[%s11 + $0x18] sm:$0xff]
      %v673 = vld [vmem:[%s11 + $0x20] sm:$0xff]
      %v674 = vld [vmem:[%s11 + $0x28] sm:$0xff]
      %v675 = vld [vmem:[%s11 + $0x30] sm:$0xff]
      %v676 = vld [vmem:[%s11 + $0x38] sm:$0xff]
      %v677 = vld [vmem:[%s12] sm:$0x3]
      %v678 = vld [vmem:[%s13] sm:$0xf]
      %v679 = vld [vmem:[%s13 + $0x4] sm:$0xf]
      %v680 = vld [vmem:[%s13 + $0x8] sm:$0xf]
      %v681 = vld [vmem:[%s13 + $0xc] sm:$0xf]
      %v682 = vld [vmem:[%s13 + $0x10] sm:$0xf]
      %v683 = vld [vmem:[%s13 + $0x14] sm:$0xf]
      %v684 = vld [vmem:[%s13 + $0x18] sm:$0xf]
      %v685 = vld [vmem:[%s13 + $0x1c] sm:$0xf]
      %v686 = vld [vmem:[%s13 + $0x20] sm:$0xf]
      %v687 = vld [vmem:[%s13 + $0x24] sm:$0xf]
      %v688 = vld [vmem:[%s13 + $0x28] sm:$0xf]
      %v689 = vld [vmem:[%s13 + $0x2c] sm:$0xf]
      %v690 = vld [vmem:[%s13 + $0x30] sm:$0xf]
      %v691 = vld [vmem:[%s13 + $0x34] sm:$0xf]
      %v692 = vld [vmem:[%s13 + $0x38] sm:$0xf]
      %v693 = vld [vmem:[%s13 + $0x3c] sm:$0xf]
      %v694 = vld [vmem:[%s13 + $0x40] sm:$0xf]
      %v695 = vld [vmem:[%s13 + $0x44] sm:$0xf]
      %v696 = vld [vmem:[%s13 + $0x48] sm:$0xf]
      %v697 = vld [vmem:[%s13 + $0x4c] sm:$0xf]
      %v698 = vld [vmem:[%s13 + $0x50] sm:$0xf]
      %v699 = vld [vmem:[%s13 + $0x54] sm:$0xf]
      %v700 = vld [vmem:[%s13 + $0x58] sm:$0xf]
      %v701 = vld [vmem:[%s13 + $0x5c] sm:$0xf]
      %v702 = vld [vmem:[%s13 + $0x60] sm:$0xf]
      %v703 = vld [vmem:[%s13 + $0x64] sm:$0xf]
      %v704 = vld [vmem:[%s13 + $0x68] sm:$0xf]
      %v705 = vld [vmem:[%s13 + $0x6c] sm:$0xf]
      %v706 = vld [vmem:[%s13 + $0x70] sm:$0xf]
      %v707 = vld [vmem:[%s13 + $0x74] sm:$0xf]
      %v708 = vld [vmem:[%s13 + $0x78] sm:$0xf]
      %v709 = vld [vmem:[%s13 + $0x7c] sm:$0xf]
      %v710 = vld [vmem:[%s14] sm:$0x1]
      %v711 = vld [vmem:[%s15] sm:$0x1]
      %v712 = vld [vmem:[%s16] sm:$0x1]
      %v713 = vld [vmem:[%s543] sm:$0xff]
      %v714 = vld [vmem:[%s543 + $0x8] sm:$0xff]
      %v715 = vpack.c.bf16 %v714, %v713
      %v717 = vlaneseq
      %v718 = vshrl.u32 %v717, 7
      %v719 = vsub.s32 0, %v718
      %v720 = vrot.slane %v582, %v719
      %v730 = vunpack.c.l.b16 %v550
      %v731 = vunpack.c.l.b16 %v551
      %v732 = vunpack.c.l.b16 %v552
      %v733 = vunpack.c.l.b16 %v553
      %v734 = vunpack.c.l.b16 %v554
      %v735 = vunpack.c.l.b16 %v555
      %v736 = vunpack.c.l.b16 %v556
      %v737 = vunpack.c.l.b16 %v557
      %v738 = vpack.c.b16 %v731, %v730
      %v739 = vpack.c.b16 %v733, %v732
      %v740 = vpack.c.b16 %v735, %v734
      %v741 = vpack.c.b16 %v737, %v736
      %vm746 = vcmask 523264
      %v748 = vsel %vm746, %v715, 0
      %750 = vmatprep.subr.bf16.mxu0 0
      %751 = vmatpush1.bf16.msra.mxu0 %v738
      %752 = vmatprep.subr.bf16.mxu0 0
      %753 = vmatpush1.bf16.msra.mxu0 %v739
      %754 = vmatprep.subr.bf16.mxu0 0
      %755 = vmatpush1.bf16.msra.mxu0 %v740
      %756 = vmatprep.subr.bf16.mxu0 0
      %757 = vmatpush1.bf16.msra.mxu0 %v741
      %758 = vmatprep.subr.bf16.mxu0 0
      %759 = vmatpush1.bf16.msra.mxu0 0
      %760 = vmatprep.subr.bf16.mxu0 0
      %761 = vmatpush1.bf16.msra.mxu0 0
      %762 = vmatprep.subr.bf16.mxu0 0
      %763 = vmatpush1.bf16.msra.mxu0 0
      %764 = vmatprep.subr.bf16.mxu0 0
      %765 = vmatpush1.bf16.msra.mxu0 0
      %766 = vmatprep.subr.bf16.mxu0 0
      %767 = vmatpush1.bf16.msra.mxu0 0
      %768 = vmatprep.subr.bf16.mxu0 0
      %769 = vmatpush1.bf16.msra.mxu0 0
      %770 = vmatprep.subr.bf16.mxu0 0
      %771 = vmatpush1.bf16.msra.mxu0 0
      %772 = vmatprep.subr.bf16.mxu0 0
      %773 = vmatpush1.bf16.msra.mxu0 0
      %774 = vmatprep.subr.bf16.mxu0 0
      %775 = vmatpush1.bf16.msra.mxu0 0
      %776 = vmatprep.subr.bf16.mxu0 0
      %777 = vmatpush1.bf16.msra.mxu0 0
      %778 = vmatprep.subr.bf16.mxu0 0
      %779 = vmatpush1.bf16.msra.mxu0 0
      %780 = vmatprep.subr.bf16.mxu0 0
      %781 = vmatpush1.bf16.msra.mxu0 0
      %782 = vmatprep.mubr.bf16.mxu0 0
      %783 = vmatmul.mubr.bf16.gmra.mrb[0].mxu0 %v748
      %v784 = vpop.f32.mrb[0].mxu0
      %v785 = vadd.f32 %v720, %v784
      %v786 = vpop.f32.mrb[0].mxu0
      %v787 = vpop.f32.mrb[0].mxu0
      %v788 = vadd.f32 %v720, %v787
      %v789 = vpop.f32.mrb[0].mxu0
      %790 = vdwg.mxu0
      %v792 = vlaneseq
      %v793 = vshrl.u32 %v792, 7
      %v794 = vsub.s32 0, %v793
      %v795 = vrot.slane %v618, %v794
      %v805 = vunpack.c.l.b16 %v586
      %v806 = vunpack.c.l.b16 %v587
      %v807 = vunpack.c.l.b16 %v588
      %v808 = vunpack.c.l.b16 %v589
      %v809 = vunpack.c.l.b16 %v590
      %v810 = vunpack.c.l.b16 %v591
      %v811 = vunpack.c.l.b16 %v592
      %v812 = vunpack.c.l.b16 %v593
      %v813 = vpack.c.b16 %v806, %v805
      %v814 = vpack.c.b16 %v808, %v807
      %v815 = vpack.c.b16 %v810, %v809
      %v816 = vpack.c.b16 %v812, %v811
      %821 = vmatprep.subr.bf16.mxu0 0
      %822 = vmatpush1.bf16.msra.mxu0 %v813
      %823 = vmatprep.subr.bf16.mxu0 0
      %824 = vmatpush1.bf16.msra.mxu0 %v814
      %825 = vmatprep.subr.bf16.mxu0 0
      %826 = vmatpush1.bf16.msra.mxu0 %v815
      %827 = vmatprep.subr.bf16.mxu0 0
      %828 = vmatpush1.bf16.msra.mxu0 %v816
      %829 = vmatprep.subr.bf16.mxu0 0
      %830 = vmatpush1.bf16.msra.mxu0 0
      %831 = vmatprep.subr.bf16.mxu0 0
      %832 = vmatpush1.bf16.msra.mxu0 0
      %833 = vmatprep.subr.bf16.mxu0 0
      %834 = vmatpush1.bf16.msra.mxu0 0
      %835 = vmatprep.subr.bf16.mxu0 0
      %836 = vmatpush1.bf16.msra.mxu0 0
      %837 = vmatprep.subr.bf16.mxu0 0
      %838 = vmatpush1.bf16.msra.mxu0 0
      %839 = vmatprep.subr.bf16.mxu0 0
      %840 = vmatpush1.bf16.msra.mxu0 0
      %841 = vmatprep.subr.bf16.mxu0 0
      %842 = vmatpush1.bf16.msra.mxu0 0
      %843 = vmatprep.subr.bf16.mxu0 0
      %844 = vmatpush1.bf16.msra.mxu0 0
      %845 = vmatprep.subr.bf16.mxu0 0
      %846 = vmatpush1.bf16.msra.mxu0 0
      %847 = vmatprep.subr.bf16.mxu0 0
      %848 = vmatpush1.bf16.msra.mxu0 0
      %849 = vmatprep.subr.bf16.mxu0 0
      %850 = vmatpush1.bf16.msra.mxu0 0
      %851 = vmatprep.subr.bf16.mxu0 0
      %852 = vmatpush1.bf16.msra.mxu0 0
      %853 = vmatprep.mubr.bf16.mxu0 0
      %854 = vmatmul.mubr.bf16.gmra.mrb[0].mxu0 %v748
      %v855 = vpop.f32.mrb[0].mxu0
      %v856 = vadd.f32 %v795, %v855
      %v857 = vpop.f32.mrb[0].mxu0
      %v858 = vpop.f32.mrb[0].mxu0
      %v859 = vadd.f32 %v795, %v858
      %v860 = vpop.f32.mrb[0].mxu0
      %861 = vdwg.mxu0
      %v863 = vlaneseq
      %v864 = vshrl.u32 %v863, 7
      %v865 = vsub.s32 0, %v864
      %v866 = vrot.slane %v654, %v865
      %v876 = vunpack.c.l.b16 %v622
      %v877 = vunpack.c.l.b16 %v623
      %v878 = vunpack.c.l.b16 %v624
      %v879 = vunpack.c.l.b16 %v625
      %v880 = vunpack.c.l.b16 %v626
      %v881 = vunpack.c.l.b16 %v627
      %v882 = vunpack.c.l.b16 %v628
      %v883 = vunpack.c.l.b16 %v629
      %v884 = vpack.c.b16 %v877, %v876
      %v885 = vpack.c.b16 %v879, %v878
      %v886 = vpack.c.b16 %v881, %v880
      %v887 = vpack.c.b16 %v883, %v882
      %892 = vmatprep.subr.bf16.mxu0 0
      %893 = vmatpush1.bf16.msra.mxu0 %v884
      %894 = vmatprep.subr.bf16.mxu0 0
      %895 = vmatpush1.bf16.msra.mxu0 %v885
      %896 = vmatprep.subr.bf16.mxu0 0
      %897 = vmatpush1.bf16.msra.mxu0 %v886
      %898 = vmatprep.subr.bf16.mxu0 0
      %899 = vmatpush1.bf16.msra.mxu0 %v887
      %900 = vmatprep.subr.bf16.mxu0 0
      %901 = vmatpush1.bf16.msra.mxu0 0
      %902 = vmatprep.subr.bf16.mxu0 0
      %903 = vmatpush1.bf16.msra.mxu0 0
      %904 = vmatprep.subr.bf16.mxu0 0
      %905 = vmatpush1.bf16.msra.mxu0 0
      %906 = vmatprep.subr.bf16.mxu0 0
      %907 = vmatpush1.bf16.msra.mxu0 0
      %908 = vmatprep.subr.bf16.mxu0 0
      %909 = vmatpush1.bf16.msra.mxu0 0
      %910 = vmatprep.subr.bf16.mxu0 0
      %911 = vmatpush1.bf16.msra.mxu0 0
      %912 = vmatprep.subr.bf16.mxu0 0
      %913 = vmatpush1.bf16.msra.mxu0 0
      %914 = vmatprep.subr.bf16.mxu0 0
      %915 = vmatpush1.bf16.msra.mxu0 0
      %916 = vmatprep.subr.bf16.mxu0 0
      %917 = vmatpush1.bf16.msra.mxu0 0
      %918 = vmatprep.subr.bf16.mxu0 0
      %919 = vmatpush1.bf16.msra.mxu0 0
      %920 = vmatprep.subr.bf16.mxu0 0
      %921 = vmatpush1.bf16.msra.mxu0 0
      %922 = vmatprep.subr.bf16.mxu0 0
      %923 = vmatpush1.bf16.msra.mxu0 0
      %924 = vmatprep.mubr.bf16.mxu0 0
      %925 = vmatmul.mubr.bf16.gmra.mrb[0].mxu0 %v748
      %v926 = vpop.f32.mrb[0].mxu0
      %v927 = vadd.f32 %v866, %v926
      %v928 = vpop.f32.mrb[0].mxu0
      %v929 = vpop.f32.mrb[0].mxu0
      %v930 = vadd.f32 %v866, %v929
      %v931 = vpop.f32.mrb[0].mxu0
      %932 = vdwg.mxu0
      %v933 = vpack.c.bf16 %v788, %v785
      %v934 = vpack.c.bf16 %v859, %v856
      %vm935 = vcmask 130048
      %v937 = vsel %vm935, %v933, 0
      %v940 = vsel %vm935, %v934, 0
      %942 = vmatprep.subr.bf16.mxu0 0
      %943 = vmatpush1.bf16.xpose.msra.mxu0 %v940
      %944 = vmatprep.subr.bf16.mxu0 0
      %945 = vmatpush1.bf16.xpose.msra.mxu0 0
      %946 = vmatprep.subr.bf16.mxu0 0
      %947 = vmatpush1.bf16.xpose.msra.mxu0 0
      %948 = vmatprep.subr.bf16.mxu0 0
      %949 = vmatpush1.bf16.xpose.msra.mxu0 0
      %950 = vmatprep.subr.bf16.mxu0 0
      %951 = vmatpush1.bf16.xpose.msra.mxu0 0
      %952 = vmatprep.subr.bf16.mxu0 0
      %953 = vmatpush1.bf16.xpose.msra.mxu0 0
      %954 = vmatprep.subr.bf16.mxu0 0
      %955 = vmatpush1.bf16.xpose.msra.mxu0 0
      %956 = vmatprep.subr.bf16.mxu0 0
      %957 = vmatpush1.bf16.xpose.msra.mxu0 0
      %958 = vmatprep.subr.bf16.mxu0 0
      %959 = vmatpush1.bf16.xpose.msra.mxu0 0
      %960 = vmatprep.subr.bf16.mxu0 0
      %961 = vmatpush1.bf16.xpose.msra.mxu0 0
      %962 = vmatprep.subr.bf16.mxu0 0
      %963 = vmatpush1.bf16.xpose.msra.mxu0 0
      %964 = vmatprep.subr.bf16.mxu0 0
      %965 = vmatpush1.bf16.xpose.msra.mxu0 0
      %966 = vmatprep.subr.bf16.mxu0 0
      %967 = vmatpush1.bf16.xpose.msra.mxu0 0
      %968 = vmatprep.subr.bf16.mxu0 0
      %969 = vmatpush1.bf16.xpose.msra.mxu0 0
      %970 = vmatprep.subr.bf16.mxu0 0
      %971 = vmatpush1.bf16.xpose.msra.mxu0 0
      %972 = vmatprep.subr.bf16.mxu0 0
      %973 = vmatpush1.bf16.xpose.msra.mxu0 0
      %974 = vmatprep.mubr.bf16.mxu0 0
      %975 = vmatmul.mubr.bf16.gmra.mrb[0].mxu0 %v937
      %v976 = vpop.f32.mrb[0].mxu0
      %v977 = vadd.f32 0.0, %v976
      %v978 = vpop.f32.mrb[0].mxu0
      %v979 = vpop.f32.mrb[0].mxu0
      %v980 = vadd.f32 0.0, %v979
      %v981 = vpop.f32.mrb[0].mxu0
      %982 = vdwg.mxu0
      %v983 = vsel %vm935, %v977, -inf
      %984 = vmax.xlane.f32.xlu0 %v983
      %v985 = vpop.xlane.xlu0 %984
      %v986 = vsel %vm935, %v980, -inf
      %987 = vmax.xlane.f32.xlu0 %v986
      %v988 = vpop.xlane.xlu0 %987
      %v989 = vsub.f32 %v977, %v985
      %v990 = vsub.f32 %v980, %v988
      %v991 = vmul.f32 %v989, 1.442695
      %v992 = vpow.pop %v991
      %v993 = vmul.f32 %v990, 1.442695
      %v994 = vpow.pop %v993
      %v995 = vsel %vm935, %v992, 0.0
      %996 = vadd.xlane.f32.xlu0 %v995
      %v997 = vpop.xlane.xlu0 %996
      %v998 = vsel %vm935, %v994, 0.0
      %999 = vadd.xlane.f32.xlu0 %v998
      %v1000 = vpop.xlane.xlu0 %999
      %v1001 = vrcp.pop %v997
      %v1002 = vrcp.pop %v1000
      %v1003 = vmul.f32 %v992, %v1001
      %v1004 = vmul.f32 %v994, %v1002
      %v1005 = vpack.c.bf16 %v1004, %v1003
      %v1006 = vpack.c.bf16 %v930, %v927
      %v1008 = vsel %vm935, %v1005, 0
      %1010 = vmatprep.subr.bf16.mxu0 0
      %1011 = vmatpush1.bf16.msra.mxu0 %v1006
      %1012 = vmatprep.subr.bf16.mxu0 0
      %1013 = vmatpush1.bf16.msra.mxu0 0
      %1014 = vmatprep.subr.bf16.mxu0 0
      %1015 = vmatpush1.bf16.msra.mxu0 0
      %1016 = vmatprep.subr.bf16.mxu0 0
      %1017 = vmatpush1.bf16.msra.mxu0 0
      %1018 = vmatprep.subr.bf16.mxu0 0
      %1019 = vmatpush1.bf16.msra.mxu0 0
      %1020 = vmatprep.subr.bf16.mxu0 0
      %1021 = vmatpush1.bf16.msra.mxu0 0
      %1022 = vmatprep.subr.bf16.mxu0 0
      %1023 = vmatpush1.bf16.msra.mxu0 0
      %1024 = vmatprep.subr.bf16.mxu0 0
      %1025 = vmatpush1.bf16.msra.mxu0 0
      %1026 = vmatprep.subr.bf16.mxu0 0
      %1027 = vmatpush1.bf16.msra.mxu0 0
      %1028 = vmatprep.subr.bf16.mxu0 0
      %1029 = vmatpush1.bf16.msra.mxu0 0
      %1030 = vmatprep.subr.bf16.mxu0 0
      %1031 = vmatpush1.bf16.msra.mxu0 0
      %1032 = vmatprep.subr.bf16.mxu0 0
      %1033 = vmatpush1.bf16.msra.mxu0 0
      %1034 = vmatprep.subr.bf16.mxu0 0
      %1035 = vmatpush1.bf16.msra.mxu0 0
      %1036 = vmatprep.subr.bf16.mxu0 0
      %1037 = vmatpush1.bf16.msra.mxu0 0
      %1038 = vmatprep.subr.bf16.mxu0 0
      %1039 = vmatpush1.bf16.msra.mxu0 0
      %1040 = vmatprep.subr.bf16.mxu0 0
      %1041 = vmatpush1.bf16.msra.mxu0 0
      %1042 = vmatprep.mubr.bf16.mxu0 0
      %1043 = vmatmul.mubr.bf16.gmra.mrb[0].mxu0 %v1008
      %v1044 = vpop.f32.mrb[0].mxu0
      %v1045 = vadd.f32 0.0, %v1044
      %v1046 = vpop.f32.mrb[0].mxu0
      %v1047 = vpop.f32.mrb[0].mxu0
      %v1048 = vadd.f32 0.0, %v1047
      %v1049 = vpop.f32.mrb[0].mxu0
      %1050 = vdwg.mxu0
      %v1051 = vpack.c.bf16 %v1048, %v1045
      %v1053 = vlaneseq
      %v1054 = vshrl.u32 %v1053, 7
      %v1055 = vsub.s32 0, %v1054
      %v1056 = vrot.slane %v583, %v1055
      %v1066 = vunpack.c.l.b16 %v558
      %v1067 = vunpack.c.l.b16 %v559
      %v1068 = vunpack.c.l.b16 %v560
      %v1069 = vunpack.c.l.b16 %v561
      %v1070 = vunpack.c.l.b16 %v562
      %v1071 = vunpack.c.l.b16 %v563
      %v1072 = vunpack.c.l.b16 %v564
      %v1073 = vunpack.c.l.b16 %v565
      %v1074 = vpack.c.b16 %v1067, %v1066
      %v1075 = vpack.c.b16 %v1069, %v1068
      %v1076 = vpack.c.b16 %v1071, %v1070
      %v1077 = vpack.c.b16 %v1073, %v1072
      %1082 = vmatprep.subr.bf16.mxu0 0
      %1083 = vmatpush1.bf16.msra.mxu0 %v1074
      %1084 = vmatprep.subr.bf16.mxu0 0
      %1085 = vmatpush1.bf16.msra.mxu0 %v1075
      %1086 = vmatprep.subr.bf16.mxu0 0
      %1087 = vmatpush1.bf16.msra.mxu0 %v1076
      %1088 = vmatprep.subr.bf16.mxu0 0
      %1089 = vmatpush1.bf16.msra.mxu0 %v1077
      %1090 = vmatprep.subr.bf16.mxu0 0
      %1091 = vmatpush1.bf16.msra.mxu0 0
      %1092 = vmatprep.subr.bf16.mxu0 0
      %1093 = vmatpush1.bf16.msra.mxu0 0
      %1094 = vmatprep.subr.bf16.mxu0 0
      %1095 = vmatpush1.bf16.msra.mxu0 0
      %1096 = vmatprep.subr.bf16.mxu0 0
      %1097 = vmatpush1.bf16.msra.mxu0 0
      %1098 = vmatprep.subr.bf16.mxu0 0
      %1099 = vmatpush1.bf16.msra.mxu0 0
      %1100 = vmatprep.subr.bf16.mxu0 0
      %1101 = vmatpush1.bf16.msra.mxu0 0
      %1102 = vmatprep.subr.bf16.mxu0 0
      %1103 = vmatpush1.bf16.msra.mxu0 0
      %1104 = vmatprep.subr.bf16.mxu0 0
      %1105 = vmatpush1.bf16.msra.mxu0 0
      %1106 = vmatprep.subr.bf16.mxu0 0
      %1107 = vmatpush1.bf16.msra.mxu0 0
      %1108 = vmatprep.subr.bf16.mxu0 0
      %1109 = vmatpush1.bf16.msra.mxu0 0
      %1110 = vmatprep.subr.bf16.mxu0 0
      %1111 = vmatpush1.bf16.msra.mxu0 0
      %1112 = vmatprep.subr.bf16.mxu0 0
      %1113 = vmatpush1.bf16.msra.mxu0 0
      %1114 = vmatprep.mubr.bf16.mxu0 0
      %1115 = vmatmul.mubr.bf16.gmra.mrb[0].mxu0 %v748
      %v1116 = vpop.f32.mrb[0].mxu0
      %v1117 = vadd.f32 %v1056, %v1116
      %v1118 = vpop.f32.mrb[0].mxu0
      %v1119 = vpop.f32.mrb[0].mxu0
      %v1120 = vadd.f32 %v1056, %v1119
      %v1121 = vpop.f32.mrb[0].mxu0
      %1122 = vdwg.mxu0
      %v1124 = vlaneseq
      %v1125 = vshrl.u32 %v1124, 7
      %v1126 = vsub.s32 0, %v1125
      %v1127 = vrot.slane %v619, %v1126
      %v1137 = vunpack.c.l.b16 %v594
      %v1138 = vunpack.c.l.b16 %v595
      %v1139 = vunpack.c.l.b16 %v596
      %v1140 = vunpack.c.l.b16 %v597
      %v1141 = vunpack.c.l.b16 %v598
      %v1142 = vunpack.c.l.b16 %v599
      %v1143 = vunpack.c.l.b16 %v600
      %v1144 = vunpack.c.l.b16 %v601
      %v1145 = vpack.c.b16 %v1138, %v1137
      %v1146 = vpack.c.b16 %v1140, %v1139
      %v1147 = vpack.c.b16 %v1142, %v1141
      %v1148 = vpack.c.b16 %v1144, %v1143
      %1153 = vmatprep.subr.bf16.mxu0 0
      %1154 = vmatpush1.bf16.msra.mxu0 %v1145
      %1155 = vmatprep.subr.bf16.mxu0 0
      %1156 = vmatpush1.bf16.msra.mxu0 %v1146
      %1157 = vmatprep.subr.bf16.mxu0 0
      %1158 = vmatpush1.bf16.msra.mxu0 %v1147
      %1159 = vmatprep.subr.bf16.mxu0 0
      %1160 = vmatpush1.bf16.msra.mxu0 %v1148
      %1161 = vmatprep.subr.bf16.mxu0 0
      %1162 = vmatpush1.bf16.msra.mxu0 0
      %1163 = vmatprep.subr.bf16.mxu0 0
      %1164 = vmatpush1.bf16.msra.mxu0 0
      %1165 = vmatprep.subr.bf16.mxu0 0
      %1166 = vmatpush1.bf16.msra.mxu0 0
      %1167 = vmatprep.subr.bf16.mxu0 0
      %1168 = vmatpush1.bf16.msra.mxu0 0
      %1169 = vmatprep.subr.bf16.mxu0 0
      %1170 = vmatpush1.bf16.msra.mxu0 0
      %1171 = vmatprep.subr.bf16.mxu0 0
      %1172 = vmatpush1.bf16.msra.mxu0 0
      %1173 = vmatprep.subr.bf16.mxu0 0
      %1174 = vmatpush1.bf16.msra.mxu0 0
      %1175 = vmatprep.subr.bf16.mxu0 0
      %1176 = vmatpush1.bf16.msra.mxu0 0
      %1177 = vmatprep.subr.bf16.mxu0 0
      %1178 = vmatpush1.bf16.msra.mxu0 0
      %1179 = vmatprep.subr.bf16.mxu0 0
      %1180 = vmatpush1.bf16.msra.mxu0 0
      %1181 = vmatprep.subr.bf16.mxu0 0
      %1182 = vmatpush1.bf16.msra.mxu0 0
      %1183 = vmatprep.subr.bf16.mxu0 0
      %1184 = vmatpush1.bf16.msra.mxu0 0
      %1185 = vmatprep.mubr.bf16.mxu0 0
      %1186 = vmatmul.mubr.bf16.gmra.mrb[0].mxu0 %v748
      %v1187 = vpop.f32.mrb[0].mxu0
      %v1188 = vadd.f32 %v1127, %v1187
      %v1189 = vpop.f32.mrb[0].mxu0
      %v1190 = vpop.f32.mrb[0].mxu0
      %v1191 = vadd.f32 %v1127, %v1190
      %v1192 = vpop.f32.mrb[0].mxu0
      %1193 = vdwg.mxu0
      %v1195 = vlaneseq
      %v1196 = vshrl.u32 %v1195, 7
      %v1197 = vsub.s32 0, %v1196
      %v1198 = vrot.slane %v655, %v1197
      %v1208 = vunpack.c.l.b16 %v630
      %v1209 = vunpack.c.l.b16 %v631
      %v1210 = vunpack.c.l.b16 %v632
      %v1211 = vunpack.c.l.b16 %v633
      %v1212 = vunpack.c.l.b16 %v634
      %v1213 = vunpack.c.l.b16 %v635
      %v1214 = vunpack.c.l.b16 %v636
      %v1215 = vunpack.c.l.b16 %v637
      %v1216 = vpack.c.b16 %v1209, %v1208
      %v1217 = vpack.c.b16 %v1211, %v1210
      %v1218 = vpack.c.b16 %v1213, %v1212
      %v1219 = vpack.c.b16 %v1215, %v1214
      %1224 = vmatprep.subr.bf16.mxu0 0
      %1225 = vmatpush1.bf16.msra.mxu0 %v1216
      %1226 = vmatprep.subr.bf16.mxu0 0
      %1227 = vmatpush1.bf16.msra.mxu0 %v1217
      %1228 = vmatprep.subr.bf16.mxu0 0
      %1229 = vmatpush1.bf16.msra.mxu0 %v1218
      %1230 = vmatprep.subr.bf16.mxu0 0
      %1231 = vmatpush1.bf16.msra.mxu0 %v1219
      %1232 = vmatprep.subr.bf16.mxu0 0
      %1233 = vmatpush1.bf16.msra.mxu0 0
      %1234 = vmatprep.subr.bf16.mxu0 0
      %1235 = vmatpush1.bf16.msra.mxu0 0
      %1236 = vmatprep.subr.bf16.mxu0 0
      %1237 = vmatpush1.bf16.msra.mxu0 0
      %1238 = vmatprep.subr.bf16.mxu0 0
      %1239 = vmatpush1.bf16.msra.mxu0 0
      %1240 = vmatprep.subr.bf16.mxu0 0
      %1241 = vmatpush1.bf16.msra.mxu0 0
      %1242 = vmatprep.subr.bf16.mxu0 0
      %1243 = vmatpush1.bf16.msra.mxu0 0
      %1244 = vmatprep.subr.bf16.mxu0 0
      %1245 = vmatpush1.bf16.msra.mxu0 0
      %1246 = vmatprep.subr.bf16.mxu0 0
      %1247 = vmatpush1.bf16.msra.mxu0 0
      %1248 = vmatprep.subr.bf16.mxu0 0
      %1249 = vmatpush1.bf16.msra.mxu0 0
      %1250 = vmatprep.subr.bf16.mxu0 0
      %1251 = vmatpush1.bf16.msra.mxu0 0
      %1252 = vmatprep.subr.bf16.mxu0 0
      %1253 = vmatpush1.bf16.msra.mxu0 0
      %1254 = vmatprep.subr.bf16.mxu0 0
      %1255 = vmatpush1.bf16.msra.mxu0 0
      %1256 = vmatprep.mubr.bf16.mxu0 0
      %1257 = vmatmul.mubr.bf16.gmra.mrb[0].mxu0 %v748
      %v1258 = vpop.f32.mrb[0].mxu0
      %v1259 = vadd.f32 %v1198, %v1258
      %v1260 = vpop.f32.mrb[0].mxu0
      %v1261 = vpop.f32.mrb[0].mxu0
      %v1262 = vadd.f32 %v1198, %v1261
      %v1263 = vpop.f32.mrb[0].mxu0
      %1264 = vdwg.mxu0
      %v1265 = vpack.c.bf16 %v1120, %v1117
      %v1266 = vpack.c.bf16 %v1191, %v1188
      %v1268 = vsel %vm935, %v1265, 0
      %v1271 = vsel %vm935, %v1266, 0
      %1273 = vmatprep.subr.bf16.mxu0 0
      %1274 = vmatpush1.bf16.xpose.msra.mxu0 %v1271
      %1275 = vmatprep.subr.bf16.mxu0 0
      %1276 = vmatpush1.bf16.xpose.msra.mxu0 0
      %1277 = vmatprep.subr.bf16.mxu0 0
      %1278 = vmatpush1.bf16.xpose.msra.mxu0 0
      %1279 = vmatprep.subr.bf16.mxu0 0
      %1280 = vmatpush1.bf16.xpose.msra.mxu0 0
      %1281 = vmatprep.subr.bf16.mxu0 0
      %1282 = vmatpush1.bf16.xpose.msra.mxu0 0
      %1283 = vmatprep.subr.bf16.mxu0 0
      %1284 = vmatpush1.bf16.xpose.msra.mxu0 0
      %1285 = vmatprep.subr.bf16.mxu0 0
      %1286 = vmatpush1.bf16.xpose.msra.mxu0 0
      %1287 = vmatprep.subr.bf16.mxu0 0
      %1288 = vmatpush1.bf16.xpose.msra.mxu0 0
      %1289 = vmatprep.subr.bf16.mxu0 0
      %1290 = vmatpush1.bf16.xpose.msra.mxu0 0
      %1291 = vmatprep.subr.bf16.mxu0 0
      %1292 = vmatpush1.bf16.xpose.msra.mxu0 0
      %1293 = vmatprep.subr.bf16.mxu0 0
      %1294 = vmatpush1.bf16.xpose.msra.mxu0 0
      %1295 = vmatprep.subr.bf16.mxu0 0
      %1296 = vmatpush1.bf16.xpose.msra.mxu0 0
      %1297 = vmatprep.subr.bf16.mxu0 0
      %1298 = vmatpush1.bf16.xpose.msra.mxu0 0
      %1299 = vmatprep.subr.bf16.mxu0 0
      %1300 = vmatpush1.bf16.xpose.msra.mxu0 0
      %1301 = vmatprep.subr.bf16.mxu0 0
      %1302 = vmatpush1.bf16.xpose.msra.mxu0 0
      %1303 = vmatprep.subr.bf16.mxu0 0
      %1304 = vmatpush1.bf16.xpose.msra.mxu0 0
      %1305 = vmatprep.mubr.bf16.mxu0 0
      %1306 = vmatmul.mubr.bf16.gmra.mrb[0].mxu0 %v1268
      %v1307 = vpop.f32.mrb[0].mxu0
      %v1308 = vadd.f32 0.0, %v1307
      %v1309 = vpop.f32.mrb[0].mxu0
      %v1310 = vpop.f32.mrb[0].mxu0
      %v1311 = vadd.f32 0.0, %v1310
      %v1312 = vpop.f32.mrb[0].mxu0
      %1313 = vdwg.mxu0
      %v1314 = vsel %vm935, %v1308, -inf
      %1315 = vmax.xlane.f32.xlu0 %v1314
      %v1316 = vpop.xlane.xlu0 %1315
      %v1317 = vsel %vm935, %v1311, -inf
      %1318 = vmax.xlane.f32.xlu0 %v1317
      %v1319 = vpop.xlane.xlu0 %1318
      %v1320 = vsub.f32 %v1308, %v1316
      %v1321 = vsub.f32 %v1311, %v1319
      %v1322 = vmul.f32 %v1320, 1.442695
      %v1323 = vpow.pop %v1322
      %v1324 = vmul.f32 %v1321, 1.442695
      %v1325 = vpow.pop %v1324
      %v1326 = vsel %vm935, %v1323, 0.0
      %1327 = vadd.xlane.f32.xlu0 %v1326
      %v1328 = vpop.xlane.xlu0 %1327
      %v1329 = vsel %vm935, %v1325, 0.0
      %1330 = vadd.xlane.f32.xlu0 %v1329
      %v1331 = vpop.xlane.xlu0 %1330
      %v1332 = vrcp.pop %v1328
      %v1333 = vrcp.pop %v1331
      %v1334 = vmul.f32 %v1323, %v1332
      %v1335 = vmul.f32 %v1325, %v1333
      %v1336 = vpack.c.bf16 %v1335, %v1334
      %v1337 = vpack.c.bf16 %v1262, %v1259
      %v1339 = vsel %vm935, %v1336, 0
      %1341 = vmatprep.subr.bf16.mxu0 0
      %1342 = vmatpush1.bf16.msra.mxu0 %v1337
      %1343 = vmatprep.subr.bf16.mxu0 0
      %1344 = vmatpush1.bf16.msra.mxu0 0
      %1345 = vmatprep.subr.bf16.mxu0 0
      %1346 = vmatpush1.bf16.msra.mxu0 0
      %1347 = vmatprep.subr.bf16.mxu0 0
      %1348 = vmatpush1.bf16.msra.mxu0 0
      %1349 = vmatprep.subr.bf16.mxu0 0
      %1350 = vmatpush1.bf16.msra.mxu0 0
      %1351 = vmatprep.subr.bf16.mxu0 0
      %1352 = vmatpush1.bf16.msra.mxu0 0
      %1353 = vmatprep.subr.bf16.mxu0 0
      %1354 = vmatpush1.bf16.msra.mxu0 0
      %1355 = vmatprep.subr.bf16.mxu0 0
      %1356 = vmatpush1.bf16.msra.mxu0 0
      %1357 = vmatprep.subr.bf16.mxu0 0
      %1358 = vmatpush1.bf16.msra.mxu0 0
      %1359 = vmatprep.subr.bf16.mxu0 0
      %1360 = vmatpush1.bf16.msra.mxu0 0
      %1361 = vmatprep.subr.bf16.mxu0 0
      %1362 = vmatpush1.bf16.msra.mxu0 0
      %1363 = vmatprep.subr.bf16.mxu0 0
      %1364 = vmatpush1.bf16.msra.mxu0 0
      %1365 = vmatprep.subr.bf16.mxu0 0
      %1366 = vmatpush1.bf16.msra.mxu0 0
      %1367 = vmatprep.subr.bf16.mxu0 0
      %1368 = vmatpush1.bf16.msra.mxu0 0
      %1369 = vmatprep.subr.bf16.mxu0 0
      %1370 = vmatpush1.bf16.msra.mxu0 0
      %1371 = vmatprep.subr.bf16.mxu0 0
      %1372 = vmatpush1.bf16.msra.mxu0 0
      %1373 = vmatprep.mubr.bf16.mxu0 0
      %1374 = vmatmul.mubr.bf16.gmra.mrb[0].mxu0 %v1339
      %v1375 = vpop.f32.mrb[0].mxu0
      %v1376 = vadd.f32 0.0, %v1375
      %v1377 = vpop.f32.mrb[0].mxu0
      %v1378 = vpop.f32.mrb[0].mxu0
      %v1379 = vadd.f32 0.0, %v1378
      %v1380 = vpop.f32.mrb[0].mxu0
      %1381 = vdwg.mxu0
      %v1382 = vpack.c.bf16 %v1379, %v1376
      %v1385 = vunpack.c.l.b16 %v660
      %v1386 = vunpack.c.l.b16 %v661
      %v1387 = vpack.c.b16 %v1386, %v1385
      %v1390 = vsel %vm935, %v1382, 0
      %1392 = vmatprep.subr.bf16.mxu0 0
      %1393 = vmatpush1.bf16.msra.mxu0 %v1387
      %1394 = vmatprep.subr.bf16.mxu0 0
      %1395 = vmatpush1.bf16.msra.mxu0 0
      %1396 = vmatprep.subr.bf16.mxu0 0
      %1397 = vmatpush1.bf16.msra.mxu0 0
      %1398 = vmatprep.subr.bf16.mxu0 0
      %1399 = vmatpush1.bf16.msra.mxu0 0
      %1400 = vmatprep.subr.bf16.mxu0 0
      %1401 = vmatpush1.bf16.msra.mxu0 0
      %1402 = vmatprep.subr.bf16.mxu0 0
      %1403 = vmatpush1.bf16.msra.mxu0 0
      %1404 = vmatprep.subr.bf16.mxu0 0
      %1405 = vmatpush1.bf16.msra.mxu0 0
      %1406 = vmatprep.subr.bf16.mxu0 0
      %1407 = vmatpush1.bf16.msra.mxu0 0
      %1408 = vmatprep.subr.bf16.mxu0 0
      %1409 = vmatpush1.bf16.msra.mxu0 0
      %1410 = vmatprep.subr.bf16.mxu0 0
      %1411 = vmatpush1.bf16.msra.mxu0 0
      %1412 = vmatprep.subr.bf16.mxu0 0
      %1413 = vmatpush1.bf16.msra.mxu0 0
      %1414 = vmatprep.subr.bf16.mxu0 0
      %1415 = vmatpush1.bf16.msra.mxu0 0
      %1416 = vmatprep.subr.bf16.mxu0 0
      %1417 = vmatpush1.bf16.msra.mxu0 0
      %1418 = vmatprep.subr.bf16.mxu0 0
      %1419 = vmatpush1.bf16.msra.mxu0 0
      %1420 = vmatprep.subr.bf16.mxu0 0
      %1421 = vmatpush1.bf16.msra.mxu0 0
      %1422 = vmatprep.subr.bf16.mxu0 0
      %1423 = vmatpush1.bf16.msra.mxu0 0
      %1424 = vmatprep.mubr.bf16.mxu0 0
      %1425 = vmatmul.mubr.bf16.gmra.mrb[0].mxu0 %v1390
      %v1426 = vpop.f32.mrb[0].mxu0
      %v1427 = vadd.f32 0.0, %v1426
      %v1428 = vpop.f32.mrb[0].mxu0
      %v1429 = vpop.f32.mrb[0].mxu0
      %v1430 = vadd.f32 0.0, %v1429
      %v1431 = vpop.f32.mrb[0].mxu0
      %1432 = vdwg.mxu0
      %v1435 = vunpack.c.l.b16 %v658
      %v1436 = vunpack.c.l.b16 %v659
      %v1437 = vpack.c.b16 %v1436, %v1435
      %v1440 = vsel %vm935, %v1051, 0
      %1442 = vmatprep.subr.bf16.mxu0 0
      %1443 = vmatpush1.bf16.msra.mxu0 %v1437
      %1444 = vmatprep.subr.bf16.mxu0 0
      %1445 = vmatpush1.bf16.msra.mxu0 0
      %1446 = vmatprep.subr.bf16.mxu0 0
      %1447 = vmatpush1.bf16.msra.mxu0 0
      %1448 = vmatprep.subr.bf16.mxu0 0
      %1449 = vmatpush1.bf16.msra.mxu0 0
      %1450 = vmatprep.subr.bf16.mxu0 0
      %1451 = vmatpush1.bf16.msra.mxu0 0
      %1452 = vmatprep.subr.bf16.mxu0 0
      %1453 = vmatpush1.bf16.msra.mxu0 0
      %1454 = vmatprep.subr.bf16.mxu0 0
      %1455 = vmatpush1.bf16.msra.mxu0 0
      %1456 = vmatprep.subr.bf16.mxu0 0
      %1457 = vmatpush1.bf16.msra.mxu0 0
      %1458 = vmatprep.subr.bf16.mxu0 0
      %1459 = vmatpush1.bf16.msra.mxu0 0
      %1460 = vmatprep.subr.bf16.mxu0 0
      %1461 = vmatpush1.bf16.msra.mxu0 0
      %1462 = vmatprep.subr.bf16.mxu0 0
      %1463 = vmatpush1.bf16.msra.mxu0 0
      %1464 = vmatprep.subr.bf16.mxu0 0
      %1465 = vmatpush1.bf16.msra.mxu0 0
      %1466 = vmatprep.subr.bf16.mxu0 0
      %1467 = vmatpush1.bf16.msra.mxu0 0
      %1468 = vmatprep.subr.bf16.mxu0 0
      %1469 = vmatpush1.bf16.msra.mxu0 0
      %1470 = vmatprep.subr.bf16.mxu0 0
      %1471 = vmatpush1.bf16.msra.mxu0 0
      %1472 = vmatprep.subr.bf16.mxu0 0
      %1473 = vmatpush1.bf16.msra.mxu0 0
      %1474 = vmatprep.mubr.bf16.mxu0 0
      %1475 = vmatmul.mubr.bf16.gmra.mrb[0].mxu0 %v1440
      %v1476 = vpop.f32.mrb[0].mxu0
      %v1477 = vadd.f32 %v1427, %v1476
      %v1478 = vpop.f32.mrb[0].mxu0
      %v1479 = vpop.f32.mrb[0].mxu0
      %v1480 = vadd.f32 %v1430, %v1479
      %v1481 = vpop.f32.mrb[0].mxu0
      %1482 = vdwg.mxu0
      %v1484 = vlaneseq
      %v1485 = vshrl.u32 %v1484, 7
      %v1486 = vsub.s32 0, %v1485
      %v1487 = vrot.slane %v584, %v1486
      %v1497 = vunpack.c.l.b16 %v566
      %v1498 = vunpack.c.l.b16 %v567
      %v1499 = vunpack.c.l.b16 %v568
      %v1500 = vunpack.c.l.b16 %v569
      %v1501 = vunpack.c.l.b16 %v570
      %v1502 = vunpack.c.l.b16 %v571
      %v1503 = vunpack.c.l.b16 %v572
      %v1504 = vunpack.c.l.b16 %v573
      %v1505 = vpack.c.b16 %v1498, %v1497
      %v1506 = vpack.c.b16 %v1500, %v1499
      %v1507 = vpack.c.b16 %v1502, %v1501
      %v1508 = vpack.c.b16 %v1504, %v1503
      %1513 = vmatprep.subr.bf16.mxu0 0
      %1514 = vmatpush1.bf16.msra.mxu0 %v1505
      %1515 = vmatprep.subr.bf16.mxu0 0
      %1516 = vmatpush1.bf16.msra.mxu0 %v1506
      %1517 = vmatprep.subr.bf16.mxu0 0
      %1518 = vmatpush1.bf16.msra.mxu0 %v1507
      %1519 = vmatprep.subr.bf16.mxu0 0
      %1520 = vmatpush1.bf16.msra.mxu0 %v1508
      %1521 = vmatprep.subr.bf16.mxu0 0
      %1522 = vmatpush1.bf16.msra.mxu0 0
      %1523 = vmatprep.subr.bf16.mxu0 0
      %1524 = vmatpush1.bf16.msra.mxu0 0
      %1525 = vmatprep.subr.bf16.mxu0 0
      %1526 = vmatpush1.bf16.msra.mxu0 0
      %1527 = vmatprep.subr.bf16.mxu0 0
      %1528 = vmatpush1.bf16.msra.mxu0 0
      %1529 = vmatprep.subr.bf16.mxu0 0
      %1530 = vmatpush1.bf16.msra.mxu0 0
      %1531 = vmatprep.subr.bf16.mxu0 0
      %1532 = vmatpush1.bf16.msra.mxu0 0
      %1533 = vmatprep.subr.bf16.mxu0 0
      %1534 = vmatpush1.bf16.msra.mxu0 0
      %1535 = vmatprep.subr.bf16.mxu0 0
      %1536 = vmatpush1.bf16.msra.mxu0 0
      %1537 = vmatprep.subr.bf16.mxu0 0
      %1538 = vmatpush1.bf16.msra.mxu0 0
      %1539 = vmatprep.subr.bf16.mxu0 0
      %1540 = vmatpush1.bf16.msra.mxu0 0
      %1541 = vmatprep.subr.bf16.mxu0 0
      %1542 = vmatpush1.bf16.msra.mxu0 0
      %1543 = vmatprep.subr.bf16.mxu0 0
      %1544 = vmatpush1.bf16.msra.mxu0 0
      %1545 = vmatprep.mubr.bf16.mxu0 0
      %1546 = vmatmul.mubr.bf16.gmra.mrb[0].mxu0 %v748
      %v1547 = vpop.f32.mrb[0].mxu0
      %v1548 = vadd.f32 %v1487, %v1547
      %v1549 = vpop.f32.mrb[0].mxu0
      %v1550 = vpop.f32.mrb[0].mxu0
      %v1551 = vadd.f32 %v1487, %v1550
      %v1552 = vpop.f32.mrb[0].mxu0
      %1553 = vdwg.mxu0
      %v1555 = vlaneseq
      %v1556 = vshrl.u32 %v1555, 7
      %v1557 = vsub.s32 0, %v1556
      %v1558 = vrot.slane %v620, %v1557
      %v1568 = vunpack.c.l.b16 %v602
      %v1569 = vunpack.c.l.b16 %v603
      %v1570 = vunpack.c.l.b16 %v604
      %v1571 = vunpack.c.l.b16 %v605
      %v1572 = vunpack.c.l.b16 %v606
      %v1573 = vunpack.c.l.b16 %v607
      %v1574 = vunpack.c.l.b16 %v608
      %v1575 = vunpack.c.l.b16 %v609
      %v1576 = vpack.c.b16 %v1569, %v1568
      %v1577 = vpack.c.b16 %v1571, %v1570
      %v1578 = vpack.c.b16 %v1573, %v1572
      %v1579 = vpack.c.b16 %v1575, %v1574
      %1584 = vmatprep.subr.bf16.mxu0 0
      %1585 = vmatpush1.bf16.msra.mxu0 %v1576
      %1586 = vmatprep.subr.bf16.mxu0 0
      %1587 = vmatpush1.bf16.msra.mxu0 %v1577
      %1588 = vmatprep.subr.bf16.mxu0 0
      %1589 = vmatpush1.bf16.msra.mxu0 %v1578
      %1590 = vmatprep.subr.bf16.mxu0 0
      %1591 = vmatpush1.bf16.msra.mxu0 %v1579
      %1592 = vmatprep.subr.bf16.mxu0 0
      %1593 = vmatpush1.bf16.msra.mxu0 0
      %1594 = vmatprep.subr.bf16.mxu0 0
      %1595 = vmatpush1.bf16.msra.mxu0 0
      %1596 = vmatprep.subr.bf16.mxu0 0
      %1597 = vmatpush1.bf16.msra.mxu0 0
      %1598 = vmatprep.subr.bf16.mxu0 0
      %1599 = vmatpush1.bf16.msra.mxu0 0
      %1600 = vmatprep.subr.bf16.mxu0 0
      %1601 = vmatpush1.bf16.msra.mxu0 0
      %1602 = vmatprep.subr.bf16.mxu0 0
      %1603 = vmatpush1.bf16.msra.mxu0 0
      %1604 = vmatprep.subr.bf16.mxu0 0
      %1605 = vmatpush1.bf16.msra.mxu0 0
      %1606 = vmatprep.subr.bf16.mxu0 0
      %1607 = vmatpush1.bf16.msra.mxu0 0
      %1608 = vmatprep.subr.bf16.mxu0 0
      %1609 = vmatpush1.bf16.msra.mxu0 0
      %1610 = vmatprep.subr.bf16.mxu0 0
      %1611 = vmatpush1.bf16.msra.mxu0 0
      %1612 = vmatprep.subr.bf16.mxu0 0
      %1613 = vmatpush1.bf16.msra.mxu0 0
      %1614 = vmatprep.subr.bf16.mxu0 0
      %1615 = vmatpush1.bf16.msra.mxu0 0
      %1616 = vmatprep.mubr.bf16.mxu0 0
      %1617 = vmatmul.mubr.bf16.gmra.mrb[0].mxu0 %v748
      %v1618 = vpop.f32.mrb[0].mxu0
      %v1619 = vadd.f32 %v1558, %v1618
      %v1620 = vpop.f32.mrb[0].mxu0
      %v1621 = vpop.f32.mrb[0].mxu0
      %v1622 = vadd.f32 %v1558, %v1621
      %v1623 = vpop.f32.mrb[0].mxu0
      %1624 = vdwg.mxu0
      %v1626 = vlaneseq
      %v1627 = vshrl.u32 %v1626, 7
      %v1628 = vsub.s32 0, %v1627
      %v1629 = vrot.slane %v656, %v1628
      %v1639 = vunpack.c.l.b16 %v638
      %v1640 = vunpack.c.l.b16 %v639
      %v1641 = vunpack.c.l.b16 %v640
      %v1642 = vunpack.c.l.b16 %v641
      %v1643 = vunpack.c.l.b16 %v642
      %v1644 = vunpack.c.l.b16 %v643
      %v1645 = vunpack.c.l.b16 %v644
      %v1646 = vunpack.c.l.b16 %v645
      %v1647 = vpack.c.b16 %v1640, %v1639
      %v1648 = vpack.c.b16 %v1642, %v1641
      %v1649 = vpack.c.b16 %v1644, %v1643
      %v1650 = vpack.c.b16 %v1646, %v1645
      %1655 = vmatprep.subr.bf16.mxu0 0
      %1656 = vmatpush1.bf16.msra.mxu0 %v1647
      %1657 = vmatprep.subr.bf16.mxu0 0
      %1658 = vmatpush1.bf16.msra.mxu0 %v1648
      %1659 = vmatprep.subr.bf16.mxu0 0
      %1660 = vmatpush1.bf16.msra.mxu0 %v1649
      %1661 = vmatprep.subr.bf16.mxu0 0
      %1662 = vmatpush1.bf16.msra.mxu0 %v1650
      %1663 = vmatprep.subr.bf16.mxu0 0
      %1664 = vmatpush1.bf16.msra.mxu0 0
      %1665 = vmatprep.subr.bf16.mxu0 0
      %1666 = vmatpush1.bf16.msra.mxu0 0
      %1667 = vmatprep.subr.bf16.mxu0 0
      %1668 = vmatpush1.bf16.msra.mxu0 0
      %1669 = vmatprep.subr.bf16.mxu0 0
      %1670 = vmatpush1.bf16.msra.mxu0 0
      %1671 = vmatprep.subr.bf16.mxu0 0
      %1672 = vmatpush1.bf16.msra.mxu0 0
      %1673 = vmatprep.subr.bf16.mxu0 0
      %1674 = vmatpush1.bf16.msra.mxu0 0
      %1675 = vmatprep.subr.bf16.mxu0 0
      %1676 = vmatpush1.bf16.msra.mxu0 0
      %1677 = vmatprep.subr.bf16.mxu0 0
      %1678 = vmatpush1.bf16.msra.mxu0 0
      %1679 = vmatprep.subr.bf16.mxu0 0
      %1680 = vmatpush1.bf16.msra.mxu0 0
      %1681 = vmatprep.subr.bf16.mxu0 0
      %1682 = vmatpush1.bf16.msra.mxu0 0
      %1683 = vmatprep.subr.bf16.mxu0 0
      %1684 = vmatpush1.bf16.msra.mxu0 0
      %1685 = vmatprep.subr.bf16.mxu0 0
      %1686 = vmatpush1.bf16.msra.mxu0 0
      %1687 = vmatprep.mubr.bf16.mxu0 0
      %1688 = vmatmul.mubr.bf16.gmra.mrb[0].mxu0 %v748
      %v1689 = vpop.f32.mrb[0].mxu0
      %v1690 = vadd.f32 %v1629, %v1689
      %v1691 = vpop.f32.mrb[0].mxu0
      %v1692 = vpop.f32.mrb[0].mxu0
      %v1693 = vadd.f32 %v1629, %v1692
      %v1694 = vpop.f32.mrb[0].mxu0
      %1695 = vdwg.mxu0
      %v1696 = vpack.c.bf16 %v1551, %v1548
      %v1697 = vpack.c.bf16 %v1622, %v1619
      %v1699 = vsel %vm935, %v1696, 0
      %v1702 = vsel %vm935, %v1697, 0
      %1704 = vmatprep.subr.bf16.mxu0 0
      %1705 = vmatpush1.bf16.xpose.msra.mxu0 %v1702
      %1706 = vmatprep.subr.bf16.mxu0 0
      %1707 = vmatpush1.bf16.xpose.msra.mxu0 0
      %1708 = vmatprep.subr.bf16.mxu0 0
      %1709 = vmatpush1.bf16.xpose.msra.mxu0 0
      %1710 = vmatprep.subr.bf16.mxu0 0
      %1711 = vmatpush1.bf16.xpose.msra.mxu0 0
      %1712 = vmatprep.subr.bf16.mxu0 0
      %1713 = vmatpush1.bf16.xpose.msra.mxu0 0
      %1714 = vmatprep.subr.bf16.mxu0 0
      %1715 = vmatpush1.bf16.xpose.msra.mxu0 0
      %1716 = vmatprep.subr.bf16.mxu0 0
      %1717 = vmatpush1.bf16.xpose.msra.mxu0 0
      %1718 = vmatprep.subr.bf16.mxu0 0
      %1719 = vmatpush1.bf16.xpose.msra.mxu0 0
      %1720 = vmatprep.subr.bf16.mxu0 0
      %1721 = vmatpush1.bf16.xpose.msra.mxu0 0
      %1722 = vmatprep.subr.bf16.mxu0 0
      %1723 = vmatpush1.bf16.xpose.msra.mxu0 0
      %1724 = vmatprep.subr.bf16.mxu0 0
      %1725 = vmatpush1.bf16.xpose.msra.mxu0 0
      %1726 = vmatprep.subr.bf16.mxu0 0
      %1727 = vmatpush1.bf16.xpose.msra.mxu0 0
      %1728 = vmatprep.subr.bf16.mxu0 0
      %1729 = vmatpush1.bf16.xpose.msra.mxu0 0
      %1730 = vmatprep.subr.bf16.mxu0 0
      %1731 = vmatpush1.bf16.xpose.msra.mxu0 0
      %1732 = vmatprep.subr.bf16.mxu0 0
      %1733 = vmatpush1.bf16.xpose.msra.mxu0 0
      %1734 = vmatprep.subr.bf16.mxu0 0
      %1735 = vmatpush1.bf16.xpose.msra.mxu0 0
      %1736 = vmatprep.mubr.bf16.mxu0 0
      %1737 = vmatmul.mubr.bf16.gmra.mrb[0].mxu0 %v1699
      %v1738 = vpop.f32.mrb[0].mxu0
      %v1739 = vadd.f32 0.0, %v1738
      %v1740 = vpop.f32.mrb[0].mxu0
      %v1741 = vpop.f32.mrb[0].mxu0
      %v1742 = vadd.f32 0.0, %v1741
      %v1743 = vpop.f32.mrb[0].mxu0
      %1744 = vdwg.mxu0
      %v1745 = vsel %vm935, %v1739, -inf
      %1746 = vmax.xlane.f32.xlu0 %v1745
      %v1747 = vpop.xlane.xlu0 %1746
      %v1748 = vsel %vm935, %v1742, -inf
      %1749 = vmax.xlane.f32.xlu0 %v1748
      %v1750 = vpop.xlane.xlu0 %1749
      %v1751 = vsub.f32 %v1739, %v1747
      %v1752 = vsub.f32 %v1742, %v1750
      %v1753 = vmul.f32 %v1751, 1.442695
      %v1754 = vpow.pop %v1753
      %v1755 = vmul.f32 %v1752, 1.442695
      %v1756 = vpow.pop %v1755
      %v1757 = vsel %vm935, %v1754, 0.0
      %1758 = vadd.xlane.f32.xlu0 %v1757
      %v1759 = vpop.xlane.xlu0 %1758
      %v1760 = vsel %vm935, %v1756, 0.0
      %1761 = vadd.xlane.f32.xlu0 %v1760
      %v1762 = vpop.xlane.xlu0 %1761
      %v1763 = vrcp.pop %v1759
      %v1764 = vrcp.pop %v1762
      %v1765 = vmul.f32 %v1754, %v1763
      %v1766 = vmul.f32 %v1756, %v1764
      %v1767 = vpack.c.bf16 %v1766, %v1765
      %v1768 = vpack.c.bf16 %v1693, %v1690
      %v1770 = vsel %vm935, %v1767, 0
      %1772 = vmatprep.subr.bf16.mxu0 0
      %1773 = vmatpush1.bf16.msra.mxu0 %v1768
      %1774 = vmatprep.subr.bf16.mxu0 0
      %1775 = vmatpush1.bf16.msra.mxu0 0
      %1776 = vmatprep.subr.bf16.mxu0 0
      %1777 = vmatpush1.bf16.msra.mxu0 0
      %1778 = vmatprep.subr.bf16.mxu0 0
      %1779 = vmatpush1.bf16.msra.mxu0 0
      %1780 = vmatprep.subr.bf16.mxu0 0
      %1781 = vmatpush1.bf16.msra.mxu0 0
      %1782 = vmatprep.subr.bf16.mxu0 0
      %1783 = vmatpush1.bf16.msra.mxu0 0
      %1784 = vmatprep.subr.bf16.mxu0 0
      %1785 = vmatpush1.bf16.msra.mxu0 0
      %1786 = vmatprep.subr.bf16.mxu0 0
      %1787 = vmatpush1.bf16.msra.mxu0 0
      %1788 = vmatprep.subr.bf16.mxu0 0
      %1789 = vmatpush1.bf16.msra.mxu0 0
      %1790 = vmatprep.subr.bf16.mxu0 0
      %1791 = vmatpush1.bf16.msra.mxu0 0
      %1792 = vmatprep.subr.bf16.mxu0 0
      %1793 = vmatpush1.bf16.msra.mxu0 0
      %1794 = vmatprep.subr.bf16.mxu0 0
      %1795 = vmatpush1.bf16.msra.mxu0 0
      %1796 = vmatprep.subr.bf16.mxu0 0
      %1797 = vmatpush1.bf16.msra.mxu0 0
      %1798 = vmatprep.subr.bf16.mxu0 0
      %1799 = vmatpush1.bf16.msra.mxu0 0
      %1800 = vmatprep.subr.bf16.mxu0 0
      %1801 = vmatpush1.bf16.msra.mxu0 0
      %1802 = vmatprep.subr.bf16.mxu0 0
      %1803 = vmatpush1.bf16.msra.mxu0 0
      %1804 = vmatprep.mubr.bf16.mxu0 0
      %1805 = vmatmul.mubr.bf16.gmra.mrb[0].mxu0 %v1770
      %v1806 = vpop.f32.mrb[0].mxu0
      %v1807 = vadd.f32 0.0, %v1806
      %v1808 = vpop.f32.mrb[0].mxu0
      %v1809 = vpop.f32.mrb[0].mxu0
      %v1810 = vadd.f32 0.0, %v1809
      %v1811 = vpop.f32.mrb[0].mxu0
      %1812 = vdwg.mxu0
      %v1813 = vpack.c.bf16 %v1810, %v1807
      %v1816 = vunpack.c.l.b16 %v662
      %v1817 = vunpack.c.l.b16 %v663
      %v1818 = vpack.c.b16 %v1817, %v1816
      %v1821 = vsel %vm935, %v1813, 0
      %1823 = vmatprep.subr.bf16.mxu0 0
      %1824 = vmatpush1.bf16.msra.mxu0 %v1818
      %1825 = vmatprep.subr.bf16.mxu0 0
      %1826 = vmatpush1.bf16.msra.mxu0 0
      %1827 = vmatprep.subr.bf16.mxu0 0
      %1828 = vmatpush1.bf16.msra.mxu0 0
      %1829 = vmatprep.subr.bf16.mxu0 0
      %1830 = vmatpush1.bf16.msra.mxu0 0
      %1831 = vmatprep.subr.bf16.mxu0 0
      %1832 = vmatpush1.bf16.msra.mxu0 0
      %1833 = vmatprep.subr.bf16.mxu0 0
      %1834 = vmatpush1.bf16.msra.mxu0 0
      %1835 = vmatprep.subr.bf16.mxu0 0
      %1836 = vmatpush1.bf16.msra.mxu0 0
      %1837 = vmatprep.subr.bf16.mxu0 0
      %1838 = vmatpush1.bf16.msra.mxu0 0
      %1839 = vmatprep.subr.bf16.mxu0 0
      %1840 = vmatpush1.bf16.msra.mxu0 0
      %1841 = vmatprep.subr.bf16.mxu0 0
      %1842 = vmatpush1.bf16.msra.mxu0 0
      %1843 = vmatprep.subr.bf16.mxu0 0
      %1844 = vmatpush1.bf16.msra.mxu0 0
      %1845 = vmatprep.subr.bf16.mxu0 0
      %1846 = vmatpush1.bf16.msra.mxu0 0
      %1847 = vmatprep.subr.bf16.mxu0 0
      %1848 = vmatpush1.bf16.msra.mxu0 0
      %1849 = vmatprep.subr.bf16.mxu0 0
      %1850 = vmatpush1.bf16.msra.mxu0 0
      %1851 = vmatprep.subr.bf16.mxu0 0
      %1852 = vmatpush1.bf16.msra.mxu0 0
      %1853 = vmatprep.subr.bf16.mxu0 0
      %1854 = vmatpush1.bf16.msra.mxu0 0
      %1855 = vmatprep.mubr.bf16.mxu0 0
      %1856 = vmatmul.mubr.bf16.gmra.mrb[0].mxu0 %v1821
      %v1857 = vpop.f32.mrb[0].mxu0
      %v1858 = vadd.f32 0.0, %v1857
      %v1859 = vpop.f32.mrb[0].mxu0
      %v1860 = vpop.f32.mrb[0].mxu0
      %v1861 = vadd.f32 0.0, %v1860
      %v1862 = vpop.f32.mrb[0].mxu0
      %1863 = vdwg.mxu0
      %v1864 = vadd.f32 %v1477, %v1858
      %v1865 = vadd.f32 %v1480, %v1861
      %v1867 = vlaneseq
      %v1868 = vshrl.u32 %v1867, 7
      %v1869 = vsub.s32 0, %v1868
      %v1870 = vrot.slane %v585, %v1869
      %v1880 = vunpack.c.l.b16 %v574
      %v1881 = vunpack.c.l.b16 %v575
      %v1882 = vunpack.c.l.b16 %v576
      %v1883 = vunpack.c.l.b16 %v577
      %v1884 = vunpack.c.l.b16 %v578
      %v1885 = vunpack.c.l.b16 %v579
      %v1886 = vunpack.c.l.b16 %v580
      %v1887 = vunpack.c.l.b16 %v581
      %v1888 = vpack.c.b16 %v1881, %v1880
      %v1889 = vpack.c.b16 %v1883, %v1882
      %v1890 = vpack.c.b16 %v1885, %v1884
      %v1891 = vpack.c.b16 %v1887, %v1886
      %1896 = vmatprep.subr.bf16.mxu0 0
      %1897 = vmatpush1.bf16.msra.mxu0 %v1888
      %1898 = vmatprep.subr.bf16.mxu0 0
      %1899 = vmatpush1.bf16.msra.mxu0 %v1889
      %1900 = vmatprep.subr.bf16.mxu0 0
      %1901 = vmatpush1.bf16.msra.mxu0 %v1890
      %1902 = vmatprep.subr.bf16.mxu0 0
      %1903 = vmatpush1.bf16.msra.mxu0 %v1891
      %1904 = vmatprep.subr.bf16.mxu0 0
      %1905 = vmatpush1.bf16.msra.mxu0 0
      %1906 = vmatprep.subr.bf16.mxu0 0
      %1907 = vmatpush1.bf16.msra.mxu0 0
      %1908 = vmatprep.subr.bf16.mxu0 0
      %1909 = vmatpush1.bf16.msra.mxu0 0
      %1910 = vmatprep.subr.bf16.mxu0 0
      %1911 = vmatpush1.bf16.msra.mxu0 0
      %1912 = vmatprep.subr.bf16.mxu0 0
      %1913 = vmatpush1.bf16.msra.mxu0 0
      %1914 = vmatprep.subr.bf16.mxu0 0
      %1915 = vmatpush1.bf16.msra.mxu0 0
      %1916 = vmatprep.subr.bf16.mxu0 0
      %1917 = vmatpush1.bf16.msra.mxu0 0
      %1918 = vmatprep.subr.bf16.mxu0 0
      %1919 = vmatpush1.bf16.msra.mxu0 0
      %1920 = vmatprep.subr.bf16.mxu0 0
      %1921 = vmatpush1.bf16.msra.mxu0 0
      %1922 = vmatprep.subr.bf16.mxu0 0
      %1923 = vmatpush1.bf16.msra.mxu0 0
      %1924 = vmatprep.subr.bf16.mxu0 0
      %1925 = vmatpush1.bf16.msra.mxu0 0
      %1926 = vmatprep.subr.bf16.mxu0 0
      %1927 = vmatpush1.bf16.msra.mxu0 0
      %1928 = vmatprep.mubr.bf16.mxu0 0
      %1929 = vmatmul.mubr.bf16.gmra.mrb[0].mxu0 %v748
      %v1930 = vpop.f32.mrb[0].mxu0
      %v1931 = vadd.f32 %v1870, %v1930
      %v1932 = vpop.f32.mrb[0].mxu0
      %v1933 = vpop.f32.mrb[0].mxu0
      %v1934 = vadd.f32 %v1870, %v1933
      %v1935 = vpop.f32.mrb[0].mxu0
      %1936 = vdwg.mxu0
      %v1938 = vlaneseq
      %v1939 = vshrl.u32 %v1938, 7
      %v1940 = vsub.s32 0, %v1939
      %v1941 = vrot.slane %v621, %v1940
      %v1951 = vunpack.c.l.b16 %v610
      %v1952 = vunpack.c.l.b16 %v611
      %v1953 = vunpack.c.l.b16 %v612
      %v1954 = vunpack.c.l.b16 %v613
      %v1955 = vunpack.c.l.b16 %v614
      %v1956 = vunpack.c.l.b16 %v615
      %v1957 = vunpack.c.l.b16 %v616
      %v1958 = vunpack.c.l.b16 %v617
      %v1959 = vpack.c.b16 %v1952, %v1951
      %v1960 = vpack.c.b16 %v1954, %v1953
      %v1961 = vpack.c.b16 %v1956, %v1955
      %v1962 = vpack.c.b16 %v1958, %v1957
      %1967 = vmatprep.subr.bf16.mxu0 0
      %1968 = vmatpush1.bf16.msra.mxu0 %v1959
      %1969 = vmatprep.subr.bf16.mxu0 0
      %1970 = vmatpush1.bf16.msra.mxu0 %v1960
      %1971 = vmatprep.subr.bf16.mxu0 0
      %1972 = vmatpush1.bf16.msra.mxu0 %v1961
      %1973 = vmatprep.subr.bf16.mxu0 0
      %1974 = vmatpush1.bf16.msra.mxu0 %v1962
      %1975 = vmatprep.subr.bf16.mxu0 0
      %1976 = vmatpush1.bf16.msra.mxu0 0
      %1977 = vmatprep.subr.bf16.mxu0 0
      %1978 = vmatpush1.bf16.msra.mxu0 0
      %1979 = vmatprep.subr.bf16.mxu0 0
      %1980 = vmatpush1.bf16.msra.mxu0 0
      %1981 = vmatprep.subr.bf16.mxu0 0
      %1982 = vmatpush1.bf16.msra.mxu0 0
      %1983 = vmatprep.subr.bf16.mxu0 0
      %1984 = vmatpush1.bf16.msra.mxu0 0
      %1985 = vmatprep.subr.bf16.mxu0 0
      %1986 = vmatpush1.bf16.msra.mxu0 0
      %1987 = vmatprep.subr.bf16.mxu0 0
      %1988 = vmatpush1.bf16.msra.mxu0 0
      %1989 = vmatprep.subr.bf16.mxu0 0
      %1990 = vmatpush1.bf16.msra.mxu0 0
      %1991 = vmatprep.subr.bf16.mxu0 0
      %1992 = vmatpush1.bf16.msra.mxu0 0
      %1993 = vmatprep.subr.bf16.mxu0 0
      %1994 = vmatpush1.bf16.msra.mxu0 0
      %1995 = vmatprep.subr.bf16.mxu0 0
      %1996 = vmatpush1.bf16.msra.mxu0 0
      %1997 = vmatprep.subr.bf16.mxu0 0
      %1998 = vmatpush1.bf16.msra.mxu0 0
      %1999 = vmatprep.mubr.bf16.mxu0 0
      %2000 = vmatmul.mubr.bf16.gmra.mrb[0].mxu0 %v748
      %v2001 = vpop.f32.mrb[0].mxu0
      %v2002 = vadd.f32 %v1941, %v2001
      %v2003 = vpop.f32.mrb[0].mxu0
      %v2004 = vpop.f32.mrb[0].mxu0
      %v2005 = vadd.f32 %v1941, %v2004
      %v2006 = vpop.f32.mrb[0].mxu0
      %2007 = vdwg.mxu0
      %v2009 = vlaneseq
      %v2010 = vshrl.u32 %v2009, 7
      %v2011 = vsub.s32 0, %v2010
      %v2012 = vrot.slane %v657, %v2011
      %v2022 = vunpack.c.l.b16 %v646
      %v2023 = vunpack.c.l.b16 %v647
      %v2024 = vunpack.c.l.b16 %v648
      %v2025 = vunpack.c.l.b16 %v649
      %v2026 = vunpack.c.l.b16 %v650
      %v2027 = vunpack.c.l.b16 %v651
      %v2028 = vunpack.c.l.b16 %v652
      %v2029 = vunpack.c.l.b16 %v653
      %v2030 = vpack.c.b16 %v2023, %v2022
      %v2031 = vpack.c.b16 %v2025, %v2024
      %v2032 = vpack.c.b16 %v2027, %v2026
      %v2033 = vpack.c.b16 %v2029, %v2028
      %2038 = vmatprep.subr.bf16.mxu0 0
      %2039 = vmatpush1.bf16.msra.mxu0 %v2030
      %2040 = vmatprep.subr.bf16.mxu0 0
      %2041 = vmatpush1.bf16.msra.mxu0 %v2031
      %2042 = vmatprep.subr.bf16.mxu0 0
      %2043 = vmatpush1.bf16.msra.mxu0 %v2032
      %2044 = vmatprep.subr.bf16.mxu0 0
      %2045 = vmatpush1.bf16.msra.mxu0 %v2033
      %2046 = vmatprep.subr.bf16.mxu0 0
      %2047 = vmatpush1.bf16.msra.mxu0 0
      %2048 = vmatprep.subr.bf16.mxu0 0
      %2049 = vmatpush1.bf16.msra.mxu0 0
      %2050 = vmatprep.subr.bf16.mxu0 0
      %2051 = vmatpush1.bf16.msra.mxu0 0
      %2052 = vmatprep.subr.bf16.mxu0 0
      %2053 = vmatpush1.bf16.msra.mxu0 0
      %2054 = vmatprep.subr.bf16.mxu0 0
      %2055 = vmatpush1.bf16.msra.mxu0 0
      %2056 = vmatprep.subr.bf16.mxu0 0
      %2057 = vmatpush1.bf16.msra.mxu0 0
      %2058 = vmatprep.subr.bf16.mxu0 0
      %2059 = vmatpush1.bf16.msra.mxu0 0
      %2060 = vmatprep.subr.bf16.mxu0 0
      %2061 = vmatpush1.bf16.msra.mxu0 0
      %2062 = vmatprep.subr.bf16.mxu0 0
      %2063 = vmatpush1.bf16.msra.mxu0 0
      %2064 = vmatprep.subr.bf16.mxu0 0
      %2065 = vmatpush1.bf16.msra.mxu0 0
      %2066 = vmatprep.subr.bf16.mxu0 0
      %2067 = vmatpush1.bf16.msra.mxu0 0
      %2068 = vmatprep.subr.bf16.mxu0 0
      %2069 = vmatpush1.bf16.msra.mxu0 0
      %2070 = vmatprep.mubr.bf16.mxu0 0
      %2071 = vmatmul.mubr.bf16.gmra.mrb[0].mxu0 %v748
      %v2072 = vpop.f32.mrb[0].mxu0
      %v2073 = vadd.f32 %v2012, %v2072
      %v2074 = vpop.f32.mrb[0].mxu0
      %v2075 = vpop.f32.mrb[0].mxu0
      %v2076 = vadd.f32 %v2012, %v2075
      %v2077 = vpop.f32.mrb[0].mxu0
      %2078 = vdwg.mxu0
      %v2079 = vpack.c.bf16 %v1934, %v1931
      %v2080 = vpack.c.bf16 %v2005, %v2002
      %v2082 = vsel %vm935, %v2079, 0
      %v2085 = vsel %vm935, %v2080, 0
      %2087 = vmatprep.subr.bf16.mxu0 0
      %2088 = vmatpush1.bf16.xpose.msra.mxu0 %v2085
      %2089 = vmatprep.subr.bf16.mxu0 0
      %2090 = vmatpush1.bf16.xpose.msra.mxu0 0
      %2091 = vmatprep.subr.bf16.mxu0 0
      %2092 = vmatpush1.bf16.xpose.msra.mxu0 0
      %2093 = vmatprep.subr.bf16.mxu0 0
      %2094 = vmatpush1.bf16.xpose.msra.mxu0 0
      %2095 = vmatprep.subr.bf16.mxu0 0
      %2096 = vmatpush1.bf16.xpose.msra.mxu0 0
      %2097 = vmatprep.subr.bf16.mxu0 0
      %2098 = vmatpush1.bf16.xpose.msra.mxu0 0
      %2099 = vmatprep.subr.bf16.mxu0 0
      %2100 = vmatpush1.bf16.xpose.msra.mxu0 0
      %2101 = vmatprep.subr.bf16.mxu0 0
      %2102 = vmatpush1.bf16.xpose.msra.mxu0 0
      %2103 = vmatprep.subr.bf16.mxu0 0
      %2104 = vmatpush1.bf16.xpose.msra.mxu0 0
      %2105 = vmatprep.subr.bf16.mxu0 0
      %2106 = vmatpush1.bf16.xpose.msra.mxu0 0
      %2107 = vmatprep.subr.bf16.mxu0 0
      %2108 = vmatpush1.bf16.xpose.msra.mxu0 0
      %2109 = vmatprep.subr.bf16.mxu0 0
      %2110 = vmatpush1.bf16.xpose.msra.mxu0 0
      %2111 = vmatprep.subr.bf16.mxu0 0
      %2112 = vmatpush1.bf16.xpose.msra.mxu0 0
      %2113 = vmatprep.subr.bf16.mxu0 0
      %2114 = vmatpush1.bf16.xpose.msra.mxu0 0
      %2115 = vmatprep.subr.bf16.mxu0 0
      %2116 = vmatpush1.bf16.xpose.msra.mxu0 0
      %2117 = vmatprep.subr.bf16.mxu0 0
      %2118 = vmatpush1.bf16.xpose.msra.mxu0 0
      %2119 = vmatprep.mubr.bf16.mxu0 0
      %2120 = vmatmul.mubr.bf16.gmra.mrb[0].mxu0 %v2082
      %v2121 = vpop.f32.mrb[0].mxu0
      %v2122 = vadd.f32 0.0, %v2121
      %v2123 = vpop.f32.mrb[0].mxu0
      %v2124 = vpop.f32.mrb[0].mxu0
      %v2125 = vadd.f32 0.0, %v2124
      %v2126 = vpop.f32.mrb[0].mxu0
      %2127 = vdwg.mxu0
      %v2128 = vsel %vm935, %v2122, -inf
      %2129 = vmax.xlane.f32.xlu0 %v2128
      %v2130 = vpop.xlane.xlu0 %2129
      %v2131 = vsel %vm935, %v2125, -inf
      %2132 = vmax.xlane.f32.xlu0 %v2131
      %v2133 = vpop.xlane.xlu0 %2132
      %v2134 = vsub.f32 %v2122, %v2130
      %v2135 = vsub.f32 %v2125, %v2133
      %v2136 = vmul.f32 %v2134, 1.442695
      %v2137 = vpow.pop %v2136
      %v2138 = vmul.f32 %v2135, 1.442695
      %v2139 = vpow.pop %v2138
      %v2140 = vsel %vm935, %v2137, 0.0
      %2141 = vadd.xlane.f32.xlu0 %v2140
      %v2142 = vpop.xlane.xlu0 %2141
      %v2143 = vsel %vm935, %v2139, 0.0
      %2144 = vadd.xlane.f32.xlu0 %v2143
      %v2145 = vpop.xlane.xlu0 %2144
      %v2146 = vrcp.pop %v2142
      %v2147 = vrcp.pop %v2145
      %v2148 = vmul.f32 %v2137, %v2146
      %v2149 = vmul.f32 %v2139, %v2147
      %v2150 = vpack.c.bf16 %v2149, %v2148
      %v2151 = vpack.c.bf16 %v2076, %v2073
      %v2153 = vsel %vm935, %v2150, 0
      %2155 = vmatprep.subr.bf16.mxu0 0
      %2156 = vmatpush1.bf16.msra.mxu0 %v2151
      %2157 = vmatprep.subr.bf16.mxu0 0
      %2158 = vmatpush1.bf16.msra.mxu0 0
      %2159 = vmatprep.subr.bf16.mxu0 0
      %2160 = vmatpush1.bf16.msra.mxu0 0
      %2161 = vmatprep.subr.bf16.mxu0 0
      %2162 = vmatpush1.bf16.msra.mxu0 0
      %2163 = vmatprep.subr.bf16.mxu0 0
      %2164 = vmatpush1.bf16.msra.mxu0 0
      %2165 = vmatprep.subr.bf16.mxu0 0
      %2166 = vmatpush1.bf16.msra.mxu0 0
      %2167 = vmatprep.subr.bf16.mxu0 0
      %2168 = vmatpush1.bf16.msra.mxu0 0
      %2169 = vmatprep.subr.bf16.mxu0 0
      %2170 = vmatpush1.bf16.msra.mxu0 0
      %2171 = vmatprep.subr.bf16.mxu0 0
      %2172 = vmatpush1.bf16.msra.mxu0 0
      %2173 = vmatprep.subr.bf16.mxu0 0
      %2174 = vmatpush1.bf16.msra.mxu0 0
      %2175 = vmatprep.subr.bf16.mxu0 0
      %2176 = vmatpush1.bf16.msra.mxu0 0
      %2177 = vmatprep.subr.bf16.mxu0 0
      %2178 = vmatpush1.bf16.msra.mxu0 0
      %2179 = vmatprep.subr.bf16.mxu0 0
      %2180 = vmatpush1.bf16.msra.mxu0 0
      %2181 = vmatprep.subr.bf16.mxu0 0
      %2182 = vmatpush1.bf16.msra.mxu0 0
      %2183 = vmatprep.subr.bf16.mxu0 0
      %2184 = vmatpush1.bf16.msra.mxu0 0
      %2185 = vmatprep.subr.bf16.mxu0 0
      %2186 = vmatpush1.bf16.msra.mxu0 0
      %2187 = vmatprep.mubr.bf16.mxu0 0
      %2188 = vmatmul.mubr.bf16.gmra.mrb[0].mxu0 %v2153
      %v2189 = vpop.f32.mrb[0].mxu0
      %v2190 = vadd.f32 0.0, %v2189
      %v2191 = vpop.f32.mrb[0].mxu0
      %v2192 = vpop.f32.mrb[0].mxu0
      %v2193 = vadd.f32 0.0, %v2192
      %v2194 = vpop.f32.mrb[0].mxu0
      %2195 = vdwg.mxu0
      %v2196 = vpack.c.bf16 %v2193, %v2190
      %v2199 = vunpack.c.l.b16 %v664
      %v2200 = vunpack.c.l.b16 %v665
      %v2201 = vpack.c.b16 %v2200, %v2199
      %v2204 = vsel %vm935, %v2196, 0
      %2206 = vmatprep.subr.bf16.mxu0 0
      %2207 = vmatpush1.bf16.msra.mxu0 %v2201
      %2208 = vmatprep.subr.bf16.mxu0 0
      %2209 = vmatpush1.bf16.msra.mxu0 0
      %2210 = vmatprep.subr.bf16.mxu0 0
      %2211 = vmatpush1.bf16.msra.mxu0 0
      %2212 = vmatprep.subr.bf16.mxu0 0
      %2213 = vmatpush1.bf16.msra.mxu0 0
      %2214 = vmatprep.subr.bf16.mxu0 0
      %2215 = vmatpush1.bf16.msra.mxu0 0
      %2216 = vmatprep.subr.bf16.mxu0 0
      %2217 = vmatpush1.bf16.msra.mxu0 0
      %2218 = vmatprep.subr.bf16.mxu0 0
      %2219 = vmatpush1.bf16.msra.mxu0 0
      %2220 = vmatprep.subr.bf16.mxu0 0
      %2221 = vmatpush1.bf16.msra.mxu0 0
      %2222 = vmatprep.subr.bf16.mxu0 0
      %2223 = vmatpush1.bf16.msra.mxu0 0
      %2224 = vmatprep.subr.bf16.mxu0 0
      %2225 = vmatpush1.bf16.msra.mxu0 0
      %2226 = vmatprep.subr.bf16.mxu0 0
      %2227 = vmatpush1.bf16.msra.mxu0 0
      %2228 = vmatprep.subr.bf16.mxu0 0
      %2229 = vmatpush1.bf16.msra.mxu0 0
      %2230 = vmatprep.subr.bf16.mxu0 0
      %2231 = vmatpush1.bf16.msra.mxu0 0
      %2232 = vmatprep.subr.bf16.mxu0 0
      %2233 = vmatpush1.bf16.msra.mxu0 0
      %2234 = vmatprep.subr.bf16.mxu0 0
      %2235 = vmatpush1.bf16.msra.mxu0 0
      %2236 = vmatprep.subr.bf16.mxu0 0
      %2237 = vmatpush1.bf16.msra.mxu0 0
      %2238 = vmatprep.mubr.bf16.mxu0 0
      %2239 = vmatmul.mubr.bf16.gmra.mrb[0].mxu0 %v2204
      %v2240 = vpop.f32.mrb[0].mxu0
      %v2241 = vadd.f32 0.0, %v2240
      %v2242 = vpop.f32.mrb[0].mxu0
      %v2243 = vpop.f32.mrb[0].mxu0
      %v2244 = vadd.f32 0.0, %v2243
      %v2245 = vpop.f32.mrb[0].mxu0
      %2246 = vdwg.mxu0
      %v2247 = vadd.f32 %v1864, %v2241
      %v2248 = vadd.f32 %v1865, %v2244
      %v2250 = vlaneseq
      %v2251 = vshrl.u32 %v2250, 7
      %v2252 = vsub.s32 0, %v2251
      %v2253 = vrot.slane %v666, %v2252
      %v2255 = vadd.f32 %v2247, %v2253
      %v2256 = vadd.f32 %v2248, %v2253
      %v2257 = vadd.f32 %v713, %v2255
      %v2258 = vadd.f32 %v714, %v2256
      %v2259 = vsel %vm746, %v2257, 0.0
      %2260 = vadd.xlane.f32.xlu0 %v2259
      %v2261 = vpop.xlane.xlu0 %2260
      %v2262 = vsel %vm746, %v2258, 0.0
      %2263 = vadd.xlane.f32.xlu0 %v2262
      %v2264 = vpop.xlane.xlu0 %2263
      %v2265 = vrcp.pop 64.0
      %v2266 = vmul.f32 %v2261, %v2265
      %v2267 = vmul.f32 %v2264, %v2265
      %v2268 = vsub.f32 %v2257, %v2266
      %v2269 = vsub.f32 %v2258, %v2267
      %v2270 = vmul.f32 %v2268, %v2268
      %v2271 = vmul.f32 %v2269, %v2269
      %v2272 = vsel %vm746, %v2270, 0.0
      %2273 = vadd.xlane.f32.xlu0 %v2272
      %v2274 = vpop.xlane.xlu0 %2273
      %v2275 = vsel %vm746, %v2271, 0.0
      %2276 = vadd.xlane.f32.xlu0 %v2275
      %v2277 = vpop.xlane.xlu0 %2276
      %v2278 = vmul.f32 %v2274, %v2265
      %v2279 = vmul.f32 %v2277, %v2265
      %v2280 = vadd.f32 %v2278, 1e-05
      %v2281 = vadd.f32 %v2279, 1e-05
      %v2282 = vrsqrt.pop %v2280
      %v2283 = vrsqrt.pop %v2281
      %v2284 = vmul.f32 %v2268, %v2282
      %v2285 = vmul.f32 %v2269, %v2283
      %v2287 = vlaneseq
      %v2288 = vshrl.u32 %v2287, 7
      %v2289 = vsub.s32 0, %v2288
      %v2290 = vrot.slane %v667, %v2289
      %v2292 = vmul.f32 %v2284, %v2290
      %v2293 = vmul.f32 %v2285, %v2290
      %v2295 = vlaneseq
      %v2296 = vshrl.u32 %v2295, 7
      %v2297 = vsub.s32 0, %v2296
      %v2298 = vrot.slane %v668, %v2297
      %v2300 = vadd.f32 %v2292, %v2298
      %v2301 = vadd.f32 %v2293, %v2298
      %v2302 = vpack.c.bf16 %v2301, %v2300
      %v2304 = vlaneseq
      %v2305 = vshrl.u32 %v2304, 7
      %v2306 = vsub.s32 0, %v2305
      %v2307 = vrot.slane %v677, %v2306
      %v2308 = vlaneseq
      %v2309 = vshrl.u32 %v2308, 7
      %v2310 = vsub.s32 1, %v2309
      %v2311 = vrot.slane %v677, %v2310
      %v2322 = vunpack.c.l.b16 %v669
      %v2323 = vunpack.c.h.b16 %v669
      %v2324 = vunpack.c.l.b16 %v670
      %v2325 = vunpack.c.h.b16 %v670
      %v2326 = vunpack.c.l.b16 %v671
      %v2327 = vunpack.c.h.b16 %v671
      %v2328 = vunpack.c.l.b16 %v672
      %v2329 = vunpack.c.h.b16 %v672
      %v2330 = vunpack.c.l.b16 %v673
      %v2331 = vunpack.c.h.b16 %v673
      %v2332 = vunpack.c.l.b16 %v674
      %v2333 = vunpack.c.h.b16 %v674
      %v2334 = vunpack.c.l.b16 %v675
      %v2335 = vunpack.c.h.b16 %v675
      %v2336 = vunpack.c.l.b16 %v676
      %v2337 = vunpack.c.h.b16 %v676
      %v2338 = vpack.c.b16 %v2324, %v2322
      %v2339 = vpack.c.b16 %v2325, %v2323
      %v2340 = vpack.c.b16 %v2328, %v2326
      %v2341 = vpack.c.b16 %v2329, %v2327
      %v2342 = vpack.c.b16 %v2332, %v2330
      %v2343 = vpack.c.b16 %v2333, %v2331
      %v2344 = vpack.c.b16 %v2336, %v2334
      %v2345 = vpack.c.b16 %v2337, %v2335
      %v2355 = vsel %vm746, %v2302, 0
      %2357 = vmatprep.subr.bf16.mxu0 %v2339
      %2358 = vmatpush1.bf16.msra.mxu0 %v2338
      %2359 = vmatprep.subr.bf16.mxu0 %v2341
      %2360 = vmatpush1.bf16.msra.mxu0 %v2340
      %2361 = vmatprep.subr.bf16.mxu0 %v2343
      %2362 = vmatpush1.bf16.msra.mxu0 %v2342
      %2363 = vmatprep.subr.bf16.mxu0 %v2345
      %2364 = vmatpush1.bf16.msra.mxu0 %v2344
      %2365 = vmatprep.subr.bf16.mxu0 0
      %2366 = vmatpush1.bf16.msra.mxu0 0
      %2367 = vmatprep.subr.bf16.mxu0 0
      %2368 = vmatpush1.bf16.msra.mxu0 0
      %2369 = vmatprep.subr.bf16.mxu0 0
      %2370 = vmatpush1.bf16.msra.mxu0 0
      %2371 = vmatprep.subr.bf16.mxu0 0
      %2372 = vmatpush1.bf16.msra.mxu0 0
      %2373 = vmatprep.subr.bf16.mxu0 0
      %2374 = vmatpush1.bf16.msra.mxu0 0
      %2375 = vmatprep.subr.bf16.mxu0 0
      %2376 = vmatpush1.bf16.msra.mxu0 0
      %2377 = vmatprep.subr.bf16.mxu0 0
      %2378 = vmatpush1.bf16.msra.mxu0 0
      %2379 = vmatprep.subr.bf16.mxu0 0
      %2380 = vmatpush1.bf16.msra.mxu0 0
      %2381 = vmatprep.subr.bf16.mxu0 0
      %2382 = vmatpush1.bf16.msra.mxu0 0
      %2383 = vmatprep.subr.bf16.mxu0 0
      %2384 = vmatpush1.bf16.msra.mxu0 0
      %2385 = vmatprep.subr.bf16.mxu0 0
      %2386 = vmatpush1.bf16.msra.mxu0 0
      %2387 = vmatprep.subr.bf16.mxu0 0
      %2388 = vmatpush1.bf16.msra.mxu0 0
      %2389 = vmatprep.mubr.bf16.mxu0 0
      %2390 = vmatmul.mubr.bf16.gmra.mrb[0].mxu0 %v2355
      %v2391 = vpop.f32.mrb[0].mxu0
      %v2392 = vadd.f32 %v2307, %v2391
      %v2393 = vpop.f32.mrb[0].mxu0
      %v2394 = vadd.f32 %v2311, %v2393
      %v2395 = vpop.f32.mrb[0].mxu0
      %v2396 = vadd.f32 %v2307, %v2395
      %v2397 = vpop.f32.mrb[0].mxu0
      %v2398 = vadd.f32 %v2311, %v2397
      %2399 = vdwg.mxu0
      %v2400 = vmax.f32 %v2392, 0.0
      %v2401 = vmax.f32 %v2394, 0.0
      %v2402 = vmax.f32 %v2396, 0.0
      %v2403 = vmax.f32 %v2398, 0.0
      %v2404 = vpack.c.bf16 %v2402, %v2400
      %v2405 = vpack.c.bf16 %v2403, %v2401
      %v2407 = vlaneseq
      %v2408 = vshrl.u32 %v2407, 7
      %v2409 = vsub.s32 0, %v2408
      %v2410 = vrot.slane %v710, %v2409
      %v2444 = vunpack.c.l.b16 %v678
      %v2445 = vunpack.c.l.b16 %v679
      %v2446 = vunpack.c.l.b16 %v680
      %v2447 = vunpack.c.l.b16 %v681
      %v2448 = vunpack.c.l.b16 %v682
      %v2449 = vunpack.c.l.b16 %v683
      %v2450 = vunpack.c.l.b16 %v684
      %v2451 = vunpack.c.l.b16 %v685
      %v2452 = vunpack.c.l.b16 %v686
      %v2453 = vunpack.c.l.b16 %v687
      %v2454 = vunpack.c.l.b16 %v688
      %v2455 = vunpack.c.l.b16 %v689
      %v2456 = vunpack.c.l.b16 %v690
      %v2457 = vunpack.c.l.b16 %v691
      %v2458 = vunpack.c.l.b16 %v692
      %v2459 = vunpack.c.l.b16 %v693
      %v2460 = vunpack.c.l.b16 %v694
      %v2461 = vunpack.c.l.b16 %v695
      %v2462 = vunpack.c.l.b16 %v696
      %v2463 = vunpack.c.l.b16 %v697
      %v2464 = vunpack.c.l.b16 %v698
      %v2465 = vunpack.c.l.b16 %v699
      %v2466 = vunpack.c.l.b16 %v700
      %v2467 = vunpack.c.l.b16 %v701
      %v2468 = vunpack.c.l.b16 %v702
      %v2469 = vunpack.c.l.b16 %v703
      %v2470 = vunpack.c.l.b16 %v704
      %v2471 = vunpack.c.l.b16 %v705
      %v2472 = vunpack.c.l.b16 %v706
      %v2473 = vunpack.c.l.b16 %v707
      %v2474 = vunpack.c.l.b16 %v708
      %v2475 = vunpack.c.l.b16 %v709
      %v2476 = vpack.c.b16 %v2445, %v2444
      %v2477 = vpack.c.b16 %v2447, %v2446
      %v2478 = vpack.c.b16 %v2449, %v2448
      %v2479 = vpack.c.b16 %v2451, %v2450
      %v2480 = vpack.c.b16 %v2453, %v2452
      %v2481 = vpack.c.b16 %v2455, %v2454
      %v2482 = vpack.c.b16 %v2457, %v2456
      %v2483 = vpack.c.b16 %v2459, %v2458
      %v2484 = vpack.c.b16 %v2461, %v2460
      %v2485 = vpack.c.b16 %v2463, %v2462
      %v2486 = vpack.c.b16 %v2465, %v2464
      %v2487 = vpack.c.b16 %v2467, %v2466
      %v2488 = vpack.c.b16 %v2469, %v2468
      %v2489 = vpack.c.b16 %v2471, %v2470
      %v2490 = vpack.c.b16 %v2473, %v2472
      %v2491 = vpack.c.b16 %v2475, %v2474
      %2508 = vmatprep.subr.bf16.mxu0 0
      %2509 = vmatpush1.bf16.msra.mxu0 %v2476
      %2510 = vmatprep.subr.bf16.mxu0 0
      %2511 = vmatpush1.bf16.msra.mxu0 %v2477
      %2512 = vmatprep.subr.bf16.mxu0 0
      %2513 = vmatpush1.bf16.msra.mxu0 %v2478
      %2514 = vmatprep.subr.bf16.mxu0 0
      %2515 = vmatpush1.bf16.msra.mxu0 %v2479
      %2516 = vmatprep.subr.bf16.mxu0 0
      %2517 = vmatpush1.bf16.msra.mxu0 %v2480
      %2518 = vmatprep.subr.bf16.mxu0 0
      %2519 = vmatpush1.bf16.msra.mxu0 %v2481
      %2520 = vmatprep.subr.bf16.mxu0 0
      %2521 = vmatpush1.bf16.msra.mxu0 %v2482
      %2522 = vmatprep.subr.bf16.mxu0 0
      %2523 = vmatpush1.bf16.msra.mxu0 %v2483
      %2524 = vmatprep.subr.bf16.mxu0 0
      %2525 = vmatpush1.bf16.msra.mxu0 %v2484
      %2526 = vmatprep.subr.bf16.mxu0 0
      %2527 = vmatpush1.bf16.msra.mxu0 %v2485
      %2528 = vmatprep.subr.bf16.mxu0 0
      %2529 = vmatpush1.bf16.msra.mxu0 %v2486
      %2530 = vmatprep.subr.bf16.mxu0 0
      %2531 = vmatpush1.bf16.msra.mxu0 %v2487
      %2532 = vmatprep.subr.bf16.mxu0 0
      %2533 = vmatpush1.bf16.msra.mxu0 %v2488
      %2534 = vmatprep.subr.bf16.mxu0 0
      %2535 = vmatpush1.bf16.msra.mxu0 %v2489
      %2536 = vmatprep.subr.bf16.mxu0 0
      %2537 = vmatpush1.bf16.msra.mxu0 %v2490
      %2538 = vmatprep.subr.bf16.mxu0 0
      %2539 = vmatpush1.bf16.msra.mxu0 %v2491
      %2540 = vmatprep.mubr.bf16.mxu0 %v2405
      %2541 = vmatmul.mubr.bf16.gmra.mrb[0].mxu0 %v2404
      %v2542 = vpop.f32.mrb[0].mxu0
      %v2543 = vadd.f32 %v2410, %v2542
      %v2544 = vpop.f32.mrb[0].mxu0
      %v2545 = vpop.f32.mrb[0].mxu0
      %v2546 = vadd.f32 %v2410, %v2545
      %v2547 = vpop.f32.mrb[0].mxu0
      %2548 = vdwg.mxu0
      %v2549 = vadd.f32 %v2300, %v2543
      %v2550 = vadd.f32 %v2301, %v2546
      %v2551 = vsel %vm746, %v2549, 0.0
      %2552 = vadd.xlane.f32.xlu0 %v2551
      %v2553 = vpop.xlane.xlu0 %2552
      %v2554 = vsel %vm746, %v2550, 0.0
      %2555 = vadd.xlane.f32.xlu0 %v2554
      %v2556 = vpop.xlane.xlu0 %2555
      %v2557 = vmul.f32 %v2553, %v2265
      %v2558 = vmul.f32 %v2556, %v2265
      %v2559 = vsub.f32 %v2549, %v2557
      %v2560 = vsub.f32 %v2550, %v2558
      %v2561 = vmul.f32 %v2559, %v2559
      %v2562 = vmul.f32 %v2560, %v2560
      %v2563 = vsel %vm746, %v2561, 0.0
      %2564 = vadd.xlane.f32.xlu0 %v2563
      %v2565 = vpop.xlane.xlu0 %2564
      %v2566 = vsel %vm746, %v2562, 0.0
      %2567 = vadd.xlane.f32.xlu0 %v2566
      %v2568 = vpop.xlane.xlu0 %2567
      %v2569 = vmul.f32 %v2565, %v2265
      %v2570 = vmul.f32 %v2568, %v2265
      %v2571 = vadd.f32 %v2569, 1e-05
      %v2572 = vadd.f32 %v2570, 1e-05
      %v2573 = vrsqrt.pop %v2571
      %v2574 = vrsqrt.pop %v2572
      %v2575 = vmul.f32 %v2559, %v2573
      %v2576 = vmul.f32 %v2560, %v2574
      %v2578 = vlaneseq
      %v2579 = vshrl.u32 %v2578, 7
      %v2580 = vsub.s32 0, %v2579
      %v2581 = vrot.slane %v711, %v2580
      %v2583 = vmul.f32 %v2575, %v2581
      %v2584 = vmul.f32 %v2576, %v2581
      %v2586 = vlaneseq
      %v2587 = vshrl.u32 %v2586, 7
      %v2588 = vsub.s32 0, %v2587
      %v2589 = vrot.slane %v712, %v2588
      %v2591 = vadd.f32 %v2583, %v2589
      %v2592 = vadd.f32 %v2584, %v2589
      %2593 = vst.msk [vmem:[%s548] sm:$0xff] %vm746, %v2591
      %2594 = vst.msk [vmem:[%s548 + $0x8] sm:$0xff] %vm746, %v2592
      %p2595 = scmp.lt.s32.totalorder %s28, 1
      %s2596 = scalar_select %p2595, %s28, 1
      %s2597 = smul.addr %s2596, 2
      %s2598 = smul.addr %s2597, 8
      %s2599 = scalar_lea.vmem %s17, %s2598
      // Predicated region
      $region89: #{joint_estimator_forward.4} parent=87 // pred_check
        %p2600 = pneg %p408
      $region90: #{joint_estimator_forward.4} parent=87 // pred_check_branch
        %2602 = sbr.rel (%p2600) target = $region92
      $region91: #{joint_estimator_forward.4} parent=87 // pred_region
        _
      $region92: #{joint_estimator_forward.4} parent=87 // pred_fallthru
        _
    $region88: #{joint_estimator_forward.4} parent=5 // pred_fallthru
      _
    %p2603 = scmp.le.s32.totalorder 2, %s23
    // Predicated region
    $region93: #{joint_estimator_forward.4} parent=5 // pred_check
      %p2604 = pneg %p2603
    $region94: #{joint_estimator_forward.4} parent=5 // pred_check_branch
      %2606 = sbr.rel (%p2604) target = $region96
    $region95: #{joint_estimator_forward.4} parent=5 // pred_region
      %s2607 = ssub.s32 %s23, 2
      // Predicated region
      $region97: #{joint_estimator_forward.4} parent=95 // pred_check
        %p2608 = pneg %p414
      $region98: #{joint_estimator_forward.4} parent=95 // pred_check_branch
        %2610 = sbr.rel (%p2608) target = $region100
      $region99: #{joint_estimator_forward.4} parent=95 // pred_region
        %p2611 = scmp.lt.s32.totalorder %s29, 1
        %s2612 = scalar_select %p2611, %s29, 1
        %s2613 = smul.addr %s2612, 2
        %s2614 = smul.addr %s2613, 8
        %s2615 = scalar_lea.vmem %s17, %s2614
      $region100: #{joint_estimator_forward.4} parent=95 // pred_fallthru
        _
    $region96: #{joint_estimator_forward.4} parent=5 // pred_fallthru
      _
  $region6: #{joint_estimator_forward.4} parent=0 // loop_footer
    %s27 = sadd.s32 1, %s23
  $region7: #{joint_estimator_forward.4} parent=0 // loop_footer_branch
    %22 = sbr.rel target = $region3
  $region8: #{joint_estimator_forward.4} parent=0 // loop_exit
    _

// kernel: joint_estimator_forward.5
$region0: #{joint_estimator_forward.5}
  #allocation0 [shape = 'u32[]', space=smem, size = 0x4, offset = 0x4, fixed_abs, tag = 'smem constant byte address 0x4 - core index']
  #allocation1 [shape = 'u32[144,128]{1,0:T(1,128)}', space=vmem, size = 0x12000, scoped, tag = 'internal scratch']
  #allocation2 [shape = 'f32[1,1]{1,0:T(1,128)S(1)}', space=vmem, size = 0x200, scoped, tag = 'scoped memory for joint_estimator_forward.5']
  #allocation3 [shape = 'f32[1,1]{1,0:T(1,128)S(1)}', space=vmem, size = 0x200, scoped, tag = 'scoped memory for joint_estimator_forward.5']
  %s0 = inlined_call_operand.smem [shape: u32[30], index: -1, kind: input, shape index: {}]
  %s1 = sld [smem:[%s0]]
  %s2 = scalar_lea.smem %s0, 1
  %s3 = sld [smem:[%s2]]
  %s4 = scalar_lea.smem %s0, 2
  %s5 = sld [smem:[%s4]]
  %s6 = scalar_lea.smem %s0, 3
  %s7 = sld [smem:[%s6]]
  %s8 = scalar_lea.smem %s0, 4
  %s9 = sld [smem:[%s8]]
  %s10 = scalar_lea.smem %s0, 5
  %s11 = sld [smem:[%s10]]
  %s12 = scalar_lea.smem %s0, 6
  %s13 = sld [smem:[%s12]]
  %s14 = scalar_lea.smem %s0, 7
  %s15 = sld [smem:[%s14]]
  %s16 = scalar_lea.smem %s0, 8
  %s17 = sld [smem:[%s16]]
  %s18 = scalar_lea.smem %s0, 9
  %s19 = sld [smem:[%s18]]
  %s20 = scalar_lea.smem %s0, 10
  %s21 = sld [smem:[%s20]]
  %s22 = scalar_lea.smem %s0, 11
  %s23 = sld [smem:[%s22]]
  %s24 = scalar_lea.smem %s0, 12
  %s25 = sld [smem:[%s24]]
  %s26 = scalar_lea.smem %s0, 13
  %s27 = sld [smem:[%s26]]
  %s28 = scalar_lea.smem %s0, 14
  %s29 = sld [smem:[%s28]]
  %s30 = scalar_lea.smem %s0, 15
  %s31 = sld [smem:[%s30]]
  %s32 = scalar_lea.smem %s0, 16
  %s33 = sld [smem:[%s32]]
  %s34 = scalar_lea.smem %s0, 17
  %s35 = sld [smem:[%s34]]
  %s36 = scalar_lea.smem %s0, 18
  %s37 = sld [smem:[%s36]]
  %s38 = scalar_lea.smem %s0, 19
  %s39 = sld [smem:[%s38]]
  %s40 = scalar_lea.smem %s0, 20
  %s41 = sld [smem:[%s40]]
  %s42 = scalar_lea.smem %s0, 21
  %s43 = sld [smem:[%s42]]
  %s44 = scalar_lea.smem %s0, 22
  %s45 = sld [smem:[%s44]]
  %s46 = scalar_lea.smem %s0, 23
  %s47 = sld [smem:[%s46]]
  %s48 = scalar_lea.smem %s0, 24
  %s49 = sld [smem:[%s48]]
  %s50 = scalar_lea.smem %s0, 25
  %s51 = sld [smem:[%s50]]
  %s52 = scalar_lea.smem %s0, 26
  %s53 = sld [smem:[%s52]]
  %s54 = scalar_lea.smem %s0, 27
  %s55 = sld [smem:[%s54]]
  %s56 = scalar_lea.smem %s0, 28
  %s57 = sld [smem:[%s56]]
  %s58 = scalar_lea.smem %s0, 29
  %s59 = sld [smem:[%s58]]
  %s60 = sld [smem:[#allocation0]]
  $region149: #{joint_estimator_forward.5} parent=0
    _
  %s62 = ssub.s32 1, %s60
  %s63 = scalar_select 0, %s62, %s60
  %v64 = vstv %s29
  %65 = vst [vmem:[#allocation2] sm:$0x1] %v64
  %v66 = vstv %s57
  %67 = vst [vmem:[#allocation3] sm:$0x1] %v66
  loop: start=0, step=1, limit=4
  $region2: #{joint_estimator_forward.5} parent=0 // loop_pre_header
    _
  $region3: #{joint_estimator_forward.5} parent=0 // loop_header
    %s69 = sphi 0, %s73
    %p70 = scmp.ge.s32.totalorder %s69, 4
    %s79 = sphi 0, %s81
    %s82 = sphi 0, %s79
    %s83 = sphi 0, %s82
    %s99 = sphi 0, %s83
    %s103 = sphi 0, %s103
    %s105 = sphi 0, %s103
    %s106 = sphi 0, %s105
    %s120 = sphi 0, %s106
    %s124 = sphi 0, %s124
    %s126 = sphi 0, %s124
    %s127 = sphi 0, %s126
    %s141 = sphi 0, %s127
    %s145 = sphi 0, %s145
    %s147 = sphi 0, %s145
    %s148 = sphi 0, %s147
    %s162 = sphi 0, %s148
    %s166 = sphi 0, %s166
    %s168 = sphi 0, %s166
    %s169 = sphi 0, %s168
    %s183 = sphi 0, %s169
    %s187 = sphi 0, %s187
    %s189 = sphi 0, %s187
    %s190 = sphi 0, %s189
    %s204 = sphi 0, %s190
    %s208 = sphi 0, %s208
    %s210 = sphi 0, %s208
    %s211 = sphi 0, %s210
    %s225 = sphi 0, %s211
    %s229 = sphi 0, %s229
    %s231 = sphi 0, %s229
    %s232 = sphi 0, %s231
    %s246 = sphi 0, %s232
    %s250 = sphi 0, %s250
    %s252 = sphi 0, %s250
    %s253 = sphi 0, %s252
    %s267 = sphi 0, %s253
    %s271 = sphi 0, %s271
    %s273 = sphi 0, %s271
    %s274 = sphi 0, %s273
    %s288 = sphi 0, %s274
    %s292 = sphi 0, %s292
    %s294 = sphi 0, %s292
    %s295 = sphi 0, %s294
    %s309 = sphi 0, %s295
    %s313 = sphi 0, %s313
    %s315 = sphi 0, %s313
    %s316 = sphi 0, %s315
    %s330 = sphi 0, %s316
    %s334 = sphi 0, %s334
    %s336 = sphi 0, %s334
    %s337 = sphi 0, %s336
    %s351 = sphi 0, %s337
    %s355 = sphi 0, %s355
    %s357 = sphi 0, %s355
    %s358 = sphi 0, %s357
    %s372 = sphi 0, %s358
    %s376 = sphi 0, %s376
    %s378 = sphi 0, %s376
    %s379 = sphi 0, %s378
    %s393 = sphi 0, %s379
    %s397 = sphi 0, %s397
    %s399 = sphi 0, %s397
    %s400 = sphi 0, %s399
    %s414 = sphi 0, %s400
    %s418 = sphi 0, %s418
    %s420 = sphi 0, %s418
    %s421 = sphi 0, %s420
    %s435 = sphi 0, %s421
    %s439 = sphi 0, %s439
    %s441 = sphi 0, %s439
    %s442 = sphi 0, %s441
    %s456 = sphi 0, %s442
    %s460 = sphi 0, %s460
    %s462 = sphi 0, %s460
    %s463 = sphi 0, %s462
    %s477 = sphi 0, %s463
    %s481 = sphi 0, %s481
    %s483 = sphi 0, %s481
    %s484 = sphi 0, %s483
    %s498 = sphi 0, %s484
    %s502 = sphi 0, %s502
    %s504 = sphi 0, %s502
    %s505 = sphi 0, %s504
    %s519 = sphi 0, %s505
    %s523 = sphi 0, %s523
    %s525 = sphi 0, %s523
    %s526 = sphi 0, %s525
    %s540 = sphi 0, %s526
    %s544 = sphi 0, %s544
    %s546 = sphi 0, %s544
    %s547 = sphi 0, %s546
    %s561 = sphi 0, %s547
    %s565 = sphi 0, %s565
    %s567 = sphi 0, %s565
    %s568 = sphi 0, %s567
    %s582 = sphi 0, %s568
    %s586 = sphi 0, %s586
    %s588 = sphi 0, %s586
    %s589 = sphi 0, %s588
    %s603 = sphi 0, %s589
    %s607 = sphi 0, %s607
    %s609 = sphi 0, %s607
    %s610 = sphi 0, %s609
    %s624 = sphi 0, %s610
    %s628 = sphi 0, %s628
    %s630 = sphi 0, %s628
    %s631 = sphi 0, %s630
    %s645 = sphi 0, %s631
    %s649 = sphi 0, %s649
    %s651 = sphi 0, %s649
    %s652 = sphi 0, %s651
    %s666 = sphi 0, %s652
    %s670 = sphi 0, %s670
    %s672 = sphi 0, %s670
    %s673 = sphi 0, %s672
    %s687 = sphi 0, %s673
    %s693 = sphi 0, %s695
    %s696 = sphi 0, %s693
    %s697 = sphi 0, %s696
    %s713 = sphi 0, %s697
  $region4: #{joint_estimator_forward.5} parent=0 // loop_header_branch
    %72 = sbr.rel (%p70) target = $region8
  $region5: #{joint_estimator_forward.5} parent=0 // loop_body
    %s74 = ssub.s32 %s69, 1
    %s75 = ssub.s32 %s69, 2
    %s76 = sadd.s32 %s69, 1
    %s77 = ssub.s32 %s69, %s76
    %p78 = scmp.eq.s32.totalorder %s77, 0
    %s80 = sadd.s32 %s79, 1
    %s81 = scalar_select %p78, %s79, %s80
    %p84 = pneg %p78
    %p85 = scmp.eq.s32.totalorder %s69, 1
    %p86 = por %p84, %p85
    %p87 = scmp.ne.s32.totalorder %s79, %s82
    %p88 = scmp.eq.s32.totalorder %s69, 0
    %p89 = por %p87, %p88
    %p90 = scmp.ne.s32.totalorder %s79, %s82
    %p91 = scmp.eq.s32.totalorder %s74, 1
    %p92 = por %p90, %p91
    %p93 = scmp.ne.s32.totalorder %s82, %s83
    %p94 = scmp.eq.s32.totalorder %s74, 0
    %p95 = por %p93, %p94
    %p96 = scmp.ne.s32.totalorder %s82, %s83
    %p97 = scmp.eq.s32.totalorder %s75, 1
    %p98 = por %p96, %p97
    %p100 = scmp.ne.s32.totalorder %s83, %s99
    %p101 = scmp.eq.s32.totalorder %s75, 0
    %p102 = por %p100, %p101
    %s104 = sadd.s32 %s103, 1
    %p107 = scmp.eq.s32.totalorder %s69, 1
    %p108 = scmp.ne.s32.totalorder %s103, %s105
    %p109 = scmp.eq.s32.totalorder %s69, 0
    %p110 = por %p108, %p109
    %p111 = scmp.ne.s32.totalorder %s103, %s105
    %p112 = scmp.eq.s32.totalorder %s74, 1
    %p113 = por %p111, %p112
    %p114 = scmp.ne.s32.totalorder %s105, %s106
    %p115 = scmp.eq.s32.totalorder %s74, 0
    %p116 = por %p114, %p115
    %p117 = scmp.ne.s32.totalorder %s105, %s106
    %p118 = scmp.eq.s32.totalorder %s75, 1
    %p119 = por %p117, %p118
    %p121 = scmp.ne.s32.totalorder %s106, %s120
    %p122 = scmp.eq.s32.totalorder %s75, 0
    %p123 = por %p121, %p122
    %s125 = sadd.s32 %s124, 1
    %p128 = scmp.eq.s32.totalorder %s69, 1
    %p129 = scmp.ne.s32.totalorder %s124, %s126
    %p130 = scmp.eq.s32.totalorder %s69, 0
    %p131 = por %p129, %p130
    %p132 = scmp.ne.s32.totalorder %s124, %s126
    %p133 = scmp.eq.s32.totalorder %s74, 1
    %p134 = por %p132, %p133
    %p135 = scmp.ne.s32.totalorder %s126, %s127
    %p136 = scmp.eq.s32.totalorder %s74, 0
    %p137 = por %p135, %p136
    %p138 = scmp.ne.s32.totalorder %s126, %s127
    %p139 = scmp.eq.s32.totalorder %s75, 1
    %p140 = por %p138, %p139
    %p142 = scmp.ne.s32.totalorder %s127, %s141
    %p143 = scmp.eq.s32.totalorder %s75, 0
    %p144 = por %p142, %p143
    %s146 = sadd.s32 %s145, 1
    %p149 = scmp.eq.s32.totalorder %s69, 1
    %p150 = scmp.ne.s32.totalorder %s145, %s147
    %p151 = scmp.eq.s32.totalorder %s69, 0
    %p152 = por %p150, %p151
    %p153 = scmp.ne.s32.totalorder %s145, %s147
    %p154 = scmp.eq.s32.totalorder %s74, 1
    %p155 = por %p153, %p154
    %p156 = scmp.ne.s32.totalorder %s147, %s148
    %p157 = scmp.eq.s32.totalorder %s74, 0
    %p158 = por %p156, %p157
    %p159 = scmp.ne.s32.totalorder %s147, %s148
    %p160 = scmp.eq.s32.totalorder %s75, 1
    %p161 = por %p159, %p160
    %p163 = scmp.ne.s32.totalorder %s148, %s162
    %p164 = scmp.eq.s32.totalorder %s75, 0
    %p165 = por %p163, %p164
    %s167 = sadd.s32 %s166, 1
    %p170 = scmp.eq.s32.totalorder %s69, 1
    %p171 = scmp.ne.s32.totalorder %s166, %s168
    %p172 = scmp.eq.s32.totalorder %s69, 0
    %p173 = por %p171, %p172
    %p174 = scmp.ne.s32.totalorder %s166, %s168
    %p175 = scmp.eq.s32.totalorder %s74, 1
    %p176 = por %p174, %p175
    %p177 = scmp.ne.s32.totalorder %s168, %s169
    %p178 = scmp.eq.s32.totalorder %s74, 0
    %p179 = por %p177, %p178
    %p180 = scmp.ne.s32.totalorder %s168, %s169
    %p181 = scmp.eq.s32.totalorder %s75, 1
    %p182 = por %p180, %p181
    %p184 = scmp.ne.s32.totalorder %s169, %s183
    %p185 = scmp.eq.s32.totalorder %s75, 0
    %p186 = por %p184, %p185
    %s188 = sadd.s32 %s187, 1
    %p191 = scmp.eq.s32.totalorder %s69, 1
    %p192 = scmp.ne.s32.totalorder %s187, %s189
    %p193 = scmp.eq.s32.totalorder %s69, 0
    %p194 = por %p192, %p193
    %p195 = scmp.ne.s32.totalorder %s187, %s189
    %p196 = scmp.eq.s32.totalorder %s74, 1
    %p197 = por %p195, %p196
    %p198 = scmp.ne.s32.totalorder %s189, %s190
    %p199 = scmp.eq.s32.totalorder %s74, 0
    %p200 = por %p198, %p199
    %p201 = scmp.ne.s32.totalorder %s189, %s190
    %p202 = scmp.eq.s32.totalorder %s75, 1
    %p203 = por %p201, %p202
    %p205 = scmp.ne.s32.totalorder %s190, %s204
    %p206 = scmp.eq.s32.totalorder %s75, 0
    %p207 = por %p205, %p206
    %s209 = sadd.s32 %s208, 1
    %p212 = scmp.eq.s32.totalorder %s69, 1
    %p213 = scmp.ne.s32.totalorder %s208, %s210
    %p214 = scmp.eq.s32.totalorder %s69, 0
    %p215 = por %p213, %p214
    %p216 = scmp.ne.s32.totalorder %s208, %s210
    %p217 = scmp.eq.s32.totalorder %s74, 1
    %p218 = por %p216, %p217
    %p219 = scmp.ne.s32.totalorder %s210, %s211
    %p220 = scmp.eq.s32.totalorder %s74, 0
    %p221 = por %p219, %p220
    %p222 = scmp.ne.s32.totalorder %s210, %s211
    %p223 = scmp.eq.s32.totalorder %s75, 1
    %p224 = por %p222, %p223
    %p226 = scmp.ne.s32.totalorder %s211, %s225
    %p227 = scmp.eq.s32.totalorder %s75, 0
    %p228 = por %p226, %p227
    %s230 = sadd.s32 %s229, 1
    %p233 = scmp.eq.s32.totalorder %s69, 1
    %p234 = scmp.ne.s32.totalorder %s229, %s231
    %p235 = scmp.eq.s32.totalorder %s69, 0
    %p236 = por %p234, %p235
    %p237 = scmp.ne.s32.totalorder %s229, %s231
    %p238 = scmp.eq.s32.totalorder %s74, 1
    %p239 = por %p237, %p238
    %p240 = scmp.ne.s32.totalorder %s231, %s232
    %p241 = scmp.eq.s32.totalorder %s74, 0
    %p242 = por %p240, %p241
    %p243 = scmp.ne.s32.totalorder %s231, %s232
    %p244 = scmp.eq.s32.totalorder %s75, 1
    %p245 = por %p243, %p244
    %p247 = scmp.ne.s32.totalorder %s232, %s246
    %p248 = scmp.eq.s32.totalorder %s75, 0
    %p249 = por %p247, %p248
    %s251 = sadd.s32 %s250, 1
    %p254 = scmp.eq.s32.totalorder %s69, 1
    %p255 = scmp.ne.s32.totalorder %s250, %s252
    %p256 = scmp.eq.s32.totalorder %s69, 0
    %p257 = por %p255, %p256
    %p258 = scmp.ne.s32.totalorder %s250, %s252
    %p259 = scmp.eq.s32.totalorder %s74, 1
    %p260 = por %p258, %p259
    %p261 = scmp.ne.s32.totalorder %s252, %s253
    %p262 = scmp.eq.s32.totalorder %s74, 0
    %p263 = por %p261, %p262
    %p264 = scmp.ne.s32.totalorder %s252, %s253
    %p265 = scmp.eq.s32.totalorder %s75, 1
    %p266 = por %p264, %p265
    %p268 = scmp.ne.s32.totalorder %s253, %s267
    %p269 = scmp.eq.s32.totalorder %s75, 0
    %p270 = por %p268, %p269
    %s272 = sadd.s32 %s271, 1
    %p275 = scmp.eq.s32.totalorder %s69, 1
    %p276 = scmp.ne.s32.totalorder %s271, %s273
    %p277 = scmp.eq.s32.totalorder %s69, 0
    %p278 = por %p276, %p277
    %p279 = scmp.ne.s32.totalorder %s271, %s273
    %p280 = scmp.eq.s32.totalorder %s74, 1
    %p281 = por %p279, %p280
    %p282 = scmp.ne.s32.totalorder %s273, %s274
    %p283 = scmp.eq.s32.totalorder %s74, 0
    %p284 = por %p282, %p283
    %p285 = scmp.ne.s32.totalorder %s273, %s274
    %p286 = scmp.eq.s32.totalorder %s75, 1
    %p287 = por %p285, %p286
    %p289 = scmp.ne.s32.totalorder %s274, %s288
    %p290 = scmp.eq.s32.totalorder %s75, 0
    %p291 = por %p289, %p290
    %s293 = sadd.s32 %s292, 1
    %p296 = scmp.eq.s32.totalorder %s69, 1
    %p297 = scmp.ne.s32.totalorder %s292, %s294
    %p298 = scmp.eq.s32.totalorder %s69, 0
    %p299 = por %p297, %p298
    %p300 = scmp.ne.s32.totalorder %s292, %s294
    %p301 = scmp.eq.s32.totalorder %s74, 1
    %p302 = por %p300, %p301
    %p303 = scmp.ne.s32.totalorder %s294, %s295
    %p304 = scmp.eq.s32.totalorder %s74, 0
    %p305 = por %p303, %p304
    %p306 = scmp.ne.s32.totalorder %s294, %s295
    %p307 = scmp.eq.s32.totalorder %s75, 1
    %p308 = por %p306, %p307
    %p310 = scmp.ne.s32.totalorder %s295, %s309
    %p311 = scmp.eq.s32.totalorder %s75, 0
    %p312 = por %p310, %p311
    %s314 = sadd.s32 %s313, 1
    %p317 = scmp.eq.s32.totalorder %s69, 1
    %p318 = scmp.ne.s32.totalorder %s313, %s315
    %p319 = scmp.eq.s32.totalorder %s69, 0
    %p320 = por %p318, %p319
    %p321 = scmp.ne.s32.totalorder %s313, %s315
    %p322 = scmp.eq.s32.totalorder %s74, 1
    %p323 = por %p321, %p322
    %p324 = scmp.ne.s32.totalorder %s315, %s316
    %p325 = scmp.eq.s32.totalorder %s74, 0
    %p326 = por %p324, %p325
    %p327 = scmp.ne.s32.totalorder %s315, %s316
    %p328 = scmp.eq.s32.totalorder %s75, 1
    %p329 = por %p327, %p328
    %p331 = scmp.ne.s32.totalorder %s316, %s330
    %p332 = scmp.eq.s32.totalorder %s75, 0
    %p333 = por %p331, %p332
    %s335 = sadd.s32 %s334, 1
    %p338 = scmp.eq.s32.totalorder %s69, 1
    %p339 = scmp.ne.s32.totalorder %s334, %s336
    %p340 = scmp.eq.s32.totalorder %s69, 0
    %p341 = por %p339, %p340
    %p342 = scmp.ne.s32.totalorder %s334, %s336
    %p343 = scmp.eq.s32.totalorder %s74, 1
    %p344 = por %p342, %p343
    %p345 = scmp.ne.s32.totalorder %s336, %s337
    %p346 = scmp.eq.s32.totalorder %s74, 0
    %p347 = por %p345, %p346
    %p348 = scmp.ne.s32.totalorder %s336, %s337
    %p349 = scmp.eq.s32.totalorder %s75, 1
    %p350 = por %p348, %p349
    %p352 = scmp.ne.s32.totalorder %s337, %s351
    %p353 = scmp.eq.s32.totalorder %s75, 0
    %p354 = por %p352, %p353
    %s356 = sadd.s32 %s355, 1
    %p359 = scmp.eq.s32.totalorder %s69, 1
    %p360 = scmp.ne.s32.totalorder %s355, %s357
    %p361 = scmp.eq.s32.totalorder %s69, 0
    %p362 = por %p360, %p361
    %p363 = scmp.ne.s32.totalorder %s355, %s357
    %p364 = scmp.eq.s32.totalorder %s74, 1
    %p365 = por %p363, %p364
    %p366 = scmp.ne.s32.totalorder %s357, %s358
    %p367 = scmp.eq.s32.totalorder %s74, 0
    %p368 = por %p366, %p367
    %p369 = scmp.ne.s32.totalorder %s357, %s358
    %p370 = scmp.eq.s32.totalorder %s75, 1
    %p371 = por %p369, %p370
    %p373 = scmp.ne.s32.totalorder %s358, %s372
    %p374 = scmp.eq.s32.totalorder %s75, 0
    %p375 = por %p373, %p374
    %s377 = sadd.s32 %s376, 1
    %p380 = scmp.eq.s32.totalorder %s69, 1
    %p381 = scmp.ne.s32.totalorder %s376, %s378
    %p382 = scmp.eq.s32.totalorder %s69, 0
    %p383 = por %p381, %p382
    %p384 = scmp.ne.s32.totalorder %s376, %s378
    %p385 = scmp.eq.s32.totalorder %s74, 1
    %p386 = por %p384, %p385
    %p387 = scmp.ne.s32.totalorder %s378, %s379
    %p388 = scmp.eq.s32.totalorder %s74, 0
    %p389 = por %p387, %p388
    %p390 = scmp.ne.s32.totalorder %s378, %s379
    %p391 = scmp.eq.s32.totalorder %s75, 1
    %p392 = por %p390, %p391
    %p394 = scmp.ne.s32.totalorder %s379, %s393
    %p395 = scmp.eq.s32.totalorder %s75, 0
    %p396 = por %p394, %p395
    %s398 = sadd.s32 %s397, 1
    %p401 = scmp.eq.s32.totalorder %s69, 1
    %p402 = scmp.ne.s32.totalorder %s397, %s399
    %p403 = scmp.eq.s32.totalorder %s69, 0
    %p404 = por %p402, %p403
    %p405 = scmp.ne.s32.totalorder %s397, %s399
    %p406 = scmp.eq.s32.totalorder %s74, 1
    %p407 = por %p405, %p406
    %p408 = scmp.ne.s32.totalorder %s399, %s400
    %p409 = scmp.eq.s32.totalorder %s74, 0
    %p410 = por %p408, %p409
    %p411 = scmp.ne.s32.totalorder %s399, %s400
    %p412 = scmp.eq.s32.totalorder %s75, 1
    %p413 = por %p411, %p412
    %p415 = scmp.ne.s32.totalorder %s400, %s414
    %p416 = scmp.eq.s32.totalorder %s75, 0
    %p417 = por %p415, %p416
    %s419 = sadd.s32 %s418, 1
    %p422 = scmp.eq.s32.totalorder %s69, 1
    %p423 = scmp.ne.s32.totalorder %s418, %s420
    %p424 = scmp.eq.s32.totalorder %s69, 0
    %p425 = por %p423, %p424
    %p426 = scmp.ne.s32.totalorder %s418, %s420
    %p427 = scmp.eq.s32.totalorder %s74, 1
    %p428 = por %p426, %p427
    %p429 = scmp.ne.s32.totalorder %s420, %s421
    %p430 = scmp.eq.s32.totalorder %s74, 0
    %p431 = por %p429, %p430
    %p432 = scmp.ne.s32.totalorder %s420, %s421
    %p433 = scmp.eq.s32.totalorder %s75, 1
    %p434 = por %p432, %p433
    %p436 = scmp.ne.s32.totalorder %s421, %s435
    %p437 = scmp.eq.s32.totalorder %s75, 0
    %p438 = por %p436, %p437
    %s440 = sadd.s32 %s439, 1
    %p443 = scmp.eq.s32.totalorder %s69, 1
    %p444 = scmp.ne.s32.totalorder %s439, %s441
    %p445 = scmp.eq.s32.totalorder %s69, 0
    %p446 = por %p444, %p445
    %p447 = scmp.ne.s32.totalorder %s439, %s441
    %p448 = scmp.eq.s32.totalorder %s74, 1
    %p449 = por %p447, %p448
    %p450 = scmp.ne.s32.totalorder %s441, %s442
    %p451 = scmp.eq.s32.totalorder %s74, 0
    %p452 = por %p450, %p451
    %p453 = scmp.ne.s32.totalorder %s441, %s442
    %p454 = scmp.eq.s32.totalorder %s75, 1
    %p455 = por %p453, %p454
    %p457 = scmp.ne.s32.totalorder %s442, %s456
    %p458 = scmp.eq.s32.totalorder %s75, 0
    %p459 = por %p457, %p458
    %s461 = sadd.s32 %s460, 1
    %p464 = scmp.eq.s32.totalorder %s69, 1
    %p465 = scmp.ne.s32.totalorder %s460, %s462
    %p466 = scmp.eq.s32.totalorder %s69, 0
    %p467 = por %p465, %p466
    %p468 = scmp.ne.s32.totalorder %s460, %s462
    %p469 = scmp.eq.s32.totalorder %s74, 1
    %p470 = por %p468, %p469
    %p471 = scmp.ne.s32.totalorder %s462, %s463
    %p472 = scmp.eq.s32.totalorder %s74, 0
    %p473 = por %p471, %p472
    %p474 = scmp.ne.s32.totalorder %s462, %s463
    %p475 = scmp.eq.s32.totalorder %s75, 1
    %p476 = por %p474, %p475
    %p478 = scmp.ne.s32.totalorder %s463, %s477
    %p479 = scmp.eq.s32.totalorder %s75, 0
    %p480 = por %p478, %p479
    %s482 = sadd.s32 %s481, 1
    %p485 = scmp.eq.s32.totalorder %s69, 1
    %p486 = scmp.ne.s32.totalorder %s481, %s483
    %p487 = scmp.eq.s32.totalorder %s69, 0
    %p488 = por %p486, %p487
    %p489 = scmp.ne.s32.totalorder %s481, %s483
    %p490 = scmp.eq.s32.totalorder %s74, 1
    %p491 = por %p489, %p490
    %p492 = scmp.ne.s32.totalorder %s483, %s484
    %p493 = scmp.eq.s32.totalorder %s74, 0
    %p494 = por %p492, %p493
    %p495 = scmp.ne.s32.totalorder %s483, %s484
    %p496 = scmp.eq.s32.totalorder %s75, 1
    %p497 = por %p495, %p496
    %p499 = scmp.ne.s32.totalorder %s484, %s498
    %p500 = scmp.eq.s32.totalorder %s75, 0
    %p501 = por %p499, %p500
    %s503 = sadd.s32 %s502, 1
    %p506 = scmp.eq.s32.totalorder %s69, 1
    %p507 = scmp.ne.s32.totalorder %s502, %s504
    %p508 = scmp.eq.s32.totalorder %s69, 0
    %p509 = por %p507, %p508
    %p510 = scmp.ne.s32.totalorder %s502, %s504
    %p511 = scmp.eq.s32.totalorder %s74, 1
    %p512 = por %p510, %p511
    %p513 = scmp.ne.s32.totalorder %s504, %s505
    %p514 = scmp.eq.s32.totalorder %s74, 0
    %p515 = por %p513, %p514
    %p516 = scmp.ne.s32.totalorder %s504, %s505
    %p517 = scmp.eq.s32.totalorder %s75, 1
    %p518 = por %p516, %p517
    %p520 = scmp.ne.s32.totalorder %s505, %s519
    %p521 = scmp.eq.s32.totalorder %s75, 0
    %p522 = por %p520, %p521
    %s524 = sadd.s32 %s523, 1
    %p527 = scmp.eq.s32.totalorder %s69, 1
    %p528 = scmp.ne.s32.totalorder %s523, %s525
    %p529 = scmp.eq.s32.totalorder %s69, 0
    %p530 = por %p528, %p529
    %p531 = scmp.ne.s32.totalorder %s523, %s525
    %p532 = scmp.eq.s32.totalorder %s74, 1
    %p533 = por %p531, %p532
    %p534 = scmp.ne.s32.totalorder %s525, %s526
    %p535 = scmp.eq.s32.totalorder %s74, 0
    %p536 = por %p534, %p535
    %p537 = scmp.ne.s32.totalorder %s525, %s526
    %p538 = scmp.eq.s32.totalorder %s75, 1
    %p539 = por %p537, %p538
    %p541 = scmp.ne.s32.totalorder %s526, %s540
    %p542 = scmp.eq.s32.totalorder %s75, 0
    %p543 = por %p541, %p542
    %s545 = sadd.s32 %s544, 1
    %p548 = scmp.eq.s32.totalorder %s69, 1
    %p549 = scmp.ne.s32.totalorder %s544, %s546
    %p550 = scmp.eq.s32.totalorder %s69, 0
    %p551 = por %p549, %p550
    %p552 = scmp.ne.s32.totalorder %s544, %s546
    %p553 = scmp.eq.s32.totalorder %s74, 1
    %p554 = por %p552, %p553
    %p555 = scmp.ne.s32.totalorder %s546, %s547
    %p556 = scmp.eq.s32.totalorder %s74, 0
    %p557 = por %p555, %p556
    %p558 = scmp.ne.s32.totalorder %s546, %s547
    %p559 = scmp.eq.s32.totalorder %s75, 1
    %p560 = por %p558, %p559
    %p562 = scmp.ne.s32.totalorder %s547, %s561
    %p563 = scmp.eq.s32.totalorder %s75, 0
    %p564 = por %p562, %p563
    %s566 = sadd.s32 %s565, 1
    %p569 = scmp.eq.s32.totalorder %s69, 1
    %p570 = scmp.ne.s32.totalorder %s565, %s567
    %p571 = scmp.eq.s32.totalorder %s69, 0
    %p572 = por %p570, %p571
    %p573 = scmp.ne.s32.totalorder %s565, %s567
    %p574 = scmp.eq.s32.totalorder %s74, 1
    %p575 = por %p573, %p574
    %p576 = scmp.ne.s32.totalorder %s567, %s568
    %p577 = scmp.eq.s32.totalorder %s74, 0
    %p578 = por %p576, %p577
    %p579 = scmp.ne.s32.totalorder %s567, %s568
    %p580 = scmp.eq.s32.totalorder %s75, 1
    %p581 = por %p579, %p580
    %p583 = scmp.ne.s32.totalorder %s568, %s582
    %p584 = scmp.eq.s32.totalorder %s75, 0
    %p585 = por %p583, %p584
    %s587 = sadd.s32 %s586, 1
    %p590 = scmp.eq.s32.totalorder %s69, 1
    %p591 = scmp.ne.s32.totalorder %s586, %s588
    %p592 = scmp.eq.s32.totalorder %s69, 0
    %p593 = por %p591, %p592
    %p594 = scmp.ne.s32.totalorder %s586, %s588
    %p595 = scmp.eq.s32.totalorder %s74, 1
    %p596 = por %p594, %p595
    %p597 = scmp.ne.s32.totalorder %s588, %s589
    %p598 = scmp.eq.s32.totalorder %s74, 0
    %p599 = por %p597, %p598
    %p600 = scmp.ne.s32.totalorder %s588, %s589
    %p601 = scmp.eq.s32.totalorder %s75, 1
    %p602 = por %p600, %p601
    %p604 = scmp.ne.s32.totalorder %s589, %s603
    %p605 = scmp.eq.s32.totalorder %s75, 0
    %p606 = por %p604, %p605
    %s608 = sadd.s32 %s607, 1
    %p611 = scmp.eq.s32.totalorder %s69, 1
    %p612 = scmp.ne.s32.totalorder %s607, %s609
    %p613 = scmp.eq.s32.totalorder %s69, 0
    %p614 = por %p612, %p613
    %p615 = scmp.ne.s32.totalorder %s607, %s609
    %p616 = scmp.eq.s32.totalorder %s74, 1
    %p617 = por %p615, %p616
    %p618 = scmp.ne.s32.totalorder %s609, %s610
    %p619 = scmp.eq.s32.totalorder %s74, 0
    %p620 = por %p618, %p619
    %p621 = scmp.ne.s32.totalorder %s609, %s610
    %p622 = scmp.eq.s32.totalorder %s75, 1
    %p623 = por %p621, %p622
    %p625 = scmp.ne.s32.totalorder %s610, %s624
    %p626 = scmp.eq.s32.totalorder %s75, 0
    %p627 = por %p625, %p626
    %s629 = sadd.s32 %s628, 1
    %p632 = scmp.eq.s32.totalorder %s69, 1
    %p633 = scmp.ne.s32.totalorder %s628, %s630
    %p634 = scmp.eq.s32.totalorder %s69, 0
    %p635 = por %p633, %p634
    %p636 = scmp.ne.s32.totalorder %s628, %s630
    %p637 = scmp.eq.s32.totalorder %s74, 1
    %p638 = por %p636, %p637
    %p639 = scmp.ne.s32.totalorder %s630, %s631
    %p640 = scmp.eq.s32.totalorder %s74, 0
    %p641 = por %p639, %p640
    %p642 = scmp.ne.s32.totalorder %s630, %s631
    %p643 = scmp.eq.s32.totalorder %s75, 1
    %p644 = por %p642, %p643
    %p646 = scmp.ne.s32.totalorder %s631, %s645
    %p647 = scmp.eq.s32.totalorder %s75, 0
    %p648 = por %p646, %p647
    %s650 = sadd.s32 %s649, 1
    %p653 = scmp.eq.s32.totalorder %s69, 1
    %p654 = scmp.ne.s32.totalorder %s649, %s651
    %p655 = scmp.eq.s32.totalorder %s69, 0
    %p656 = por %p654, %p655
    %p657 = scmp.ne.s32.totalorder %s649, %s651
    %p658 = scmp.eq.s32.totalorder %s74, 1
    %p659 = por %p657, %p658
    %p660 = scmp.ne.s32.totalorder %s651, %s652
    %p661 = scmp.eq.s32.totalorder %s74, 0
    %p662 = por %p660, %p661
    %p663 = scmp.ne.s32.totalorder %s651, %s652
    %p664 = scmp.eq.s32.totalorder %s75, 1
    %p665 = por %p663, %p664
    %p667 = scmp.ne.s32.totalorder %s652, %s666
    %p668 = scmp.eq.s32.totalorder %s75, 0
    %p669 = por %p667, %p668
    %s671 = sadd.s32 %s670, 1
    %p674 = scmp.eq.s32.totalorder %s69, 1
    %p675 = scmp.ne.s32.totalorder %s670, %s672
    %p676 = scmp.eq.s32.totalorder %s69, 0
    %p677 = por %p675, %p676
    %p678 = scmp.ne.s32.totalorder %s670, %s672
    %p679 = scmp.eq.s32.totalorder %s74, 1
    %p680 = por %p678, %p679
    %p681 = scmp.ne.s32.totalorder %s672, %s673
    %p682 = scmp.eq.s32.totalorder %s74, 0
    %p683 = por %p681, %p682
    %p684 = scmp.ne.s32.totalorder %s672, %s673
    %p685 = scmp.eq.s32.totalorder %s75, 1
    %p686 = por %p684, %p685
    %p688 = scmp.ne.s32.totalorder %s673, %s687
    %p689 = scmp.eq.s32.totalorder %s75, 0
    %p690 = por %p688, %p689
    %s691 = ssub.s32 %s69, %s76
    %p692 = scmp.eq.s32.totalorder %s691, 0
    %s694 = sadd.s32 %s693, 1
    %s695 = scalar_select %p692, %s693, %s694
    %p698 = pneg %p692
    %p699 = scmp.eq.s32.totalorder %s69, 1
    %p700 = por %p698, %p699
    %p701 = scmp.ne.s32.totalorder %s693, %s696
    %p702 = scmp.eq.s32.totalorder %s69, 0
    %p703 = por %p701, %p702
    %p704 = scmp.ne.s32.totalorder %s693, %s696
    %p705 = scmp.eq.s32.totalorder %s74, 1
    %p706 = por %p704, %p705
    %p707 = scmp.ne.s32.totalorder %s696, %s697
    %p708 = scmp.eq.s32.totalorder %s74, 0
    %p709 = por %p707, %p708
    %p710 = scmp.ne.s32.totalorder %s696, %s697
    %p711 = scmp.eq.s32.totalorder %s75, 1
    %p712 = por %p710, %p711
    %p714 = scmp.ne.s32.totalorder %s697, %s713
    %p715 = scmp.eq.s32.totalorder %s75, 0
    %p716 = por %p714, %p715
    %p717 = scmp.le.s32.totalorder 1, %s69
    %p718 = scmp.lt.s32.totalorder %s69, 3
    %p719 = pnand %p717, %p718
    %p720 = pneg %p719
    // Predicated region
    $region9: #{joint_estimator_forward.5} parent=5 // pred_check
      _
    $region10: #{joint_estimator_forward.5} parent=5 // pred_check_branch
      %722 = sbr.rel (%p719) target = $region12
    $region11: #{joint_estimator_forward.5} parent=5 // pred_region
      %s723 = ssub.s32 %s69, 1
      // Predicated region
      $region13: #{joint_estimator_forward.5} parent=11 // pred_check
        %p724 = pneg %p116
      $region14: #{joint_estimator_forward.5} parent=11 // pred_check_branch
        %726 = sbr.rel (%p724) target = $region16
      $region15: #{joint_estimator_forward.5} parent=11 // pred_region
        _
      $region16: #{joint_estimator_forward.5} parent=11 // pred_fallthru
        _
      // Predicated region
      $region17: #{joint_estimator_forward.5} parent=11 // pred_check
        %p727 = pneg %p137
      $region18: #{joint_estimator_forward.5} parent=11 // pred_check_branch
        %729 = sbr.rel (%p727) target = $region20
      $region19: #{joint_estimator_forward.5} parent=11 // pred_region
        _
      $region20: #{joint_estimator_forward.5} parent=11 // pred_fallthru
        _
      // Predicated region
      $region21: #{joint_estimator_forward.5} parent=11 // pred_check
        %p730 = pneg %p158
      $region22: #{joint_estimator_forward.5} parent=11 // pred_check_branch
        %732 = sbr.rel (%p730) target = $region24
      $region23: #{joint_estimator_forward.5} parent=11 // pred_region
        _
      $region24: #{joint_estimator_forward.5} parent=11 // pred_fallthru
        _
      // Predicated region
      $region25: #{joint_estimator_forward.5} parent=11 // pred_check
        %p733 = pneg %p179
      $region26: #{joint_estimator_forward.5} parent=11 // pred_check_branch
        %735 = sbr.rel (%p733) target = $region28
      $region27: #{joint_estimator_forward.5} parent=11 // pred_region
        _
      $region28: #{joint_estimator_forward.5} parent=11 // pred_fallthru
        _
      // Predicated region
      $region29: #{joint_estimator_forward.5} parent=11 // pred_check
        %p736 = pneg %p200
      $region30: #{joint_estimator_forward.5} parent=11 // pred_check_branch
        %738 = sbr.rel (%p736) target = $region32
      $region31: #{joint_estimator_forward.5} parent=11 // pred_region
        _
      $region32: #{joint_estimator_forward.5} parent=11 // pred_fallthru
        _
      // Predicated region
      $region33: #{joint_estimator_forward.5} parent=11 // pred_check
        %p739 = pneg %p221
      $region34: #{joint_estimator_forward.5} parent=11 // pred_check_branch
        %741 = sbr.rel (%p739) target = $region36
      $region35: #{joint_estimator_forward.5} parent=11 // pred_region
        _
      $region36: #{joint_estimator_forward.5} parent=11 // pred_fallthru
        _
      // Predicated region
      $region37: #{joint_estimator_forward.5} parent=11 // pred_check
        %p742 = pneg %p242
      $region38: #{joint_estimator_forward.5} parent=11 // pred_check_branch
        %744 = sbr.rel (%p742) target = $region40
      $region39: #{joint_estimator_forward.5} parent=11 // pred_region
        _
      $region40: #{joint_estimator_forward.5} parent=11 // pred_fallthru
        _
      // Predicated region
      $region41: #{joint_estimator_forward.5} parent=11 // pred_check
        %p745 = pneg %p263
      $region42: #{joint_estimator_forward.5} parent=11 // pred_check_branch
        %747 = sbr.rel (%p745) target = $region44
      $region43: #{joint_estimator_forward.5} parent=11 // pred_region
        _
      $region44: #{joint_estimator_forward.5} parent=11 // pred_fallthru
        _
      // Predicated region
      $region45: #{joint_estimator_forward.5} parent=11 // pred_check
        %p748 = pneg %p284
      $region46: #{joint_estimator_forward.5} parent=11 // pred_check_branch
        %750 = sbr.rel (%p748) target = $region48
      $region47: #{joint_estimator_forward.5} parent=11 // pred_region
        _
      $region48: #{joint_estimator_forward.5} parent=11 // pred_fallthru
        _
      // Predicated region
      $region49: #{joint_estimator_forward.5} parent=11 // pred_check
        %p751 = pneg %p305
      $region50: #{joint_estimator_forward.5} parent=11 // pred_check_branch
        %753 = sbr.rel (%p751) target = $region52
      $region51: #{joint_estimator_forward.5} parent=11 // pred_region
        _
      $region52: #{joint_estimator_forward.5} parent=11 // pred_fallthru
        _
      // Predicated region
      $region53: #{joint_estimator_forward.5} parent=11 // pred_check
        %p754 = pneg %p326
      $region54: #{joint_estimator_forward.5} parent=11 // pred_check_branch
        %756 = sbr.rel (%p754) target = $region56
      $region55: #{joint_estimator_forward.5} parent=11 // pred_region
        _
      $region56: #{joint_estimator_forward.5} parent=11 // pred_fallthru
        _
      // Predicated region
      $region57: #{joint_estimator_forward.5} parent=11 // pred_check
        %p757 = pneg %p347
      $region58: #{joint_estimator_forward.5} parent=11 // pred_check_branch
        %759 = sbr.rel (%p757) target = $region60
      $region59: #{joint_estimator_forward.5} parent=11 // pred_region
        _
      $region60: #{joint_estimator_forward.5} parent=11 // pred_fallthru
        _
      // Predicated region
      $region61: #{joint_estimator_forward.5} parent=11 // pred_check
        %p760 = pneg %p368
      $region62: #{joint_estimator_forward.5} parent=11 // pred_check_branch
        %762 = sbr.rel (%p760) target = $region64
      $region63: #{joint_estimator_forward.5} parent=11 // pred_region
        _
      $region64: #{joint_estimator_forward.5} parent=11 // pred_fallthru
        _
      // Predicated region
      $region65: #{joint_estimator_forward.5} parent=11 // pred_check
        %p763 = pneg %p389
      $region66: #{joint_estimator_forward.5} parent=11 // pred_check_branch
        %765 = sbr.rel (%p763) target = $region68
      $region67: #{joint_estimator_forward.5} parent=11 // pred_region
        _
      $region68: #{joint_estimator_forward.5} parent=11 // pred_fallthru
        _
      // Predicated region
      $region69: #{joint_estimator_forward.5} parent=11 // pred_check
        %p766 = pneg %p410
      $region70: #{joint_estimator_forward.5} parent=11 // pred_check_branch
        %768 = sbr.rel (%p766) target = $region72
      $region71: #{joint_estimator_forward.5} parent=11 // pred_region
        _
      $region72: #{joint_estimator_forward.5} parent=11 // pred_fallthru
        _
      // Predicated region
      $region73: #{joint_estimator_forward.5} parent=11 // pred_check
        %p769 = pneg %p431
      $region74: #{joint_estimator_forward.5} parent=11 // pred_check_branch
        %771 = sbr.rel (%p769) target = $region76
      $region75: #{joint_estimator_forward.5} parent=11 // pred_region
        _
      $region76: #{joint_estimator_forward.5} parent=11 // pred_fallthru
        _
      // Predicated region
      $region77: #{joint_estimator_forward.5} parent=11 // pred_check
        %p772 = pneg %p452
      $region78: #{joint_estimator_forward.5} parent=11 // pred_check_branch
        %774 = sbr.rel (%p772) target = $region80
      $region79: #{joint_estimator_forward.5} parent=11 // pred_region
        _
      $region80: #{joint_estimator_forward.5} parent=11 // pred_fallthru
        _
      // Predicated region
      $region81: #{joint_estimator_forward.5} parent=11 // pred_check
        %p775 = pneg %p473
      $region82: #{joint_estimator_forward.5} parent=11 // pred_check_branch
        %777 = sbr.rel (%p775) target = $region84
      $region83: #{joint_estimator_forward.5} parent=11 // pred_region
        _
      $region84: #{joint_estimator_forward.5} parent=11 // pred_fallthru
        _
      // Predicated region
      $region85: #{joint_estimator_forward.5} parent=11 // pred_check
        %p778 = pneg %p494
      $region86: #{joint_estimator_forward.5} parent=11 // pred_check_branch
        %780 = sbr.rel (%p778) target = $region88
      $region87: #{joint_estimator_forward.5} parent=11 // pred_region
        _
      $region88: #{joint_estimator_forward.5} parent=11 // pred_fallthru
        _
      // Predicated region
      $region89: #{joint_estimator_forward.5} parent=11 // pred_check
        %p781 = pneg %p515
      $region90: #{joint_estimator_forward.5} parent=11 // pred_check_branch
        %783 = sbr.rel (%p781) target = $region92
      $region91: #{joint_estimator_forward.5} parent=11 // pred_region
        _
      $region92: #{joint_estimator_forward.5} parent=11 // pred_fallthru
        _
      // Predicated region
      $region93: #{joint_estimator_forward.5} parent=11 // pred_check
        %p784 = pneg %p536
      $region94: #{joint_estimator_forward.5} parent=11 // pred_check_branch
        %786 = sbr.rel (%p784) target = $region96
      $region95: #{joint_estimator_forward.5} parent=11 // pred_region
        _
      $region96: #{joint_estimator_forward.5} parent=11 // pred_fallthru
        _
      // Predicated region
      $region97: #{joint_estimator_forward.5} parent=11 // pred_check
        %p787 = pneg %p557
      $region98: #{joint_estimator_forward.5} parent=11 // pred_check_branch
        %789 = sbr.rel (%p787) target = $region100
      $region99: #{joint_estimator_forward.5} parent=11 // pred_region
        _
      $region100: #{joint_estimator_forward.5} parent=11 // pred_fallthru
        _
      // Predicated region
      $region101: #{joint_estimator_forward.5} parent=11 // pred_check
        %p790 = pneg %p578
      $region102: #{joint_estimator_forward.5} parent=11 // pred_check_branch
        %792 = sbr.rel (%p790) target = $region104
      $region103: #{joint_estimator_forward.5} parent=11 // pred_region
        _
      $region104: #{joint_estimator_forward.5} parent=11 // pred_fallthru
        _
      // Predicated region
      $region105: #{joint_estimator_forward.5} parent=11 // pred_check
        %p793 = pneg %p599
      $region106: #{joint_estimator_forward.5} parent=11 // pred_check_branch
        %795 = sbr.rel (%p793) target = $region108
      $region107: #{joint_estimator_forward.5} parent=11 // pred_region
        _
      $region108: #{joint_estimator_forward.5} parent=11 // pred_fallthru
        _
      // Predicated region
      $region109: #{joint_estimator_forward.5} parent=11 // pred_check
        %p796 = pneg %p620
      $region110: #{joint_estimator_forward.5} parent=11 // pred_check_branch
        %798 = sbr.rel (%p796) target = $region112
      $region111: #{joint_estimator_forward.5} parent=11 // pred_region
        _
      $region112: #{joint_estimator_forward.5} parent=11 // pred_fallthru
        _
      // Predicated region
      $region113: #{joint_estimator_forward.5} parent=11 // pred_check
        %p799 = pneg %p641
      $region114: #{joint_estimator_forward.5} parent=11 // pred_check_branch
        %801 = sbr.rel (%p799) target = $region116
      $region115: #{joint_estimator_forward.5} parent=11 // pred_region
        _
      $region116: #{joint_estimator_forward.5} parent=11 // pred_fallthru
        _
      // Predicated region
      $region117: #{joint_estimator_forward.5} parent=11 // pred_check
        %p802 = pneg %p662
      $region118: #{joint_estimator_forward.5} parent=11 // pred_check_branch
        %804 = sbr.rel (%p802) target = $region120
      $region119: #{joint_estimator_forward.5} parent=11 // pred_region
        _
      $region120: #{joint_estimator_forward.5} parent=11 // pred_fallthru
        _
      // Predicated region
      $region121: #{joint_estimator_forward.5} parent=11 // pred_check
        %p805 = pneg %p683
      $region122: #{joint_estimator_forward.5} parent=11 // pred_check_branch
        %807 = sbr.rel (%p805) target = $region124
      $region123: #{joint_estimator_forward.5} parent=11 // pred_region
        _
      $region124: #{joint_estimator_forward.5} parent=11 // pred_fallthru
        _
    $region12: #{joint_estimator_forward.5} parent=5 // pred_fallthru
      _
    %p808 = scmp.lt.s32.totalorder %s69, 2
    // Predicated region
    $region125: #{joint_estimator_forward.5} parent=5 // pred_check
      %p809 = pneg %p808
    $region126: #{joint_estimator_forward.5} parent=5 // pred_check_branch
      %811 = sbr.rel (%p809) target = $region128
    $region127: #{joint_estimator_forward.5} parent=5 // pred_region
      // Predicated region
      $region129: #{joint_estimator_forward.5} parent=127 // pred_check
        %p812 = pneg %p89
      $region130: #{joint_estimator_forward.5} parent=127 // pred_check_branch
        %814 = sbr.rel (%p812) target = $region132
      $region131: #{joint_estimator_forward.5} parent=127 // pred_region
        %p815 = scmp.lt.s32.totalorder %s69, 1
        %s816 = scalar_select %p815, %s69, 1
        %s817 = smul.addr %s816, 2
        %s818 = smul.addr %s817, 8
        %s819 = scalar_lea.vmem %s1, %s818
      $region132: #{joint_estimator_forward.5} parent=127 // pred_fallthru
        _
    $region128: #{joint_estimator_forward.5} parent=5 // pred_fallthru
      _
    %p820 = scmp.le.s32.totalorder 1, %s69
    %p821 = scmp.lt.s32.totalorder %s69, 3
    %p822 = pnand %p820, %p821
    %p823 = pneg %p822
    // Predicated region
    $region133: #{joint_estimator_forward.5} parent=5 // pred_check
      _
    $region134: #{joint_estimator_forward.5} parent=5 // pred_check_branch
      %825 = sbr.rel (%p822) target = $region136
    $region135: #{joint_estimator_forward.5} parent=5 // pred_region
      %s826 = ssub.s32 %s69, 1
      %p827 = scmp.lt.s32.totalorder %s74, 1
      %s828 = scalar_select %p827, %s74, 1
      %s829 = smul.addr %s828, 2
      %s830 = smul.addr %s829, 8
      %s831 = scalar_lea.vmem %s1, %s830
      %p832 = pneg %p95
      %p833 = pneg %p92
      %p834 = pneg %p116
      %p835 = pneg %p113
      %p836 = pneg %p137
      %p837 = pneg %p134
      %p838 = pneg %p158
      %p839 = pneg %p155
      %p840 = pneg %p179
      %p841 = pneg %p176
      %p842 = pneg %p200
      %p843 = pneg %p197
      %p844 = pneg %p221
      %p845 = pneg %p218
      %p846 = pneg %p242
      %p847 = pneg %p239
      %p848 = pneg %p263
      %p849 = pneg %p260
      %p850 = pneg %p284
      %p851 = pneg %p281
      %p852 = pneg %p305
      %p853 = pneg %p302
      %p854 = pneg %p326
      %p855 = pneg %p323
      %p856 = pneg %p347
      %p857 = pneg %p344
      %p858 = pneg %p368
      %p859 = pneg %p365
      %p860 = pneg %p389
      %p861 = pneg %p386
      %p862 = pneg %p410
      %p863 = pneg %p407
      %p864 = pneg %p431
      %p865 = pneg %p428
      %p866 = pneg %p452
      %p867 = pneg %p449
      %p868 = pneg %p473
      %p869 = pneg %p470
      %p870 = pneg %p494
      %p871 = pneg %p491
      %p872 = pneg %p515
      %p873 = pneg %p512
      %p874 = pneg %p536
      %p875 = pneg %p533
      %p876 = pneg %p557
      %p877 = pneg %p554
      %p878 = pneg %p578
      %p879 = pneg %p575
      %p880 = pneg %p599
      %p881 = pneg %p596
      %p882 = pneg %p620
      %p883 = pneg %p617
      %p884 = pneg %p641
      %p885 = pneg %p638
      %p886 = pneg %p662
      %p887 = pneg %p659
      %p888 = pneg %p683
      %p889 = pneg %p680
      %p890 = pneg %p709
      %p891 = pneg %p706
      %p892 = scmp.lt.s32.totalorder %s74, 1
      %s893 = scalar_select %p892, %s74, 1
      %s894 = smul.addr %s893, 2
      %s895 = scalar_lea.vmem %s59, %s894
      %p896 = scmp.lt.s32.totalorder %s74, 1
      %s897 = scalar_select %p896, %s74, 1
      %s898 = smul.addr %s897, 2
      %s899 = smul.addr %s898, 8
      %s900 = scalar_lea.vmem %s1, %s899
      %p901 = scmp.lt.s32.totalorder %s74, 1
      %s902 = scalar_select %p901, %s74, 1
      %s903 = smul.addr %s902, 2
      %s904 = scalar_lea.vmem %s59, %s903
      %v906 = vld [vmem:[%s900] sm:$0xff]
      %v907 = vld [vmem:[%s900 + $0x8] sm:$0xff]
      %v908 = vld [vmem:[%s3] sm:$0xf]
      %v909 = vld [vmem:[%s3 + $0x4] sm:$0xf]
      %v910 = vld [vmem:[%s3 + $0x8] sm:$0xf]
      %v911 = vld [vmem:[%s3 + $0xc] sm:$0xf]
      %v912 = vld [vmem:[%s3 + $0x10] sm:$0xf]
      %v913 = vld [vmem:[%s3 + $0x14] sm:$0xf]
      %v914 = vld [vmem:[%s3 + $0x18] sm:$0xf]
      %v915 = vld [vmem:[%s3 + $0x1c] sm:$0xf]
      %v916 = vld [vmem:[%s3 + $0x20] sm:$0xf]
      %v917 = vld [vmem:[%s3 + $0x24] sm:$0xf]
      %v918 = vld [vmem:[%s3 + $0x28] sm:$0xf]
      %v919 = vld [vmem:[%s3 + $0x2c] sm:$0xf]
      %v920 = vld [vmem:[%s3 + $0x30] sm:$0xf]
      %v921 = vld [vmem:[%s3 + $0x34] sm:$0xf]
      %v922 = vld [vmem:[%s3 + $0x38] sm:$0xf]
      %v923 = vld [vmem:[%s3 + $0x3c] sm:$0xf]
      %v924 = vld [vmem:[%s3 + $0x40] sm:$0xf]
      %v925 = vld [vmem:[%s3 + $0x44] sm:$0xf]
      %v926 = vld [vmem:[%s3 + $0x48] sm:$0xf]
      %v927 = vld [vmem:[%s3 + $0x4c] sm:$0xf]
      %v928 = vld [vmem:[%s3 + $0x50] sm:$0xf]
      %v929 = vld [vmem:[%s3 + $0x54] sm:$0xf]
      %v930 = vld [vmem:[%s3 + $0x58] sm:$0xf]
      %v931 = vld [vmem:[%s3 + $0x5c] sm:$0xf]
      %v932 = vld [vmem:[%s5] sm:$0x1]
      %v933 = vld [vmem:[%s7] sm:$0x1]
      %v934 = vld [vmem:[%s9] sm:$0x1]
      %v935 = vlaneseq
      %v936 = vshrl.u32 %v935, 7
      %v937 = vadd.s32 %v936, 8
      %v938 = vrot.slane %v906, 7
      %v939 = vrot.slane %v907, 7
      %vm940 = vcmp.lt.s32.totalorder %v936, 1
      %v941 = vsel %vm940, %v938, %v939
      %v942 = vsel %vm940, %v939, %v938
      %v943 = vadd.s32 %v936, 4294967295
      %v944 = vadd.s32 %v937, 4294967295
      %vm945 = vcmp.ge.s32.totalorder %v943, 0
      %vm946 = vcmp.ge.s32.totalorder %v944, 0
      %vm947 = vcmp.lt.s32.totalorder %v943, 16
      %vm948 = vcmp.lt.s32.totalorder %v944, 16
      %vm949 = vmand %vm945, %vm947
      %vm950 = vmand %vm946, %vm948
      %v951 = vsel %vm949, 1, 0
      %v952 = vsel %vm950, 1, 0
      %vm953 = vcmp.eq.s32.totalorder %v951, 1
      %vm954 = vcmp.eq.s32.totalorder %v952, 1
      %v955 = vsel %vm953, %v942, 0.0
      %v956 = vsel %vm954, %v941, 0.0
      %v957 = vpack.c.bf16 %v956, %v955
      %v958 = vpack.c.bf16 %v907, %v906
      %v967 = vunpack.c.l.b16 %v916
      %v968 = vunpack.c.l.b16 %v917
      %v969 = vunpack.c.l.b16 %v918
      %v970 = vunpack.c.l.b16 %v919
      %v971 = vunpack.c.l.b16 %v920
      %v972 = vunpack.c.l.b16 %v921
      %v973 = vunpack.c.l.b16 %v922
      %v974 = vunpack.c.l.b16 %v923
      %v975 = vpack.c.b16 %v968, %v967
      %v976 = vpack.c.b16 %v970, %v969
      %v977 = vpack.c.b16 %v972, %v971
      %v978 = vpack.c.b16 %v974, %v973
      %vm983 = vcmask 523264
      %v985 = vsel %vm983, %v958, 0
      %987 = vmatprep.subr.bf16.mxu0 0
      %988 = vmatpush1.bf16.msra.mxu0 %v975
      %989 = vmatprep.subr.bf16.mxu0 0
      %990 = vmatpush1.bf16.msra.mxu0 %v976
      %991 = vmatprep.subr.bf16.mxu0 0
      %992 = vmatpush1.bf16.msra.mxu0 %v977
      %993 = vmatprep.subr.bf16.mxu0 0
      %994 = vmatpush1.bf16.msra.mxu0 %v978
      %995 = vmatprep.subr.bf16.mxu0 0
      %996 = vmatpush1.bf16.msra.mxu0 0
      %997 = vmatprep.subr.bf16.mxu0 0
      %998 = vmatpush1.bf16.msra.mxu0 0
      %999 = vmatprep.subr.bf16.mxu0 0
      %1000 = vmatpush1.bf16.msra.mxu0 0
      %1001 = vmatprep.subr.bf16.mxu0 0
      %1002 = vmatpush1.bf16.msra.mxu0 0
      %1003 = vmatprep.subr.bf16.mxu0 0
      %1004 = vmatpush1.bf16.msra.mxu0 0
      %1005 = vmatprep.subr.bf16.mxu0 0
      %1006 = vmatpush1.bf16.msra.mxu0 0
      %1007 = vmatprep.subr.bf16.mxu0 0
      %1008 = vmatpush1.bf16.msra.mxu0 0
      %1009 = vmatprep.subr.bf16.mxu0 0
      %1010 = vmatpush1.bf16.msra.mxu0 0
      %1011 = vmatprep.subr.bf16.mxu0 0
      %1012 = vmatpush1.bf16.msra.mxu0 0
      %1013 = vmatprep.subr.bf16.mxu0 0
      %1014 = vmatpush1.bf16.msra.mxu0 0
      %1015 = vmatprep.subr.bf16.mxu0 0
      %1016 = vmatpush1.bf16.msra.mxu0 0
      %1017 = vmatprep.subr.bf16.mxu0 0
      %1018 = vmatpush1.bf16.msra.mxu0 0
      %1019 = vmatprep.mubr.bf16.mxu0 0
      %1020 = vmatmul.mubr.bf16.gmra.mrb[0].mxu0 %v985
      %v1021 = vpop.f32.mrb[0].mxu0
      %v1022 = vadd.f32 0.0, %v1021
      %v1023 = vpop.f32.mrb[0].mxu0
      %v1024 = vpop.f32.mrb[0].mxu0
      %v1025 = vadd.f32 0.0, %v1024
      %v1026 = vpop.f32.mrb[0].mxu0
      %1027 = vdwg.mxu0
      %v1036 = vunpack.c.l.b16 %v908
      %v1037 = vunpack.c.l.b16 %v909
      %v1038 = vunpack.c.l.b16 %v910
      %v1039 = vunpack.c.l.b16 %v911
      %v1040 = vunpack.c.l.b16 %v912
      %v1041 = vunpack.c.l.b16 %v913
      %v1042 = vunpack.c.l.b16 %v914
      %v1043 = vunpack.c.l.b16 %v915
      %v1044 = vpack.c.b16 %v1037, %v1036
      %v1045 = vpack.c.b16 %v1039, %v1038
      %v1046 = vpack.c.b16 %v1041, %v1040
      %v1047 = vpack.c.b16 %v1043, %v1042
      %v1053 = vsel %vm983, %v957, 0
      %1055 = vmatprep.subr.bf16.mxu0 0
      %1056 = vmatpush1.bf16.msra.mxu0 %v1044
      %1057 = vmatprep.subr.bf16.mxu0 0
      %1058 = vmatpush1.bf16.msra.mxu0 %v1045
      %1059 = vmatprep.subr.bf16.mxu0 0
      %1060 = vmatpush1.bf16.msra.mxu0 %v1046
      %1061 = vmatprep.subr.bf16.mxu0 0
      %1062 = vmatpush1.bf16.msra.mxu0 %v1047
      %1063 = vmatprep.subr.bf16.mxu0 0
      %1064 = vmatpush1.bf16.msra.mxu0 0
      %1065 = vmatprep.subr.bf16.mxu0 0
      %1066 = vmatpush1.bf16.msra.mxu0 0
      %1067 = vmatprep.subr.bf16.mxu0 0
      %1068 = vmatpush1.bf16.msra.mxu0 0
      %1069 = vmatprep.subr.bf16.mxu0 0
      %1070 = vmatpush1.bf16.msra.mxu0 0
      %1071 = vmatprep.subr.bf16.mxu0 0
      %1072 = vmatpush1.bf16.msra.mxu0 0
      %1073 = vmatprep.subr.bf16.mxu0 0
      %1074 = vmatpush1.bf16.msra.mxu0 0
      %1075 = vmatprep.subr.bf16.mxu0 0
      %1076 = vmatpush1.bf16.msra.mxu0 0
      %1077 = vmatprep.subr.bf16.mxu0 0
      %1078 = vmatpush1.bf16.msra.mxu0 0
      %1079 = vmatprep.subr.bf16.mxu0 0
      %1080 = vmatpush1.bf16.msra.mxu0 0
      %1081 = vmatprep.subr.bf16.mxu0 0
      %1082 = vmatpush1.bf16.msra.mxu0 0
      %1083 = vmatprep.subr.bf16.mxu0 0
      %1084 = vmatpush1.bf16.msra.mxu0 0
      %1085 = vmatprep.subr.bf16.mxu0 0
      %1086 = vmatpush1.bf16.msra.mxu0 0
      %1087 = vmatprep.mubr.bf16.mxu0 0
      %1088 = vmatmul.mubr.bf16.gmra.mrb[0].mxu0 %v1053
      %v1089 = vpop.f32.mrb[0].mxu0
      %v1090 = vadd.f32 %v1022, %v1089
      %v1091 = vpop.f32.mrb[0].mxu0
      %v1092 = vpop.f32.mrb[0].mxu0
      %v1093 = vadd.f32 %v1025, %v1092
      %v1094 = vpop.f32.mrb[0].mxu0
      %1095 = vdwg.mxu0
      %v1096 = vrot.slane %v906, 1
      %v1097 = vrot.slane %v907, 1
      %vm1098 = vcmp.lt.s32.totalorder %v936, 7
      %v1099 = vsel %vm1098, %v1096, %v1097
      %v1100 = vsel %vm1098, %v1097, %v1096
      %v1101 = vadd.s32 %v936, 1
      %v1102 = vadd.s32 %v937, 1
      %vm1103 = vcmp.ge.s32.totalorder %v1101, 0
      %vm1104 = vcmp.ge.s32.totalorder %v1102, 0
      %vm1105 = vcmp.lt.s32.totalorder %v1101, 16
      %vm1106 = vcmp.lt.s32.totalorder %v1102, 16
      %vm1107 = vmand %vm1103, %vm1105
      %vm1108 = vmand %vm1104, %vm1106
      %v1109 = vsel %vm1107, 1, 0
      %v1110 = vsel %vm1108, 1, 0
      %vm1111 = vcmp.eq.s32.totalorder %v1109, 1
      %vm1112 = vcmp.eq.s32.totalorder %v1110, 1
      %v1113 = vsel %vm1111, %v1099, 0.0
      %v1114 = vsel %vm1112, %v1100, 0.0
      %v1115 = vpack.c.bf16 %v1114, %v1113
      %v1124 = vunpack.c.l.b16 %v924
      %v1125 = vunpack.c.l.b16 %v925
      %v1126 = vunpack.c.l.b16 %v926
      %v1127 = vunpack.c.l.b16 %v927
      %v1128 = vunpack.c.l.b16 %v928
      %v1129 = vunpack.c.l.b16 %v929
      %v1130 = vunpack.c.l.b16 %v930
      %v1131 = vunpack.c.l.b16 %v931
      %v1132 = vpack.c.b16 %v1125, %v1124
      %v1133 = vpack.c.b16 %v1127, %v1126
      %v1134 = vpack.c.b16 %v1129, %v1128
      %v1135 = vpack.c.b16 %v1131, %v1130
      %v1141 = vsel %vm983, %v1115, 0
      %1143 = vmatprep.subr.bf16.mxu0 0
      %1144 = vmatpush1.bf16.msra.mxu0 %v1132
      %1145 = vmatprep.subr.bf16.mxu0 0
      %1146 = vmatpush1.bf16.msra.mxu0 %v1133
      %1147 = vmatprep.subr.bf16.mxu0 0
      %1148 = vmatpush1.bf16.msra.mxu0 %v1134
      %1149 = vmatprep.subr.bf16.mxu0 0
      %1150 = vmatpush1.bf16.msra.mxu0 %v1135
      %1151 = vmatprep.subr.bf16.mxu0 0
      %1152 = vmatpush1.bf16.msra.mxu0 0
      %1153 = vmatprep.subr.bf16.mxu0 0
      %1154 = vmatpush1.bf16.msra.mxu0 0
      %1155 = vmatprep.subr.bf16.mxu0 0
      %1156 = vmatpush1.bf16.msra.mxu0 0
      %1157 = vmatprep.subr.bf16.mxu0 0
      %1158 = vmatpush1.bf16.msra.mxu0 0
      %1159 = vmatprep.subr.bf16.mxu0 0
      %1160 = vmatpush1.bf16.msra.mxu0 0
      %1161 = vmatprep.subr.bf16.mxu0 0
      %1162 = vmatpush1.bf16.msra.mxu0 0
      %1163 = vmatprep.subr.bf16.mxu0 0
      %1164 = vmatpush1.bf16.msra.mxu0 0
      %1165 = vmatprep.subr.bf16.mxu0 0
      %1166 = vmatpush1.bf16.msra.mxu0 0
      %1167 = vmatprep.subr.bf16.mxu0 0
      %1168 = vmatpush1.bf16.msra.mxu0 0
      %1169 = vmatprep.subr.bf16.mxu0 0
      %1170 = vmatpush1.bf16.msra.mxu0 0
      %1171 = vmatprep.subr.bf16.mxu0 0
      %1172 = vmatpush1.bf16.msra.mxu0 0
      %1173 = vmatprep.subr.bf16.mxu0 0
      %1174 = vmatpush1.bf16.msra.mxu0 0
      %1175 = vmatprep.mubr.bf16.mxu0 0
      %1176 = vmatmul.mubr.bf16.gmra.mrb[0].mxu0 %v1141
      %v1177 = vpop.f32.mrb[0].mxu0
      %v1178 = vadd.f32 0.0, %v1177
      %v1179 = vpop.f32.mrb[0].mxu0
      %v1180 = vpop.f32.mrb[0].mxu0
      %v1181 = vadd.f32 0.0, %v1180
      %v1182 = vpop.f32.mrb[0].mxu0
      %1183 = vdwg.mxu0
      %v1184 = vadd.f32 %v1090, %v1178
      %v1185 = vadd.f32 %v1093, %v1181
      %v1187 = vlaneseq
      %v1188 = vshrl.u32 %v1187, 7
      %v1189 = vsub.s32 0, %v1188
      %v1190 = vrot.slane %v932, %v1189
      %v1192 = vadd.f32 %v1184, %v1190
      %v1193 = vadd.f32 %v1185, %v1190
      %v1194 = vmax.f32 %v1192, 0.0
      %v1195 = vmax.f32 %v1193, 0.0
      %vm1196 = vcmask 261120
      %v1197 = vsel %vm1196, %v1194, 0.0
      %1198 = vadd.xlane.f32.xlu0 %v1197
      %v1199 = vpop.xlane.xlu0 %1198
      %v1200 = vsel %vm1196, %v1195, 0.0
      %1201 = vadd.xlane.f32.xlu0 %v1200
      %v1202 = vpop.xlane.xlu0 %1201
      %v1203 = vrcp.pop 32.0
      %v1204 = vmul.f32 %v1199, %v1203
      %v1205 = vmul.f32 %v1202, %v1203
      %v1206 = vsub.f32 %v1194, %v1204
      %v1207 = vsub.f32 %v1195, %v1205
      %v1208 = vmul.f32 %v1206, %v1206
      %v1209 = vmul.f32 %v1207, %v1207
      %v1210 = vsel %vm1196, %v1208, 0.0
      %1211 = vadd.xlane.f32.xlu0 %v1210
      %v1212 = vpop.xlane.xlu0 %1211
      %v1213 = vsel %vm1196, %v1209, 0.0
      %1214 = vadd.xlane.f32.xlu0 %v1213
      %v1215 = vpop.xlane.xlu0 %1214
      %v1216 = vmul.f32 %v1212, %v1203
      %v1217 = vmul.f32 %v1215, %v1203
      %v1218 = vadd.f32 %v1216, 1e-05
      %v1219 = vadd.f32 %v1217, 1e-05
      %v1220 = vrsqrt.pop %v1218
      %v1221 = vrsqrt.pop %v1219
      %v1222 = vmul.f32 %v1206, %v1220
      %v1223 = vmul.f32 %v1207, %v1221
      %v1225 = vlaneseq
      %v1226 = vshrl.u32 %v1225, 7
      %v1227 = vsub.s32 0, %v1226
      %v1228 = vrot.slane %v933, %v1227
      %v1230 = vmul.f32 %v1222, %v1228
      %v1231 = vmul.f32 %v1223, %v1228
      %v1233 = vlaneseq
      %v1234 = vshrl.u32 %v1233, 7
      %v1235 = vsub.s32 0, %v1234
      %v1236 = vrot.slane %v934, %v1235
      %v1238 = vadd.f32 %v1230, %v1236
      %v1239 = vadd.f32 %v1231, %v1236
      %v1240 = vld [vmem:[%s11] sm:$0xf]
      %v1241 = vld [vmem:[%s11 + $0x4] sm:$0xf]
      %v1242 = vld [vmem:[%s11 + $0x8] sm:$0xf]
      %v1243 = vld [vmem:[%s11 + $0xc] sm:$0xf]
      %v1244 = vld [vmem:[%s11 + $0x10] sm:$0xf]
      %v1245 = vld [vmem:[%s11 + $0x14] sm:$0xf]
      %v1246 = vld [vmem:[%s11 + $0x18] sm:$0xf]
      %v1247 = vld [vmem:[%s11 + $0x1c] sm:$0xf]
      %v1248 = vld [vmem:[%s11 + $0x20] sm:$0xf]
      %v1249 = vld [vmem:[%s11 + $0x24] sm:$0xf]
      %v1250 = vld [vmem:[%s11 + $0x28] sm:$0xf]
      %v1251 = vld [vmem:[%s11 + $0x2c] sm:$0xf]
      %v1252 = vld [vmem:[%s13] sm:$0x1]
      %v1253 = vld [vmem:[%s15] sm:$0x1]
      %v1254 = vld [vmem:[%s17] sm:$0x1]
      %v1255 = vrot.slane %v1238, 7
      %v1256 = vrot.slane %v1239, 7
      %v1257 = vsel %vm940, %v1255, %v1256
      %v1258 = vsel %vm940, %v1256, %v1255
      %v1259 = vsel %vm953, %v1258, 0.0
      %v1260 = vsel %vm954, %v1257, 0.0
      %v1261 = vpack.c.bf16 %v1260, %v1259
      %v1262 = vpack.c.bf16 %v1239, %v1238
      %v1267 = vunpack.c.l.b16 %v1244
      %v1268 = vunpack.c.l.b16 %v1245
      %v1269 = vunpack.c.l.b16 %v1246
      %v1270 = vunpack.c.l.b16 %v1247
      %v1271 = vpack.c.b16 %v1268, %v1267
      %v1272 = vpack.c.b16 %v1270, %v1269
      %v1276 = vsel %vm1196, %v1262, 0
      %1278 = vmatprep.subr.bf16.mxu0 0
      %1279 = vmatpush1.bf16.msra.mxu0 %v1271
      %1280 = vmatprep.subr.bf16.mxu0 0
      %1281 = vmatpush1.bf16.msra.mxu0 %v1272
      %1282 = vmatprep.subr.bf16.mxu0 0
      %1283 = vmatpush1.bf16.msra.mxu0 0
      %1284 = vmatprep.subr.bf16.mxu0 0
      %1285 = vmatpush1.bf16.msra.mxu0 0
      %1286 = vmatprep.subr.bf16.mxu0 0
      %1287 = vmatpush1.bf16.msra.mxu0 0
      %1288 = vmatprep.subr.bf16.mxu0 0
      %1289 = vmatpush1.bf16.msra.mxu0 0
      %1290 = vmatprep.subr.bf16.mxu0 0
      %1291 = vmatpush1.bf16.msra.mxu0 0
      %1292 = vmatprep.subr.bf16.mxu0 0
      %1293 = vmatpush1.bf16.msra.mxu0 0
      %1294 = vmatprep.subr.bf16.mxu0 0
      %1295 = vmatpush1.bf16.msra.mxu0 0
      %1296 = vmatprep.subr.bf16.mxu0 0
      %1297 = vmatpush1.bf16.msra.mxu0 0
      %1298 = vmatprep.subr.bf16.mxu0 0
      %1299 = vmatpush1.bf16.msra.mxu0 0
      %1300 = vmatprep.subr.bf16.mxu0 0
      %1301 = vmatpush1.bf16.msra.mxu0 0
      %1302 = vmatprep.subr.bf16.mxu0 0
      %1303 = vmatpush1.bf16.msra.mxu0 0
      %1304 = vmatprep.subr.bf16.mxu0 0
      %1305 = vmatpush1.bf16.msra.mxu0 0
      %1306 = vmatprep.subr.bf16.mxu0 0
      %1307 = vmatpush1.bf16.msra.mxu0 0
      %1308 = vmatprep.subr.bf16.mxu0 0
      %1309 = vmatpush1.bf16.msra.mxu0 0
      %1310 = vmatprep.mubr.bf16.mxu0 0
      %1311 = vmatmul.mubr.bf16.gmra.mrb[0].mxu0 %v1276
      %v1312 = vpop.f32.mrb[0].mxu0
      %v1313 = vadd.f32 0.0, %v1312
      %v1314 = vpop.f32.mrb[0].mxu0
      %v1315 = vpop.f32.mrb[0].mxu0
      %v1316 = vadd.f32 0.0, %v1315
      %v1317 = vpop.f32.mrb[0].mxu0
      %1318 = vdwg.mxu0
      %v1323 = vunpack.c.l.b16 %v1240
      %v1324 = vunpack.c.l.b16 %v1241
      %v1325 = vunpack.c.l.b16 %v1242
      %v1326 = vunpack.c.l.b16 %v1243
      %v1327 = vpack.c.b16 %v1324, %v1323
      %v1328 = vpack.c.b16 %v1326, %v1325
      %v1332 = vsel %vm1196, %v1261, 0
      %1334 = vmatprep.subr.bf16.mxu0 0
      %1335 = vmatpush1.bf16.msra.mxu0 %v1327
      %1336 = vmatprep.subr.bf16.mxu0 0
      %1337 = vmatpush1.bf16.msra.mxu0 %v1328
      %1338 = vmatprep.subr.bf16.mxu0 0
      %1339 = vmatpush1.bf16.msra.mxu0 0
      %1340 = vmatprep.subr.bf16.mxu0 0
      %1341 = vmatpush1.bf16.msra.mxu0 0
      %1342 = vmatprep.subr.bf16.mxu0 0
      %1343 = vmatpush1.bf16.msra.mxu0 0
      %1344 = vmatprep.subr.bf16.mxu0 0
      %1345 = vmatpush1.bf16.msra.mxu0 0
      %1346 = vmatprep.subr.bf16.mxu0 0
      %1347 = vmatpush1.bf16.msra.mxu0 0
      %1348 = vmatprep.subr.bf16.mxu0 0
      %1349 = vmatpush1.bf16.msra.mxu0 0
      %1350 = vmatprep.subr.bf16.mxu0 0
      %1351 = vmatpush1.bf16.msra.mxu0 0
      %1352 = vmatprep.subr.bf16.mxu0 0
      %1353 = vmatpush1.bf16.msra.mxu0 0
      %1354 = vmatprep.subr.bf16.mxu0 0
      %1355 = vmatpush1.bf16.msra.mxu0 0
      %1356 = vmatprep.subr.bf16.mxu0 0
      %1357 = vmatpush1.bf16.msra.mxu0 0
      %1358 = vmatprep.subr.bf16.mxu0 0
      %1359 = vmatpush1.bf16.msra.mxu0 0
      %1360 = vmatprep.subr.bf16.mxu0 0
      %1361 = vmatpush1.bf16.msra.mxu0 0
      %1362 = vmatprep.subr.bf16.mxu0 0
      %1363 = vmatpush1.bf16.msra.mxu0 0
      %1364 = vmatprep.subr.bf16.mxu0 0
      %1365 = vmatpush1.bf16.msra.mxu0 0
      %1366 = vmatprep.mubr.bf16.mxu0 0
      %1367 = vmatmul.mubr.bf16.gmra.mrb[0].mxu0 %v1332
      %v1368 = vpop.f32.mrb[0].mxu0
      %v1369 = vadd.f32 %v1313, %v1368
      %v1370 = vpop.f32.mrb[0].mxu0
      %v1371 = vpop.f32.mrb[0].mxu0
      %v1372 = vadd.f32 %v1316, %v1371
      %v1373 = vpop.f32.mrb[0].mxu0
      %1374 = vdwg.mxu0
      %v1375 = vrot.slane %v1238, 1
      %v1376 = vrot.slane %v1239, 1
      %v1377 = vsel %vm1098, %v1375, %v1376
      %v1378 = vsel %vm1098, %v1376, %v1375
      %v1379 = vsel %vm1111, %v1377, 0.0
      %v1380 = vsel %vm1112, %v1378, 0.0
      %v1381 = vpack.c.bf16 %v1380, %v1379
      %v1386 = vunpack.c.l.b16 %v1248
      %v1387 = vunpack.c.l.b16 %v1249
      %v1388 = vunpack.c.l.b16 %v1250
      %v1389 = vunpack.c.l.b16 %v1251
      %v1390 = vpack.c.b16 %v1387, %v1386
      %v1391 = vpack.c.b16 %v1389, %v1388
      %v1395 = vsel %vm1196, %v1381, 0
      %1397 = vmatprep.subr.bf16.mxu0 0
      %1398 = vmatpush1.bf16.msra.mxu0 %v1390
      %1399 = vmatprep.subr.bf16.mxu0 0
      %1400 = vmatpush1.bf16.msra.mxu0 %v1391
      %1401 = vmatprep.subr.bf16.mxu0 0
      %1402 = vmatpush1.bf16.msra.mxu0 0
      %1403 = vmatprep.subr.bf16.mxu0 0
      %1404 = vmatpush1.bf16.msra.mxu0 0
      %1405 = vmatprep.subr.bf16.mxu0 0
      %1406 = vmatpush1.bf16.msra.mxu0 0
      %1407 = vmatprep.subr.bf16.mxu0 0
      %1408 = vmatpush1.bf16.msra.mxu0 0
      %1409 = vmatprep.subr.bf16.mxu0 0
      %1410 = vmatpush1.bf16.msra.mxu0 0
      %1411 = vmatprep.subr.bf16.mxu0 0
      %1412 = vmatpush1.bf16.msra.mxu0 0
      %1413 = vmatprep.subr.bf16.mxu0 0
      %1414 = vmatpush1.bf16.msra.mxu0 0
      %1415 = vmatprep.subr.bf16.mxu0 0
      %1416 = vmatpush1.bf16.msra.mxu0 0
      %1417 = vmatprep.subr.bf16.mxu0 0
      %1418 = vmatpush1.bf16.msra.mxu0 0
      %1419 = vmatprep.subr.bf16.mxu0 0
      %1420 = vmatpush1.bf16.msra.mxu0 0
      %1421 = vmatprep.subr.bf16.mxu0 0
      %1422 = vmatpush1.bf16.msra.mxu0 0
      %1423 = vmatprep.subr.bf16.mxu0 0
      %1424 = vmatpush1.bf16.msra.mxu0 0
      %1425 = vmatprep.subr.bf16.mxu0 0
      %1426 = vmatpush1.bf16.msra.mxu0 0
      %1427 = vmatprep.subr.bf16.mxu0 0
      %1428 = vmatpush1.bf16.msra.mxu0 0
      %1429 = vmatprep.mubr.bf16.mxu0 0
      %1430 = vmatmul.mubr.bf16.gmra.mrb[0].mxu0 %v1395
      %v1431 = vpop.f32.mrb[0].mxu0
      %v1432 = vadd.f32 0.0, %v1431
      %v1433 = vpop.f32.mrb[0].mxu0
      %v1434 = vpop.f32.mrb[0].mxu0
      %v1435 = vadd.f32 0.0, %v1434
      %v1436 = vpop.f32.mrb[0].mxu0
      %1437 = vdwg.mxu0
      %v1438 = vadd.f32 %v1369, %v1432
      %v1439 = vadd.f32 %v1372, %v1435
      %v1441 = vlaneseq
      %v1442 = vshrl.u32 %v1441, 7
      %v1443 = vsub.s32 0, %v1442
      %v1444 = vrot.slane %v1252, %v1443
      %v1446 = vadd.f32 %v1438, %v1444
      %v1447 = vadd.f32 %v1439, %v1444
      %v1448 = vmax.f32 %v1446, 0.0
      %v1449 = vmax.f32 %v1447, 0.0
      %v1450 = vsel %vm1196, %v1448, 0.0
      %1451 = vadd.xlane.f32.xlu0 %v1450
      %v1452 = vpop.xlane.xlu0 %1451
      %v1453 = vsel %vm1196, %v1449, 0.0
      %1454 = vadd.xlane.f32.xlu0 %v1453
      %v1455 = vpop.xlane.xlu0 %1454
      %v1456 = vmul.f32 %v1452, %v1203
      %v1457 = vmul.f32 %v1455, %v1203
      %v1458 = vsub.f32 %v1448, %v1456
      %v1459 = vsub.f32 %v1449, %v1457
      %v1460 = vmul.f32 %v1458, %v1458
      %v1461 = vmul.f32 %v1459, %v1459
      %v1462 = vsel %vm1196, %v1460, 0.0
      %1463 = vadd.xlane.f32.xlu0 %v1462
      %v1464 = vpop.xlane.xlu0 %1463
      %v1465 = vsel %vm1196, %v1461, 0.0
      %1466 = vadd.xlane.f32.xlu0 %v1465
      %v1467 = vpop.xlane.xlu0 %1466
      %v1468 = vmul.f32 %v1464, %v1203
      %v1469 = vmul.f32 %v1467, %v1203
      %v1470 = vadd.f32 %v1468, 1e-05
      %v1471 = vadd.f32 %v1469, 1e-05
      %v1472 = vrsqrt.pop %v1470
      %v1473 = vrsqrt.pop %v1471
      %v1474 = vmul.f32 %v1458, %v1472
      %v1475 = vmul.f32 %v1459, %v1473
      %v1477 = vlaneseq
      %v1478 = vshrl.u32 %v1477, 7
      %v1479 = vsub.s32 0, %v1478
      %v1480 = vrot.slane %v1253, %v1479
      %v1482 = vmul.f32 %v1474, %v1480
      %v1483 = vmul.f32 %v1475, %v1480
      %v1485 = vlaneseq
      %v1486 = vshrl.u32 %v1485, 7
      %v1487 = vsub.s32 0, %v1486
      %v1488 = vrot.slane %v1254, %v1487
      %v1490 = vadd.f32 %v1482, %v1488
      %v1491 = vadd.f32 %v1483, %v1488
      %v1492 = vld [vmem:[%s19] sm:$0xf]
      %v1493 = vld [vmem:[%s19 + $0x4] sm:$0xf]
      %v1494 = vld [vmem:[%s19 + $0x8] sm:$0xf]
      %v1495 = vld [vmem:[%s19 + $0xc] sm:$0xf]
      %v1496 = vld [vmem:[%s19 + $0x10] sm:$0xf]
      %v1497 = vld [vmem:[%s19 + $0x14] sm:$0xf]
      %v1498 = vld [vmem:[%s19 + $0x18] sm:$0xf]
      %v1499 = vld [vmem:[%s19 + $0x1c] sm:$0xf]
      %v1500 = vld [vmem:[%s19 + $0x20] sm:$0xf]
      %v1501 = vld [vmem:[%s19 + $0x24] sm:$0xf]
      %v1502 = vld [vmem:[%s19 + $0x28] sm:$0xf]
      %v1503 = vld [vmem:[%s19 + $0x2c] sm:$0xf]
      %v1504 = vld [vmem:[%s21] sm:$0x1]
      %v1505 = vld [vmem:[%s23] sm:$0x1]
      %v1506 = vld [vmem:[%s25] sm:$0x1]
      %v1507 = vrot.slane %v1490, 7
      %v1508 = vrot.slane %v1491, 7
      %v1509 = vsel %vm940, %v1507, %v1508
      %v1510 = vsel %vm940, %v1508, %v1507
      %v1511 = vsel %vm953, %v1510, 0.0
      %v1512 = vsel %vm954, %v1509, 0.0
      %v1513 = vpack.c.bf16 %v1512, %v1511
      %v1514 = vpack.c.bf16 %v1491, %v1490
      %v1519 = vunpack.c.l.b16 %v1496
      %v1520 = vunpack.c.l.b16 %v1497
      %v1521 = vunpack.c.l.b16 %v1498
      %v1522 = vunpack.c.l.b16 %v1499
      %v1523 = vpack.c.b16 %v1520, %v1519
      %v1524 = vpack.c.b16 %v1522, %v1521
      %v1528 = vsel %vm1196, %v1514, 0
      %1530 = vmatprep.subr.bf16.mxu0 0
      %1531 = vmatpush1.bf16.msra.mxu0 %v1523
      %1532 = vmatprep.subr.bf16.mxu0 0
      %1533 = vmatpush1.bf16.msra.mxu0 %v1524
      %1534 = vmatprep.subr.bf16.mxu0 0
      %1535 = vmatpush1.bf16.msra.mxu0 0
      %1536 = vmatprep.subr.bf16.mxu0 0
      %1537 = vmatpush1.bf16.msra.mxu0 0
      %1538 = vmatprep.subr.bf16.mxu0 0
      %1539 = vmatpush1.bf16.msra.mxu0 0
      %1540 = vmatprep.subr.bf16.mxu0 0
      %1541 = vmatpush1.bf16.msra.mxu0 0
      %1542 = vmatprep.subr.bf16.mxu0 0
      %1543 = vmatpush1.bf16.msra.mxu0 0
      %1544 = vmatprep.subr.bf16.mxu0 0
      %1545 = vmatpush1.bf16.msra.mxu0 0
      %1546 = vmatprep.subr.bf16.mxu0 0
      %1547 = vmatpush1.bf16.msra.mxu0 0
      %1548 = vmatprep.subr.bf16.mxu0 0
      %1549 = vmatpush1.bf16.msra.mxu0 0
      %1550 = vmatprep.subr.bf16.mxu0 0
      %1551 = vmatpush1.bf16.msra.mxu0 0
      %1552 = vmatprep.subr.bf16.mxu0 0
      %1553 = vmatpush1.bf16.msra.mxu0 0
      %1554 = vmatprep.subr.bf16.mxu0 0
      %1555 = vmatpush1.bf16.msra.mxu0 0
      %1556 = vmatprep.subr.bf16.mxu0 0
      %1557 = vmatpush1.bf16.msra.mxu0 0
      %1558 = vmatprep.subr.bf16.mxu0 0
      %1559 = vmatpush1.bf16.msra.mxu0 0
      %1560 = vmatprep.subr.bf16.mxu0 0
      %1561 = vmatpush1.bf16.msra.mxu0 0
      %1562 = vmatprep.mubr.bf16.mxu0 0
      %1563 = vmatmul.mubr.bf16.gmra.mrb[0].mxu0 %v1528
      %v1564 = vpop.f32.mrb[0].mxu0
      %v1565 = vadd.f32 0.0, %v1564
      %v1566 = vpop.f32.mrb[0].mxu0
      %v1567 = vpop.f32.mrb[0].mxu0
      %v1568 = vadd.f32 0.0, %v1567
      %v1569 = vpop.f32.mrb[0].mxu0
      %1570 = vdwg.mxu0
      %v1575 = vunpack.c.l.b16 %v1492
      %v1576 = vunpack.c.l.b16 %v1493
      %v1577 = vunpack.c.l.b16 %v1494
      %v1578 = vunpack.c.l.b16 %v1495
      %v1579 = vpack.c.b16 %v1576, %v1575
      %v1580 = vpack.c.b16 %v1578, %v1577
      %v1584 = vsel %vm1196, %v1513, 0
      %1586 = vmatprep.subr.bf16.mxu0 0
      %1587 = vmatpush1.bf16.msra.mxu0 %v1579
      %1588 = vmatprep.subr.bf16.mxu0 0
      %1589 = vmatpush1.bf16.msra.mxu0 %v1580
      %1590 = vmatprep.subr.bf16.mxu0 0
      %1591 = vmatpush1.bf16.msra.mxu0 0
      %1592 = vmatprep.subr.bf16.mxu0 0
      %1593 = vmatpush1.bf16.msra.mxu0 0
      %1594 = vmatprep.subr.bf16.mxu0 0
      %1595 = vmatpush1.bf16.msra.mxu0 0
      %1596 = vmatprep.subr.bf16.mxu0 0
      %1597 = vmatpush1.bf16.msra.mxu0 0
      %1598 = vmatprep.subr.bf16.mxu0 0
      %1599 = vmatpush1.bf16.msra.mxu0 0
      %1600 = vmatprep.subr.bf16.mxu0 0
      %1601 = vmatpush1.bf16.msra.mxu0 0
      %1602 = vmatprep.subr.bf16.mxu0 0
      %1603 = vmatpush1.bf16.msra.mxu0 0
      %1604 = vmatprep.subr.bf16.mxu0 0
      %1605 = vmatpush1.bf16.msra.mxu0 0
      %1606 = vmatprep.subr.bf16.mxu0 0
      %1607 = vmatpush1.bf16.msra.mxu0 0
      %1608 = vmatprep.subr.bf16.mxu0 0
      %1609 = vmatpush1.bf16.msra.mxu0 0
      %1610 = vmatprep.subr.bf16.mxu0 0
      %1611 = vmatpush1.bf16.msra.mxu0 0
      %1612 = vmatprep.subr.bf16.mxu0 0
      %1613 = vmatpush1.bf16.msra.mxu0 0
      %1614 = vmatprep.subr.bf16.mxu0 0
      %1615 = vmatpush1.bf16.msra.mxu0 0
      %1616 = vmatprep.subr.bf16.mxu0 0
      %1617 = vmatpush1.bf16.msra.mxu0 0
      %1618 = vmatprep.mubr.bf16.mxu0 0
      %1619 = vmatmul.mubr.bf16.gmra.mrb[0].mxu0 %v1584
      %v1620 = vpop.f32.mrb[0].mxu0
      %v1621 = vadd.f32 %v1565, %v1620
      %v1622 = vpop.f32.mrb[0].mxu0
      %v1623 = vpop.f32.mrb[0].mxu0
      %v1624 = vadd.f32 %v1568, %v1623
      %v1625 = vpop.f32.mrb[0].mxu0
      %1626 = vdwg.mxu0
      %v1627 = vrot.slane %v1490, 1
      %v1628 = vrot.slane %v1491, 1
      %v1629 = vsel %vm1098, %v1627, %v1628
      %v1630 = vsel %vm1098, %v1628, %v1627
      %v1631 = vsel %vm1111, %v1629, 0.0
      %v1632 = vsel %vm1112, %v1630, 0.0
      %v1633 = vpack.c.bf16 %v1632, %v1631
      %v1638 = vunpack.c.l.b16 %v1500
      %v1639 = vunpack.c.l.b16 %v1501
      %v1640 = vunpack.c.l.b16 %v1502
      %v1641 = vunpack.c.l.b16 %v1503
      %v1642 = vpack.c.b16 %v1639, %v1638
      %v1643 = vpack.c.b16 %v1641, %v1640
      %v1647 = vsel %vm1196, %v1633, 0
      %1649 = vmatprep.subr.bf16.mxu0 0
      %1650 = vmatpush1.bf16.msra.mxu0 %v1642
      %1651 = vmatprep.subr.bf16.mxu0 0
      %1652 = vmatpush1.bf16.msra.mxu0 %v1643
      %1653 = vmatprep.subr.bf16.mxu0 0
      %1654 = vmatpush1.bf16.msra.mxu0 0
      %1655 = vmatprep.subr.bf16.mxu0 0
      %1656 = vmatpush1.bf16.msra.mxu0 0
      %1657 = vmatprep.subr.bf16.mxu0 0
      %1658 = vmatpush1.bf16.msra.mxu0 0
      %1659 = vmatprep.subr.bf16.mxu0 0
      %1660 = vmatpush1.bf16.msra.mxu0 0
      %1661 = vmatprep.subr.bf16.mxu0 0
      %1662 = vmatpush1.bf16.msra.mxu0 0
      %1663 = vmatprep.subr.bf16.mxu0 0
      %1664 = vmatpush1.bf16.msra.mxu0 0
      %1665 = vmatprep.subr.bf16.mxu0 0
      %1666 = vmatpush1.bf16.msra.mxu0 0
      %1667 = vmatprep.subr.bf16.mxu0 0
      %1668 = vmatpush1.bf16.msra.mxu0 0
      %1669 = vmatprep.subr.bf16.mxu0 0
      %1670 = vmatpush1.bf16.msra.mxu0 0
      %1671 = vmatprep.subr.bf16.mxu0 0
      %1672 = vmatpush1.bf16.msra.mxu0 0
      %1673 = vmatprep.subr.bf16.mxu0 0
      %1674 = vmatpush1.bf16.msra.mxu0 0
      %1675 = vmatprep.subr.bf16.mxu0 0
      %1676 = vmatpush1.bf16.msra.mxu0 0
      %1677 = vmatprep.subr.bf16.mxu0 0
      %1678 = vmatpush1.bf16.msra.mxu0 0
      %1679 = vmatprep.subr.bf16.mxu0 0
      %1680 = vmatpush1.bf16.msra.mxu0 0
      %1681 = vmatprep.mubr.bf16.mxu0 0
      %1682 = vmatmul.mubr.bf16.gmra.mrb[0].mxu0 %v1647
      %v1683 = vpop.f32.mrb[0].mxu0
      %v1684 = vadd.f32 0.0, %v1683
      %v1685 = vpop.f32.mrb[0].mxu0
      %v1686 = vpop.f32.mrb[0].mxu0
      %v1687 = vadd.f32 0.0, %v1686
      %v1688 = vpop.f32.mrb[0].mxu0
      %1689 = vdwg.mxu0
      %v1690 = vadd.f32 %v1621, %v1684
      %v1691 = vadd.f32 %v1624, %v1687
      %v1693 = vlaneseq
      %v1694 = vshrl.u32 %v1693, 7
      %v1695 = vsub.s32 0, %v1694
      %v1696 = vrot.slane %v1504, %v1695
      %v1698 = vadd.f32 %v1690, %v1696
      %v1699 = vadd.f32 %v1691, %v1696
      %v1700 = vmax.f32 %v1698, 0.0
      %v1701 = vmax.f32 %v1699, 0.0
      %v1702 = vsel %vm1196, %v1700, 0.0
      %1703 = vadd.xlane.f32.xlu0 %v1702
      %v1704 = vpop.xlane.xlu0 %1703
      %v1705 = vsel %vm1196, %v1701, 0.0
      %1706 = vadd.xlane.f32.xlu0 %v1705
      %v1707 = vpop.xlane.xlu0 %1706
      %v1708 = vmul.f32 %v1704, %v1203
      %v1709 = vmul.f32 %v1707, %v1203
      %v1710 = vsub.f32 %v1700, %v1708
      %v1711 = vsub.f32 %v1701, %v1709
      %v1712 = vmul.f32 %v1710, %v1710
      %v1713 = vmul.f32 %v1711, %v1711
      %v1714 = vsel %vm1196, %v1712, 0.0
      %1715 = vadd.xlane.f32.xlu0 %v1714
      %v1716 = vpop.xlane.xlu0 %1715
      %v1717 = vsel %vm1196, %v1713, 0.0
      %1718 = vadd.xlane.f32.xlu0 %v1717
      %v1719 = vpop.xlane.xlu0 %1718
      %v1720 = vmul.f32 %v1716, %v1203
      %v1721 = vmul.f32 %v1719, %v1203
      %v1722 = vadd.f32 %v1720, 1e-05
      %v1723 = vadd.f32 %v1721, 1e-05
      %v1724 = vrsqrt.pop %v1722
      %v1725 = vrsqrt.pop %v1723
      %v1726 = vmul.f32 %v1710, %v1724
      %v1727 = vmul.f32 %v1711, %v1725
      %v1729 = vlaneseq
      %v1730 = vshrl.u32 %v1729, 7
      %v1731 = vsub.s32 0, %v1730
      %v1732 = vrot.slane %v1505, %v1731
      %v1734 = vmul.f32 %v1726, %v1732
      %v1735 = vmul.f32 %v1727, %v1732
      %v1737 = vlaneseq
      %v1738 = vshrl.u32 %v1737, 7
      %v1739 = vsub.s32 0, %v1738
      %v1740 = vrot.slane %v1506, %v1739
      %v1742 = vadd.f32 %v1734, %v1740
      %v1743 = vadd.f32 %v1735, %v1740
      %v1744 = vld [vmem:[%s27] sm:$0x1]
      %v1745 = vld [vmem:[#allocation2] sm:$0x1]
      %v1746 = vpack.c.bf16 %v1743, %v1742
      %1748 = vset.pattern.permute.xlu0 0
      %1749 = vperm.xlu0 %1748, %v1745
      %v1750 = vpop.permute.xlu0 %1749
      %v1752 = vlaneseq
      %v1753 = vshrl.u32 %v1752, 7
      %v1754 = vsub.s32 0, %v1753
      %v1755 = vrot.slane %v1750, %v1754
      %v1757 = vsel %vm1196, %v1744, 0
      %v1760 = vsel %vm1196, %v1746, 0
      %1762 = vmatprep.subr.bf16.mxu0 0
      %1763 = vmatpush1.bf16.xpose.msra.mxu0 %v1760
      %1764 = vmatprep.subr.bf16.mxu0 0
      %1765 = vmatpush1.bf16.xpose.msra.mxu0 0
      %1766 = vmatprep.subr.bf16.mxu0 0
      %1767 = vmatpush1.bf16.xpose.msra.mxu0 0
      %1768 = vmatprep.subr.bf16.mxu0 0
      %1769 = vmatpush1.bf16.xpose.msra.mxu0 0
      %1770 = vmatprep.subr.bf16.mxu0 0
      %1771 = vmatpush1.bf16.xpose.msra.mxu0 0
      %1772 = vmatprep.subr.bf16.mxu0 0
      %1773 = vmatpush1.bf16.xpose.msra.mxu0 0
      %1774 = vmatprep.subr.bf16.mxu0 0
      %1775 = vmatpush1.bf16.xpose.msra.mxu0 0
      %1776 = vmatprep.subr.bf16.mxu0 0
      %1777 = vmatpush1.bf16.xpose.msra.mxu0 0
      %1778 = vmatprep.subr.bf16.mxu0 0
      %1779 = vmatpush1.bf16.xpose.msra.mxu0 0
      %1780 = vmatprep.subr.bf16.mxu0 0
      %1781 = vmatpush1.bf16.xpose.msra.mxu0 0
      %1782 = vmatprep.subr.bf16.mxu0 0
      %1783 = vmatpush1.bf16.xpose.msra.mxu0 0
      %1784 = vmatprep.subr.bf16.mxu0 0
      %1785 = vmatpush1.bf16.xpose.msra.mxu0 0
      %1786 = vmatprep.subr.bf16.mxu0 0
      %1787 = vmatpush1.bf16.xpose.msra.mxu0 0
      %1788 = vmatprep.subr.bf16.mxu0 0
      %1789 = vmatpush1.bf16.xpose.msra.mxu0 0
      %1790 = vmatprep.subr.bf16.mxu0 0
      %1791 = vmatpush1.bf16.xpose.msra.mxu0 0
      %1792 = vmatprep.subr.bf16.mxu0 0
      %1793 = vmatpush1.bf16.xpose.msra.mxu0 0
      %1794 = vmatprep.mubr.bf16.mxu0 0
      %1795 = vmatmul.mubr.bf16.gmra.mrb[0].mxu0 %v1757
      %v1796 = vpop.f32.mrb[0].mxu0
      %v1797 = vadd.f32 %v1755, %v1796
      %v1798 = vpop.f32.mrb[0].mxu0
      %v1799 = vpop.f32.mrb[0].mxu0
      %v1800 = vpop.f32.mrb[0].mxu0
      %1801 = vdwg.mxu0
      %v1802 = vld [vmem:[%s31] sm:$0xf]
      %v1803 = vld [vmem:[%s31 + $0x4] sm:$0xf]
      %v1804 = vld [vmem:[%s31 + $0x8] sm:$0xf]
      %v1805 = vld [vmem:[%s31 + $0xc] sm:$0xf]
      %v1806 = vld [vmem:[%s31 + $0x10] sm:$0xf]
      %v1807 = vld [vmem:[%s31 + $0x14] sm:$0xf]
      %v1808 = vld [vmem:[%s31 + $0x18] sm:$0xf]
      %v1809 = vld [vmem:[%s31 + $0x1c] sm:$0xf]
      %v1810 = vld [vmem:[%s31 + $0x20] sm:$0xf]
      %v1811 = vld [vmem:[%s31 + $0x24] sm:$0xf]
      %v1812 = vld [vmem:[%s31 + $0x28] sm:$0xf]
      %v1813 = vld [vmem:[%s31 + $0x2c] sm:$0xf]
      %v1814 = vld [vmem:[%s31 + $0x30] sm:$0xf]
      %v1815 = vld [vmem:[%s31 + $0x34] sm:$0xf]
      %v1816 = vld [vmem:[%s31 + $0x38] sm:$0xf]
      %v1817 = vld [vmem:[%s31 + $0x3c] sm:$0xf]
      %v1818 = vld [vmem:[%s31 + $0x40] sm:$0xf]
      %v1819 = vld [vmem:[%s31 + $0x44] sm:$0xf]
      %v1820 = vld [vmem:[%s31 + $0x48] sm:$0xf]
      %v1821 = vld [vmem:[%s31 + $0x4c] sm:$0xf]
      %v1822 = vld [vmem:[%s31 + $0x50] sm:$0xf]
      %v1823 = vld [vmem:[%s31 + $0x54] sm:$0xf]
      %v1824 = vld [vmem:[%s31 + $0x58] sm:$0xf]
      %v1825 = vld [vmem:[%s31 + $0x5c] sm:$0xf]
      %v1826 = vld [vmem:[%s33] sm:$0x1]
      %v1827 = vld [vmem:[%s35] sm:$0x1]
      %v1828 = vld [vmem:[%s37] sm:$0x1]
      %v1837 = vunpack.c.l.b16 %v1810
      %v1838 = vunpack.c.l.b16 %v1811
      %v1839 = vunpack.c.l.b16 %v1812
      %v1840 = vunpack.c.l.b16 %v1813
      %v1841 = vunpack.c.l.b16 %v1814
      %v1842 = vunpack.c.l.b16 %v1815
      %v1843 = vunpack.c.l.b16 %v1816
      %v1844 = vunpack.c.l.b16 %v1817
      %v1845 = vpack.c.b16 %v1838, %v1837
      %v1846 = vpack.c.b16 %v1840, %v1839
      %v1847 = vpack.c.b16 %v1842, %v1841
      %v1848 = vpack.c.b16 %v1844, %v1843
      %1853 = vmatprep.subr.bf16.mxu0 0
      %1854 = vmatpush1.bf16.msra.mxu0 %v1845
      %1855 = vmatprep.subr.bf16.mxu0 0
      %1856 = vmatpush1.bf16.msra.mxu0 %v1846
      %1857 = vmatprep.subr.bf16.mxu0 0
      %1858 = vmatpush1.bf16.msra.mxu0 %v1847
      %1859 = vmatprep.subr.bf16.mxu0 0
      %1860 = vmatpush1.bf16.msra.mxu0 %v1848
      %1861 = vmatprep.subr.bf16.mxu0 0
      %1862 = vmatpush1.bf16.msra.mxu0 0
      %1863 = vmatprep.subr.bf16.mxu0 0
      %1864 = vmatpush1.bf16.msra.mxu0 0
      %1865 = vmatprep.subr.bf16.mxu0 0
      %1866 = vmatpush1.bf16.msra.mxu0 0
      %1867 = vmatprep.subr.bf16.mxu0 0
      %1868 = vmatpush1.bf16.msra.mxu0 0
      %1869 = vmatprep.subr.bf16.mxu0 0
      %1870 = vmatpush1.bf16.msra.mxu0 0
      %1871 = vmatprep.subr.bf16.mxu0 0
      %1872 = vmatpush1.bf16.msra.mxu0 0
      %1873 = vmatprep.subr.bf16.mxu0 0
      %1874 = vmatpush1.bf16.msra.mxu0 0
      %1875 = vmatprep.subr.bf16.mxu0 0
      %1876 = vmatpush1.bf16.msra.mxu0 0
      %1877 = vmatprep.subr.bf16.mxu0 0
      %1878 = vmatpush1.bf16.msra.mxu0 0
      %1879 = vmatprep.subr.bf16.mxu0 0
      %1880 = vmatpush1.bf16.msra.mxu0 0
      %1881 = vmatprep.subr.bf16.mxu0 0
      %1882 = vmatpush1.bf16.msra.mxu0 0
      %1883 = vmatprep.subr.bf16.mxu0 0
      %1884 = vmatpush1.bf16.msra.mxu0 0
      %1885 = vmatprep.mubr.bf16.mxu0 0
      %1886 = vmatmul.mubr.bf16.gmra.mrb[0].mxu0 %v985
      %v1887 = vpop.f32.mrb[0].mxu0
      %v1888 = vadd.f32 0.0, %v1887
      %v1889 = vpop.f32.mrb[0].mxu0
      %v1890 = vpop.f32.mrb[0].mxu0
      %v1891 = vadd.f32 0.0, %v1890
      %v1892 = vpop.f32.mrb[0].mxu0
      %1893 = vdwg.mxu0
      %v1902 = vunpack.c.l.b16 %v1802
      %v1903 = vunpack.c.l.b16 %v1803
      %v1904 = vunpack.c.l.b16 %v1804
      %v1905 = vunpack.c.l.b16 %v1805
      %v1906 = vunpack.c.l.b16 %v1806
      %v1907 = vunpack.c.l.b16 %v1807
      %v1908 = vunpack.c.l.b16 %v1808
      %v1909 = vunpack.c.l.b16 %v1809
      %v1910 = vpack.c.b16 %v1903, %v1902
      %v1911 = vpack.c.b16 %v1905, %v1904
      %v1912 = vpack.c.b16 %v1907, %v1906
      %v1913 = vpack.c.b16 %v1909, %v1908
      %1918 = vmatprep.subr.bf16.mxu0 0
      %1919 = vmatpush1.bf16.msra.mxu0 %v1910
      %1920 = vmatprep.subr.bf16.mxu0 0
      %1921 = vmatpush1.bf16.msra.mxu0 %v1911
      %1922 = vmatprep.subr.bf16.mxu0 0
      %1923 = vmatpush1.bf16.msra.mxu0 %v1912
      %1924 = vmatprep.subr.bf16.mxu0 0
      %1925 = vmatpush1.bf16.msra.mxu0 %v1913
      %1926 = vmatprep.subr.bf16.mxu0 0
      %1927 = vmatpush1.bf16.msra.mxu0 0
      %1928 = vmatprep.subr.bf16.mxu0 0
      %1929 = vmatpush1.bf16.msra.mxu0 0
      %1930 = vmatprep.subr.bf16.mxu0 0
      %1931 = vmatpush1.bf16.msra.mxu0 0
      %1932 = vmatprep.subr.bf16.mxu0 0
      %1933 = vmatpush1.bf16.msra.mxu0 0
      %1934 = vmatprep.subr.bf16.mxu0 0
      %1935 = vmatpush1.bf16.msra.mxu0 0
      %1936 = vmatprep.subr.bf16.mxu0 0
      %1937 = vmatpush1.bf16.msra.mxu0 0
      %1938 = vmatprep.subr.bf16.mxu0 0
      %1939 = vmatpush1.bf16.msra.mxu0 0
      %1940 = vmatprep.subr.bf16.mxu0 0
      %1941 = vmatpush1.bf16.msra.mxu0 0
      %1942 = vmatprep.subr.bf16.mxu0 0
      %1943 = vmatpush1.bf16.msra.mxu0 0
      %1944 = vmatprep.subr.bf16.mxu0 0
      %1945 = vmatpush1.bf16.msra.mxu0 0
      %1946 = vmatprep.subr.bf16.mxu0 0
      %1947 = vmatpush1.bf16.msra.mxu0 0
      %1948 = vmatprep.subr.bf16.mxu0 0
      %1949 = vmatpush1.bf16.msra.mxu0 0
      %1950 = vmatprep.mubr.bf16.mxu0 0
      %1951 = vmatmul.mubr.bf16.gmra.mrb[0].mxu0 %v1053
      %v1952 = vpop.f32.mrb[0].mxu0
      %v1953 = vadd.f32 %v1888, %v1952
      %v1954 = vpop.f32.mrb[0].mxu0
      %v1955 = vpop.f32.mrb[0].mxu0
      %v1956 = vadd.f32 %v1891, %v1955
      %v1957 = vpop.f32.mrb[0].mxu0
      %1958 = vdwg.mxu0
      %v1967 = vunpack.c.l.b16 %v1818
      %v1968 = vunpack.c.l.b16 %v1819
      %v1969 = vunpack.c.l.b16 %v1820
      %v1970 = vunpack.c.l.b16 %v1821
      %v1971 = vunpack.c.l.b16 %v1822
      %v1972 = vunpack.c.l.b16 %v1823
      %v1973 = vunpack.c.l.b16 %v1824
      %v1974 = vunpack.c.l.b16 %v1825
      %v1975 = vpack.c.b16 %v1968, %v1967
      %v1976 = vpack.c.b16 %v1970, %v1969
      %v1977 = vpack.c.b16 %v1972, %v1971
      %v1978 = vpack.c.b16 %v1974, %v1973
      %1983 = vmatprep.subr.bf16.mxu0 0
      %1984 = vmatpush1.bf16.msra.mxu0 %v1975
      %1985 = vmatprep.subr.bf16.mxu0 0
      %1986 = vmatpush1.bf16.msra.mxu0 %v1976
      %1987 = vmatprep.subr.bf16.mxu0 0
      %1988 = vmatpush1.bf16.msra.mxu0 %v1977
      %1989 = vmatprep.subr.bf16.mxu0 0
      %1990 = vmatpush1.bf16.msra.mxu0 %v1978
      %1991 = vmatprep.subr.bf16.mxu0 0
      %1992 = vmatpush1.bf16.msra.mxu0 0
      %1993 = vmatprep.subr.bf16.mxu0 0
      %1994 = vmatpush1.bf16.msra.mxu0 0
      %1995 = vmatprep.subr.bf16.mxu0 0
      %1996 = vmatpush1.bf16.msra.mxu0 0
      %1997 = vmatprep.subr.bf16.mxu0 0
      %1998 = vmatpush1.bf16.msra.mxu0 0
      %1999 = vmatprep.subr.bf16.mxu0 0
      %2000 = vmatpush1.bf16.msra.mxu0 0
      %2001 = vmatprep.subr.bf16.mxu0 0
      %2002 = vmatpush1.bf16.msra.mxu0 0
      %2003 = vmatprep.subr.bf16.mxu0 0
      %2004 = vmatpush1.bf16.msra.mxu0 0
      %2005 = vmatprep.subr.bf16.mxu0 0
      %2006 = vmatpush1.bf16.msra.mxu0 0
      %2007 = vmatprep.subr.bf16.mxu0 0
      %2008 = vmatpush1.bf16.msra.mxu0 0
      %2009 = vmatprep.subr.bf16.mxu0 0
      %2010 = vmatpush1.bf16.msra.mxu0 0
      %2011 = vmatprep.subr.bf16.mxu0 0
      %2012 = vmatpush1.bf16.msra.mxu0 0
      %2013 = vmatprep.subr.bf16.mxu0 0
      %2014 = vmatpush1.bf16.msra.mxu0 0
      %2015 = vmatprep.mubr.bf16.mxu0 0
      %2016 = vmatmul.mubr.bf16.gmra.mrb[0].mxu0 %v1141
      %v2017 = vpop.f32.mrb[0].mxu0
      %v2018 = vadd.f32 0.0, %v2017
      %v2019 = vpop.f32.mrb[0].mxu0
      %v2020 = vpop.f32.mrb[0].mxu0
      %v2021 = vadd.f32 0.0, %v2020
      %v2022 = vpop.f32.mrb[0].mxu0
      %2023 = vdwg.mxu0
      %v2024 = vadd.f32 %v1953, %v2018
      %v2025 = vadd.f32 %v1956, %v2021
      %v2027 = vlaneseq
      %v2028 = vshrl.u32 %v2027, 7
      %v2029 = vsub.s32 0, %v2028
      %v2030 = vrot.slane %v1826, %v2029
      %v2032 = vadd.f32 %v2024, %v2030
      %v2033 = vadd.f32 %v2025, %v2030
      %v2034 = vmax.f32 %v2032, 0.0
      %v2035 = vmax.f32 %v2033, 0.0
      %v2036 = vsel %vm1196, %v2034, 0.0
      %2037 = vadd.xlane.f32.xlu0 %v2036
      %v2038 = vpop.xlane.xlu0 %2037
      %v2039 = vsel %vm1196, %v2035, 0.0
      %2040 = vadd.xlane.f32.xlu0 %v2039
      %v2041 = vpop.xlane.xlu0 %2040
      %v2042 = vmul.f32 %v2038, %v1203
      %v2043 = vmul.f32 %v2041, %v1203
      %v2044 = vsub.f32 %v2034, %v2042
      %v2045 = vsub.f32 %v2035, %v2043
      %v2046 = vmul.f32 %v2044, %v2044
      %v2047 = vmul.f32 %v2045, %v2045
      %v2048 = vsel %vm1196, %v2046, 0.0
      %2049 = vadd.xlane.f32.xlu0 %v2048
      %v2050 = vpop.xlane.xlu0 %2049
      %v2051 = vsel %vm1196, %v2047, 0.0
      %2052 = vadd.xlane.f32.xlu0 %v2051
      %v2053 = vpop.xlane.xlu0 %2052
      %v2054 = vmul.f32 %v2050, %v1203
      %v2055 = vmul.f32 %v2053, %v1203
      %v2056 = vadd.f32 %v2054, 1e-05
      %v2057 = vadd.f32 %v2055, 1e-05
      %v2058 = vrsqrt.pop %v2056
      %v2059 = vrsqrt.pop %v2057
      %v2060 = vmul.f32 %v2044, %v2058
      %v2061 = vmul.f32 %v2045, %v2059
      %v2063 = vlaneseq
      %v2064 = vshrl.u32 %v2063, 7
      %v2065 = vsub.s32 0, %v2064
      %v2066 = vrot.slane %v1827, %v2065
      %v2068 = vmul.f32 %v2060, %v2066
      %v2069 = vmul.f32 %v2061, %v2066
      %v2071 = vlaneseq
      %v2072 = vshrl.u32 %v2071, 7
      %v2073 = vsub.s32 0, %v2072
      %v2074 = vrot.slane %v1828, %v2073
      %v2076 = vadd.f32 %v2068, %v2074
      %v2077 = vadd.f32 %v2069, %v2074
      %v2078 = vld [vmem:[%s39] sm:$0xf]
      %v2079 = vld [vmem:[%s39 + $0x4] sm:$0xf]
      %v2080 = vld [vmem:[%s39 + $0x8] sm:$0xf]
      %v2081 = vld [vmem:[%s39 + $0xc] sm:$0xf]
      %v2082 = vld [vmem:[%s39 + $0x10] sm:$0xf]
      %v2083 = vld [vmem:[%s39 + $0x14] sm:$0xf]
      %v2084 = vld [vmem:[%s39 + $0x18] sm:$0xf]
      %v2085 = vld [vmem:[%s39 + $0x1c] sm:$0xf]
      %v2086 = vld [vmem:[%s39 + $0x20] sm:$0xf]
      %v2087 = vld [vmem:[%s39 + $0x24] sm:$0xf]
      %v2088 = vld [vmem:[%s39 + $0x28] sm:$0xf]
      %v2089 = vld [vmem:[%s39 + $0x2c] sm:$0xf]
      %v2090 = vld [vmem:[%s41] sm:$0x1]
      %v2091 = vld [vmem:[%s43] sm:$0x1]
      %v2092 = vld [vmem:[%s45] sm:$0x1]
      %v2093 = vrot.slane %v2076, 7
      %v2094 = vrot.slane %v2077, 7
      %v2095 = vsel %vm940, %v2093, %v2094
      %v2096 = vsel %vm940, %v2094, %v2093
      %v2097 = vsel %vm953, %v2096, 0.0
      %v2098 = vsel %vm954, %v2095, 0.0
      %v2099 = vpack.c.bf16 %v2098, %v2097
      %v2100 = vpack.c.bf16 %v2077, %v2076
      %v2105 = vunpack.c.l.b16 %v2082
      %v2106 = vunpack.c.l.b16 %v2083
      %v2107 = vunpack.c.l.b16 %v2084
      %v2108 = vunpack.c.l.b16 %v2085
      %v2109 = vpack.c.b16 %v2106, %v2105
      %v2110 = vpack.c.b16 %v2108, %v2107
      %v2114 = vsel %vm1196, %v2100, 0
      %2116 = vmatprep.subr.bf16.mxu0 0
      %2117 = vmatpush1.bf16.msra.mxu0 %v2109
      %2118 = vmatprep.subr.bf16.mxu0 0
      %2119 = vmatpush1.bf16.msra.mxu0 %v2110
      %2120 = vmatprep.subr.bf16.mxu0 0
      %2121 = vmatpush1.bf16.msra.mxu0 0
      %2122 = vmatprep.subr.bf16.mxu0 0
      %2123 = vmatpush1.bf16.msra.mxu0 0
      %2124 = vmatprep.subr.bf16.mxu0 0
      %2125 = vmatpush1.bf16.msra.mxu0 0
      %2126 = vmatprep.subr.bf16.mxu0 0
      %2127 = vmatpush1.bf16.msra.mxu0 0
      %2128 = vmatprep.subr.bf16.mxu0 0
      %2129 = vmatpush1.bf16.msra.mxu0 0
      %2130 = vmatprep.subr.bf16.mxu0 0
      %2131 = vmatpush1.bf16.msra.mxu0 0
      %2132 = vmatprep.subr.bf16.mxu0 0
      %2133 = vmatpush1.bf16.msra.mxu0 0
      %2134 = vmatprep.subr.bf16.mxu0 0
      %2135 = vmatpush1.bf16.msra.mxu0 0
      %2136 = vmatprep.subr.bf16.mxu0 0
      %2137 = vmatpush1.bf16.msra.mxu0 0
      %2138 = vmatprep.subr.bf16.mxu0 0
      %2139 = vmatpush1.bf16.msra.mxu0 0
      %2140 = vmatprep.subr.bf16.mxu0 0
      %2141 = vmatpush1.bf16.msra.mxu0 0
      %2142 = vmatprep.subr.bf16.mxu0 0
      %2143 = vmatpush1.bf16.msra.mxu0 0
      %2144 = vmatprep.subr.bf16.mxu0 0
      %2145 = vmatpush1.bf16.msra.mxu0 0
      %2146 = vmatprep.subr.bf16.mxu0 0
      %2147 = vmatpush1.bf16.msra.mxu0 0
      %2148 = vmatprep.mubr.bf16.mxu0 0
      %2149 = vmatmul.mubr.bf16.gmra.mrb[0].mxu0 %v2114
      %v2150 = vpop.f32.mrb[0].mxu0
      %v2151 = vadd.f32 0.0, %v2150
      %v2152 = vpop.f32.mrb[0].mxu0
      %v2153 = vpop.f32.mrb[0].mxu0
      %v2154 = vadd.f32 0.0, %v2153
      %v2155 = vpop.f32.mrb[0].mxu0
      %2156 = vdwg.mxu0
      %v2161 = vunpack.c.l.b16 %v2078
      %v2162 = vunpack.c.l.b16 %v2079
      %v2163 = vunpack.c.l.b16 %v2080
      %v2164 = vunpack.c.l.b16 %v2081
      %v2165 = vpack.c.b16 %v2162, %v2161
      %v2166 = vpack.c.b16 %v2164, %v2163
      %v2170 = vsel %vm1196, %v2099, 0
      %2172 = vmatprep.subr.bf16.mxu0 0
      %2173 = vmatpush1.bf16.msra.mxu0 %v2165
      %2174 = vmatprep.subr.bf16.mxu0 0
      %2175 = vmatpush1.bf16.msra.mxu0 %v2166
      %2176 = vmatprep.subr.bf16.mxu0 0
      %2177 = vmatpush1.bf16.msra.mxu0 0
      %2178 = vmatprep.subr.bf16.mxu0 0
      %2179 = vmatpush1.bf16.msra.mxu0 0
      %2180 = vmatprep.subr.bf16.mxu0 0
      %2181 = vmatpush1.bf16.msra.mxu0 0
      %2182 = vmatprep.subr.bf16.mxu0 0
      %2183 = vmatpush1.bf16.msra.mxu0 0
      %2184 = vmatprep.subr.bf16.mxu0 0
      %2185 = vmatpush1.bf16.msra.mxu0 0
      %2186 = vmatprep.subr.bf16.mxu0 0
      %2187 = vmatpush1.bf16.msra.mxu0 0
      %2188 = vmatprep.subr.bf16.mxu0 0
      %2189 = vmatpush1.bf16.msra.mxu0 0
      %2190 = vmatprep.subr.bf16.mxu0 0
      %2191 = vmatpush1.bf16.msra.mxu0 0
      %2192 = vmatprep.subr.bf16.mxu0 0
      %2193 = vmatpush1.bf16.msra.mxu0 0
      %2194 = vmatprep.subr.bf16.mxu0 0
      %2195 = vmatpush1.bf16.msra.mxu0 0
      %2196 = vmatprep.subr.bf16.mxu0 0
      %2197 = vmatpush1.bf16.msra.mxu0 0
      %2198 = vmatprep.subr.bf16.mxu0 0
      %2199 = vmatpush1.bf16.msra.mxu0 0
      %2200 = vmatprep.subr.bf16.mxu0 0
      %2201 = vmatpush1.bf16.msra.mxu0 0
      %2202 = vmatprep.subr.bf16.mxu0 0
      %2203 = vmatpush1.bf16.msra.mxu0 0
      %2204 = vmatprep.mubr.bf16.mxu0 0
      %2205 = vmatmul.mubr.bf16.gmra.mrb[0].mxu0 %v2170
      %v2206 = vpop.f32.mrb[0].mxu0
      %v2207 = vadd.f32 %v2151, %v2206
      %v2208 = vpop.f32.mrb[0].mxu0
      %v2209 = vpop.f32.mrb[0].mxu0
      %v2210 = vadd.f32 %v2154, %v2209
      %v2211 = vpop.f32.mrb[0].mxu0
      %2212 = vdwg.mxu0
      %v2213 = vrot.slane %v2076, 1
      %v2214 = vrot.slane %v2077, 1
      %v2215 = vsel %vm1098, %v2213, %v2214
      %v2216 = vsel %vm1098, %v2214, %v2213
      %v2217 = vsel %vm1111, %v2215, 0.0
      %v2218 = vsel %vm1112, %v2216, 0.0
      %v2219 = vpack.c.bf16 %v2218, %v2217
      %v2224 = vunpack.c.l.b16 %v2086
      %v2225 = vunpack.c.l.b16 %v2087
      %v2226 = vunpack.c.l.b16 %v2088
      %v2227 = vunpack.c.l.b16 %v2089
      %v2228 = vpack.c.b16 %v2225, %v2224
      %v2229 = vpack.c.b16 %v2227, %v2226
      %v2233 = vsel %vm1196, %v2219, 0
      %2235 = vmatprep.subr.bf16.mxu0 0
      %2236 = vmatpush1.bf16.msra.mxu0 %v2228
      %2237 = vmatprep.subr.bf16.mxu0 0
      %2238 = vmatpush1.bf16.msra.mxu0 %v2229
      %2239 = vmatprep.subr.bf16.mxu0 0
      %2240 = vmatpush1.bf16.msra.mxu0 0
      %2241 = vmatprep.subr.bf16.mxu0 0
      %2242 = vmatpush1.bf16.msra.mxu0 0
      %2243 = vmatprep.subr.bf16.mxu0 0
      %2244 = vmatpush1.bf16.msra.mxu0 0
      %2245 = vmatprep.subr.bf16.mxu0 0
      %2246 = vmatpush1.bf16.msra.mxu0 0
      %2247 = vmatprep.subr.bf16.mxu0 0
      %2248 = vmatpush1.bf16.msra.mxu0 0
      %2249 = vmatprep.subr.bf16.mxu0 0
      %2250 = vmatpush1.bf16.msra.mxu0 0
      %2251 = vmatprep.subr.bf16.mxu0 0
      %2252 = vmatpush1.bf16.msra.mxu0 0
      %2253 = vmatprep.subr.bf16.mxu0 0
      %2254 = vmatpush1.bf16.msra.mxu0 0
      %2255 = vmatprep.subr.bf16.mxu0 0
      %2256 = vmatpush1.bf16.msra.mxu0 0
      %2257 = vmatprep.subr.bf16.mxu0 0
      %2258 = vmatpush1.bf16.msra.mxu0 0
      %2259 = vmatprep.subr.bf16.mxu0 0
      %2260 = vmatpush1.bf16.msra.mxu0 0
      %2261 = vmatprep.subr.bf16.mxu0 0
      %2262 = vmatpush1.bf16.msra.mxu0 0
      %2263 = vmatprep.subr.bf16.mxu0 0
      %2264 = vmatpush1.bf16.msra.mxu0 0
      %2265 = vmatprep.subr.bf16.mxu0 0
      %2266 = vmatpush1.bf16.msra.mxu0 0
      %2267 = vmatprep.mubr.bf16.mxu0 0
      %2268 = vmatmul.mubr.bf16.gmra.mrb[0].mxu0 %v2233
      %v2269 = vpop.f32.mrb[0].mxu0
      %v2270 = vadd.f32 0.0, %v2269
      %v2271 = vpop.f32.mrb[0].mxu0
      %v2272 = vpop.f32.mrb[0].mxu0
      %v2273 = vadd.f32 0.0, %v2272
      %v2274 = vpop.f32.mrb[0].mxu0
      %2275 = vdwg.mxu0
      %v2276 = vadd.f32 %v2207, %v2270
      %v2277 = vadd.f32 %v2210, %v2273
      %v2279 = vlaneseq
      %v2280 = vshrl.u32 %v2279, 7
      %v2281 = vsub.s32 0, %v2280
      %v2282 = vrot.slane %v2090, %v2281
      %v2284 = vadd.f32 %v2276, %v2282
      %v2285 = vadd.f32 %v2277, %v2282
      %v2286 = vmax.f32 %v2284, 0.0
      %v2287 = vmax.f32 %v2285, 0.0
      %v2288 = vsel %vm1196, %v2286, 0.0
      %2289 = vadd.xlane.f32.xlu0 %v2288
      %v2290 = vpop.xlane.xlu0 %2289
      %v2291 = vsel %vm1196, %v2287, 0.0
      %2292 = vadd.xlane.f32.xlu0 %v2291
      %v2293 = vpop.xlane.xlu0 %2292
      %v2294 = vmul.f32 %v2290, %v1203
      %v2295 = vmul.f32 %v2293, %v1203
      %v2296 = vsub.f32 %v2286, %v2294
      %v2297 = vsub.f32 %v2287, %v2295
      %v2298 = vmul.f32 %v2296, %v2296
      %v2299 = vmul.f32 %v2297, %v2297
      %v2300 = vsel %vm1196, %v2298, 0.0
      %2301 = vadd.xlane.f32.xlu0 %v2300
      %v2302 = vpop.xlane.xlu0 %2301
      %v2303 = vsel %vm1196, %v2299, 0.0
      %2304 = vadd.xlane.f32.xlu0 %v2303
      %v2305 = vpop.xlane.xlu0 %2304
      %v2306 = vmul.f32 %v2302, %v1203
      %v2307 = vmul.f32 %v2305, %v1203
      %v2308 = vadd.f32 %v2306, 1e-05
      %v2309 = vadd.f32 %v2307, 1e-05
      %v2310 = vrsqrt.pop %v2308
      %v2311 = vrsqrt.pop %v2309
      %v2312 = vmul.f32 %v2296, %v2310
      %v2313 = vmul.f32 %v2297, %v2311
      %v2315 = vlaneseq
      %v2316 = vshrl.u32 %v2315, 7
      %v2317 = vsub.s32 0, %v2316
      %v2318 = vrot.slane %v2091, %v2317
      %v2320 = vmul.f32 %v2312, %v2318
      %v2321 = vmul.f32 %v2313, %v2318
      %v2323 = vlaneseq
      %v2324 = vshrl.u32 %v2323, 7
      %v2325 = vsub.s32 0, %v2324
      %v2326 = vrot.slane %v2092, %v2325
      %v2328 = vadd.f32 %v2320, %v2326
      %v2329 = vadd.f32 %v2321, %v2326
      %v2330 = vld [vmem:[%s47] sm:$0xf]
      %v2331 = vld [vmem:[%s47 + $0x4] sm:$0xf]
      %v2332 = vld [vmem:[%s47 + $0x8] sm:$0xf]
      %v2333 = vld [vmem:[%s47 + $0xc] sm:$0xf]
      %v2334 = vld [vmem:[%s47 + $0x10] sm:$0xf]
      %v2335 = vld [vmem:[%s47 + $0x14] sm:$0xf]
      %v2336 = vld [vmem:[%s47 + $0x18] sm:$0xf]
      %v2337 = vld [vmem:[%s47 + $0x1c] sm:$0xf]
      %v2338 = vld [vmem:[%s47 + $0x20] sm:$0xf]
      %v2339 = vld [vmem:[%s47 + $0x24] sm:$0xf]
      %v2340 = vld [vmem:[%s47 + $0x28] sm:$0xf]
      %v2341 = vld [vmem:[%s47 + $0x2c] sm:$0xf]
      %v2342 = vld [vmem:[%s49] sm:$0x1]
      %v2343 = vld [vmem:[%s51] sm:$0x1]
      %v2344 = vld [vmem:[%s53] sm:$0x1]
      %v2345 = vrot.slane %v2328, 7
      %v2346 = vrot.slane %v2329, 7
      %v2347 = vsel %vm940, %v2345, %v2346
      %v2348 = vsel %vm940, %v2346, %v2345
      %v2349 = vsel %vm953, %v2348, 0.0
      %v2350 = vsel %vm954, %v2347, 0.0
      %v2351 = vpack.c.bf16 %v2350, %v2349
      %v2352 = vpack.c.bf16 %v2329, %v2328
      %v2357 = vunpack.c.l.b16 %v2334
      %v2358 = vunpack.c.l.b16 %v2335
      %v2359 = vunpack.c.l.b16 %v2336
      %v2360 = vunpack.c.l.b16 %v2337
      %v2361 = vpack.c.b16 %v2358, %v2357
      %v2362 = vpack.c.b16 %v2360, %v2359
      %v2366 = vsel %vm1196, %v2352, 0
      %2368 = vmatprep.subr.bf16.mxu0 0
      %2369 = vmatpush1.bf16.msra.mxu0 %v2361
      %2370 = vmatprep.subr.bf16.mxu0 0
      %2371 = vmatpush1.bf16.msra.mxu0 %v2362
      %2372 = vmatprep.subr.bf16.mxu0 0
      %2373 = vmatpush1.bf16.msra.mxu0 0
      %2374 = vmatprep.subr.bf16.mxu0 0
      %2375 = vmatpush1.bf16.msra.mxu0 0
      %2376 = vmatprep.subr.bf16.mxu0 0
      %2377 = vmatpush1.bf16.msra.mxu0 0
      %2378 = vmatprep.subr.bf16.mxu0 0
      %2379 = vmatpush1.bf16.msra.mxu0 0
      %2380 = vmatprep.subr.bf16.mxu0 0
      %2381 = vmatpush1.bf16.msra.mxu0 0
      %2382 = vmatprep.subr.bf16.mxu0 0
      %2383 = vmatpush1.bf16.msra.mxu0 0
      %2384 = vmatprep.subr.bf16.mxu0 0
      %2385 = vmatpush1.bf16.msra.mxu0 0
      %2386 = vmatprep.subr.bf16.mxu0 0
      %2387 = vmatpush1.bf16.msra.mxu0 0
      %2388 = vmatprep.subr.bf16.mxu0 0
      %2389 = vmatpush1.bf16.msra.mxu0 0
      %2390 = vmatprep.subr.bf16.mxu0 0
      %2391 = vmatpush1.bf16.msra.mxu0 0
      %2392 = vmatprep.subr.bf16.mxu0 0
      %2393 = vmatpush1.bf16.msra.mxu0 0
      %2394 = vmatprep.subr.bf16.mxu0 0
      %2395 = vmatpush1.bf16.msra.mxu0 0
      %2396 = vmatprep.subr.bf16.mxu0 0
      %2397 = vmatpush1.bf16.msra.mxu0 0
      %2398 = vmatprep.subr.bf16.mxu0 0
      %2399 = vmatpush1.bf16.msra.mxu0 0
      %2400 = vmatprep.mubr.bf16.mxu0 0
      %2401 = vmatmul.mubr.bf16.gmra.mrb[0].mxu0 %v2366
      %v2402 = vpop.f32.mrb[0].mxu0
      %v2403 = vadd.f32 0.0, %v2402
      %v2404 = vpop.f32.mrb[0].mxu0
      %v2405 = vpop.f32.mrb[0].mxu0
      %v2406 = vadd.f32 0.0, %v2405
      %v2407 = vpop.f32.mrb[0].mxu0
      %2408 = vdwg.mxu0
      %v2413 = vunpack.c.l.b16 %v2330
      %v2414 = vunpack.c.l.b16 %v2331
      %v2415 = vunpack.c.l.b16 %v2332
      %v2416 = vunpack.c.l.b16 %v2333
      %v2417 = vpack.c.b16 %v2414, %v2413
      %v2418 = vpack.c.b16 %v2416, %v2415
      %v2422 = vsel %vm1196, %v2351, 0
      %2424 = vmatprep.subr.bf16.mxu0 0
      %2425 = vmatpush1.bf16.msra.mxu0 %v2417
      %2426 = vmatprep.subr.bf16.mxu0 0
      %2427 = vmatpush1.bf16.msra.mxu0 %v2418
      %2428 = vmatprep.subr.bf16.mxu0 0
      %2429 = vmatpush1.bf16.msra.mxu0 0
      %2430 = vmatprep.subr.bf16.mxu0 0
      %2431 = vmatpush1.bf16.msra.mxu0 0
      %2432 = vmatprep.subr.bf16.mxu0 0
      %2433 = vmatpush1.bf16.msra.mxu0 0
      %2434 = vmatprep.subr.bf16.mxu0 0
      %2435 = vmatpush1.bf16.msra.mxu0 0
      %2436 = vmatprep.subr.bf16.mxu0 0
      %2437 = vmatpush1.bf16.msra.mxu0 0
      %2438 = vmatprep.subr.bf16.mxu0 0
      %2439 = vmatpush1.bf16.msra.mxu0 0
      %2440 = vmatprep.subr.bf16.mxu0 0
      %2441 = vmatpush1.bf16.msra.mxu0 0
      %2442 = vmatprep.subr.bf16.mxu0 0
      %2443 = vmatpush1.bf16.msra.mxu0 0
      %2444 = vmatprep.subr.bf16.mxu0 0
      %2445 = vmatpush1.bf16.msra.mxu0 0
      %2446 = vmatprep.subr.bf16.mxu0 0
      %2447 = vmatpush1.bf16.msra.mxu0 0
      %2448 = vmatprep.subr.bf16.mxu0 0
      %2449 = vmatpush1.bf16.msra.mxu0 0
      %2450 = vmatprep.subr.bf16.mxu0 0
      %2451 = vmatpush1.bf16.msra.mxu0 0
      %2452 = vmatprep.subr.bf16.mxu0 0
      %2453 = vmatpush1.bf16.msra.mxu0 0
      %2454 = vmatprep.subr.bf16.mxu0 0
      %2455 = vmatpush1.bf16.msra.mxu0 0
      %2456 = vmatprep.mubr.bf16.mxu0 0
      %2457 = vmatmul.mubr.bf16.gmra.mrb[0].mxu0 %v2422
      %v2458 = vpop.f32.mrb[0].mxu0
      %v2459 = vadd.f32 %v2403, %v2458
      %v2460 = vpop.f32.mrb[0].mxu0
      %v2461 = vpop.f32.mrb[0].mxu0
      %v2462 = vadd.f32 %v2406, %v2461
      %v2463 = vpop.f32.mrb[0].mxu0
      %2464 = vdwg.mxu0
      %v2465 = vrot.slane %v2328, 1
      %v2466 = vrot.slane %v2329, 1
      %v2467 = vsel %vm1098, %v2465, %v2466
      %v2468 = vsel %vm1098, %v2466, %v2465
      %v2469 = vsel %vm1111, %v2467, 0.0
      %v2470 = vsel %vm1112, %v2468, 0.0
      %v2471 = vpack.c.bf16 %v2470, %v2469
      %v2476 = vunpack.c.l.b16 %v2338
      %v2477 = vunpack.c.l.b16 %v2339
      %v2478 = vunpack.c.l.b16 %v2340
      %v2479 = vunpack.c.l.b16 %v2341
      %v2480 = vpack.c.b16 %v2477, %v2476
      %v2481 = vpack.c.b16 %v2479, %v2478
      %v2485 = vsel %vm1196, %v2471, 0
      %2487 = vmatprep.subr.bf16.mxu0 0
      %2488 = vmatpush1.bf16.msra.mxu0 %v2480
      %2489 = vmatprep.subr.bf16.mxu0 0
      %2490 = vmatpush1.bf16.msra.mxu0 %v2481
      %2491 = vmatprep.subr.bf16.mxu0 0
      %2492 = vmatpush1.bf16.msra.mxu0 0
      %2493 = vmatprep.subr.bf16.mxu0 0
      %2494 = vmatpush1.bf16.msra.mxu0 0
      %2495 = vmatprep.subr.bf16.mxu0 0
      %2496 = vmatpush1.bf16.msra.mxu0 0
      %2497 = vmatprep.subr.bf16.mxu0 0
      %2498 = vmatpush1.bf16.msra.mxu0 0
      %2499 = vmatprep.subr.bf16.mxu0 0
      %2500 = vmatpush1.bf16.msra.mxu0 0
      %2501 = vmatprep.subr.bf16.mxu0 0
      %2502 = vmatpush1.bf16.msra.mxu0 0
      %2503 = vmatprep.subr.bf16.mxu0 0
      %2504 = vmatpush1.bf16.msra.mxu0 0
      %2505 = vmatprep.subr.bf16.mxu0 0
      %2506 = vmatpush1.bf16.msra.mxu0 0
      %2507 = vmatprep.subr.bf16.mxu0 0
      %2508 = vmatpush1.bf16.msra.mxu0 0
      %2509 = vmatprep.subr.bf16.mxu0 0
      %2510 = vmatpush1.bf16.msra.mxu0 0
      %2511 = vmatprep.subr.bf16.mxu0 0
      %2512 = vmatpush1.bf16.msra.mxu0 0
      %2513 = vmatprep.subr.bf16.mxu0 0
      %2514 = vmatpush1.bf16.msra.mxu0 0
      %2515 = vmatprep.subr.bf16.mxu0 0
      %2516 = vmatpush1.bf16.msra.mxu0 0
      %2517 = vmatprep.subr.bf16.mxu0 0
      %2518 = vmatpush1.bf16.msra.mxu0 0
      %2519 = vmatprep.mubr.bf16.mxu0 0
      %2520 = vmatmul.mubr.bf16.gmra.mrb[0].mxu0 %v2485
      %v2521 = vpop.f32.mrb[0].mxu0
      %v2522 = vadd.f32 0.0, %v2521
      %v2523 = vpop.f32.mrb[0].mxu0
      %v2524 = vpop.f32.mrb[0].mxu0
      %v2525 = vadd.f32 0.0, %v2524
      %v2526 = vpop.f32.mrb[0].mxu0
      %2527 = vdwg.mxu0
      %v2528 = vadd.f32 %v2459, %v2522
      %v2529 = vadd.f32 %v2462, %v2525
      %v2531 = vlaneseq
      %v2532 = vshrl.u32 %v2531, 7
      %v2533 = vsub.s32 0, %v2532
      %v2534 = vrot.slane %v2342, %v2533
      %v2536 = vadd.f32 %v2528, %v2534
      %v2537 = vadd.f32 %v2529, %v2534
      %v2538 = vmax.f32 %v2536, 0.0
      %v2539 = vmax.f32 %v2537, 0.0
      %v2540 = vsel %vm1196, %v2538, 0.0
      %2541 = vadd.xlane.f32.xlu0 %v2540
      %v2542 = vpop.xlane.xlu0 %2541
      %v2543 = vsel %vm1196, %v2539, 0.0
      %2544 = vadd.xlane.f32.xlu0 %v2543
      %v2545 = vpop.xlane.xlu0 %2544
      %v2546 = vmul.f32 %v2542, %v1203
      %v2547 = vmul.f32 %v2545, %v1203
      %v2548 = vsub.f32 %v2538, %v2546
      %v2549 = vsub.f32 %v2539, %v2547
      %v2550 = vmul.f32 %v2548, %v2548
      %v2551 = vmul.f32 %v2549, %v2549
      %v2552 = vsel %vm1196, %v2550, 0.0
      %2553 = vadd.xlane.f32.xlu0 %v2552
      %v2554 = vpop.xlane.xlu0 %2553
      %v2555 = vsel %vm1196, %v2551, 0.0
      %2556 = vadd.xlane.f32.xlu0 %v2555
      %v2557 = vpop.xlane.xlu0 %2556
      %v2558 = vmul.f32 %v2554, %v1203
      %v2559 = vmul.f32 %v2557, %v1203
      %v2560 = vadd.f32 %v2558, 1e-05
      %v2561 = vadd.f32 %v2559, 1e-05
      %v2562 = vrsqrt.pop %v2560
      %v2563 = vrsqrt.pop %v2561
      %v2564 = vmul.f32 %v2548, %v2562
      %v2565 = vmul.f32 %v2549, %v2563
      %v2567 = vlaneseq
      %v2568 = vshrl.u32 %v2567, 7
      %v2569 = vsub.s32 0, %v2568
      %v2570 = vrot.slane %v2343, %v2569
      %v2572 = vmul.f32 %v2564, %v2570
      %v2573 = vmul.f32 %v2565, %v2570
      %v2575 = vlaneseq
      %v2576 = vshrl.u32 %v2575, 7
      %v2577 = vsub.s32 0, %v2576
      %v2578 = vrot.slane %v2344, %v2577
      %v2580 = vadd.f32 %v2572, %v2578
      %v2581 = vadd.f32 %v2573, %v2578
      %v2582 = vld [vmem:[%s55] sm:$0x1]
      %v2583 = vld [vmem:[#allocation3] sm:$0x1]
      %v2584 = vpack.c.bf16 %v2581, %v2580
      %2586 = vset.pattern.permute.xlu0 0
      %2587 = vperm.xlu0 %2586, %v2583
      %v2588 = vpop.permute.xlu0 %2587
      %v2590 = vlaneseq
      %v2591 = vshrl.u32 %v2590, 7
      %v2592 = vsub.s32 0, %v2591
      %v2593 = vrot.slane %v2588, %v2592
      %v2595 = vsel %vm1196, %v2582, 0
      %v2598 = vsel %vm1196, %v2584, 0
      %2600 = vmatprep.subr.bf16.mxu0 0
      %2601 = vmatpush1.bf16.xpose.msra.mxu0 %v2598
      %2602 = vmatprep.subr.bf16.mxu0 0
      %2603 = vmatpush1.bf16.xpose.msra.mxu0 0
      %2604 = vmatprep.subr.bf16.mxu0 0
      %2605 = vmatpush1.bf16.xpose.msra.mxu0 0
      %2606 = vmatprep.subr.bf16.mxu0 0
      %2607 = vmatpush1.bf16.xpose.msra.mxu0 0
      %2608 = vmatprep.subr.bf16.mxu0 0
      %2609 = vmatpush1.bf16.xpose.msra.mxu0 0
      %2610 = vmatprep.subr.bf16.mxu0 0
      %2611 = vmatpush1.bf16.xpose.msra.mxu0 0
      %2612 = vmatprep.subr.bf16.mxu0 0
      %2613 = vmatpush1.bf16.xpose.msra.mxu0 0
      %2614 = vmatprep.subr.bf16.mxu0 0
      %2615 = vmatpush1.bf16.xpose.msra.mxu0 0
      %2616 = vmatprep.subr.bf16.mxu0 0
      %2617 = vmatpush1.bf16.xpose.msra.mxu0 0
      %2618 = vmatprep.subr.bf16.mxu0 0
      %2619 = vmatpush1.bf16.xpose.msra.mxu0 0
      %2620 = vmatprep.subr.bf16.mxu0 0
      %2621 = vmatpush1.bf16.xpose.msra.mxu0 0
      %2622 = vmatprep.subr.bf16.mxu0 0
      %2623 = vmatpush1.bf16.xpose.msra.mxu0 0
      %2624 = vmatprep.subr.bf16.mxu0 0
      %2625 = vmatpush1.bf16.xpose.msra.mxu0 0
      %2626 = vmatprep.subr.bf16.mxu0 0
      %2627 = vmatpush1.bf16.xpose.msra.mxu0 0
      %2628 = vmatprep.subr.bf16.mxu0 0
      %2629 = vmatpush1.bf16.xpose.msra.mxu0 0
      %2630 = vmatprep.subr.bf16.mxu0 0
      %2631 = vmatpush1.bf16.xpose.msra.mxu0 0
      %2632 = vmatprep.mubr.bf16.mxu0 0
      %2633 = vmatmul.mubr.bf16.gmra.mrb[0].mxu0 %v2595
      %v2634 = vpop.f32.mrb[0].mxu0
      %v2635 = vadd.f32 %v2593, %v2634
      %v2636 = vpop.f32.mrb[0].mxu0
      %v2637 = vpop.f32.mrb[0].mxu0
      %v2638 = vpop.f32.mrb[0].mxu0
      %2639 = vdwg.mxu0
      %v2641 = vrot.slane %v2635, 7
      %vm2643 = vcmask 1040384
      %v2644 = vsel %vm2643, %v1797, %v2641
      %vm2645 = vcmask 123904
      %2646 = vst.msk [vmem:[%s904] sm:$0x3] %vm2645, %v2644
      %p2647 = scmp.lt.s32.totalorder %s74, 1
      %s2648 = scalar_select %p2647, %s74, 1
      %s2649 = smul.addr %s2648, 2
      %s2650 = scalar_lea.vmem %s59, %s2649
      // Predicated region
      $region137: #{joint_estimator_forward.5} parent=135 // pred_check
        %p2651 = pneg %p706
      $region138: #{joint_estimator_forward.5} parent=135 // pred_check_branch
        %2653 = sbr.rel (%p2651) target = $region140
      $region139: #{joint_estimator_forward.5} parent=135 // pred_region
        _
      $region140: #{joint_estimator_forward.5} parent=135 // pred_fallthru
        _
    $region136: #{joint_estimator_forward.5} parent=5 // pred_fallthru
      _
    %p2654 = scmp.le.s32.totalorder 2, %s69
    // Predicated region
    $region141: #{joint_estimator_forward.5} parent=5 // pred_check
      %p2655 = pneg %p2654
    $region142: #{joint_estimator_forward.5} parent=5 // pred_check_branch
      %2657 = sbr.rel (%p2655) target = $region144
    $region143: #{joint_estimator_forward.5} parent=5 // pred_region
      %s2658 = ssub.s32 %s69, 2
      // Predicated region
      $region145: #{joint_estimator_forward.5} parent=143 // pred_check
        %p2659 = pneg %p712
      $region146: #{joint_estimator_forward.5} parent=143 // pred_check_branch
        %2661 = sbr.rel (%p2659) target = $region148
      $region147: #{joint_estimator_forward.5} parent=143 // pred_region
        %p2662 = scmp.lt.s32.totalorder %s75, 1
        %s2663 = scalar_select %p2662, %s75, 1
        %s2664 = smul.addr %s2663, 2
        %s2665 = scalar_lea.vmem %s59, %s2664
      $region148: #{joint_estimator_forward.5} parent=143 // pred_fallthru
        _
    $region144: #{joint_estimator_forward.5} parent=5 // pred_fallthru
      _
  $region6: #{joint_estimator_forward.5} parent=0 // loop_footer
    %s73 = sadd.s32 1, %s69
  $region7: #{joint_estimator_forward.5} parent=0 // loop_footer_branch
    %68 = sbr.rel target = $region3
  $region8: #{joint_estimator_forward.5} parent=0 // loop_exit
    _

</llo_original>
